<compile_context>
chip_gen: v7x
topology: tpu7x:2x2x1
jax: 0.10.0
libtpu: 0.0.40
codegen_flags: <defaults>
</compile_context>

<pallas_src>
import functools

import jax
import jax.numpy as jnp
from jax.experimental import pallas as pl
from jax.experimental.pallas import tpu as pltpu

_EPS = 1e-5  # nn.BatchNorm2d default eps


def _vmem_limit_bytes():
    """Scoped-VMEM limit with headroom, derived from the actual chip."""
    try:
        cap = int(getattr(pltpu.get_tpu_info(), "vmem_capacity_bytes",
                          64 * 1024 * 1024))
    except Exception:
        cap = 64 * 1024 * 1024          # conservative (v7x-sized) fallback
    return max((cap * 3) // 4, 32 * 1024 * 1024)


_VMEM_LIMIT = _vmem_limit_bytes()


# ---------------------------------------------------------------------------
# 3x3 conv (pad=1, no bias) over one row-tile, with optional fused per-channel
# scale/shift + ReLU applied to the *input* (fuses BN1+ReLU into conv2), plus
# per-(batch, cout-block) [sum, sum_sq] accumulation for BatchNorm.
#
# Grid = (N, CB, T); the s axis (row tiles) is sequential ("arbitrary"): a
# persistent VMEM sliding window of TH+2 zero-padded rows carries the top halo
# row from the previous tile, and the bottom halo row is fetched via a tiny
# clamped-index BlockSpec — no jnp.pad, no overlapping blocks, no manual DMA.
# ---------------------------------------------------------------------------
def _conv3x3_kernel(x_ref, hb_ref, w_ref, scale_ref, shift_ref,   # inputs
                    y_ref, stats_ref,                             # outputs
                    win_ref,                                      # VMEM scratch
                    *, preact: bool):
    # x_ref:     (1, TH, W, Cin)  bf16 input rows [s*TH, (s+1)*TH)
    # hb_ref:    (1, 1, W, Cin)   bf16 bottom-halo row (row (s+1)*TH, clamped)
    # w_ref:     (9*Cin, TC)      bf16 weights, tap-major: k = (kh*3+kw)*Cin+ci
    # scale_ref: (1, Cin) f32     BN fold of the input channel (iff preact)
    # shift_ref: (1, Cin) f32
    # y_ref:     (1, TH, W, TC)   bf16 raw conv output (pre-BN)
    # stats_ref: (1, 2, TC) f32   per-(batch, cout-block) [sum, sum_sq] accum
    # win_ref:   (TH+2, W+2, Cin) bf16 sliding zero-padded window
    s = pl.program_id(2)
    T = pl.num_programs(2)
    _, TH, W, Cin = x_ref.shape
    TC = w_ref.shape[1]

    xb = x_ref[0]                                    # (TH, W, Cin) bf16
    hb = hb_ref[0]                                   # (1, W, Cin)  bf16
    if preact:                                       # fused BN1 + ReLU (f32 math)
        sc = scale_ref[...]
        sh = shift_ref[...]
        xb = jnp.maximum(xb.astype(jnp.float32) * sc + sh, 0.0).astype(jnp.bfloat16)
        hb = jnp.maximum(hb.astype(jnp.float32) * sc + sh, 0.0).astype(jnp.bfloat16)

    # --- window maintenance -------------------------------------------------
    @pl.when(s == 0)
    def _():   # zero top halo row + the two padded columns once per s sweep;
        #        interior writes below never touch them again.
        win_ref[0:1, :, :] = jnp.zeros((1, W + 2, Cin), jnp.bfloat16)
        win_ref[:, 0:1, :] = jnp.zeros((TH + 2, 1, Cin), jnp.bfloat16)
        win_ref[:, W + 1:W + 2, :] = jnp.zeros((TH + 2, 1, Cin), jnp.bfloat16)

    @pl.when(s > 0)
    def _():   # top halo = last interior row of the previous tile (resident)
        win_ref[0:1, :, :] = win_ref[TH:TH + 1, :, :]

    win_ref[1:TH + 1, 1:W + 1, :] = xb

    @pl.when(s < T - 1)
    def _():
        win_ref[TH + 1:TH + 2, 1:W + 1, :] = hb

    @pl.when(s == T - 1)
    def _():
        win_ref[TH + 1:TH + 2, 1:W + 1, :] = jnp.zeros((1, W, Cin), jnp.bfloat16)

    # --- 3x3 conv: 9 accumulated MXU matmuls (no im2col scratch) ------------
    acc = None
    for kh in range(3):
        for kw in range(3):
            tap = kh * 3 + kw
            lhs = win_ref[kh:kh + TH, kw:kw + W, :].reshape(TH * W, Cin)
            part = jnp.dot(lhs, w_ref[tap * Cin:(tap + 1) * Cin, :],
                           preferred_element_type=jnp.float32)
            acc = part if acc is None else acc + part

    y_ref[...] = acc.reshape(1, TH, W, TC).astype(y_ref.dtype)

    # --- BN statistics, accumulated across the s sweep ----------------------
    ssum = jnp.sum(acc, axis=0, keepdims=True)        # (1, TC)
    ssq = jnp.sum(acc * acc, axis=0, keepdims=True)   # (1, TC)
    st = jnp.concatenate([ssum, ssq], axis=0).reshape(1, 2, TC)

    @pl.when(s == 0)
    def _():
        stats_ref[...] = st

    @pl.when(s > 0)
    def _():
        stats_ref[...] += st


def _conv3x3_bn_stats(x, wmat, scale, shift, *, th, tc, preact):
    """3x3 conv (pad=1, no bias) of NHWC `x` + per-batch BN statistics."""
    N, H, W, Cin = x.shape
    Cout = wmat.shape[1]
    assert H % th == 0 and Cout % tc == 0
    T = H // th
    CB = Cout // tc

    kernel = functools.partial(_conv3x3_kernel, preact=preact)
    y, stats = pl.pallas_call(
        kernel,
        grid=(N, CB, T),
        in_specs=[
            pl.BlockSpec((1, th, W, Cin), lambda n, cb, s: (n, s, 0, 0)),
            # bottom halo row: row (s+1)*th, clamped (zeroed in-kernel at s==T-1)
            pl.BlockSpec((1, 1, W, Cin),
                         lambda n, cb, s: (n, jnp.minimum((s + 1) * th, H - 1), 0, 0)),
            pl.BlockSpec((9 * Cin, tc), lambda n, cb, s: (0, cb)),   # weight slab
            pl.BlockSpec((1, Cin), lambda n, cb, s: (0, 0)),
            pl.BlockSpec((1, Cin), lambda n, cb, s: (0, 0)),
        ],
        out_specs=[
            pl.BlockSpec((1, th, W, tc), lambda n, cb, s: (n, s, 0, cb)),
            pl.BlockSpec((1, 2, tc), lambda n, cb, s: (n, 0, cb)),   # accumulator
        ],
        out_shape=[
            jax.ShapeDtypeStruct((N, H, W, Cout), jnp.bfloat16),
            jax.ShapeDtypeStruct((N, 2, Cout), jnp.float32),
        ],
        scratch_shapes=[pltpu.VMEM((th + 2, W + 2, Cin), jnp.bfloat16)],
        compiler_params=pltpu.CompilerParams(
            dimension_semantics=("parallel", "parallel", "arbitrary"),
            vmem_limit_bytes=_VMEM_LIMIT),
    )(x, x, wmat, scale, shift)
    return y, stats


# ---------------------------------------------------------------------------
# BN2 + ReLU, lane-dense: operates on the collapsed (N, H, W*C) layout so both
# loads and stores use full 128-lane vectors even for small channel counts.
# ---------------------------------------------------------------------------
def _bn_relu_kernel(y_ref, scale_ref, shift_ref, o_ref):
    v = y_ref[...].astype(jnp.float32) * scale_ref[...] + shift_ref[...]
    o_ref[...] = jnp.maximum(v, 0.0)


def _bn_relu(y, scale, shift, *, th):
    N, H, W, C = y.shape
    WC = W * C
    yf = y.reshape(N, H, WC)                  # free reshape (contiguous minors)
    scale_t = jnp.tile(scale, (1, W))         # (1, W*C), channel-fastest
    shift_t = jnp.tile(shift, (1, W))
    T = H // th
    out = pl.pallas_call(
        _bn_relu_kernel,
        grid=(N, T),
        in_specs=[
            pl.BlockSpec((1, th, WC), lambda n, t: (n, t, 0)),
            pl.BlockSpec((1, WC), lambda n, t: (0, 0)),
            pl.BlockSpec((1, WC), lambda n, t: (0, 0)),
        ],
        out_specs=pl.BlockSpec((1, th, WC), lambda n, t: (n, t, 0)),
        out_shape=jax.ShapeDtypeStruct((N, H, WC), jnp.float32),
        compiler_params=pltpu.CompilerParams(
            dimension_semantics=("parallel", "parallel"),
            vmem_limit_bytes=_VMEM_LIMIT),
    )(yf, scale_t, shift_t)
    return out.reshape(N, H, W, C)


# ---------------------------------------------------------------------------
# Folds / packing / tile sizing helpers
# ---------------------------------------------------------------------------
def _fold_bn(stats, gamma, beta, count):
    """Per-batch [sum, sum_sq] -> per-channel (scale, shift) for y*scale+shift.
    NOTE: E[x^2]-E[x]^2 in f32; adequate here, Welford would be safer at depth."""
    s = jnp.sum(stats.astype(jnp.float32), axis=0)        # (2, C)
    mean = s[0] / count
    var = jnp.maximum(s[1] / count - mean * mean, 0.0)    # biased batch variance
    scale = gamma.astype(jnp.float32) * jax.lax.rsqrt(var + _EPS)
    shift = beta.astype(jnp.float32) - mean * scale
    return scale.reshape(1, -1), shift.reshape(1, -1)


def _pack_weight(w):
    """PyTorch conv weight (Cout, Cin, 3, 3) -> tap-major (9*Cin, Cout) bf16."""
    cout, cin = w.shape[0], w.shape[1]
    return (jnp.transpose(w, (2, 3, 1, 0))
            .reshape(9 * cin, cout).astype(jnp.bfloat16))


def _pick_cout_block(cout):
    """Cout slab per grid step (bounds weight/output residency on v7x)."""
    if cout <= 256:
        return cout
    for tc in (256, 128):
        if cout % tc == 0:
            return tc
    return cout


def _pick_conv_rows(H, W, Cin, tc):
    """Largest divisor of H whose full conv working set fits the VMEM budget."""
    budget = max(_VMEM_LIMIT - 4 * 9 * Cin * tc - (8 << 20), 4 << 20)
    best = 1
    for th in range(1, H + 1):
        if H % th:
            continue
        win = (th + 2) * (W + 2) * Cin * 2        # sliding window (bf16)
        x_blk = 2 * (th + 1) * W * Cin * 2        # double-buffered input + halo
        y_blk = 2 * th * W * tc * 2               # double-buffered output
        acc = th * W * tc * 4                     # f32 accumulator
        tmp = 2 * th * W * Cin * 2                # matmul-operand relayout temps
        if win + x_blk + y_blk + acc + tmp <= budget:
            best = th
    return best


def _pick_bn_rows(H, WC):
    """Largest row tile for the elementwise pass (keeps (8,128) block rules)."""
    budget = max(_VMEM_LIMIT - (8 << 20), 4 << 20)
    cands = [t for t in range(1, H + 1) if H % t == 0 and (t == H or t % 8 == 0)]
    best = cands[0]
    for th in cands:
        if 2 * th * WC * (2 + 4) <= budget:       # bf16 in (2x) + f32 out (2x)
            best = th
    return best


# ---------------------------------------------------------------------------
# DoubleConv forward
# ---------------------------------------------------------------------------
@functools.partial(jax.jit, static_argnames=("row_tile",))
def double_conv(x_nchw, params, row_tile=None):
    """DoubleConv forward.  x_nchw: (N, Cin, H, W) f32 -> (N, Cout, H, W) f32."""
    w1, b1, g1, be1, w2, b2, g2, be2 = params
    # Conv biases are a per-channel constant added before training-mode BN and
    # are exactly cancelled by the batch-mean subtraction -> dropped.
    del b1, b2
    N, Cin, H, W = x_nchw.shape
    Cmid = w1.shape[0]
    Cout = w2.shape[0]
    count = N * H * W

    tc1 = _pick_cout_block(Cmid)
    tc2 = _pick_cout_block(Cout)
    if row_tile is None:
        th1 = _pick_conv_rows(H, W, Cin, tc1)
        th2 = _pick_conv_rows(H, W, Cmid, tc2)
    else:
        assert H % row_tile == 0
        th1 = th2 = row_tile

    # TODO(synk): in a full UNet keep activations NHWC (and bf16) end-to-end so
    # these entry/exit layout round trips (one extra HBM pass each) disappear.
    x = jnp.transpose(x_nchw, (0, 2, 3, 1)).astype(jnp.bfloat16)
    w1m = _pack_weight(w1)
    w2m = _pack_weight(w2)

    # conv1 (+ BN1 partial stats)
    one = jnp.ones((1, Cin), jnp.float32)
    zero = jnp.zeros((1, Cin), jnp.float32)
    y1, st1 = _conv3x3_bn_stats(x, w1m, one, zero, th=th1, tc=tc1, preact=False)
    scale1, shift1 = _fold_bn(st1, g1, be1, count)

    # BN1 + ReLU fused into conv2's input path (+ BN2 partial stats)
    y2, st2 = _conv3x3_bn_stats(y1, w2m, scale1, shift1, th=th2, tc=tc2, preact=True)
    scale2, shift2 = _fold_bn(st2, g2, be2, count)

    # BN2 + ReLU (lane-dense collapsed layout, own larger tile)
    out = _bn_relu(y2, scale2, shift2, th=_pick_bn_rows(H, W * Cout))

    # TODO(synk): nn.BatchNorm2d also updates running_mean/running_var in
    # training mode; this forward-only kernel does not maintain that state.
    return jnp.transpose(out, (0, 3, 1, 2))


def init_params(key, in_channels, out_channels, mid_channels=None):
    if not mid_channels:
        mid_channels = out_channels
    k = jax.random.split(key, 8)
    w1 = 0.1 * jax.random.normal(k[0], (mid_channels, in_channels, 3, 3), jnp.float32)
    b1 = 0.1 * jax.random.normal(k[1], (mid_channels,), jnp.float32)
    g1 = 1.0 + 0.1 * jax.random.normal(k[2], (mid_channels,), jnp.float32)
    be1 = 0.1 * jax.random.normal(k[3], (mid_channels,), jnp.float32)
    w2 = 0.1 * jax.random.normal(k[4], (out_channels, mid_channels, 3, 3), jnp.float32)
    b2 = 0.1 * jax.random.normal(k[5], (out_channels,), jnp.float32)
    g2 = 1.0 + 0.1 * jax.random.normal(k[6], (out_channels,), jnp.float32)
    be2 = 0.1 * jax.random.normal(k[7], (out_channels,), jnp.float32)
    return (w1, b1, g1, be1, w2, b2, g2, be2)


def _reference(x_nchw, params):
    """Pure-JAX f32 reference of the PyTorch module (training-mode BN)."""
    w1, b1, g1, be1, w2, b2, g2, be2 = params

    def block(x, w, b, g, be):
        y = jax.lax.conv_general_dilated(
            x, jnp.transpose(w, (2, 3, 1, 0)), window_strides=(1, 1),
            padding=((1, 1), (1, 1)),
            dimension_numbers=("NHWC", "HWIO", "NHWC")) + b
        mean = jnp.mean(y, axis=(0, 1, 2))
        var = jnp.mean((y - mean) ** 2, axis=(0, 1, 2))
        return jnp.maximum((y - mean) * jax.lax.rsqrt(var + _EPS) * g + be, 0.0)

    x = jnp.transpose(x_nchw, (0, 2, 3, 1)).astype(jnp.float32)
    h = block(x, w1, b1, g1, be1)
    h = block(h, w2, b2, g2, be2)
    return jnp.transpose(h, (0, 3, 1, 2))


if __name__ == "__main__":
    key = jax.random.PRNGKey(0)
    kx, kp = jax.random.split(key)

    N, Cin, H, W = 2, 4, 16, 16
    Cout = 8
    x = jax.random.normal(kx, (N, Cin, H, W), jnp.float32)
    params = init_params(kp, Cin, Cout)

    ref = _reference(x, params)

    # Auto-sized tiles (whole image per row tile at these demo shapes).
    out = double_conv(x, params)
    jax.block_until_ready(out)
    assert out.shape == (N, Cout, H, W), out.shape
    err = float(jnp.max(jnp.abs(out - ref)))
    # bf16 MXU path / bf16 intermediates on unit-variance BN outputs: allow a
    # few 1e-2 of abs error; structural bugs would produce O(1) errors.
    assert err < 0.25, f"max abs error vs reference (auto tile): {err}"

    # Forced small row tile: exercises the sliding-window halo carry (T = 4).
    out_small = double_conv(x, params, row_tile=4)
    jax.block_until_ready(out_small)
    err_small = float(jnp.max(jnp.abs(out_small - ref)))
    assert err_small < 0.25, f"max abs error vs reference (row_tile=4): {err_small}"

    print("KERNEL_OK")
</pallas_src>

<mosaic_0001>
module attributes {stable_mosaic.version = 11 : i64} {
  func.func @_conv3x3_kernel(%arg0: i32, %arg1: i32, %arg2: i32, %arg3: memref<1x16x16x4xbf16, #tpu.memory_space<vmem>>, %arg4: memref<1x1x16x4xbf16, #tpu.memory_space<vmem>>, %arg5: memref<36x8xbf16, #tpu.memory_space<vmem>>, %arg6: memref<1x4xf32, #tpu.memory_space<vmem>>, %arg7: memref<1x4xf32, #tpu.memory_space<vmem>>, %arg8: memref<1x16x16x8xbf16, #tpu.memory_space<vmem>>, %arg9: memref<1x2x8xf32, #tpu.memory_space<vmem>>, %arg10: memref<18x18x4xbf16, #tpu.memory_space<vmem>>) attributes {dimension_semantics = [#tpu.dimension_semantics<parallel>, #tpu.dimension_semantics<parallel>, #tpu.dimension_semantics<arbitrary>], iteration_bounds = array<i64: 2, 1, 1>, scalar_prefetch = 0 : i64, scratch_operands = 1 : i64, tpu.core_type = #tpu.core_type<tc>, window_params = [{transform_indices = @transform_0, window_bounds = array<i64: 1, 16, 16, 4>}, {transform_indices = @transform_1, window_bounds = array<i64: 1, 1, 16, 4>}, {transform_indices = @transform_2, window_bounds = array<i64: 36, 8>}, {pipeline_mode = #tpu.pipeline_mode<synchronous>, transform_indices = @transform_3, window_bounds = array<i64: 1, 4>}, {pipeline_mode = #tpu.pipeline_mode<synchronous>, transform_indices = @transform_4, window_bounds = array<i64: 1, 4>}, {transform_indices = @transform_5, window_bounds = array<i64: 1, 16, 16, 8>}, {transform_indices = @transform_6, window_bounds = array<i64: 1, 2, 8>}]} {
    %c0 = arith.constant 0 : index
    %c0_0 = arith.constant 0 : index
    %c0_1 = arith.constant 0 : index
    %c0_2 = arith.constant 0 : index
    %0 = vector.load %arg3[%c0, %c0_0, %c0_1, %c0_2] : memref<1x16x16x4xbf16, #tpu.memory_space<vmem>>, vector<1x16x16x4xbf16>
    %1 = vector.shape_cast %0 : vector<1x16x16x4xbf16> to vector<16x16x4xbf16>
    %c0_3 = arith.constant 0 : index
    %c0_4 = arith.constant 0 : index
    %c0_5 = arith.constant 0 : index
    %c0_6 = arith.constant 0 : index
    %2 = vector.load %arg4[%c0_3, %c0_4, %c0_5, %c0_6] : memref<1x1x16x4xbf16, #tpu.memory_space<vmem>>, vector<1x1x16x4xbf16>
    %3 = vector.shape_cast %2 : vector<1x1x16x4xbf16> to vector<1x16x4xbf16>
    %c0_i32 = arith.constant 0 : i32
    %4 = arith.cmpi eq, %arg2, %c0_i32 : i32
    %5 = arith.extui %4 : i1 to i32
    %c0_i32_7 = arith.constant 0 : i32
    %6 = arith.cmpi ne, %5, %c0_i32_7 : i32
    scf.if %6 {
      %cst_70 = arith.constant 0.000000e+00 : bf16
      %77 = vector.broadcast %cst_70 : bf16 to vector<1x18x4xbf16>
      %c0_71 = arith.constant 0 : index
      %c0_72 = arith.constant 0 : index
      %c0_73 = arith.constant 0 : index
      %78 = vector.load %arg10[%c0_71, %c0_72, %c0_73] : memref<18x18x4xbf16, #tpu.memory_space<vmem>>, vector<1x18x4xbf16>
      tpu.vector_store %arg10[%c0_71, %c0_72, %c0_73], %77 {strides = array<i32>} : memref<18x18x4xbf16, #tpu.memory_space<vmem>>, vector<1x18x4xbf16>,
      %cst_74 = arith.constant 0.000000e+00 : bf16
      %79 = vector.broadcast %cst_74 : bf16 to vector<18x1x4xbf16>
      %c0_75 = arith.constant 0 : index
      %c0_76 = arith.constant 0 : index
      %c0_77 = arith.constant 0 : index
      %80 = vector.load %arg10[%c0_75, %c0_76, %c0_77] : memref<18x18x4xbf16, #tpu.memory_space<vmem>>, vector<18x1x4xbf16>
      tpu.vector_store %arg10[%c0_75, %c0_76, %c0_77], %79 {strides = array<i32>} : memref<18x18x4xbf16, #tpu.memory_space<vmem>>, vector<18x1x4xbf16>,
      %cst_78 = arith.constant 0.000000e+00 : bf16
      %81 = vector.broadcast %cst_78 : bf16 to vector<18x1x4xbf16>
      %c0_79 = arith.constant 0 : index
      %c17 = arith.constant 17 : index
      %c0_80 = arith.constant 0 : index
      %82 = vector.load %arg10[%c0_79, %c17, %c0_80] : memref<18x18x4xbf16, #tpu.memory_space<vmem>>, vector<18x1x4xbf16>
      tpu.vector_store %arg10[%c0_79, %c17, %c0_80], %81 {strides = array<i32>} : memref<18x18x4xbf16, #tpu.memory_space<vmem>>, vector<18x1x4xbf16>,
    } else {
    }
    %c0_i32_8 = arith.constant 0 : i32
    %7 = arith.cmpi sgt, %arg2, %c0_i32_8 : i32
    %8 = arith.extui %7 : i1 to i32
    %c0_i32_9 = arith.constant 0 : i32
    %9 = arith.cmpi ne, %8, %c0_i32_9 : i32
    scf.if %9 {
      %c16_70 = arith.constant 16 : index
      %c0_71 = arith.constant 0 : index
      %c0_72 = arith.constant 0 : index
      %77 = vector.load %arg10[%c16_70, %c0_71, %c0_72] : memref<18x18x4xbf16, #tpu.memory_space<vmem>>, vector<1x18x4xbf16>
      %c0_73 = arith.constant 0 : index
      %c0_74 = arith.constant 0 : index
      %c0_75 = arith.constant 0 : index
      %78 = vector.load %arg10[%c0_73, %c0_74, %c0_75] : memref<18x18x4xbf16, #tpu.memory_space<vmem>>, vector<1x18x4xbf16>
      tpu.vector_store %arg10[%c0_73, %c0_74, %c0_75], %77 {strides = array<i32>} : memref<18x18x4xbf16, #tpu.memory_space<vmem>>, vector<1x18x4xbf16>,
    } else {
    }
    %c1 = arith.constant 1 : index
    %c1_10 = arith.constant 1 : index
    %c0_11 = arith.constant 0 : index
    %10 = vector.load %arg10[%c1, %c1_10, %c0_11] : memref<18x18x4xbf16, #tpu.memory_space<vmem>>, vector<16x16x4xbf16>
    tpu.vector_store %arg10[%c1, %c1_10, %c0_11], %1 {strides = array<i32>} : memref<18x18x4xbf16, #tpu.memory_space<vmem>>, vector<16x16x4xbf16>,
    %c0_i32_12 = arith.constant 0 : i32
    %11 = arith.cmpi slt, %arg2, %c0_i32_12 : i32
    %12 = arith.extui %11 : i1 to i32
    %c0_i32_13 = arith.constant 0 : i32
    %13 = arith.cmpi ne, %12, %c0_i32_13 : i32
    scf.if %13 {
      %c17 = arith.constant 17 : index
      %c1_70 = arith.constant 1 : index
      %c0_71 = arith.constant 0 : index
      %77 = vector.load %arg10[%c17, %c1_70, %c0_71] : memref<18x18x4xbf16, #tpu.memory_space<vmem>>, vector<1x16x4xbf16>
      tpu.vector_store %arg10[%c17, %c1_70, %c0_71], %3 {strides = array<i32>} : memref<18x18x4xbf16, #tpu.memory_space<vmem>>, vector<1x16x4xbf16>,
    } else {
    }
    %c0_i32_14 = arith.constant 0 : i32
    %14 = arith.cmpi eq, %arg2, %c0_i32_14 : i32
    %15 = arith.extui %14 : i1 to i32
    %c0_i32_15 = arith.constant 0 : i32
    %16 = arith.cmpi ne, %15, %c0_i32_15 : i32
    scf.if %16 {
      %cst_70 = arith.constant 0.000000e+00 : bf16
      %77 = vector.broadcast %cst_70 : bf16 to vector<1x16x4xbf16>
      %c17 = arith.constant 17 : index
      %c1_71 = arith.constant 1 : index
      %c0_72 = arith.constant 0 : index
      %78 = vector.load %arg10[%c17, %c1_71, %c0_72] : memref<18x18x4xbf16, #tpu.memory_space<vmem>>, vector<1x16x4xbf16>
      tpu.vector_store %arg10[%c17, %c1_71, %c0_72], %77 {strides = array<i32>} : memref<18x18x4xbf16, #tpu.memory_space<vmem>>, vector<1x16x4xbf16>,
    } else {
    }
    %c0_16 = arith.constant 0 : index
    %c0_17 = arith.constant 0 : index
    %c0_18 = arith.constant 0 : index
    %17 = vector.load %arg10[%c0_16, %c0_17, %c0_18] : memref<18x18x4xbf16, #tpu.memory_space<vmem>>, vector<16x16x4xbf16>
    %18 = vector.shape_cast %17 : vector<16x16x4xbf16> to vector<256x4xbf16>
    %c0_19 = arith.constant 0 : index
    %c0_20 = arith.constant 0 : index
    %19 = vector.load %arg5[%c0_19, %c0_20] : memref<36x8xbf16, #tpu.memory_space<vmem>>, vector<4x8xbf16>
    %cst = arith.constant dense<0.000000e+00> : vector<256x8xf32>
    %20 = tpu.matmul %18, %19, %cst {dimension_numbers = #tpu.dot_dimension_numbers<[1], [0], [0], [1], [0, 0, 1, 1], [], []>} : vector<256x4xbf16>, vector<4x8xbf16>, vector<256x8xf32> -> vector<256x8xf32>
    %c0_21 = arith.constant 0 : index
    %c1_22 = arith.constant 1 : index
    %c0_23 = arith.constant 0 : index
    %21 = vector.load %arg10[%c0_21, %c1_22, %c0_23] : memref<18x18x4xbf16, #tpu.memory_space<vmem>>, vector<16x16x4xbf16>
    %22 = vector.shape_cast %21 : vector<16x16x4xbf16> to vector<256x4xbf16>
    %c4 = arith.constant 4 : index
    %c0_24 = arith.constant 0 : index
    %23 = vector.load %arg5[%c4, %c0_24] : memref<36x8xbf16, #tpu.memory_space<vmem>>, vector<4x8xbf16>
    %cst_25 = arith.constant dense<0.000000e+00> : vector<256x8xf32>
    %24 = tpu.matmul %22, %23, %cst_25 {dimension_numbers = #tpu.dot_dimension_numbers<[1], [0], [0], [1], [0, 0, 1, 1], [], []>} : vector<256x4xbf16>, vector<4x8xbf16>, vector<256x8xf32> -> vector<256x8xf32>
    %25 = arith.addf %20, %24 : vector<256x8xf32>
    %c0_26 = arith.constant 0 : index
    %c2 = arith.constant 2 : index
    %c0_27 = arith.constant 0 : index
    %26 = vector.load %arg10[%c0_26, %c2, %c0_27] : memref<18x18x4xbf16, #tpu.memory_space<vmem>>, vector<16x16x4xbf16>
    %27 = vector.shape_cast %26 : vector<16x16x4xbf16> to vector<256x4xbf16>
    %c8 = arith.constant 8 : index
    %c0_28 = arith.constant 0 : index
    %28 = vector.load %arg5[%c8, %c0_28] : memref<36x8xbf16, #tpu.memory_space<vmem>>, vector<4x8xbf16>
    %cst_29 = arith.constant dense<0.000000e+00> : vector<256x8xf32>
    %29 = tpu.matmul %27, %28, %cst_29 {dimension_numbers = #tpu.dot_dimension_numbers<[1], [0], [0], [1], [0, 0, 1, 1], [], []>} : vector<256x4xbf16>, vector<4x8xbf16>, vector<256x8xf32> -> vector<256x8xf32>
    %30 = arith.addf %25, %29 : vector<256x8xf32>
    %c1_30 = arith.constant 1 : index
    %c0_31 = arith.constant 0 : index
    %c0_32 = arith.constant 0 : index
    %31 = vector.load %arg10[%c1_30, %c0_31, %c0_32] : memref<18x18x4xbf16, #tpu.memory_space<vmem>>, vector<16x16x4xbf16>
    %32 = vector.shape_cast %31 : vector<16x16x4xbf16> to vector<256x4xbf16>
    %c12 = arith.constant 12 : index
    %c0_33 = arith.constant 0 : index
    %33 = vector.load %arg5[%c12, %c0_33] : memref<36x8xbf16, #tpu.memory_space<vmem>>, vector<4x8xbf16>
    %cst_34 = arith.constant dense<0.000000e+00> : vector<256x8xf32>
    %34 = tpu.matmul %32, %33, %cst_34 {dimension_numbers = #tpu.dot_dimension_numbers<[1], [0], [0], [1], [0, 0, 1, 1], [], []>} : vector<256x4xbf16>, vector<4x8xbf16>, vector<256x8xf32> -> vector<256x8xf32>
    %35 = arith.addf %30, %34 : vector<256x8xf32>
    %c1_35 = arith.constant 1 : index
    %c1_36 = arith.constant 1 : index
    %c0_37 = arith.constant 0 : index
    %36 = vector.load %arg10[%c1_35, %c1_36, %c0_37] : memref<18x18x4xbf16, #tpu.memory_space<vmem>>, vector<16x16x4xbf16>
    %37 = vector.shape_cast %36 : vector<16x16x4xbf16> to vector<256x4xbf16>
    %c16 = arith.constant 16 : index
    %c0_38 = arith.constant 0 : index
    %38 = vector.load %arg5[%c16, %c0_38] : memref<36x8xbf16, #tpu.memory_space<vmem>>, vector<4x8xbf16>
    %cst_39 = arith.constant dense<0.000000e+00> : vector<256x8xf32>
    %39 = tpu.matmul %37, %38, %cst_39 {dimension_numbers = #tpu.dot_dimension_numbers<[1], [0], [0], [1], [0, 0, 1, 1], [], []>} : vector<256x4xbf16>, vector<4x8xbf16>, vector<256x8xf32> -> vector<256x8xf32>
    %40 = arith.addf %35, %39 : vector<256x8xf32>
    %c1_40 = arith.constant 1 : index
    %c2_41 = arith.constant 2 : index
    %c0_42 = arith.constant 0 : index
    %41 = vector.load %arg10[%c1_40, %c2_41, %c0_42] : memref<18x18x4xbf16, #tpu.memory_space<vmem>>, vector<16x16x4xbf16>
    %42 = vector.shape_cast %41 : vector<16x16x4xbf16> to vector<256x4xbf16>
    %c20 = arith.constant 20 : index
    %c0_43 = arith.constant 0 : index
    %43 = vector.load %arg5[%c20, %c0_43] : memref<36x8xbf16, #tpu.memory_space<vmem>>, vector<4x8xbf16>
    %cst_44 = arith.constant dense<0.000000e+00> : vector<256x8xf32>
    %44 = tpu.matmul %42, %43, %cst_44 {dimension_numbers = #tpu.dot_dimension_numbers<[1], [0], [0], [1], [0, 0, 1, 1], [], []>} : vector<256x4xbf16>, vector<4x8xbf16>, vector<256x8xf32> -> vector<256x8xf32>
    %45 = arith.addf %40, %44 : vector<256x8xf32>
    %c2_45 = arith.constant 2 : index
    %c0_46 = arith.constant 0 : index
    %c0_47 = arith.constant 0 : index
    %46 = vector.load %arg10[%c2_45, %c0_46, %c0_47] : memref<18x18x4xbf16, #tpu.memory_space<vmem>>, vector<16x16x4xbf16>
    %47 = vector.shape_cast %46 : vector<16x16x4xbf16> to vector<256x4xbf16>
    %c24 = arith.constant 24 : index
    %c0_48 = arith.constant 0 : index
    %48 = vector.load %arg5[%c24, %c0_48] : memref<36x8xbf16, #tpu.memory_space<vmem>>, vector<4x8xbf16>
    %cst_49 = arith.constant dense<0.000000e+00> : vector<256x8xf32>
    %49 = tpu.matmul %47, %48, %cst_49 {dimension_numbers = #tpu.dot_dimension_numbers<[1], [0], [0], [1], [0, 0, 1, 1], [], []>} : vector<256x4xbf16>, vector<4x8xbf16>, vector<256x8xf32> -> vector<256x8xf32>
    %50 = arith.addf %45, %49 : vector<256x8xf32>
    %c2_50 = arith.constant 2 : index
    %c1_51 = arith.constant 1 : index
    %c0_52 = arith.constant 0 : index
    %51 = vector.load %arg10[%c2_50, %c1_51, %c0_52] : memref<18x18x4xbf16, #tpu.memory_space<vmem>>, vector<16x16x4xbf16>
    %52 = vector.shape_cast %51 : vector<16x16x4xbf16> to vector<256x4xbf16>
    %c28 = arith.constant 28 : index
    %c0_53 = arith.constant 0 : index
    %53 = vector.load %arg5[%c28, %c0_53] : memref<36x8xbf16, #tpu.memory_space<vmem>>, vector<4x8xbf16>
    %cst_54 = arith.constant dense<0.000000e+00> : vector<256x8xf32>
    %54 = tpu.matmul %52, %53, %cst_54 {dimension_numbers = #tpu.dot_dimension_numbers<[1], [0], [0], [1], [0, 0, 1, 1], [], []>} : vector<256x4xbf16>, vector<4x8xbf16>, vector<256x8xf32> -> vector<256x8xf32>
    %55 = arith.addf %50, %54 : vector<256x8xf32>
    %c2_55 = arith.constant 2 : index
    %c2_56 = arith.constant 2 : index
    %c0_57 = arith.constant 0 : index
    %56 = vector.load %arg10[%c2_55, %c2_56, %c0_57] : memref<18x18x4xbf16, #tpu.memory_space<vmem>>, vector<16x16x4xbf16>
    %57 = vector.shape_cast %56 : vector<16x16x4xbf16> to vector<256x4xbf16>
    %c32 = arith.constant 32 : index
    %c0_58 = arith.constant 0 : index
    %58 = vector.load %arg5[%c32, %c0_58] : memref<36x8xbf16, #tpu.memory_space<vmem>>, vector<4x8xbf16>
    %cst_59 = arith.constant dense<0.000000e+00> : vector<256x8xf32>
    %59 = tpu.matmul %57, %58, %cst_59 {dimension_numbers = #tpu.dot_dimension_numbers<[1], [0], [0], [1], [0, 0, 1, 1], [], []>} : vector<256x4xbf16>, vector<4x8xbf16>, vector<256x8xf32> -> vector<256x8xf32>
    %60 = arith.addf %55, %59 : vector<256x8xf32>
    %61 = vector.shape_cast %60 : vector<256x8xf32> to vector<1x16x16x8xf32>
    %62 = arith.truncf %61 : vector<1x16x16x8xf32> to vector<1x16x16x8xbf16>
    %c0_60 = arith.constant 0 : index
    %c0_61 = arith.constant 0 : index
    %c0_62 = arith.constant 0 : index
    %c0_63 = arith.constant 0 : index
    %63 = vector.load %arg8[%c0_60, %c0_61, %c0_62, %c0_63] : memref<1x16x16x8xbf16, #tpu.memory_space<vmem>>, vector<1x16x16x8xbf16>
    tpu.vector_store %arg8[%c0_60, %c0_61, %c0_62, %c0_63], %62 {strides = array<i32>} : memref<1x16x16x8xbf16, #tpu.memory_space<vmem>>, vector<1x16x16x8xbf16>,
    %cst_64 = arith.constant dense<0.000000e+00> : vector<8xf32>
    %64 = vector.multi_reduction <add>, %60, %cst_64 [0] : vector<256x8xf32> to vector<8xf32>
    %65 = vector.shape_cast %64 : vector<8xf32> to vector<1x8xf32>
    %66 = arith.mulf %60, %60 : vector<256x8xf32>
    %cst_65 = arith.constant dense<0.000000e+00> : vector<8xf32>
    %67 = vector.multi_reduction <add>, %66, %cst_65 [0] : vector<256x8xf32> to vector<8xf32>
    %68 = vector.shape_cast %67 : vector<8xf32> to vector<1x8xf32>
    %69 = tpu.concatenate %65, %68 in 0 : vector<1x8xf32>, vector<1x8xf32> -> vector<2x8xf32>
    %70 = vector.shape_cast %69 : vector<2x8xf32> to vector<1x2x8xf32>
    %c0_i32_66 = arith.constant 0 : i32
    %71 = arith.cmpi eq, %arg2, %c0_i32_66 : i32
    %72 = arith.extui %71 : i1 to i32
    %c0_i32_67 = arith.constant 0 : i32
    %73 = arith.cmpi ne, %72, %c0_i32_67 : i32
    scf.if %73 {
      %c0_70 = arith.constant 0 : index
      %c0_71 = arith.constant 0 : index
      %c0_72 = arith.constant 0 : index
      %77 = vector.load %arg9[%c0_70, %c0_71, %c0_72] : memref<1x2x8xf32, #tpu.memory_space<vmem>>, vector<1x2x8xf32>
      tpu.vector_store %arg9[%c0_70, %c0_71, %c0_72], %70 {strides = array<i32>} : memref<1x2x8xf32, #tpu.memory_space<vmem>>, vector<1x2x8xf32>,
    } else {
    }
    %c0_i32_68 = arith.constant 0 : i32
    %74 = arith.cmpi sgt, %arg2, %c0_i32_68 : i32
    %75 = arith.extui %74 : i1 to i32
    %c0_i32_69 = arith.constant 0 : i32
    %76 = arith.cmpi ne, %75, %c0_i32_69 : i32
    scf.if %76 {
      %c0_70 = arith.constant 0 : index
      %c0_71 = arith.constant 0 : index
      %c0_72 = arith.constant 0 : index
      %77 = vector.load %arg9[%c0_70, %c0_71, %c0_72] : memref<1x2x8xf32, #tpu.memory_space<vmem>>, vector<1x2x8xf32>
      %78 = arith.addf %77, %70 : vector<1x2x8xf32>
      %c0_73 = arith.constant 0 : index
      %c0_74 = arith.constant 0 : index
      %c0_75 = arith.constant 0 : index
      %79 = vector.load %arg9[%c0_73, %c0_74, %c0_75] : memref<1x2x8xf32, #tpu.memory_space<vmem>>, vector<1x2x8xf32>
      tpu.vector_store %arg9[%c0_73, %c0_74, %c0_75], %78 {strides = array<i32>} : memref<1x2x8xf32, #tpu.memory_space<vmem>>, vector<1x2x8xf32>,
    } else {
    }
    return
  }
  func.func @transform_0(%arg0: i32, %arg1: i32, %arg2: i32) -> (i32, i32, i32, i32) {
    %c0_i32 = arith.constant 0 : i32
    %c0_i32_0 = arith.constant 0 : i32
    %c0_i32_1 = arith.constant 0 : i32
    return %arg0, %arg2, %c0_i32, %c0_i32_0 : i32, i32, i32, i32
  }
  func.func @transform_1(%arg0: i32, %arg1: i32, %arg2: i32) -> (i32, i32, i32, i32) {
    %c1_i32 = arith.constant 1 : i32
    %0 = arith.addi %arg2, %c1_i32 : i32
    %c16_i32 = arith.constant 16 : i32
    %1 = arith.muli %0, %c16_i32 : i32
    %c15_i32 = arith.constant 15 : i32
    %2 = arith.minsi %1, %c15_i32 : i32
    %c0_i32 = arith.constant 0 : i32
    %c0_i32_0 = arith.constant 0 : i32
    %c0_i32_1 = arith.constant 0 : i32
    return %arg0, %2, %c0_i32, %c0_i32_0 : i32, i32, i32, i32
  }
  func.func @transform_2(%arg0: i32, %arg1: i32, %arg2: i32) -> (i32, i32) {
    %c0_i32 = arith.constant 0 : i32
    %c0_i32_0 = arith.constant 0 : i32
    return %c0_i32, %arg1 : i32, i32
  }
  func.func @transform_3(%arg0: i32, %arg1: i32, %arg2: i32) -> (i32, i32) {
    %c0_i32 = arith.constant 0 : i32
    %c0_i32_0 = arith.constant 0 : i32
    %c0_i32_1 = arith.constant 0 : i32
    return %c0_i32, %c0_i32_0 : i32, i32
  }
  func.func @transform_4(%arg0: i32, %arg1: i32, %arg2: i32) -> (i32, i32) {
    %c0_i32 = arith.constant 0 : i32
    %c0_i32_0 = arith.constant 0 : i32
    %c0_i32_1 = arith.constant 0 : i32
    return %c0_i32, %c0_i32_0 : i32, i32
  }
  func.func @transform_5(%arg0: i32, %arg1: i32, %arg2: i32) -> (i32, i32, i32, i32) {
    %c0_i32 = arith.constant 0 : i32
    %c0_i32_0 = arith.constant 0 : i32
    return %arg0, %arg2, %c0_i32, %arg1 : i32, i32, i32, i32
  }
  func.func @transform_6(%arg0: i32, %arg1: i32, %arg2: i32) -> (i32, i32, i32) {
    %c0_i32 = arith.constant 0 : i32
    %c0_i32_0 = arith.constant 0 : i32
    return %arg0, %c0_i32, %arg1 : i32, i32, i32
  }
}

module attributes {stable_mosaic.version = 11 : i64} {
  func.func @_conv3x3_kernel(%arg0: i32, %arg1: i32, %arg2: i32, %arg3: memref<1x16x16x8xbf16, #tpu.memory_space<vmem>>, %arg4: memref<1x1x16x8xbf16, #tpu.memory_space<vmem>>, %arg5: memref<72x8xbf16, #tpu.memory_space<vmem>>, %arg6: memref<1x8xf32, #tpu.memory_space<vmem>>, %arg7: memref<1x8xf32, #tpu.memory_space<vmem>>, %arg8: memref<1x16x16x8xbf16, #tpu.memory_space<vmem>>, %arg9: memref<1x2x8xf32, #tpu.memory_space<vmem>>, %arg10: memref<18x18x8xbf16, #tpu.memory_space<vmem>>) attributes {dimension_semantics = [#tpu.dimension_semantics<parallel>, #tpu.dimension_semantics<parallel>, #tpu.dimension_semantics<arbitrary>], iteration_bounds = array<i64: 2, 1, 1>, scalar_prefetch = 0 : i64, scratch_operands = 1 : i64, tpu.core_type = #tpu.core_type<tc>, window_params = [{transform_indices = @transform_0, window_bounds = array<i64: 1, 16, 16, 8>}, {transform_indices = @transform_1, window_bounds = array<i64: 1, 1, 16, 8>}, {transform_indices = @transform_2, window_bounds = array<i64: 72, 8>}, {pipeline_mode = #tpu.pipeline_mode<synchronous>, transform_indices = @transform_3, window_bounds = array<i64: 1, 8>}, {pipeline_mode = #tpu.pipeline_mode<synchronous>, transform_indices = @transform_4, window_bounds = array<i64: 1, 8>}, {transform_indices = @transform_5, window_bounds = array<i64: 1, 16, 16, 8>}, {transform_indices = @transform_6, window_bounds = array<i64: 1, 2, 8>}]} {
    %c0 = arith.constant 0 : index
    %c0_0 = arith.constant 0 : index
    %c0_1 = arith.constant 0 : index
    %c0_2 = arith.constant 0 : index
    %0 = vector.load %arg3[%c0, %c0_0, %c0_1, %c0_2] : memref<1x16x16x8xbf16, #tpu.memory_space<vmem>>, vector<1x16x16x8xbf16>
    %1 = vector.shape_cast %0 : vector<1x16x16x8xbf16> to vector<16x16x8xbf16>
    %c0_3 = arith.constant 0 : index
    %c0_4 = arith.constant 0 : index
    %c0_5 = arith.constant 0 : index
    %c0_6 = arith.constant 0 : index
    %2 = vector.load %arg4[%c0_3, %c0_4, %c0_5, %c0_6] : memref<1x1x16x8xbf16, #tpu.memory_space<vmem>>, vector<1x1x16x8xbf16>
    %3 = vector.shape_cast %2 : vector<1x1x16x8xbf16> to vector<1x16x8xbf16>
    %c0_7 = arith.constant 0 : index
    %c0_8 = arith.constant 0 : index
    %4 = vector.load %arg6[%c0_7, %c0_8] : memref<1x8xf32, #tpu.memory_space<vmem>>, vector<1x8xf32>
    %c0_9 = arith.constant 0 : index
    %c0_10 = arith.constant 0 : index
    %5 = vector.load %arg7[%c0_9, %c0_10] : memref<1x8xf32, #tpu.memory_space<vmem>>, vector<1x8xf32>
    %6 = arith.extf %1 : vector<16x16x8xbf16> to vector<16x16x8xf32>
    %7 = vector.shape_cast %4 : vector<1x8xf32> to vector<1x1x8xf32>
    %8 = vector.broadcast %7 : vector<1x1x8xf32> to vector<16x16x8xf32>
    %9 = arith.mulf %6, %8 : vector<16x16x8xf32>
    %10 = vector.shape_cast %5 : vector<1x8xf32> to vector<1x1x8xf32>
    %11 = vector.broadcast %10 : vector<1x1x8xf32> to vector<16x16x8xf32>
    %12 = arith.addf %9, %11 : vector<16x16x8xf32>
    %cst = arith.constant 0.000000e+00 : f32
    %13 = vector.broadcast %cst : f32 to vector<16x16x8xf32>
    %14 = arith.maximumf %12, %13 : vector<16x16x8xf32>
    %15 = arith.truncf %14 : vector<16x16x8xf32> to vector<16x16x8xbf16>
    %16 = arith.extf %3 : vector<1x16x8xbf16> to vector<1x16x8xf32>
    %17 = vector.shape_cast %4 : vector<1x8xf32> to vector<1x1x8xf32>
    %18 = vector.broadcast %17 : vector<1x1x8xf32> to vector<1x16x8xf32>
    %19 = arith.mulf %16, %18 : vector<1x16x8xf32>
    %20 = vector.shape_cast %5 : vector<1x8xf32> to vector<1x1x8xf32>
    %21 = vector.broadcast %20 : vector<1x1x8xf32> to vector<1x16x8xf32>
    %22 = arith.addf %19, %21 : vector<1x16x8xf32>
    %cst_11 = arith.constant 0.000000e+00 : f32
    %23 = vector.broadcast %cst_11 : f32 to vector<1x16x8xf32>
    %24 = arith.maximumf %22, %23 : vector<1x16x8xf32>
    %25 = arith.truncf %24 : vector<1x16x8xf32> to vector<1x16x8xbf16>
    %c0_i32 = arith.constant 0 : i32
    %26 = arith.cmpi eq, %arg2, %c0_i32 : i32
    %27 = arith.extui %26 : i1 to i32
    %c0_i32_12 = arith.constant 0 : i32
    %28 = arith.cmpi ne, %27, %c0_i32_12 : i32
    scf.if %28 {
      %cst_76 = arith.constant 0.000000e+00 : bf16
      %99 = vector.broadcast %cst_76 : bf16 to vector<1x18x8xbf16>
      %c0_77 = arith.constant 0 : index
      %c0_78 = arith.constant 0 : index
      %c0_79 = arith.constant 0 : index
      %100 = vector.load %arg10[%c0_77, %c0_78, %c0_79] : memref<18x18x8xbf16, #tpu.memory_space<vmem>>, vector<1x18x8xbf16>
      tpu.vector_store %arg10[%c0_77, %c0_78, %c0_79], %99 {strides = array<i32>} : memref<18x18x8xbf16, #tpu.memory_space<vmem>>, vector<1x18x8xbf16>,
      %cst_80 = arith.constant 0.000000e+00 : bf16
      %101 = vector.broadcast %cst_80 : bf16 to vector<18x1x8xbf16>
      %c0_81 = arith.constant 0 : index
      %c0_82 = arith.constant 0 : index
      %c0_83 = arith.constant 0 : index
      %102 = vector.load %arg10[%c0_81, %c0_82, %c0_83] : memref<18x18x8xbf16, #tpu.memory_space<vmem>>, vector<18x1x8xbf16>
      tpu.vector_store %arg10[%c0_81, %c0_82, %c0_83], %101 {strides = array<i32>} : memref<18x18x8xbf16, #tpu.memory_space<vmem>>, vector<18x1x8xbf16>,
      %cst_84 = arith.constant 0.000000e+00 : bf16
      %103 = vector.broadcast %cst_84 : bf16 to vector<18x1x8xbf16>
      %c0_85 = arith.constant 0 : index
      %c17 = arith.constant 17 : index
      %c0_86 = arith.constant 0 : index
      %104 = vector.load %arg10[%c0_85, %c17, %c0_86] : memref<18x18x8xbf16, #tpu.memory_space<vmem>>, vector<18x1x8xbf16>
      tpu.vector_store %arg10[%c0_85, %c17, %c0_86], %103 {strides = array<i32>} : memref<18x18x8xbf16, #tpu.memory_space<vmem>>, vector<18x1x8xbf16>,
    } else {
    }
    %c0_i32_13 = arith.constant 0 : i32
    %29 = arith.cmpi sgt, %arg2, %c0_i32_13 : i32
    %30 = arith.extui %29 : i1 to i32
    %c0_i32_14 = arith.constant 0 : i32
    %31 = arith.cmpi ne, %30, %c0_i32_14 : i32
    scf.if %31 {
      %c16_76 = arith.constant 16 : index
      %c0_77 = arith.constant 0 : index
      %c0_78 = arith.constant 0 : index
      %99 = vector.load %arg10[%c16_76, %c0_77, %c0_78] : memref<18x18x8xbf16, #tpu.memory_space<vmem>>, vector<1x18x8xbf16>
      %c0_79 = arith.constant 0 : index
      %c0_80 = arith.constant 0 : index
      %c0_81 = arith.constant 0 : index
      %100 = vector.load %arg10[%c0_79, %c0_80, %c0_81] : memref<18x18x8xbf16, #tpu.memory_space<vmem>>, vector<1x18x8xbf16>
      tpu.vector_store %arg10[%c0_79, %c0_80, %c0_81], %99 {strides = array<i32>} : memref<18x18x8xbf16, #tpu.memory_space<vmem>>, vector<1x18x8xbf16>,
    } else {
    }
    %c1 = arith.constant 1 : index
    %c1_15 = arith.constant 1 : index
    %c0_16 = arith.constant 0 : index
    %32 = vector.load %arg10[%c1, %c1_15, %c0_16] : memref<18x18x8xbf16, #tpu.memory_space<vmem>>, vector<16x16x8xbf16>
    tpu.vector_store %arg10[%c1, %c1_15, %c0_16], %15 {strides = array<i32>} : memref<18x18x8xbf16, #tpu.memory_space<vmem>>, vector<16x16x8xbf16>,
    %c0_i32_17 = arith.constant 0 : i32
    %33 = arith.cmpi slt, %arg2, %c0_i32_17 : i32
    %34 = arith.extui %33 : i1 to i32
    %c0_i32_18 = arith.constant 0 : i32
    %35 = arith.cmpi ne, %34, %c0_i32_18 : i32
    scf.if %35 {
      %c17 = arith.constant 17 : index
      %c1_76 = arith.constant 1 : index
      %c0_77 = arith.constant 0 : index
      %99 = vector.load %arg10[%c17, %c1_76, %c0_77] : memref<18x18x8xbf16, #tpu.memory_space<vmem>>, vector<1x16x8xbf16>
      tpu.vector_store %arg10[%c17, %c1_76, %c0_77], %25 {strides = array<i32>} : memref<18x18x8xbf16, #tpu.memory_space<vmem>>, vector<1x16x8xbf16>,
    } else {
    }
    %c0_i32_19 = arith.constant 0 : i32
    %36 = arith.cmpi eq, %arg2, %c0_i32_19 : i32
    %37 = arith.extui %36 : i1 to i32
    %c0_i32_20 = arith.constant 0 : i32
    %38 = arith.cmpi ne, %37, %c0_i32_20 : i32
    scf.if %38 {
      %cst_76 = arith.constant 0.000000e+00 : bf16
      %99 = vector.broadcast %cst_76 : bf16 to vector<1x16x8xbf16>
      %c17 = arith.constant 17 : index
      %c1_77 = arith.constant 1 : index
      %c0_78 = arith.constant 0 : index
      %100 = vector.load %arg10[%c17, %c1_77, %c0_78] : memref<18x18x8xbf16, #tpu.memory_space<vmem>>, vector<1x16x8xbf16>
      tpu.vector_store %arg10[%c17, %c1_77, %c0_78], %99 {strides = array<i32>} : memref<18x18x8xbf16, #tpu.memory_space<vmem>>, vector<1x16x8xbf16>,
    } else {
    }
    %c0_21 = arith.constant 0 : index
    %c0_22 = arith.constant 0 : index
    %c0_23 = arith.constant 0 : index
    %39 = vector.load %arg10[%c0_21, %c0_22, %c0_23] : memref<18x18x8xbf16, #tpu.memory_space<vmem>>, vector<16x16x8xbf16>
    %40 = vector.shape_cast %39 : vector<16x16x8xbf16> to vector<256x8xbf16>
    %c0_24 = arith.constant 0 : index
    %c0_25 = arith.constant 0 : index
    %41 = vector.load %arg5[%c0_24, %c0_25] : memref<72x8xbf16, #tpu.memory_space<vmem>>, vector<8x8xbf16>
    %cst_26 = arith.constant dense<0.000000e+00> : vector<256x8xf32>
    %42 = tpu.matmul %40, %41, %cst_26 {dimension_numbers = #tpu.dot_dimension_numbers<[1], [0], [0], [1], [0, 0, 1, 1], [], []>} : vector<256x8xbf16>, vector<8x8xbf16>, vector<256x8xf32> -> vector<256x8xf32>
    %c0_27 = arith.constant 0 : index
    %c1_28 = arith.constant 1 : index
    %c0_29 = arith.constant 0 : index
    %43 = vector.load %arg10[%c0_27, %c1_28, %c0_29] : memref<18x18x8xbf16, #tpu.memory_space<vmem>>, vector<16x16x8xbf16>
    %44 = vector.shape_cast %43 : vector<16x16x8xbf16> to vector<256x8xbf16>
    %c8 = arith.constant 8 : index
    %c0_30 = arith.constant 0 : index
    %45 = vector.load %arg5[%c8, %c0_30] : memref<72x8xbf16, #tpu.memory_space<vmem>>, vector<8x8xbf16>
    %cst_31 = arith.constant dense<0.000000e+00> : vector<256x8xf32>
    %46 = tpu.matmul %44, %45, %cst_31 {dimension_numbers = #tpu.dot_dimension_numbers<[1], [0], [0], [1], [0, 0, 1, 1], [], []>} : vector<256x8xbf16>, vector<8x8xbf16>, vector<256x8xf32> -> vector<256x8xf32>
    %47 = arith.addf %42, %46 : vector<256x8xf32>
    %c0_32 = arith.constant 0 : index
    %c2 = arith.constant 2 : index
    %c0_33 = arith.constant 0 : index
    %48 = vector.load %arg10[%c0_32, %c2, %c0_33] : memref<18x18x8xbf16, #tpu.memory_space<vmem>>, vector<16x16x8xbf16>
    %49 = vector.shape_cast %48 : vector<16x16x8xbf16> to vector<256x8xbf16>
    %c16 = arith.constant 16 : index
    %c0_34 = arith.constant 0 : index
    %50 = vector.load %arg5[%c16, %c0_34] : memref<72x8xbf16, #tpu.memory_space<vmem>>, vector<8x8xbf16>
    %cst_35 = arith.constant dense<0.000000e+00> : vector<256x8xf32>
    %51 = tpu.matmul %49, %50, %cst_35 {dimension_numbers = #tpu.dot_dimension_numbers<[1], [0], [0], [1], [0, 0, 1, 1], [], []>} : vector<256x8xbf16>, vector<8x8xbf16>, vector<256x8xf32> -> vector<256x8xf32>
    %52 = arith.addf %47, %51 : vector<256x8xf32>
    %c1_36 = arith.constant 1 : index
    %c0_37 = arith.constant 0 : index
    %c0_38 = arith.constant 0 : index
    %53 = vector.load %arg10[%c1_36, %c0_37, %c0_38] : memref<18x18x8xbf16, #tpu.memory_space<vmem>>, vector<16x16x8xbf16>
    %54 = vector.shape_cast %53 : vector<16x16x8xbf16> to vector<256x8xbf16>
    %c24 = arith.constant 24 : index
    %c0_39 = arith.constant 0 : index
    %55 = vector.load %arg5[%c24, %c0_39] : memref<72x8xbf16, #tpu.memory_space<vmem>>, vector<8x8xbf16>
    %cst_40 = arith.constant dense<0.000000e+00> : vector<256x8xf32>
    %56 = tpu.matmul %54, %55, %cst_40 {dimension_numbers = #tpu.dot_dimension_numbers<[1], [0], [0], [1], [0, 0, 1, 1], [], []>} : vector<256x8xbf16>, vector<8x8xbf16>, vector<256x8xf32> -> vector<256x8xf32>
    %57 = arith.addf %52, %56 : vector<256x8xf32>
    %c1_41 = arith.constant 1 : index
    %c1_42 = arith.constant 1 : index
    %c0_43 = arith.constant 0 : index
    %58 = vector.load %arg10[%c1_41, %c1_42, %c0_43] : memref<18x18x8xbf16, #tpu.memory_space<vmem>>, vector<16x16x8xbf16>
    %59 = vector.shape_cast %58 : vector<16x16x8xbf16> to vector<256x8xbf16>
    %c32 = arith.constant 32 : index
    %c0_44 = arith.constant 0 : index
    %60 = vector.load %arg5[%c32, %c0_44] : memref<72x8xbf16, #tpu.memory_space<vmem>>, vector<8x8xbf16>
    %cst_45 = arith.constant dense<0.000000e+00> : vector<256x8xf32>
    %61 = tpu.matmul %59, %60, %cst_45 {dimension_numbers = #tpu.dot_dimension_numbers<[1], [0], [0], [1], [0, 0, 1, 1], [], []>} : vector<256x8xbf16>, vector<8x8xbf16>, vector<256x8xf32> -> vector<256x8xf32>
    %62 = arith.addf %57, %61 : vector<256x8xf32>
    %c1_46 = arith.constant 1 : index
    %c2_47 = arith.constant 2 : index
    %c0_48 = arith.constant 0 : index
    %63 = vector.load %arg10[%c1_46, %c2_47, %c0_48] : memref<18x18x8xbf16, #tpu.memory_space<vmem>>, vector<16x16x8xbf16>
    %64 = vector.shape_cast %63 : vector<16x16x8xbf16> to vector<256x8xbf16>
    %c40 = arith.constant 40 : index
    %c0_49 = arith.constant 0 : index
    %65 = vector.load %arg5[%c40, %c0_49] : memref<72x8xbf16, #tpu.memory_space<vmem>>, vector<8x8xbf16>
    %cst_50 = arith.constant dense<0.000000e+00> : vector<256x8xf32>
    %66 = tpu.matmul %64, %65, %cst_50 {dimension_numbers = #tpu.dot_dimension_numbers<[1], [0], [0], [1], [0, 0, 1, 1], [], []>} : vector<256x8xbf16>, vector<8x8xbf16>, vector<256x8xf32> -> vector<256x8xf32>
    %67 = arith.addf %62, %66 : vector<256x8xf32>
    %c2_51 = arith.constant 2 : index
    %c0_52 = arith.constant 0 : index
    %c0_53 = arith.constant 0 : index
    %68 = vector.load %arg10[%c2_51, %c0_52, %c0_53] : memref<18x18x8xbf16, #tpu.memory_space<vmem>>, vector<16x16x8xbf16>
    %69 = vector.shape_cast %68 : vector<16x16x8xbf16> to vector<256x8xbf16>
    %c48 = arith.constant 48 : index
    %c0_54 = arith.constant 0 : index
    %70 = vector.load %arg5[%c48, %c0_54] : memref<72x8xbf16, #tpu.memory_space<vmem>>, vector<8x8xbf16>
    %cst_55 = arith.constant dense<0.000000e+00> : vector<256x8xf32>
    %71 = tpu.matmul %69, %70, %cst_55 {dimension_numbers = #tpu.dot_dimension_numbers<[1], [0], [0], [1], [0, 0, 1, 1], [], []>} : vector<256x8xbf16>, vector<8x8xbf16>, vector<256x8xf32> -> vector<256x8xf32>
    %72 = arith.addf %67, %71 : vector<256x8xf32>
    %c2_56 = arith.constant 2 : index
    %c1_57 = arith.constant 1 : index
    %c0_58 = arith.constant 0 : index
    %73 = vector.load %arg10[%c2_56, %c1_57, %c0_58] : memref<18x18x8xbf16, #tpu.memory_space<vmem>>, vector<16x16x8xbf16>
    %74 = vector.shape_cast %73 : vector<16x16x8xbf16> to vector<256x8xbf16>
    %c56 = arith.constant 56 : index
    %c0_59 = arith.constant 0 : index
    %75 = vector.load %arg5[%c56, %c0_59] : memref<72x8xbf16, #tpu.memory_space<vmem>>, vector<8x8xbf16>
    %cst_60 = arith.constant dense<0.000000e+00> : vector<256x8xf32>
    %76 = tpu.matmul %74, %75, %cst_60 {dimension_numbers = #tpu.dot_dimension_numbers<[1], [0], [0], [1], [0, 0, 1, 1], [], []>} : vector<256x8xbf16>, vector<8x8xbf16>, vector<256x8xf32> -> vector<256x8xf32>
    %77 = arith.addf %72, %76 : vector<256x8xf32>
    %c2_61 = arith.constant 2 : index
    %c2_62 = arith.constant 2 : index
    %c0_63 = arith.constant 0 : index
    %78 = vector.load %arg10[%c2_61, %c2_62, %c0_63] : memref<18x18x8xbf16, #tpu.memory_space<vmem>>, vector<16x16x8xbf16>
    %79 = vector.shape_cast %78 : vector<16x16x8xbf16> to vector<256x8xbf16>
    %c64 = arith.constant 64 : index
    %c0_64 = arith.constant 0 : index
    %80 = vector.load %arg5[%c64, %c0_64] : memref<72x8xbf16, #tpu.memory_space<vmem>>, vector<8x8xbf16>
    %cst_65 = arith.constant dense<0.000000e+00> : vector<256x8xf32>
    %81 = tpu.matmul %79, %80, %cst_65 {dimension_numbers = #tpu.dot_dimension_numbers<[1], [0], [0], [1], [0, 0, 1, 1], [], []>} : vector<256x8xbf16>, vector<8x8xbf16>, vector<256x8xf32> -> vector<256x8xf32>
    %82 = arith.addf %77, %81 : vector<256x8xf32>
    %83 = vector.shape_cast %82 : vector<256x8xf32> to vector<1x16x16x8xf32>
    %84 = arith.truncf %83 : vector<1x16x16x8xf32> to vector<1x16x16x8xbf16>
    %c0_66 = arith.constant 0 : index
    %c0_67 = arith.constant 0 : index
    %c0_68 = arith.constant 0 : index
    %c0_69 = arith.constant 0 : index
    %85 = vector.load %arg8[%c0_66, %c0_67, %c0_68, %c0_69] : memref<1x16x16x8xbf16, #tpu.memory_space<vmem>>, vector<1x16x16x8xbf16>
    tpu.vector_store %arg8[%c0_66, %c0_67, %c0_68, %c0_69], %84 {strides = array<i32>} : memref<1x16x16x8xbf16, #tpu.memory_space<vmem>>, vector<1x16x16x8xbf16>,
    %cst_70 = arith.constant dense<0.000000e+00> : vector<8xf32>
    %86 = vector.multi_reduction <add>, %82, %cst_70 [0] : vector<256x8xf32> to vector<8xf32>
    %87 = vector.shape_cast %86 : vector<8xf32> to vector<1x8xf32>
    %88 = arith.mulf %82, %82 : vector<256x8xf32>
    %cst_71 = arith.constant dense<0.000000e+00> : vector<8xf32>
    %89 = vector.multi_reduction <add>, %88, %cst_71 [0] : vector<256x8xf32> to vector<8xf32>
    %90 = vector.shape_cast %89 : vector<8xf32> to vector<1x8xf32>
    %91 = tpu.concatenate %87, %90 in 0 : vector<1x8xf32>, vector<1x8xf32> -> vector<2x8xf32>
    %92 = vector.shape_cast %91 : vector<2x8xf32> to vector<1x2x8xf32>
    %c0_i32_72 = arith.constant 0 : i32
    %93 = arith.cmpi eq, %arg2, %c0_i32_72 : i32
    %94 = arith.extui %93 : i1 to i32
    %c0_i32_73 = arith.constant 0 : i32
    %95 = arith.cmpi ne, %94, %c0_i32_73 : i32
    scf.if %95 {
      %c0_76 = arith.constant 0 : index
      %c0_77 = arith.constant 0 : index
      %c0_78 = arith.constant 0 : index
      %99 = vector.load %arg9[%c0_76, %c0_77, %c0_78] : memref<1x2x8xf32, #tpu.memory_space<vmem>>, vector<1x2x8xf32>
      tpu.vector_store %arg9[%c0_76, %c0_77, %c0_78], %92 {strides = array<i32>} : memref<1x2x8xf32, #tpu.memory_space<vmem>>, vector<1x2x8xf32>,
    } else {
    }
    %c0_i32_74 = arith.constant 0 : i32
    %96 = arith.cmpi sgt, %arg2, %c0_i32_74 : i32
    %97 = arith.extui %96 : i1 to i32
    %c0_i32_75 = arith.constant 0 : i32
    %98 = arith.cmpi ne, %97, %c0_i32_75 : i32
    scf.if %98 {
      %c0_76 = arith.constant 0 : index
      %c0_77 = arith.constant 0 : index
      %c0_78 = arith.constant 0 : index
      %99 = vector.load %arg9[%c0_76, %c0_77, %c0_78] : memref<1x2x8xf32, #tpu.memory_space<vmem>>, vector<1x2x8xf32>
      %100 = arith.addf %99, %92 : vector<1x2x8xf32>
      %c0_79 = arith.constant 0 : index
      %c0_80 = arith.constant 0 : index
      %c0_81 = arith.constant 0 : index
      %101 = vector.load %arg9[%c0_79, %c0_80, %c0_81] : memref<1x2x8xf32, #tpu.memory_space<vmem>>, vector<1x2x8xf32>
      tpu.vector_store %arg9[%c0_79, %c0_80, %c0_81], %100 {strides = array<i32>} : memref<1x2x8xf32, #tpu.memory_space<vmem>>, vector<1x2x8xf32>,
    } else {
    }
    return
  }
  func.func @transform_0(%arg0: i32, %arg1: i32, %arg2: i32) -> (i32, i32, i32, i32) {
    %c0_i32 = arith.constant 0 : i32
    %c0_i32_0 = arith.constant 0 : i32
    %c0_i32_1 = arith.constant 0 : i32
    return %arg0, %arg2, %c0_i32, %c0_i32_0 : i32, i32, i32, i32
  }
  func.func @transform_1(%arg0: i32, %arg1: i32, %arg2: i32) -> (i32, i32, i32, i32) {
    %c1_i32 = arith.constant 1 : i32
    %0 = arith.addi %arg2, %c1_i32 : i32
    %c16_i32 = arith.constant 16 : i32
    %1 = arith.muli %0, %c16_i32 : i32
    %c15_i32 = arith.constant 15 : i32
    %2 = arith.minsi %1, %c15_i32 : i32
    %c0_i32 = arith.constant 0 : i32
    %c0_i32_0 = arith.constant 0 : i32
    %c0_i32_1 = arith.constant 0 : i32
    return %arg0, %2, %c0_i32, %c0_i32_0 : i32, i32, i32, i32
  }
  func.func @transform_2(%arg0: i32, %arg1: i32, %arg2: i32) -> (i32, i32) {
    %c0_i32 = arith.constant 0 : i32
    %c0_i32_0 = arith.constant 0 : i32
    return %c0_i32, %arg1 : i32, i32
  }
  func.func @transform_3(%arg0: i32, %arg1: i32, %arg2: i32) -> (i32, i32) {
    %c0_i32 = arith.constant 0 : i32
    %c0_i32_0 = arith.constant 0 : i32
    %c0_i32_1 = arith.constant 0 : i32
    return %c0_i32, %c0_i32_0 : i32, i32
  }
  func.func @transform_4(%arg0: i32, %arg1: i32, %arg2: i32) -> (i32, i32) {
    %c0_i32 = arith.constant 0 : i32
    %c0_i32_0 = arith.constant 0 : i32
    %c0_i32_1 = arith.constant 0 : i32
    return %c0_i32, %c0_i32_0 : i32, i32
  }
  func.func @transform_5(%arg0: i32, %arg1: i32, %arg2: i32) -> (i32, i32, i32, i32) {
    %c0_i32 = arith.constant 0 : i32
    %c0_i32_0 = arith.constant 0 : i32
    return %arg0, %arg2, %c0_i32, %arg1 : i32, i32, i32, i32
  }
  func.func @transform_6(%arg0: i32, %arg1: i32, %arg2: i32) -> (i32, i32, i32) {
    %c0_i32 = arith.constant 0 : i32
    %c0_i32_0 = arith.constant 0 : i32
    return %arg0, %c0_i32, %arg1 : i32, i32, i32
  }
}

module attributes {stable_mosaic.version = 11 : i64} {
  func.func @_bn_relu_kernel(%arg0: i32, %arg1: i32, %arg2: memref<1x16x128xbf16, #tpu.memory_space<vmem>>, %arg3: memref<1x128xf32, #tpu.memory_space<vmem>>, %arg4: memref<1x128xf32, #tpu.memory_space<vmem>>, %arg5: memref<1x16x128xf32, #tpu.memory_space<vmem>>) attributes {dimension_semantics = [#tpu.dimension_semantics<parallel>, #tpu.dimension_semantics<parallel>], iteration_bounds = array<i64: 2, 1>, scalar_prefetch = 0 : i64, scratch_operands = 0 : i64, tpu.core_type = #tpu.core_type<tc>, window_params = [{transform_indices = @transform_0, window_bounds = array<i64: 1, 16, 128>}, {pipeline_mode = #tpu.pipeline_mode<synchronous>, transform_indices = @transform_1, window_bounds = array<i64: 1, 128>}, {pipeline_mode = #tpu.pipeline_mode<synchronous>, transform_indices = @transform_2, window_bounds = array<i64: 1, 128>}, {transform_indices = @transform_3, window_bounds = array<i64: 1, 16, 128>}]} {
    %c0 = arith.constant 0 : index
    %c0_0 = arith.constant 0 : index
    %c0_1 = arith.constant 0 : index
    %0 = vector.load %arg2[%c0, %c0_0, %c0_1] : memref<1x16x128xbf16, #tpu.memory_space<vmem>>, vector<1x16x128xbf16>
    %1 = arith.extf %0 : vector<1x16x128xbf16> to vector<1x16x128xf32>
    %c0_2 = arith.constant 0 : index
    %c0_3 = arith.constant 0 : index
    %2 = vector.load %arg3[%c0_2, %c0_3] : memref<1x128xf32, #tpu.memory_space<vmem>>, vector<1x128xf32>
    %3 = vector.shape_cast %2 : vector<1x128xf32> to vector<1x1x128xf32>
    %4 = vector.broadcast %3 : vector<1x1x128xf32> to vector<1x16x128xf32>
    %5 = arith.mulf %1, %4 : vector<1x16x128xf32>
    %c0_4 = arith.constant 0 : index
    %c0_5 = arith.constant 0 : index
    %6 = vector.load %arg4[%c0_4, %c0_5] : memref<1x128xf32, #tpu.memory_space<vmem>>, vector<1x128xf32>
    %7 = vector.shape_cast %6 : vector<1x128xf32> to vector<1x1x128xf32>
    %8 = vector.broadcast %7 : vector<1x1x128xf32> to vector<1x16x128xf32>
    %9 = arith.addf %5, %8 : vector<1x16x128xf32>
    %cst = arith.constant 0.000000e+00 : f32
    %10 = vector.broadcast %cst : f32 to vector<1x16x128xf32>
    %11 = arith.maximumf %9, %10 : vector<1x16x128xf32>
    %c0_6 = arith.constant 0 : index
    %c0_7 = arith.constant 0 : index
    %c0_8 = arith.constant 0 : index
    %12 = vector.load %arg5[%c0_6, %c0_7, %c0_8] : memref<1x16x128xf32, #tpu.memory_space<vmem>>, vector<1x16x128xf32>
    tpu.vector_store %arg5[%c0_6, %c0_7, %c0_8], %11 {strides = array<i32>} : memref<1x16x128xf32, #tpu.memory_space<vmem>>, vector<1x16x128xf32>,
    return
  }
  func.func @transform_0(%arg0: i32, %arg1: i32) -> (i32, i32, i32) {
    %c0_i32 = arith.constant 0 : i32
    %c0_i32_0 = arith.constant 0 : i32
    return %arg0, %arg1, %c0_i32 : i32, i32, i32
  }
  func.func @transform_1(%arg0: i32, %arg1: i32) -> (i32, i32) {
    %c0_i32 = arith.constant 0 : i32
    %c0_i32_0 = arith.constant 0 : i32
    %c0_i32_1 = arith.constant 0 : i32
    return %c0_i32, %c0_i32_0 : i32, i32
  }
  func.func @transform_2(%arg0: i32, %arg1: i32) -> (i32, i32) {
    %c0_i32 = arith.constant 0 : i32
    %c0_i32_0 = arith.constant 0 : i32
    %c0_i32_1 = arith.constant 0 : i32
    return %c0_i32, %c0_i32_0 : i32, i32
  }
  func.func @transform_3(%arg0: i32, %arg1: i32) -> (i32, i32, i32) {
    %c0_i32 = arith.constant 0 : i32
    %c0_i32_0 = arith.constant 0 : i32
    return %arg0, %arg1, %c0_i32 : i32, i32, i32
  }
}

</mosaic_0001>

<llo_original>
// kernel: double_conv.5
$region0: #{double_conv.5}
  #allocation0 [shape = 'u32[]', space=smem, size = 0x4, offset = 0x4, fixed_abs, tag = 'smem constant byte address 0x4 - core index']
  #allocation1 [shape = 'u32[144,128]{1,0:T(1,128)}', space=vmem, size = 0x12000, scoped, tag = 'internal scratch']
  %s0 = inlined_call_operand.vmem [shape: bf16[2,16,128], index: 0, kind: input, shape index: {}]
  %s1 = inlined_call_operand.vmem [shape: f32[1,128], index: 1, kind: input, shape index: {}]
  %s2 = inlined_call_operand.vmem [shape: f32[1,128], index: 2, kind: input, shape index: {}]
  %s3 = inlined_call_operand.vmem [shape: f32[2,16,128], index: 3, kind: output, shape index: {}]
  %s4 = sld [smem:[#allocation0]]
  $region45: #{double_conv.5} parent=0
    _
  %s6 = ssub.s32 1, %s4
  %s7 = scalar_select 0, %s6, %s4
  loop: start=0, step=1, limit=4
  $region2: #{double_conv.5} parent=0 // loop_pre_header
    _
  $region3: #{double_conv.5} parent=0 // loop_header
    %s9 = sphi 0, %s13
    %p10 = scmp.ge.s32.totalorder %s9, 4
    %s16 = sphi 0, %s28
    %s17 = sphi 0, %s24
    %s18 = sphi 0, %s16
    %s19 = sphi 0, %s17
    %s20 = sphi 0, %s18
    %s21 = sphi 0, %s19
    %s33 = sphi 0, %s35
    %s36 = sphi 0, %s33
    %s37 = sphi 0, %s36
    %s53 = sphi 0, %s37
    %s57 = sphi 0, %s57
    %s59 = sphi 0, %s57
    %s60 = sphi 0, %s59
    %s74 = sphi 0, %s60
    %s78 = sphi 0, %s78
    %s80 = sphi 0, %s78
    %s81 = sphi 0, %s80
    %s95 = sphi 0, %s81
    %s103 = sphi 0, %s105
    %s106 = sphi 0, %s103
    %s107 = sphi 0, %s106
    %s123 = sphi 0, %s107
  $region4: #{double_conv.5} parent=0 // loop_header_branch
    %12 = sbr.rel (%p10) target = $region8
  $region5: #{double_conv.5} parent=0 // loop_body
    %s14 = ssub.s32 %s9, 1
    %s15 = ssub.s32 %s9, 2
    %s22 = sadd.s32 1, %s17
    %p23 = scmp.ge.s32.totalorder %s22, 1
    %s24 = scalar_select %p23, 0, %s22
    %s25 = sadd.s32 1, %s16
    %s26 = scalar_select %p23, %s25, %s16
    %p27 = scmp.ge.s32.totalorder %s26, 2
    %s28 = scalar_select %p27, 0, %s26
    %s29 = ssub.s32 %s16, %s28
    %s30 = ssub.s32 %s17, %s24
    %s31 = sor.u32 %s29, %s30
    %p32 = scmp.eq.s32.totalorder %s31, 0
    %s34 = sadd.s32 %s33, 1
    %s35 = scalar_select %p32, %s33, %s34
    %p38 = pneg %p32
    %p39 = scmp.eq.s32.totalorder %s9, 1
    %p40 = por %p38, %p39
    %p41 = scmp.ne.s32.totalorder %s33, %s36
    %p42 = scmp.eq.s32.totalorder %s9, 0
    %p43 = por %p41, %p42
    %p44 = scmp.ne.s32.totalorder %s33, %s36
    %p45 = scmp.eq.s32.totalorder %s14, 1
    %p46 = por %p44, %p45
    %p47 = scmp.ne.s32.totalorder %s36, %s37
    %p48 = scmp.eq.s32.totalorder %s14, 0
    %p49 = por %p47, %p48
    %p50 = scmp.ne.s32.totalorder %s36, %s37
    %p51 = scmp.eq.s32.totalorder %s15, 1
    %p52 = por %p50, %p51
    %p54 = scmp.ne.s32.totalorder %s37, %s53
    %p55 = scmp.eq.s32.totalorder %s15, 0
    %p56 = por %p54, %p55
    %s58 = sadd.s32 %s57, 1
    %p61 = scmp.eq.s32.totalorder %s9, 1
    %p62 = scmp.ne.s32.totalorder %s57, %s59
    %p63 = scmp.eq.s32.totalorder %s9, 0
    %p64 = por %p62, %p63
    %p65 = scmp.ne.s32.totalorder %s57, %s59
    %p66 = scmp.eq.s32.totalorder %s14, 1
    %p67 = por %p65, %p66
    %p68 = scmp.ne.s32.totalorder %s59, %s60
    %p69 = scmp.eq.s32.totalorder %s14, 0
    %p70 = por %p68, %p69
    %p71 = scmp.ne.s32.totalorder %s59, %s60
    %p72 = scmp.eq.s32.totalorder %s15, 1
    %p73 = por %p71, %p72
    %p75 = scmp.ne.s32.totalorder %s60, %s74
    %p76 = scmp.eq.s32.totalorder %s15, 0
    %p77 = por %p75, %p76
    %s79 = sadd.s32 %s78, 1
    %p82 = scmp.eq.s32.totalorder %s9, 1
    %p83 = scmp.ne.s32.totalorder %s78, %s80
    %p84 = scmp.eq.s32.totalorder %s9, 0
    %p85 = por %p83, %p84
    %p86 = scmp.ne.s32.totalorder %s78, %s80
    %p87 = scmp.eq.s32.totalorder %s14, 1
    %p88 = por %p86, %p87
    %p89 = scmp.ne.s32.totalorder %s80, %s81
    %p90 = scmp.eq.s32.totalorder %s14, 0
    %p91 = por %p89, %p90
    %p92 = scmp.ne.s32.totalorder %s80, %s81
    %p93 = scmp.eq.s32.totalorder %s15, 1
    %p94 = por %p92, %p93
    %p96 = scmp.ne.s32.totalorder %s81, %s95
    %p97 = scmp.eq.s32.totalorder %s15, 0
    %p98 = por %p96, %p97
    %s99 = ssub.s32 %s16, %s28
    %s100 = ssub.s32 %s17, %s24
    %s101 = sor.u32 %s99, %s100
    %p102 = scmp.eq.s32.totalorder %s101, 0
    %s104 = sadd.s32 %s103, 1
    %s105 = scalar_select %p102, %s103, %s104
    %p108 = pneg %p102
    %p109 = scmp.eq.s32.totalorder %s9, 1
    %p110 = por %p108, %p109
    %p111 = scmp.ne.s32.totalorder %s103, %s106
    %p112 = scmp.eq.s32.totalorder %s9, 0
    %p113 = por %p111, %p112
    %p114 = scmp.ne.s32.totalorder %s103, %s106
    %p115 = scmp.eq.s32.totalorder %s14, 1
    %p116 = por %p114, %p115
    %p117 = scmp.ne.s32.totalorder %s106, %s107
    %p118 = scmp.eq.s32.totalorder %s14, 0
    %p119 = por %p117, %p118
    %p120 = scmp.ne.s32.totalorder %s106, %s107
    %p121 = scmp.eq.s32.totalorder %s15, 1
    %p122 = por %p120, %p121
    %p124 = scmp.ne.s32.totalorder %s107, %s123
    %p125 = scmp.eq.s32.totalorder %s15, 0
    %p126 = por %p124, %p125
    %p127 = scmp.le.s32.totalorder 1, %s9
    %p128 = scmp.lt.s32.totalorder %s9, 3
    %p129 = pnand %p127, %p128
    %p130 = pneg %p129
    // Predicated region
    $region9: #{double_conv.5} parent=5 // pred_check
      _
    $region10: #{double_conv.5} parent=5 // pred_check_branch
      %132 = sbr.rel (%p129) target = $region12
    $region11: #{double_conv.5} parent=5 // pred_region
      %s133 = ssub.s32 %s9, 1
      // Predicated region
      $region13: #{double_conv.5} parent=11 // pred_check
        %p134 = pneg %p70
      $region14: #{double_conv.5} parent=11 // pred_check_branch
        %136 = sbr.rel (%p134) target = $region16
      $region15: #{double_conv.5} parent=11 // pred_region
        _
      $region16: #{double_conv.5} parent=11 // pred_fallthru
        _
      // Predicated region
      $region17: #{double_conv.5} parent=11 // pred_check
        %p137 = pneg %p91
      $region18: #{double_conv.5} parent=11 // pred_check_branch
        %139 = sbr.rel (%p137) target = $region20
      $region19: #{double_conv.5} parent=11 // pred_region
        _
      $region20: #{double_conv.5} parent=11 // pred_fallthru
        _
    $region12: #{double_conv.5} parent=5 // pred_fallthru
      _
    %p140 = scmp.lt.s32.totalorder %s9, 2
    // Predicated region
    $region21: #{double_conv.5} parent=5 // pred_check
      %p141 = pneg %p140
    $region22: #{double_conv.5} parent=5 // pred_check_branch
      %143 = sbr.rel (%p141) target = $region24
    $region23: #{double_conv.5} parent=5 // pred_region
      // Predicated region
      $region25: #{double_conv.5} parent=23 // pred_check
        %p144 = pneg %p43
      $region26: #{double_conv.5} parent=23 // pred_check_branch
        %146 = sbr.rel (%p144) target = $region28
      $region27: #{double_conv.5} parent=23 // pred_region
        %s147 = smul.u32 2, %s17
        %p148 = scmp.lt.s32.totalorder %s16, 1
        %s149 = scalar_select %p148, %s16, 1
        %p150 = scmp.lt.s32.totalorder %s147, 1
        %s151 = scalar_select %p150, %s147, 1
        %s152 = smul.addr %s149, 2
        %s153 = sadd.s32 %s151, %s152
        %s154 = smul.addr %s153, 4
        %s155 = scalar_lea.vmem %s0, %s154
        %s156 = smul.u32 2, %s17
      $region28: #{double_conv.5} parent=23 // pred_fallthru
        _
    $region24: #{double_conv.5} parent=5 // pred_fallthru
      _
    %p157 = scmp.le.s32.totalorder 1, %s9
    %p158 = scmp.lt.s32.totalorder %s9, 3
    %p159 = pnand %p157, %p158
    %p160 = pneg %p159
    // Predicated region
    $region29: #{double_conv.5} parent=5 // pred_check
      _
    $region30: #{double_conv.5} parent=5 // pred_check_branch
      %162 = sbr.rel (%p159) target = $region32
    $region31: #{double_conv.5} parent=5 // pred_region
      %s163 = ssub.s32 %s9, 1
      %s164 = smul.u32 2, %s19
      %p165 = scmp.lt.s32.totalorder %s18, 1
      %s166 = scalar_select %p165, %s18, 1
      %p167 = scmp.lt.s32.totalorder %s164, 1
      %s168 = scalar_select %p167, %s164, 1
      %s169 = smul.addr %s166, 2
      %s170 = sadd.s32 %s168, %s169
      %s171 = smul.addr %s170, 4
      %s172 = scalar_lea.vmem %s0, %s171
      %p173 = pneg %p49
      %p174 = pneg %p46
      %p175 = pneg %p70
      %p176 = pneg %p67
      %p177 = pneg %p91
      %p178 = pneg %p88
      %p179 = pneg %p119
      %p180 = pneg %p116
      %s181 = smul.u32 2, %s19
      %p182 = scmp.lt.s32.totalorder %s18, 1
      %s183 = scalar_select %p182, %s18, 1
      %p184 = scmp.lt.s32.totalorder %s181, 1
      %s185 = scalar_select %p184, %s181, 1
      %s186 = smul.addr %s183, 2
      %s187 = sadd.s32 %s185, %s186
      %s188 = smul.addr %s187, 8
      %s189 = scalar_lea.vmem %s3, %s188
      %s190 = smul.u32 2, %s19
      %p191 = scmp.lt.s32.totalorder %s18, 1
      %s192 = scalar_select %p191, %s18, 1
      %p193 = scmp.lt.s32.totalorder %s190, 1
      %s194 = scalar_select %p193, %s190, 1
      %s195 = smul.addr %s192, 2
      %s196 = sadd.s32 %s194, %s195
      %s197 = smul.addr %s196, 4
      %s198 = scalar_lea.vmem %s0, %s197
      %s199 = smul.u32 2, %s19
      %s200 = smul.u32 2, %s19
      %p201 = scmp.lt.s32.totalorder %s18, 1
      %s202 = scalar_select %p201, %s18, 1
      %p203 = scmp.lt.s32.totalorder %s200, 1
      %s204 = scalar_select %p203, %s200, 1
      %s205 = smul.addr %s202, 2
      %s206 = sadd.s32 %s204, %s205
      %s207 = smul.addr %s206, 8
      %s208 = scalar_lea.vmem %s3, %s207
      %s209 = smul.u32 2, %s19
      %v210 = vld [vmem:[%s198] sm:$0xf]
      %v211 = vld [vmem:[%s198 + $0x4] sm:$0xf]
      %v212 = vunpack.c.l.bf16 %v210
      %v213 = vunpack.c.l.bf16 %v211
      %v214 = vld [vmem:[%s1] sm:$0x1]
      %v216 = vlaneseq
      %v217 = vshrl.u32 %v216, 7
      %v218 = vsub.s32 0, %v217
      %v219 = vrot.slane %v214, %v218
      %v221 = vmul.f32 %v212, %v219
      %v222 = vmul.f32 %v213, %v219
      %v223 = vld [vmem:[%s2] sm:$0x1]
      %v225 = vlaneseq
      %v226 = vshrl.u32 %v225, 7
      %v227 = vsub.s32 0, %v226
      %v228 = vrot.slane %v223, %v227
      %v230 = vadd.f32 %v221, %v228
      %v231 = vadd.f32 %v222, %v228
      %v232 = vmax.f32 %v230, 0.0
      %v233 = vmax.f32 %v231, 0.0
      %234 = vst [vmem:[%s208] sm:$0xff] %v232
      %235 = vst [vmem:[%s208 + $0x8] sm:$0xff] %v233
      %s236 = smul.u32 2, %s19
      %p237 = scmp.lt.s32.totalorder %s18, 1
      %s238 = scalar_select %p237, %s18, 1
      %p239 = scmp.lt.s32.totalorder %s236, 1
      %s240 = scalar_select %p239, %s236, 1
      %s241 = smul.addr %s238, 2
      %s242 = sadd.s32 %s240, %s241
      %s243 = smul.addr %s242, 8
      %s244 = scalar_lea.vmem %s3, %s243
      // Predicated region
      $region33: #{double_conv.5} parent=31 // pred_check
        %p245 = pneg %p116
      $region34: #{double_conv.5} parent=31 // pred_check_branch
        %247 = sbr.rel (%p245) target = $region36
      $region35: #{double_conv.5} parent=31 // pred_region
        %s248 = smul.u32 2, %s19
      $region36: #{double_conv.5} parent=31 // pred_fallthru
        _
    $region32: #{double_conv.5} parent=5 // pred_fallthru
      _
    %p249 = scmp.le.s32.totalorder 2, %s9
    // Predicated region
    $region37: #{double_conv.5} parent=5 // pred_check
      %p250 = pneg %p249
    $region38: #{double_conv.5} parent=5 // pred_check_branch
      %252 = sbr.rel (%p250) target = $region40
    $region39: #{double_conv.5} parent=5 // pred_region
      %s253 = ssub.s32 %s9, 2
      // Predicated region
      $region41: #{double_conv.5} parent=39 // pred_check
        %p254 = pneg %p122
      $region42: #{double_conv.5} parent=39 // pred_check_branch
        %256 = sbr.rel (%p254) target = $region44
      $region43: #{double_conv.5} parent=39 // pred_region
        %s257 = smul.u32 2, %s21
        %p258 = scmp.lt.s32.totalorder %s20, 1
        %s259 = scalar_select %p258, %s20, 1
        %p260 = scmp.lt.s32.totalorder %s257, 1
        %s261 = scalar_select %p260, %s257, 1
        %s262 = smul.addr %s259, 2
        %s263 = sadd.s32 %s261, %s262
        %s264 = smul.addr %s263, 8
        %s265 = scalar_lea.vmem %s3, %s264
      $region44: #{double_conv.5} parent=39 // pred_fallthru
        _
    $region40: #{double_conv.5} parent=5 // pred_fallthru
      _
  $region6: #{double_conv.5} parent=0 // loop_footer
    %s13 = sadd.s32 1, %s9
  $region7: #{double_conv.5} parent=0 // loop_footer_branch
    %8 = sbr.rel target = $region3
  $region8: #{double_conv.5} parent=0 // loop_exit
    _

// kernel: double_conv.3
$region0: #{double_conv.3}
  #allocation0 [shape = 'u32[]', space=smem, size = 0x4, offset = 0x4, fixed_abs, tag = 'smem constant byte address 0x4 - core index']
  #allocation1 [shape = 'u32[144,128]{1,0:T(1,128)}', space=vmem, size = 0x12000, scoped, tag = 'internal scratch']
  #allocation2 [shape = 'bf16[18,18,4]{2,1,0:T(8,128)(2,1)}', space=vmem, size = 0x1b000, scoped, tag = 'scratch operand']
  %s0 = inlined_call_operand.vmem [shape: bf16[2,16,16,4], index: 0, kind: input, shape index: {}, may-alias: {0,1}]
  %s1 = inlined_call_operand.vmem [shape: bf16[2,16,16,4], index: 1, kind: input, shape index: {}, may-alias: {0,1}]
  %s2 = inlined_call_operand.vmem [shape: bf16[36,8], index: 2, kind: input, shape index: {}]
  %s3 = inlined_call_operand.vmem [shape: f32[1,4], index: 3, kind: input, shape index: {}]
  %s4 = inlined_call_operand.vmem [shape: f32[1,4], index: 4, kind: input, shape index: {}]
  %s5 = inlined_call_operand.vmem [shape: bf16[2,16,16,8], index: 5, kind: output, shape index: {0}]
  %s6 = inlined_call_operand.vmem [shape: f32[2,2,8], index: 6, kind: output, shape index: {1}]
  %7 = xla_tuple %s5, %s6
  %s8 = sld [smem:[#allocation0]]
  $region85: #{double_conv.3} parent=0
    _
  %s10 = ssub.s32 1, %s8
  %s11 = scalar_select 0, %s10, %s8
  loop: start=0, step=1, limit=4
  $region2: #{double_conv.3} parent=0 // loop_pre_header
    _
  $region3: #{double_conv.3} parent=0 // loop_header
    %s13 = sphi 0, %s17
    %p14 = scmp.ge.s32.totalorder %s13, 4
    %s20 = sphi 0, %s39
    %s21 = sphi 0, %s35
    %s22 = sphi 0, %s31
    %s23 = sphi 0, %s20
    %s24 = sphi 0, %s21
    %s25 = sphi 0, %s22
    %s26 = sphi 0, %s23
    %s27 = sphi 0, %s24
    %s28 = sphi 0, %s25
    %s44 = sphi 0, %s46
    %s47 = sphi 0, %s44
    %s48 = sphi 0, %s47
    %s64 = sphi 0, %s48
    %s80 = sphi 0, %s82
    %s83 = sphi 0, %s80
    %s84 = sphi 0, %s83
    %s100 = sphi 0, %s84
    %s106 = sphi 0, %s108
    %s109 = sphi 0, %s106
    %s110 = sphi 0, %s109
    %s126 = sphi 0, %s110
    %s130 = sphi 0, %s130
    %s132 = sphi 0, %s130
    %s133 = sphi 0, %s132
    %s147 = sphi 0, %s133
    %s151 = sphi 0, %s151
    %s153 = sphi 0, %s151
    %s154 = sphi 0, %s153
    %s168 = sphi 0, %s154
    %s178 = sphi 0, %s180
    %s181 = sphi 0, %s178
    %s182 = sphi 0, %s181
    %s198 = sphi 0, %s182
    %s206 = sphi 0, %s208
    %s209 = sphi 0, %s206
    %s210 = sphi 0, %s209
    %s226 = sphi 0, %s210
  $region4: #{double_conv.3} parent=0 // loop_header_branch
    %16 = sbr.rel (%p14) target = $region8
  $region5: #{double_conv.3} parent=0 // loop_body
    %s18 = ssub.s32 %s13, 1
    %s19 = ssub.s32 %s13, 2
    %s29 = sadd.s32 1, %s22
    %p30 = scmp.ge.s32.totalorder %s29, 1
    %s31 = scalar_select %p30, 0, %s29
    %s32 = sadd.s32 1, %s21
    %s33 = scalar_select %p30, %s32, %s21
    %p34 = scmp.ge.s32.totalorder %s33, 1
    %s35 = scalar_select %p34, 0, %s33
    %s36 = sadd.s32 1, %s20
    %s37 = scalar_select %p34, %s36, %s20
    %p38 = scmp.ge.s32.totalorder %s37, 2
    %s39 = scalar_select %p38, 0, %s37
    %s40 = ssub.s32 %s20, %s39
    %s41 = ssub.s32 %s22, %s31
    %s42 = sor.u32 %s40, %s41
    %p43 = scmp.eq.s32.totalorder %s42, 0
    %s45 = sadd.s32 %s44, 1
    %s46 = scalar_select %p43, %s44, %s45
    %p49 = pneg %p43
    %p50 = scmp.eq.s32.totalorder %s13, 1
    %p51 = por %p49, %p50
    %p52 = scmp.ne.s32.totalorder %s44, %s47
    %p53 = scmp.eq.s32.totalorder %s13, 0
    %p54 = por %p52, %p53
    %p55 = scmp.ne.s32.totalorder %s44, %s47
    %p56 = scmp.eq.s32.totalorder %s18, 1
    %p57 = por %p55, %p56
    %p58 = scmp.ne.s32.totalorder %s47, %s48
    %p59 = scmp.eq.s32.totalorder %s18, 0
    %p60 = por %p58, %p59
    %p61 = scmp.ne.s32.totalorder %s47, %s48
    %p62 = scmp.eq.s32.totalorder %s19, 1
    %p63 = por %p61, %p62
    %p65 = scmp.ne.s32.totalorder %s48, %s64
    %p66 = scmp.eq.s32.totalorder %s19, 0
    %p67 = por %p65, %p66
    %s68 = sadd.s32 %s22, 1
    %s69 = smul.u32 %s68, 16
    %p70 = scmp.lt.s32.totalorder %s69, 15
    %s71 = scalar_select %p70, %s69, 15
    %s72 = sadd.s32 %s31, 1
    %s73 = smul.u32 %s72, 16
    %p74 = scmp.lt.s32.totalorder %s73, 15
    %s75 = scalar_select %p74, %s73, 15
    %s76 = ssub.s32 %s20, %s39
    %s77 = ssub.s32 %s71, %s75
    %s78 = sor.u32 %s76, %s77
    %p79 = scmp.eq.s32.totalorder %s78, 0
    %s81 = sadd.s32 %s80, 1
    %s82 = scalar_select %p79, %s80, %s81
    %p85 = pneg %p79
    %p86 = scmp.eq.s32.totalorder %s13, 1
    %p87 = por %p85, %p86
    %p88 = scmp.ne.s32.totalorder %s80, %s83
    %p89 = scmp.eq.s32.totalorder %s13, 0
    %p90 = por %p88, %p89
    %p91 = scmp.ne.s32.totalorder %s80, %s83
    %p92 = scmp.eq.s32.totalorder %s18, 1
    %p93 = por %p91, %p92
    %p94 = scmp.ne.s32.totalorder %s83, %s84
    %p95 = scmp.eq.s32.totalorder %s18, 0
    %p96 = por %p94, %p95
    %p97 = scmp.ne.s32.totalorder %s83, %s84
    %p98 = scmp.eq.s32.totalorder %s19, 1
    %p99 = por %p97, %p98
    %p101 = scmp.ne.s32.totalorder %s84, %s100
    %p102 = scmp.eq.s32.totalorder %s19, 0
    %p103 = por %p101, %p102
    %s104 = ssub.s32 %s21, %s35
    %p105 = scmp.eq.s32.totalorder %s104, 0
    %s107 = sadd.s32 %s106, 1
    %s108 = scalar_select %p105, %s106, %s107
    %p111 = pneg %p105
    %p112 = scmp.eq.s32.totalorder %s13, 1
    %p113 = por %p111, %p112
    %p114 = scmp.ne.s32.totalorder %s106, %s109
    %p115 = scmp.eq.s32.totalorder %s13, 0
    %p116 = por %p114, %p115
    %p117 = scmp.ne.s32.totalorder %s106, %s109
    %p118 = scmp.eq.s32.totalorder %s18, 1
    %p119 = por %p117, %p118
    %p120 = scmp.ne.s32.totalorder %s109, %s110
    %p121 = scmp.eq.s32.totalorder %s18, 0
    %p122 = por %p120, %p121
    %p123 = scmp.ne.s32.totalorder %s109, %s110
    %p124 = scmp.eq.s32.totalorder %s19, 1
    %p125 = por %p123, %p124
    %p127 = scmp.ne.s32.totalorder %s110, %s126
    %p128 = scmp.eq.s32.totalorder %s19, 0
    %p129 = por %p127, %p128
    %s131 = sadd.s32 %s130, 1
    %p134 = scmp.eq.s32.totalorder %s13, 1
    %p135 = scmp.ne.s32.totalorder %s130, %s132
    %p136 = scmp.eq.s32.totalorder %s13, 0
    %p137 = por %p135, %p136
    %p138 = scmp.ne.s32.totalorder %s130, %s132
    %p139 = scmp.eq.s32.totalorder %s18, 1
    %p140 = por %p138, %p139
    %p141 = scmp.ne.s32.totalorder %s132, %s133
    %p142 = scmp.eq.s32.totalorder %s18, 0
    %p143 = por %p141, %p142
    %p144 = scmp.ne.s32.totalorder %s132, %s133
    %p145 = scmp.eq.s32.totalorder %s19, 1
    %p146 = por %p144, %p145
    %p148 = scmp.ne.s32.totalorder %s133, %s147
    %p149 = scmp.eq.s32.totalorder %s19, 0
    %p150 = por %p148, %p149
    %s152 = sadd.s32 %s151, 1
    %p155 = scmp.eq.s32.totalorder %s13, 1
    %p156 = scmp.ne.s32.totalorder %s151, %s153
    %p157 = scmp.eq.s32.totalorder %s13, 0
    %p158 = por %p156, %p157
    %p159 = scmp.ne.s32.totalorder %s151, %s153
    %p160 = scmp.eq.s32.totalorder %s18, 1
    %p161 = por %p159, %p160
    %p162 = scmp.ne.s32.totalorder %s153, %s154
    %p163 = scmp.eq.s32.totalorder %s18, 0
    %p164 = por %p162, %p163
    %p165 = scmp.ne.s32.totalorder %s153, %s154
    %p166 = scmp.eq.s32.totalorder %s19, 1
    %p167 = por %p165, %p166
    %p169 = scmp.ne.s32.totalorder %s154, %s168
    %p170 = scmp.eq.s32.totalorder %s19, 0
    %p171 = por %p169, %p170
    %s172 = ssub.s32 %s20, %s39
    %s173 = ssub.s32 %s22, %s31
    %s174 = sor.u32 %s172, %s173
    %s175 = ssub.s32 %s21, %s35
    %s176 = sor.u32 %s174, %s175
    %p177 = scmp.eq.s32.totalorder %s176, 0
    %s179 = sadd.s32 %s178, 1
    %s180 = scalar_select %p177, %s178, %s179
    %p183 = pneg %p177
    %p184 = scmp.eq.s32.totalorder %s13, 1
    %p185 = por %p183, %p184
    %p186 = scmp.ne.s32.totalorder %s178, %s181
    %p187 = scmp.eq.s32.totalorder %s13, 0
    %p188 = por %p186, %p187
    %p189 = scmp.ne.s32.totalorder %s178, %s181
    %p190 = scmp.eq.s32.totalorder %s18, 1
    %p191 = por %p189, %p190
    %p192 = scmp.ne.s32.totalorder %s181, %s182
    %p193 = scmp.eq.s32.totalorder %s18, 0
    %p194 = por %p192, %p193
    %p195 = scmp.ne.s32.totalorder %s181, %s182
    %p196 = scmp.eq.s32.totalorder %s19, 1
    %p197 = por %p195, %p196
    %p199 = scmp.ne.s32.totalorder %s182, %s198
    %p200 = scmp.eq.s32.totalorder %s19, 0
    %p201 = por %p199, %p200
    %s202 = ssub.s32 %s20, %s39
    %s203 = ssub.s32 %s21, %s35
    %s204 = sor.u32 %s202, %s203
    %p205 = scmp.eq.s32.totalorder %s204, 0
    %s207 = sadd.s32 %s206, 1
    %s208 = scalar_select %p205, %s206, %s207
    %p211 = pneg %p205
    %p212 = scmp.eq.s32.totalorder %s13, 1
    %p213 = por %p211, %p212
    %p214 = scmp.ne.s32.totalorder %s206, %s209
    %p215 = scmp.eq.s32.totalorder %s13, 0
    %p216 = por %p214, %p215
    %p217 = scmp.ne.s32.totalorder %s206, %s209
    %p218 = scmp.eq.s32.totalorder %s18, 1
    %p219 = por %p217, %p218
    %p220 = scmp.ne.s32.totalorder %s209, %s210
    %p221 = scmp.eq.s32.totalorder %s18, 0
    %p222 = por %p220, %p221
    %p223 = scmp.ne.s32.totalorder %s209, %s210
    %p224 = scmp.eq.s32.totalorder %s19, 1
    %p225 = por %p223, %p224
    %p227 = scmp.ne.s32.totalorder %s210, %s226
    %p228 = scmp.eq.s32.totalorder %s19, 0
    %p229 = por %p227, %p228
    %p230 = scmp.le.s32.totalorder 1, %s13
    %p231 = scmp.lt.s32.totalorder %s13, 3
    %p232 = pnand %p230, %p231
    %p233 = pneg %p232
    // Predicated region
    $region9: #{double_conv.3} parent=5 // pred_check
      _
    $region10: #{double_conv.3} parent=5 // pred_check_branch
      %235 = sbr.rel (%p232) target = $region12
    $region11: #{double_conv.3} parent=5 // pred_region
      %s236 = ssub.s32 %s13, 1
      // Predicated region
      $region13: #{double_conv.3} parent=11 // pred_check
        %p237 = pneg %p122
      $region14: #{double_conv.3} parent=11 // pred_check_branch
        %239 = sbr.rel (%p237) target = $region16
      $region15: #{double_conv.3} parent=11 // pred_region
        %p240 = scmp.lt.s32.totalorder %s24, 0
        %s241 = scalar_select %p240, %s24, 0
        %s242 = smul.addr %s241, 4
        %s243 = scalar_lea.vmem %s2, %s242
      $region16: #{double_conv.3} parent=11 // pred_fallthru
        _
      // Predicated region
      $region17: #{double_conv.3} parent=11 // pred_check
        %p244 = pneg %p143
      $region18: #{double_conv.3} parent=11 // pred_check_branch
        %246 = sbr.rel (%p244) target = $region20
      $region19: #{double_conv.3} parent=11 // pred_region
        _
      $region20: #{double_conv.3} parent=11 // pred_fallthru
        _
      // Predicated region
      $region21: #{double_conv.3} parent=11 // pred_check
        %p247 = pneg %p164
      $region22: #{double_conv.3} parent=11 // pred_check_branch
        %249 = sbr.rel (%p247) target = $region24
      $region23: #{double_conv.3} parent=11 // pred_region
        _
      $region24: #{double_conv.3} parent=11 // pred_fallthru
        _
    $region12: #{double_conv.3} parent=5 // pred_fallthru
      _
    %p250 = scmp.lt.s32.totalorder %s13, 2
    // Predicated region
    $region25: #{double_conv.3} parent=5 // pred_check
      %p251 = pneg %p250
    $region26: #{double_conv.3} parent=5 // pred_check_branch
      %253 = sbr.rel (%p251) target = $region28
    $region27: #{double_conv.3} parent=5 // pred_region
      // Predicated region
      $region29: #{double_conv.3} parent=27 // pred_check
        %p254 = pneg %p54
      $region30: #{double_conv.3} parent=27 // pred_check_branch
        %256 = sbr.rel (%p254) target = $region32
      $region31: #{double_conv.3} parent=27 // pred_region
        %s257 = smul.u32 16, %s22
        %p258 = scmp.lt.s32.totalorder %s20, 1
        %s259 = scalar_select %p258, %s20, 1
        %p260 = scmp.lt.s32.totalorder %s257, 15
        %s261 = scalar_select %p260, %s257, 15
        %s262 = smul.addr %s261, 2
        %s263 = smul.addr %s259, 32
        %s264 = sadd.s32 %s262, %s263
        %s265 = smul.addr %s264, 4
        %s266 = scalar_lea.vmem %s0, %s265
        %s267 = smul.u32 16, %s22
      $region32: #{double_conv.3} parent=27 // pred_fallthru
        _
      // Predicated region
      $region33: #{double_conv.3} parent=27 // pred_check
        %p268 = pneg %p90
      $region34: #{double_conv.3} parent=27 // pred_check_branch
        %270 = sbr.rel (%p268) target = $region36
      $region35: #{double_conv.3} parent=27 // pred_region
        %s271 = sadd.s32 %s22, 1
        %s272 = smul.u32 %s271, 16
        %p273 = scmp.lt.s32.totalorder %s272, 15
        %s274 = scalar_select %p273, %s272, 15
        %p275 = scmp.lt.s32.totalorder %s20, 1
        %s276 = scalar_select %p275, %s20, 1
        %p277 = scmp.lt.s32.totalorder %s274, 15
        %s278 = scalar_select %p277, %s274, 15
        %s279 = smul.addr %s278, 2
        %s280 = smul.addr %s276, 32
        %s281 = sadd.s32 %s279, %s280
        %s282 = smul.addr %s281, 4
        %s283 = scalar_lea.vmem %s1, %s282
        %s284 = sadd.s32 %s22, 1
        %s285 = smul.u32 %s284, 16
        %p286 = scmp.lt.s32.totalorder %s285, 15
        %s287 = scalar_select %p286, %s285, 15
      $region36: #{double_conv.3} parent=27 // pred_fallthru
        _
    $region28: #{double_conv.3} parent=5 // pred_fallthru
      _
    %p288 = scmp.le.s32.totalorder 1, %s13
    %p289 = scmp.lt.s32.totalorder %s13, 3
    %p290 = pnand %p288, %p289
    %p291 = pneg %p290
    // Predicated region
    $region37: #{double_conv.3} parent=5 // pred_check
      _
    $region38: #{double_conv.3} parent=5 // pred_check_branch
      %293 = sbr.rel (%p290) target = $region40
    $region39: #{double_conv.3} parent=5 // pred_region
      %s294 = ssub.s32 %s13, 1
      %s295 = smul.u32 16, %s25
      %p296 = scmp.lt.s32.totalorder %s23, 1
      %s297 = scalar_select %p296, %s23, 1
      %p298 = scmp.lt.s32.totalorder %s295, 15
      %s299 = scalar_select %p298, %s295, 15
      %s300 = smul.addr %s299, 2
      %s301 = smul.addr %s297, 32
      %s302 = sadd.s32 %s300, %s301
      %s303 = smul.addr %s302, 4
      %s304 = scalar_lea.vmem %s0, %s303
      %p305 = pneg %p60
      %p306 = pneg %p57
      %s307 = sadd.s32 %s25, 1
      %s308 = smul.u32 %s307, 16
      %p309 = scmp.lt.s32.totalorder %s308, 15
      %s310 = scalar_select %p309, %s308, 15
      %p311 = scmp.lt.s32.totalorder %s23, 1
      %s312 = scalar_select %p311, %s23, 1
      %p313 = scmp.lt.s32.totalorder %s310, 15
      %s314 = scalar_select %p313, %s310, 15
      %s315 = smul.addr %s314, 2
      %s316 = smul.addr %s312, 32
      %s317 = sadd.s32 %s315, %s316
      %s318 = smul.addr %s317, 4
      %s319 = scalar_lea.vmem %s1, %s318
      %p320 = pneg %p96
      %p321 = pneg %p93
      %p322 = scmp.lt.s32.totalorder %s24, 0
      %s323 = scalar_select %p322, %s24, 0
      %s324 = smul.addr %s323, 4
      %s325 = scalar_lea.vmem %s2, %s324
      %p326 = pneg %p122
      %p327 = pneg %p119
      %p328 = pneg %p143
      %p329 = pneg %p140
      %p330 = pneg %p164
      %p331 = pneg %p161
      %p332 = pneg %p194
      %p333 = pneg %p191
      %s334 = smul.u32 16, %s25
      %p335 = scmp.lt.s32.totalorder %s23, 1
      %s336 = scalar_select %p335, %s23, 1
      %p337 = scmp.lt.s32.totalorder %s334, 15
      %s338 = scalar_select %p337, %s334, 15
      %p339 = scmp.lt.s32.totalorder %s24, 0
      %s340 = scalar_select %p339, %s24, 0
      %s341 = smul.addr %s338, 2
      %s342 = sadd.s32 %s340, %s341
      %s343 = smul.addr %s336, 32
      %s344 = sadd.s32 %s342, %s343
      %s345 = smul.addr %s344, 4
      %s346 = scalar_lea.vmem %s5, %s345
      %p347 = pneg %p222
      %p348 = pneg %p219
      %p349 = scmp.lt.s32.totalorder %s23, 1
      %s350 = scalar_select %p349, %s23, 1
      %p351 = scmp.lt.s32.totalorder %s24, 0
      %s352 = scalar_select %p351, %s24, 0
      %s353 = sadd.s32 %s352, %s350
      %s354 = smul.addr %s353, 2
      %s355 = scalar_lea.vmem %s6, %s354
      %s356 = smul.u32 16, %s25
      %p357 = scmp.lt.s32.totalorder %s23, 1
      %s358 = scalar_select %p357, %s23, 1
      %p359 = scmp.lt.s32.totalorder %s356, 15
      %s360 = scalar_select %p359, %s356, 15
      %s361 = smul.addr %s360, 2
      %s362 = smul.addr %s358, 32
      %s363 = sadd.s32 %s361, %s362
      %s364 = smul.addr %s363, 4
      %s365 = scalar_lea.vmem %s0, %s364
      %s366 = smul.u32 16, %s25
      %s367 = sadd.s32 %s25, 1
      %s368 = smul.u32 %s367, 16
      %p369 = scmp.lt.s32.totalorder %s368, 15
      %s370 = scalar_select %p369, %s368, 15
      %p371 = scmp.lt.s32.totalorder %s23, 1
      %s372 = scalar_select %p371, %s23, 1
      %p373 = scmp.lt.s32.totalorder %s370, 15
      %s374 = scalar_select %p373, %s370, 15
      %s375 = smul.addr %s374, 2
      %s376 = smul.addr %s372, 32
      %s377 = sadd.s32 %s375, %s376
      %s378 = smul.addr %s377, 4
      %s379 = scalar_lea.vmem %s1, %s378
      %s380 = sadd.s32 %s25, 1
      %s381 = smul.u32 %s380, 16
      %p382 = scmp.lt.s32.totalorder %s381, 15
      %s383 = scalar_select %p382, %s381, 15
      %p384 = scmp.lt.s32.totalorder %s24, 0
      %s385 = scalar_select %p384, %s24, 0
      %s386 = smul.addr %s385, 4
      %s387 = scalar_lea.vmem %s2, %s386
      %s388 = smul.u32 16, %s25
      %p389 = scmp.lt.s32.totalorder %s23, 1
      %s390 = scalar_select %p389, %s23, 1
      %p391 = scmp.lt.s32.totalorder %s388, 15
      %s392 = scalar_select %p391, %s388, 15
      %p393 = scmp.lt.s32.totalorder %s24, 0
      %s394 = scalar_select %p393, %s24, 0
      %s395 = smul.addr %s392, 2
      %s396 = sadd.s32 %s394, %s395
      %s397 = smul.addr %s390, 32
      %s398 = sadd.s32 %s396, %s397
      %s399 = smul.addr %s398, 4
      %s400 = scalar_lea.vmem %s5, %s399
      %s401 = smul.u32 16, %s25
      %p402 = scmp.lt.s32.totalorder %s23, 1
      %s403 = scalar_select %p402, %s23, 1
      %p404 = scmp.lt.s32.totalorder %s24, 0
      %s405 = scalar_select %p404, %s24, 0
      %s406 = sadd.s32 %s405, %s403
      %s407 = smul.addr %s406, 2
      %s408 = scalar_lea.vmem %s6, %s407
      %v410 = vld [vmem:[%s365] sm:$0xf]
      %v411 = vld [vmem:[%s365 + $0x4] sm:$0xf]
      %v412 = vld [vmem:[%s365 + $0x8] sm:$0xf]
      %v413 = vld [vmem:[%s365 + $0xc] sm:$0xf]
      %v414 = vld [vmem:[%s365 + $0x10] sm:$0xf]
      %v415 = vld [vmem:[%s365 + $0x14] sm:$0xf]
      %v416 = vld [vmem:[%s365 + $0x18] sm:$0xf]
      %v417 = vld [vmem:[%s365 + $0x1c] sm:$0xf]
      %v418 = vld [vmem:[%s365 + $0x20] sm:$0xf]
      %v419 = vld [vmem:[%s365 + $0x24] sm:$0xf]
      %v420 = vld [vmem:[%s365 + $0x28] sm:$0xf]
      %v421 = vld [vmem:[%s365 + $0x2c] sm:$0xf]
      %v422 = vld [vmem:[%s365 + $0x30] sm:$0xf]
      %v423 = vld [vmem:[%s365 + $0x34] sm:$0xf]
      %v424 = vld [vmem:[%s365 + $0x38] sm:$0xf]
      %v425 = vld [vmem:[%s365 + $0x3c] sm:$0xf]
      %v426 = vld [vmem:[%s365 + $0x40] sm:$0xf]
      %v427 = vld [vmem:[%s365 + $0x44] sm:$0xf]
      %v428 = vld [vmem:[%s365 + $0x48] sm:$0xf]
      %v429 = vld [vmem:[%s365 + $0x4c] sm:$0xf]
      %v430 = vld [vmem:[%s365 + $0x50] sm:$0xf]
      %v431 = vld [vmem:[%s365 + $0x54] sm:$0xf]
      %v432 = vld [vmem:[%s365 + $0x58] sm:$0xf]
      %v433 = vld [vmem:[%s365 + $0x5c] sm:$0xf]
      %v434 = vld [vmem:[%s365 + $0x60] sm:$0xf]
      %v435 = vld [vmem:[%s365 + $0x64] sm:$0xf]
      %v436 = vld [vmem:[%s365 + $0x68] sm:$0xf]
      %v437 = vld [vmem:[%s365 + $0x6c] sm:$0xf]
      %v438 = vld [vmem:[%s365 + $0x70] sm:$0xf]
      %v439 = vld [vmem:[%s365 + $0x74] sm:$0xf]
      %v440 = vld [vmem:[%s365 + $0x78] sm:$0xf]
      %v441 = vld [vmem:[%s365 + $0x7c] sm:$0xf]
      %v442 = vld [vmem:[%s379] sm:$0xf]
      %v443 = vld [vmem:[%s379 + $0x4] sm:$0xf]
      %p444 = scmp.eq.s32.totalorder %s25, 0
      // Predicated region
      $region41: #{double_conv.3} parent=39 // pred_check
        %p445 = pneg %p444
      $region42: #{double_conv.3} parent=39 // pred_check_branch
        %447 = sbr.rel (%p445) target = $region44
      $region43: #{double_conv.3} parent=39 // pred_region
        %vm448 = vcmask 27648
        %449 = vst.msk [vmem:[#allocation2] sm:$0xf] %vm448, 0
        %450 = vst.msk [vmem:[#allocation2 + $0x4] sm:$0xf] %vm448, 0
        %vm451 = vcmask 24576
        %452 = vst.msk [vmem:[#allocation2 + $0x8] sm:$0x1] %vm451, 0
        %vm453 = vcmask 24576
        %vm454 = vsmask.f32 256
        %vm455 = vmand %vm453, %vm454
        %v456 = vld [vmem:[#allocation2] sm:$0x1]
        %v457 = vsel %vm455, 0, %v456
        %458 = vst [vmem:[#allocation2] sm:$0x1] %v457
        %v459 = vld [vmem:[#allocation2 + $0xc] sm:$0x1]
        %v460 = vsel %vm455, 0, %v459
        %461 = vst [vmem:[#allocation2 + $0xc] sm:$0x1] %v460
        %v462 = vld [vmem:[#allocation2 + $0x18] sm:$0x1]
        %v463 = vsel %vm455, 0, %v462
        %464 = vst [vmem:[#allocation2 + $0x18] sm:$0x1] %v463
        %v465 = vld [vmem:[#allocation2 + $0x24] sm:$0x1]
        %v466 = vsel %vm455, 0, %v465
        %467 = vst [vmem:[#allocation2 + $0x24] sm:$0x1] %v466
        %v468 = vld [vmem:[#allocation2 + $0x30] sm:$0x1]
        %v469 = vsel %vm455, 0, %v468
        %470 = vst [vmem:[#allocation2 + $0x30] sm:$0x1] %v469
        %v471 = vld [vmem:[#allocation2 + $0x3c] sm:$0x1]
        %v472 = vsel %vm455, 0, %v471
        %473 = vst [vmem:[#allocation2 + $0x3c] sm:$0x1] %v472
        %v474 = vld [vmem:[#allocation2 + $0x48] sm:$0x1]
        %v475 = vsel %vm455, 0, %v474
        %476 = vst [vmem:[#allocation2 + $0x48] sm:$0x1] %v475
        %v477 = vld [vmem:[#allocation2 + $0x54] sm:$0x1]
        %v478 = vsel %vm455, 0, %v477
        %479 = vst [vmem:[#allocation2 + $0x54] sm:$0x1] %v478
        %v480 = vld [vmem:[#allocation2 + $0x60] sm:$0x1]
        %v481 = vsel %vm455, 0, %v480
        %482 = vst [vmem:[#allocation2 + $0x60] sm:$0x1] %v481
        %v483 = vld [vmem:[#allocation2 + $0x6c] sm:$0x1]
        %v484 = vsel %vm455, 0, %v483
        %485 = vst [vmem:[#allocation2 + $0x6c] sm:$0x1] %v484
        %v486 = vld [vmem:[#allocation2 + $0x78] sm:$0x1]
        %v487 = vsel %vm455, 0, %v486
        %488 = vst [vmem:[#allocation2 + $0x78] sm:$0x1] %v487
        %v489 = vld [vmem:[#allocation2 + $0x84] sm:$0x1]
        %v490 = vsel %vm455, 0, %v489
        %491 = vst [vmem:[#allocation2 + $0x84] sm:$0x1] %v490
        %v492 = vld [vmem:[#allocation2 + $0x90] sm:$0x1]
        %v493 = vsel %vm455, 0, %v492
        %494 = vst [vmem:[#allocation2 + $0x90] sm:$0x1] %v493
        %v495 = vld [vmem:[#allocation2 + $0x9c] sm:$0x1]
        %v496 = vsel %vm455, 0, %v495
        %497 = vst [vmem:[#allocation2 + $0x9c] sm:$0x1] %v496
        %v498 = vld [vmem:[#allocation2 + $0xa8] sm:$0x1]
        %v499 = vsel %vm455, 0, %v498
        %500 = vst [vmem:[#allocation2 + $0xa8] sm:$0x1] %v499
        %v501 = vld [vmem:[#allocation2 + $0xb4] sm:$0x1]
        %v502 = vsel %vm455, 0, %v501
        %503 = vst [vmem:[#allocation2 + $0xb4] sm:$0x1] %v502
        %v504 = vld [vmem:[#allocation2 + $0xc0] sm:$0x1]
        %v505 = vsel %vm455, 0, %v504
        %506 = vst [vmem:[#allocation2 + $0xc0] sm:$0x1] %v505
        %v507 = vld [vmem:[#allocation2 + $0xcc] sm:$0x1]
        %v508 = vsel %vm455, 0, %v507
        %509 = vst [vmem:[#allocation2 + $0xcc] sm:$0x1] %v508
        %vm510 = vsmask.f32 7938
        %vm511 = vmand %vm453, %vm510
        %v512 = vld [vmem:[#allocation2 + $0x8] sm:$0x1]
        %v513 = vsel %vm511, 0, %v512
        %514 = vst [vmem:[#allocation2 + $0x8] sm:$0x1] %v513
        %v515 = vld [vmem:[#allocation2 + $0x14] sm:$0x1]
        %v516 = vsel %vm511, 0, %v515
        %517 = vst [vmem:[#allocation2 + $0x14] sm:$0x1] %v516
        %v518 = vld [vmem:[#allocation2 + $0x20] sm:$0x1]
        %v519 = vsel %vm511, 0, %v518
        %520 = vst [vmem:[#allocation2 + $0x20] sm:$0x1] %v519
        %v521 = vld [vmem:[#allocation2 + $0x2c] sm:$0x1]
        %v522 = vsel %vm511, 0, %v521
        %523 = vst [vmem:[#allocation2 + $0x2c] sm:$0x1] %v522
        %v524 = vld [vmem:[#allocation2 + $0x38] sm:$0x1]
        %v525 = vsel %vm511, 0, %v524
        %526 = vst [vmem:[#allocation2 + $0x38] sm:$0x1] %v525
        %v527 = vld [vmem:[#allocation2 + $0x44] sm:$0x1]
        %v528 = vsel %vm511, 0, %v527
        %529 = vst [vmem:[#allocation2 + $0x44] sm:$0x1] %v528
        %v530 = vld [vmem:[#allocation2 + $0x50] sm:$0x1]
        %v531 = vsel %vm511, 0, %v530
        %532 = vst [vmem:[#allocation2 + $0x50] sm:$0x1] %v531
        %v533 = vld [vmem:[#allocation2 + $0x5c] sm:$0x1]
        %v534 = vsel %vm511, 0, %v533
        %535 = vst [vmem:[#allocation2 + $0x5c] sm:$0x1] %v534
        %v536 = vld [vmem:[#allocation2 + $0x68] sm:$0x1]
        %v537 = vsel %vm511, 0, %v536
        %538 = vst [vmem:[#allocation2 + $0x68] sm:$0x1] %v537
        %v539 = vld [vmem:[#allocation2 + $0x74] sm:$0x1]
        %v540 = vsel %vm511, 0, %v539
        %541 = vst [vmem:[#allocation2 + $0x74] sm:$0x1] %v540
        %v542 = vld [vmem:[#allocation2 + $0x80] sm:$0x1]
        %v543 = vsel %vm511, 0, %v542
        %544 = vst [vmem:[#allocation2 + $0x80] sm:$0x1] %v543
        %v545 = vld [vmem:[#allocation2 + $0x8c] sm:$0x1]
        %v546 = vsel %vm511, 0, %v545
        %547 = vst [vmem:[#allocation2 + $0x8c] sm:$0x1] %v546
        %v548 = vld [vmem:[#allocation2 + $0x98] sm:$0x1]
        %v549 = vsel %vm511, 0, %v548
        %550 = vst [vmem:[#allocation2 + $0x98] sm:$0x1] %v549
        %v551 = vld [vmem:[#allocation2 + $0xa4] sm:$0x1]
        %v552 = vsel %vm511, 0, %v551
        %553 = vst [vmem:[#allocation2 + $0xa4] sm:$0x1] %v552
        %v554 = vld [vmem:[#allocation2 + $0xb0] sm:$0x1]
        %v555 = vsel %vm511, 0, %v554
        %556 = vst [vmem:[#allocation2 + $0xb0] sm:$0x1] %v555
        %v557 = vld [vmem:[#allocation2 + $0xbc] sm:$0x1]
        %v558 = vsel %vm511, 0, %v557
        %559 = vst [vmem:[#allocation2 + $0xbc] sm:$0x1] %v558
        %v560 = vld [vmem:[#allocation2 + $0xc8] sm:$0x1]
        %v561 = vsel %vm511, 0, %v560
        %562 = vst [vmem:[#allocation2 + $0xc8] sm:$0x1] %v561
        %v563 = vld [vmem:[#allocation2 + $0xd4] sm:$0x1]
        %v564 = vsel %vm511, 0, %v563
        %565 = vst [vmem:[#allocation2 + $0xd4] sm:$0x1] %v564
      $region44: #{double_conv.3} parent=39 // pred_fallthru
        _
      %p566 = scmp.gt.s32.totalorder %s25, 0
      // Predicated region
      $region45: #{double_conv.3} parent=39 // pred_check
        %p567 = pneg %p566
      $region46: #{double_conv.3} parent=39 // pred_check_branch
        %569 = sbr.rel (%p567) target = $region48
      $region47: #{double_conv.3} parent=39 // pred_region
        %s570 = scalar_lea.vmem [#allocation2], 192
        %v571 = vld [vmem:[%s570] sm:$0xf]
        %v572 = vld [vmem:[%s570 + $0x4] sm:$0xf]
        %v573 = vld [vmem:[%s570 + $0x8] sm:$0x1]
        %vm574 = vcmask 27648
        %575 = vst.msk [vmem:[#allocation2] sm:$0xf] %vm574, %v571
        %576 = vst.msk [vmem:[#allocation2 + $0x4] sm:$0xf] %vm574, %v572
        %vm577 = vcmask 24576
        %578 = vst.msk [vmem:[#allocation2 + $0x8] sm:$0x1] %vm577, %v573
      $region48: #{double_conv.3} parent=39 // pred_fallthru
        _
      %vm579 = vsmask.f32 256
      %vm580 = vsmask.f32 4368
      %vm581 = vmor %vm579, %vm580
      %v583 = vshrl.u32 %v410, 16
      %v585 = vrot.slane %v583, 7
      %v586 = vshll.u32 %v410, 16
      %v588 = vor.u32 %v585, %v586
      %v589 = vrot.slane %v585, 4
      %v591 = vshrl.u32 %v411, 16
      %v593 = vrot.slane %v591, 7
      %v594 = vshll.u32 %v411, 16
      %v596 = vor.u32 %v593, %v594
      %v597 = vsel %vm581, %v589, %v596
      %v598 = vrot.slane %v593, 4
      %v600 = vshrl.u32 %v412, 16
      %v602 = vrot.slane %v600, 7
      %v603 = vshll.u32 %v412, 16
      %v605 = vor.u32 %v602, %v603
      %v606 = vrot.slane %v602, 4
      %v608 = vshrl.u32 %v413, 16
      %v610 = vrot.slane %v608, 7
      %v611 = vshll.u32 %v413, 16
      %v613 = vor.u32 %v610, %v611
      %v614 = vsel %vm581, %v606, %v613
      %v615 = vrot.slane %v610, 4
      %v617 = vshrl.u32 %v414, 16
      %v619 = vrot.slane %v617, 7
      %v620 = vshll.u32 %v414, 16
      %v622 = vor.u32 %v619, %v620
      %v623 = vrot.slane %v619, 4
      %v625 = vshrl.u32 %v415, 16
      %v627 = vrot.slane %v625, 7
      %v628 = vshll.u32 %v415, 16
      %v630 = vor.u32 %v627, %v628
      %v631 = vsel %vm581, %v623, %v630
      %v632 = vrot.slane %v627, 4
      %v634 = vshrl.u32 %v416, 16
      %v636 = vrot.slane %v634, 7
      %v637 = vshll.u32 %v416, 16
      %v639 = vor.u32 %v636, %v637
      %v640 = vrot.slane %v636, 4
      %v642 = vshrl.u32 %v417, 16
      %v644 = vrot.slane %v642, 7
      %v645 = vshll.u32 %v417, 16
      %v647 = vor.u32 %v644, %v645
      %v648 = vsel %vm581, %v640, %v647
      %v649 = vrot.slane %v644, 4
      %v651 = vshrl.u32 %v418, 16
      %v653 = vrot.slane %v651, 7
      %v654 = vshll.u32 %v418, 16
      %v656 = vor.u32 %v653, %v654
      %v657 = vrot.slane %v653, 4
      %v659 = vshrl.u32 %v419, 16
      %v661 = vrot.slane %v659, 7
      %v662 = vshll.u32 %v419, 16
      %v664 = vor.u32 %v661, %v662
      %v665 = vsel %vm581, %v657, %v664
      %v666 = vrot.slane %v661, 4
      %v668 = vshrl.u32 %v420, 16
      %v670 = vrot.slane %v668, 7
      %v671 = vshll.u32 %v420, 16
      %v673 = vor.u32 %v670, %v671
      %v674 = vrot.slane %v670, 4
      %v676 = vshrl.u32 %v421, 16
      %v678 = vrot.slane %v676, 7
      %v679 = vshll.u32 %v421, 16
      %v681 = vor.u32 %v678, %v679
      %v682 = vsel %vm581, %v674, %v681
      %v683 = vrot.slane %v678, 4
      %v685 = vshrl.u32 %v422, 16
      %v687 = vrot.slane %v685, 7
      %v688 = vshll.u32 %v422, 16
      %v690 = vor.u32 %v687, %v688
      %v691 = vrot.slane %v687, 4
      %v693 = vshrl.u32 %v423, 16
      %v695 = vrot.slane %v693, 7
      %v696 = vshll.u32 %v423, 16
      %v698 = vor.u32 %v695, %v696
      %v699 = vsel %vm581, %v691, %v698
      %v700 = vrot.slane %v695, 4
      %v702 = vshrl.u32 %v424, 16
      %v704 = vrot.slane %v702, 7
      %v705 = vshll.u32 %v424, 16
      %v707 = vor.u32 %v704, %v705
      %v708 = vrot.slane %v704, 4
      %v710 = vshrl.u32 %v425, 16
      %v712 = vrot.slane %v710, 7
      %v713 = vshll.u32 %v425, 16
      %v715 = vor.u32 %v712, %v713
      %v716 = vsel %vm581, %v708, %v715
      %v717 = vrot.slane %v712, 4
      %v719 = vshrl.u32 %v426, 16
      %v721 = vrot.slane %v719, 7
      %v722 = vshll.u32 %v426, 16
      %v724 = vor.u32 %v721, %v722
      %v725 = vrot.slane %v721, 4
      %v727 = vshrl.u32 %v427, 16
      %v729 = vrot.slane %v727, 7
      %v730 = vshll.u32 %v427, 16
      %v732 = vor.u32 %v729, %v730
      %v733 = vsel %vm581, %v725, %v732
      %v734 = vrot.slane %v729, 4
      %v736 = vshrl.u32 %v428, 16
      %v738 = vrot.slane %v736, 7
      %v739 = vshll.u32 %v428, 16
      %v741 = vor.u32 %v738, %v739
      %v742 = vrot.slane %v738, 4
      %v744 = vshrl.u32 %v429, 16
      %v746 = vrot.slane %v744, 7
      %v747 = vshll.u32 %v429, 16
      %v749 = vor.u32 %v746, %v747
      %v750 = vsel %vm581, %v742, %v749
      %v751 = vrot.slane %v746, 4
      %v753 = vshrl.u32 %v430, 16
      %v755 = vrot.slane %v753, 7
      %v756 = vshll.u32 %v430, 16
      %v758 = vor.u32 %v755, %v756
      %v759 = vrot.slane %v755, 4
      %v761 = vshrl.u32 %v431, 16
      %v763 = vrot.slane %v761, 7
      %v764 = vshll.u32 %v431, 16
      %v766 = vor.u32 %v763, %v764
      %v767 = vsel %vm581, %v759, %v766
      %v768 = vrot.slane %v763, 4
      %v770 = vshrl.u32 %v432, 16
      %v772 = vrot.slane %v770, 7
      %v773 = vshll.u32 %v432, 16
      %v775 = vor.u32 %v772, %v773
      %v776 = vrot.slane %v772, 4
      %v778 = vshrl.u32 %v433, 16
      %v780 = vrot.slane %v778, 7
      %v781 = vshll.u32 %v433, 16
      %v783 = vor.u32 %v780, %v781
      %v784 = vsel %vm581, %v776, %v783
      %v785 = vrot.slane %v780, 4
      %v787 = vshrl.u32 %v434, 16
      %v789 = vrot.slane %v787, 7
      %v790 = vshll.u32 %v434, 16
      %v792 = vor.u32 %v789, %v790
      %v793 = vrot.slane %v789, 4
      %v795 = vshrl.u32 %v435, 16
      %v797 = vrot.slane %v795, 7
      %v798 = vshll.u32 %v435, 16
      %v800 = vor.u32 %v797, %v798
      %v801 = vsel %vm581, %v793, %v800
      %v802 = vrot.slane %v797, 4
      %v804 = vshrl.u32 %v436, 16
      %v806 = vrot.slane %v804, 7
      %v807 = vshll.u32 %v436, 16
      %v809 = vor.u32 %v806, %v807
      %v810 = vrot.slane %v806, 4
      %v812 = vshrl.u32 %v437, 16
      %v814 = vrot.slane %v812, 7
      %v815 = vshll.u32 %v437, 16
      %v817 = vor.u32 %v814, %v815
      %v818 = vsel %vm581, %v810, %v817
      %v819 = vrot.slane %v814, 4
      %v821 = vshrl.u32 %v438, 16
      %v823 = vrot.slane %v821, 7
      %v824 = vshll.u32 %v438, 16
      %v826 = vor.u32 %v823, %v824
      %v827 = vrot.slane %v823, 4
      %v829 = vshrl.u32 %v439, 16
      %v831 = vrot.slane %v829, 7
      %v832 = vshll.u32 %v439, 16
      %v834 = vor.u32 %v831, %v832
      %v835 = vsel %vm581, %v827, %v834
      %v836 = vrot.slane %v831, 4
      %v838 = vshrl.u32 %v440, 16
      %v840 = vrot.slane %v838, 7
      %v841 = vshll.u32 %v440, 16
      %v843 = vor.u32 %v840, %v841
      %v844 = vrot.slane %v840, 4
      %v846 = vshrl.u32 %v441, 16
      %v848 = vrot.slane %v846, 7
      %v849 = vshll.u32 %v441, 16
      %v851 = vor.u32 %v848, %v849
      %v852 = vsel %vm581, %v844, %v851
      %v853 = vrot.slane %v848, 4
      %s902 = scalar_lea.vmem [#allocation2], 12
      %vm903 = vcmask 27648
      %vm904 = vsmask.f32 7938
      %vm905 = vmand %vm903, %vm904
      %v906 = vld [vmem:[%s902] sm:$0xf]
      %v907 = vsel %vm905, %v588, %v906
      %908 = vst [vmem:[%s902] sm:$0xf] %v907
      %vm909 = vcmask 27648
      %910 = vst.msk [vmem:[%s902 + $0x4] sm:$0xf] %vm909, %v597
      %vm911 = vcmask 24576
      %vm912 = vmand %vm911, %vm579
      %v913 = vld [vmem:[%s902 + $0x8] sm:$0x1]
      %v914 = vsel %vm912, %v598, %v913
      %915 = vst [vmem:[%s902 + $0x8] sm:$0x1] %v914
      %v916 = vld [vmem:[%s902 + $0xc] sm:$0xf]
      %v917 = vsel %vm905, %v605, %v916
      %918 = vst [vmem:[%s902 + $0xc] sm:$0xf] %v917
      %919 = vst.msk [vmem:[%s902 + $0x10] sm:$0xf] %vm909, %v614
      %v920 = vld [vmem:[%s902 + $0x14] sm:$0x1]
      %v921 = vsel %vm912, %v615, %v920
      %922 = vst [vmem:[%s902 + $0x14] sm:$0x1] %v921
      %v923 = vld [vmem:[%s902 + $0x18] sm:$0xf]
      %v924 = vsel %vm905, %v622, %v923
      %925 = vst [vmem:[%s902 + $0x18] sm:$0xf] %v924
      %926 = vst.msk [vmem:[%s902 + $0x1c] sm:$0xf] %vm909, %v631
      %v927 = vld [vmem:[%s902 + $0x20] sm:$0x1]
      %v928 = vsel %vm912, %v632, %v927
      %929 = vst [vmem:[%s902 + $0x20] sm:$0x1] %v928
      %v930 = vld [vmem:[%s902 + $0x24] sm:$0xf]
      %v931 = vsel %vm905, %v639, %v930
      %932 = vst [vmem:[%s902 + $0x24] sm:$0xf] %v931
      %933 = vst.msk [vmem:[%s902 + $0x28] sm:$0xf] %vm909, %v648
      %v934 = vld [vmem:[%s902 + $0x2c] sm:$0x1]
      %v935 = vsel %vm912, %v649, %v934
      %936 = vst [vmem:[%s902 + $0x2c] sm:$0x1] %v935
      %v937 = vld [vmem:[%s902 + $0x30] sm:$0xf]
      %v938 = vsel %vm905, %v656, %v937
      %939 = vst [vmem:[%s902 + $0x30] sm:$0xf] %v938
      %940 = vst.msk [vmem:[%s902 + $0x34] sm:$0xf] %vm909, %v665
      %v941 = vld [vmem:[%s902 + $0x38] sm:$0x1]
      %v942 = vsel %vm912, %v666, %v941
      %943 = vst [vmem:[%s902 + $0x38] sm:$0x1] %v942
      %v944 = vld [vmem:[%s902 + $0x3c] sm:$0xf]
      %v945 = vsel %vm905, %v673, %v944
      %946 = vst [vmem:[%s902 + $0x3c] sm:$0xf] %v945
      %947 = vst.msk [vmem:[%s902 + $0x40] sm:$0xf] %vm909, %v682
      %v948 = vld [vmem:[%s902 + $0x44] sm:$0x1]
      %v949 = vsel %vm912, %v683, %v948
      %950 = vst [vmem:[%s902 + $0x44] sm:$0x1] %v949
      %v951 = vld [vmem:[%s902 + $0x48] sm:$0xf]
      %v952 = vsel %vm905, %v690, %v951
      %953 = vst [vmem:[%s902 + $0x48] sm:$0xf] %v952
      %954 = vst.msk [vmem:[%s902 + $0x4c] sm:$0xf] %vm909, %v699
      %v955 = vld [vmem:[%s902 + $0x50] sm:$0x1]
      %v956 = vsel %vm912, %v700, %v955
      %957 = vst [vmem:[%s902 + $0x50] sm:$0x1] %v956
      %v958 = vld [vmem:[%s902 + $0x54] sm:$0xf]
      %v959 = vsel %vm905, %v707, %v958
      %960 = vst [vmem:[%s902 + $0x54] sm:$0xf] %v959
      %961 = vst.msk [vmem:[%s902 + $0x58] sm:$0xf] %vm909, %v716
      %v962 = vld [vmem:[%s902 + $0x5c] sm:$0x1]
      %v963 = vsel %vm912, %v717, %v962
      %964 = vst [vmem:[%s902 + $0x5c] sm:$0x1] %v963
      %v965 = vld [vmem:[%s902 + $0x60] sm:$0xf]
      %v966 = vsel %vm905, %v724, %v965
      %967 = vst [vmem:[%s902 + $0x60] sm:$0xf] %v966
      %968 = vst.msk [vmem:[%s902 + $0x64] sm:$0xf] %vm909, %v733
      %v969 = vld [vmem:[%s902 + $0x68] sm:$0x1]
      %v970 = vsel %vm912, %v734, %v969
      %971 = vst [vmem:[%s902 + $0x68] sm:$0x1] %v970
      %v972 = vld [vmem:[%s902 + $0x6c] sm:$0xf]
      %v973 = vsel %vm905, %v741, %v972
      %974 = vst [vmem:[%s902 + $0x6c] sm:$0xf] %v973
      %975 = vst.msk [vmem:[%s902 + $0x70] sm:$0xf] %vm909, %v750
      %v976 = vld [vmem:[%s902 + $0x74] sm:$0x1]
      %v977 = vsel %vm912, %v751, %v976
      %978 = vst [vmem:[%s902 + $0x74] sm:$0x1] %v977
      %v979 = vld [vmem:[%s902 + $0x78] sm:$0xf]
      %v980 = vsel %vm905, %v758, %v979
      %981 = vst [vmem:[%s902 + $0x78] sm:$0xf] %v980
      %982 = vst.msk [vmem:[%s902 + $0x7c] sm:$0xf] %vm909, %v767
      %v983 = vld [vmem:[%s902 + $0x80] sm:$0x1]
      %v984 = vsel %vm912, %v768, %v983
      %985 = vst [vmem:[%s902 + $0x80] sm:$0x1] %v984
      %v986 = vld [vmem:[%s902 + $0x84] sm:$0xf]
      %v987 = vsel %vm905, %v775, %v986
      %988 = vst [vmem:[%s902 + $0x84] sm:$0xf] %v987
      %989 = vst.msk [vmem:[%s902 + $0x88] sm:$0xf] %vm909, %v784
      %v990 = vld [vmem:[%s902 + $0x8c] sm:$0x1]
      %v991 = vsel %vm912, %v785, %v990
      %992 = vst [vmem:[%s902 + $0x8c] sm:$0x1] %v991
      %v993 = vld [vmem:[%s902 + $0x90] sm:$0xf]
      %v994 = vsel %vm905, %v792, %v993
      %995 = vst [vmem:[%s902 + $0x90] sm:$0xf] %v994
      %996 = vst.msk [vmem:[%s902 + $0x94] sm:$0xf] %vm909, %v801
      %v997 = vld [vmem:[%s902 + $0x98] sm:$0x1]
      %v998 = vsel %vm912, %v802, %v997
      %999 = vst [vmem:[%s902 + $0x98] sm:$0x1] %v998
      %v1000 = vld [vmem:[%s902 + $0x9c] sm:$0xf]
      %v1001 = vsel %vm905, %v809, %v1000
      %1002 = vst [vmem:[%s902 + $0x9c] sm:$0xf] %v1001
      %1003 = vst.msk [vmem:[%s902 + $0xa0] sm:$0xf] %vm909, %v818
      %v1004 = vld [vmem:[%s902 + $0xa4] sm:$0x1]
      %v1005 = vsel %vm912, %v819, %v1004
      %1006 = vst [vmem:[%s902 + $0xa4] sm:$0x1] %v1005
      %v1007 = vld [vmem:[%s902 + $0xa8] sm:$0xf]
      %v1008 = vsel %vm905, %v826, %v1007
      %1009 = vst [vmem:[%s902 + $0xa8] sm:$0xf] %v1008
      %1010 = vst.msk [vmem:[%s902 + $0xac] sm:$0xf] %vm909, %v835
      %v1011 = vld [vmem:[%s902 + $0xb0] sm:$0x1]
      %v1012 = vsel %vm912, %v836, %v1011
      %1013 = vst [vmem:[%s902 + $0xb0] sm:$0x1] %v1012
      %v1014 = vld [vmem:[%s902 + $0xb4] sm:$0xf]
      %v1015 = vsel %vm905, %v843, %v1014
      %1016 = vst [vmem:[%s902 + $0xb4] sm:$0xf] %v1015
      %1017 = vst.msk [vmem:[%s902 + $0xb8] sm:$0xf] %vm909, %v852
      %v1018 = vld [vmem:[%s902 + $0xbc] sm:$0x1]
      %v1019 = vsel %vm912, %v853, %v1018
      %1020 = vst [vmem:[%s902 + $0xbc] sm:$0x1] %v1019
      %p1021 = scmp.lt.s32.totalorder %s25, 0
      // Predicated region
      $region49: #{double_conv.3} parent=39 // pred_check
        %p1022 = pneg %p1021
      $region50: #{double_conv.3} parent=39 // pred_check_branch
        %1024 = sbr.rel (%p1022) target = $region52
      $region51: #{double_conv.3} parent=39 // pred_region
        %v1026 = vshrl.u32 %v442, 16
        %v1028 = vrot.slane %v1026, 7
        %v1029 = vshll.u32 %v442, 16
        %v1031 = vor.u32 %v1028, %v1029
        %v1032 = vrot.slane %v1028, 4
        %v1034 = vshrl.u32 %v443, 16
        %v1036 = vrot.slane %v1034, 7
        %v1037 = vshll.u32 %v443, 16
        %v1039 = vor.u32 %v1036, %v1037
        %v1040 = vsel %vm581, %v1032, %v1039
        %v1041 = vrot.slane %v1036, 4
        %s1045 = scalar_lea.vmem [#allocation2], 204
        %v1046 = vld [vmem:[%s1045] sm:$0xf]
        %v1047 = vsel %vm905, %v1031, %v1046
        %1048 = vst [vmem:[%s1045] sm:$0xf] %v1047
        %1049 = vst.msk [vmem:[%s1045 + $0x4] sm:$0xf] %vm909, %v1040
        %v1050 = vld [vmem:[%s1045 + $0x8] sm:$0x1]
        %v1051 = vsel %vm912, %v1041, %v1050
        %1052 = vst [vmem:[%s1045 + $0x8] sm:$0x1] %v1051
      $region52: #{double_conv.3} parent=39 // pred_fallthru
        _
      // Predicated region
      $region53: #{double_conv.3} parent=39 // pred_check
        %p1053 = pneg %p444
      $region54: #{double_conv.3} parent=39 // pred_check_branch
        %1055 = sbr.rel (%p1053) target = $region56
      $region55: #{double_conv.3} parent=39 // pred_region
        %s1056 = scalar_lea.vmem [#allocation2], 204
        %v1057 = vld [vmem:[%s1056] sm:$0xf]
        %v1058 = vsel %vm905, 0, %v1057
        %1059 = vst [vmem:[%s1056] sm:$0xf] %v1058
        %1060 = vst.msk [vmem:[%s1056 + $0x4] sm:$0xf] %vm909, 0
        %v1061 = vld [vmem:[%s1056 + $0x8] sm:$0x1]
        %v1062 = vsel %vm912, 0, %v1061
        %1063 = vst [vmem:[%s1056 + $0x8] sm:$0x1] %v1062
      $region56: #{double_conv.3} parent=39 // pred_fallthru
        _
      %v1064 = vld [vmem:[#allocation2] sm:$0xf]
      %v1065 = vld [vmem:[#allocation2 + $0x4] sm:$0xf]
      %v1066 = vld [vmem:[#allocation2 + $0xc] sm:$0xf]
      %v1067 = vld [vmem:[#allocation2 + $0x10] sm:$0xf]
      %v1068 = vld [vmem:[#allocation2 + $0x18] sm:$0xf]
      %v1069 = vld [vmem:[#allocation2 + $0x1c] sm:$0xf]
      %v1070 = vld [vmem:[#allocation2 + $0x24] sm:$0xf]
      %v1071 = vld [vmem:[#allocation2 + $0x28] sm:$0xf]
      %v1072 = vld [vmem:[#allocation2 + $0x30] sm:$0xf]
      %v1073 = vld [vmem:[#allocation2 + $0x34] sm:$0xf]
      %v1074 = vld [vmem:[#allocation2 + $0x3c] sm:$0xf]
      %v1075 = vld [vmem:[#allocation2 + $0x40] sm:$0xf]
      %v1076 = vld [vmem:[#allocation2 + $0x48] sm:$0xf]
      %v1077 = vld [vmem:[#allocation2 + $0x4c] sm:$0xf]
      %v1078 = vld [vmem:[#allocation2 + $0x54] sm:$0xf]
      %v1079 = vld [vmem:[#allocation2 + $0x58] sm:$0xf]
      %v1080 = vld [vmem:[#allocation2 + $0x60] sm:$0xf]
      %v1081 = vld [vmem:[#allocation2 + $0x64] sm:$0xf]
      %v1082 = vld [vmem:[#allocation2 + $0x6c] sm:$0xf]
      %v1083 = vld [vmem:[#allocation2 + $0x70] sm:$0xf]
      %v1084 = vld [vmem:[#allocation2 + $0x78] sm:$0xf]
      %v1085 = vld [vmem:[#allocation2 + $0x7c] sm:$0xf]
      %v1086 = vld [vmem:[#allocation2 + $0x84] sm:$0xf]
      %v1087 = vld [vmem:[#allocation2 + $0x88] sm:$0xf]
      %v1088 = vld [vmem:[#allocation2 + $0x90] sm:$0xf]
      %v1089 = vld [vmem:[#allocation2 + $0x94] sm:$0xf]
      %v1090 = vld [vmem:[#allocation2 + $0x9c] sm:$0xf]
      %v1091 = vld [vmem:[#allocation2 + $0xa0] sm:$0xf]
      %v1092 = vld [vmem:[#allocation2 + $0xa8] sm:$0xf]
      %v1093 = vld [vmem:[#allocation2 + $0xac] sm:$0xf]
      %v1094 = vld [vmem:[#allocation2 + $0xb4] sm:$0xf]
      %v1095 = vld [vmem:[#allocation2 + $0xb8] sm:$0xf]
      %v1096 = vld [vmem:[%s387] sm:$0x3]
      %v1097 = vld [vmem:[#allocation2 + $0x8] sm:$0x1]
      %v1098 = vld [vmem:[#allocation2 + $0x14] sm:$0x1]
      %v1099 = vld [vmem:[#allocation2 + $0x20] sm:$0x1]
      %v1100 = vld [vmem:[#allocation2 + $0x2c] sm:$0x1]
      %v1101 = vld [vmem:[#allocation2 + $0x38] sm:$0x1]
      %v1102 = vld [vmem:[#allocation2 + $0x44] sm:$0x1]
      %v1103 = vld [vmem:[#allocation2 + $0x50] sm:$0x1]
      %v1104 = vld [vmem:[#allocation2 + $0x5c] sm:$0x1]
      %v1105 = vld [vmem:[#allocation2 + $0x68] sm:$0x1]
      %v1106 = vld [vmem:[#allocation2 + $0x74] sm:$0x1]
      %v1107 = vld [vmem:[#allocation2 + $0x80] sm:$0x1]
      %v1108 = vld [vmem:[#allocation2 + $0x8c] sm:$0x1]
      %v1109 = vld [vmem:[#allocation2 + $0x98] sm:$0x1]
      %v1110 = vld [vmem:[#allocation2 + $0xa4] sm:$0x1]
      %v1111 = vld [vmem:[#allocation2 + $0xb0] sm:$0x1]
      %v1112 = vld [vmem:[#allocation2 + $0xbc] sm:$0x1]
      %vm1113 = vsmask.f32 3328
      %vm1114 = vsmask.f32 7440
      %vm1115 = vmor %vm1113, %vm1114
      %v1117 = vshrl.u32 %v1064, 16
      %v1119 = vrot.slane %v1117, 4
      %v1120 = vshll.u32 %v1064, 16
      %v1122 = vrot.slane %v1120, 5
      %v1123 = vor.u32 %v1119, %v1122
      %v1124 = vrot.slane %v1123, 4
      %v1126 = vshll.u32 %v1065, 16
      %v1128 = vrot.slane %v1126, 5
      %v1129 = vsel %vm1115, %v1124, %v1128
      %v1130 = vshrl.u32 %v1065, 16
      %v1132 = vrot.slane %v1130, 4
      %v1133 = vor.u32 %v1132, %v1128
      %v1134 = vrot.slane %v1133, 4
      %v1136 = vshll.u32 %v1097, 16
      %v1138 = vrot.slane %v1136, 5
      %v1139 = vsel %vm1115, %v1134, %v1138
      %v1141 = vshrl.u32 %v1066, 16
      %v1143 = vrot.slane %v1141, 4
      %v1144 = vshll.u32 %v1066, 16
      %v1146 = vrot.slane %v1144, 5
      %v1147 = vor.u32 %v1143, %v1146
      %v1148 = vrot.slane %v1147, 4
      %v1150 = vshll.u32 %v1067, 16
      %v1152 = vrot.slane %v1150, 5
      %v1153 = vsel %vm1115, %v1148, %v1152
      %v1154 = vshrl.u32 %v1067, 16
      %v1156 = vrot.slane %v1154, 4
      %v1157 = vor.u32 %v1156, %v1152
      %v1158 = vrot.slane %v1157, 4
      %v1160 = vshll.u32 %v1098, 16
      %v1162 = vrot.slane %v1160, 5
      %v1163 = vsel %vm1115, %v1158, %v1162
      %v1165 = vshrl.u32 %v1068, 16
      %v1167 = vrot.slane %v1165, 4
      %v1168 = vshll.u32 %v1068, 16
      %v1170 = vrot.slane %v1168, 5
      %v1171 = vor.u32 %v1167, %v1170
      %v1172 = vrot.slane %v1171, 4
      %v1174 = vshll.u32 %v1069, 16
      %v1176 = vrot.slane %v1174, 5
      %v1177 = vsel %vm1115, %v1172, %v1176
      %v1178 = vshrl.u32 %v1069, 16
      %v1180 = vrot.slane %v1178, 4
      %v1181 = vor.u32 %v1180, %v1176
      %v1182 = vrot.slane %v1181, 4
      %v1184 = vshll.u32 %v1099, 16
      %v1186 = vrot.slane %v1184, 5
      %v1187 = vsel %vm1115, %v1182, %v1186
      %v1189 = vshrl.u32 %v1070, 16
      %v1191 = vrot.slane %v1189, 4
      %v1192 = vshll.u32 %v1070, 16
      %v1194 = vrot.slane %v1192, 5
      %v1195 = vor.u32 %v1191, %v1194
      %v1196 = vrot.slane %v1195, 4
      %v1198 = vshll.u32 %v1071, 16
      %v1200 = vrot.slane %v1198, 5
      %v1201 = vsel %vm1115, %v1196, %v1200
      %v1202 = vshrl.u32 %v1071, 16
      %v1204 = vrot.slane %v1202, 4
      %v1205 = vor.u32 %v1204, %v1200
      %v1206 = vrot.slane %v1205, 4
      %v1208 = vshll.u32 %v1100, 16
      %v1210 = vrot.slane %v1208, 5
      %v1211 = vsel %vm1115, %v1206, %v1210
      %v1213 = vshrl.u32 %v1072, 16
      %v1215 = vrot.slane %v1213, 4
      %v1216 = vshll.u32 %v1072, 16
      %v1218 = vrot.slane %v1216, 5
      %v1219 = vor.u32 %v1215, %v1218
      %v1220 = vrot.slane %v1219, 4
      %v1222 = vshll.u32 %v1073, 16
      %v1224 = vrot.slane %v1222, 5
      %v1225 = vsel %vm1115, %v1220, %v1224
      %v1226 = vshrl.u32 %v1073, 16
      %v1228 = vrot.slane %v1226, 4
      %v1229 = vor.u32 %v1228, %v1224
      %v1230 = vrot.slane %v1229, 4
      %v1232 = vshll.u32 %v1101, 16
      %v1234 = vrot.slane %v1232, 5
      %v1235 = vsel %vm1115, %v1230, %v1234
      %v1237 = vshrl.u32 %v1074, 16
      %v1239 = vrot.slane %v1237, 4
      %v1240 = vshll.u32 %v1074, 16
      %v1242 = vrot.slane %v1240, 5
      %v1243 = vor.u32 %v1239, %v1242
      %v1244 = vrot.slane %v1243, 4
      %v1246 = vshll.u32 %v1075, 16
      %v1248 = vrot.slane %v1246, 5
      %v1249 = vsel %vm1115, %v1244, %v1248
      %v1250 = vshrl.u32 %v1075, 16
      %v1252 = vrot.slane %v1250, 4
      %v1253 = vor.u32 %v1252, %v1248
      %v1254 = vrot.slane %v1253, 4
      %v1256 = vshll.u32 %v1102, 16
      %v1258 = vrot.slane %v1256, 5
      %v1259 = vsel %vm1115, %v1254, %v1258
      %v1261 = vshrl.u32 %v1076, 16
      %v1263 = vrot.slane %v1261, 4
      %v1264 = vshll.u32 %v1076, 16
      %v1266 = vrot.slane %v1264, 5
      %v1267 = vor.u32 %v1263, %v1266
      %v1268 = vrot.slane %v1267, 4
      %v1270 = vshll.u32 %v1077, 16
      %v1272 = vrot.slane %v1270, 5
      %v1273 = vsel %vm1115, %v1268, %v1272
      %v1274 = vshrl.u32 %v1077, 16
      %v1276 = vrot.slane %v1274, 4
      %v1277 = vor.u32 %v1276, %v1272
      %v1278 = vrot.slane %v1277, 4
      %v1280 = vshll.u32 %v1103, 16
      %v1282 = vrot.slane %v1280, 5
      %v1283 = vsel %vm1115, %v1278, %v1282
      %v1285 = vshrl.u32 %v1078, 16
      %v1287 = vrot.slane %v1285, 4
      %v1288 = vshll.u32 %v1078, 16
      %v1290 = vrot.slane %v1288, 5
      %v1291 = vor.u32 %v1287, %v1290
      %v1292 = vrot.slane %v1291, 4
      %v1294 = vshll.u32 %v1079, 16
      %v1296 = vrot.slane %v1294, 5
      %v1297 = vsel %vm1115, %v1292, %v1296
      %v1298 = vshrl.u32 %v1079, 16
      %v1300 = vrot.slane %v1298, 4
      %v1301 = vor.u32 %v1300, %v1296
      %v1302 = vrot.slane %v1301, 4
      %v1304 = vshll.u32 %v1104, 16
      %v1306 = vrot.slane %v1304, 5
      %v1307 = vsel %vm1115, %v1302, %v1306
      %v1309 = vshrl.u32 %v1080, 16
      %v1311 = vrot.slane %v1309, 4
      %v1312 = vshll.u32 %v1080, 16
      %v1314 = vrot.slane %v1312, 5
      %v1315 = vor.u32 %v1311, %v1314
      %v1316 = vrot.slane %v1315, 4
      %v1318 = vshll.u32 %v1081, 16
      %v1320 = vrot.slane %v1318, 5
      %v1321 = vsel %vm1115, %v1316, %v1320
      %v1322 = vshrl.u32 %v1081, 16
      %v1324 = vrot.slane %v1322, 4
      %v1325 = vor.u32 %v1324, %v1320
      %v1326 = vrot.slane %v1325, 4
      %v1328 = vshll.u32 %v1105, 16
      %v1330 = vrot.slane %v1328, 5
      %v1331 = vsel %vm1115, %v1326, %v1330
      %v1333 = vshrl.u32 %v1082, 16
      %v1335 = vrot.slane %v1333, 4
      %v1336 = vshll.u32 %v1082, 16
      %v1338 = vrot.slane %v1336, 5
      %v1339 = vor.u32 %v1335, %v1338
      %v1340 = vrot.slane %v1339, 4
      %v1342 = vshll.u32 %v1083, 16
      %v1344 = vrot.slane %v1342, 5
      %v1345 = vsel %vm1115, %v1340, %v1344
      %v1346 = vshrl.u32 %v1083, 16
      %v1348 = vrot.slane %v1346, 4
      %v1349 = vor.u32 %v1348, %v1344
      %v1350 = vrot.slane %v1349, 4
      %v1352 = vshll.u32 %v1106, 16
      %v1354 = vrot.slane %v1352, 5
      %v1355 = vsel %vm1115, %v1350, %v1354
      %v1357 = vshrl.u32 %v1084, 16
      %v1359 = vrot.slane %v1357, 4
      %v1360 = vshll.u32 %v1084, 16
      %v1362 = vrot.slane %v1360, 5
      %v1363 = vor.u32 %v1359, %v1362
      %v1364 = vrot.slane %v1363, 4
      %v1366 = vshll.u32 %v1085, 16
      %v1368 = vrot.slane %v1366, 5
      %v1369 = vsel %vm1115, %v1364, %v1368
      %v1370 = vshrl.u32 %v1085, 16
      %v1372 = vrot.slane %v1370, 4
      %v1373 = vor.u32 %v1372, %v1368
      %v1374 = vrot.slane %v1373, 4
      %v1376 = vshll.u32 %v1107, 16
      %v1378 = vrot.slane %v1376, 5
      %v1379 = vsel %vm1115, %v1374, %v1378
      %v1381 = vshrl.u32 %v1086, 16
      %v1383 = vrot.slane %v1381, 4
      %v1384 = vshll.u32 %v1086, 16
      %v1386 = vrot.slane %v1384, 5
      %v1387 = vor.u32 %v1383, %v1386
      %v1388 = vrot.slane %v1387, 4
      %v1390 = vshll.u32 %v1087, 16
      %v1392 = vrot.slane %v1390, 5
      %v1393 = vsel %vm1115, %v1388, %v1392
      %v1394 = vshrl.u32 %v1087, 16
      %v1396 = vrot.slane %v1394, 4
      %v1397 = vor.u32 %v1396, %v1392
      %v1398 = vrot.slane %v1397, 4
      %v1400 = vshll.u32 %v1108, 16
      %v1402 = vrot.slane %v1400, 5
      %v1403 = vsel %vm1115, %v1398, %v1402
      %v1405 = vshrl.u32 %v1088, 16
      %v1407 = vrot.slane %v1405, 4
      %v1408 = vshll.u32 %v1088, 16
      %v1410 = vrot.slane %v1408, 5
      %v1411 = vor.u32 %v1407, %v1410
      %v1412 = vrot.slane %v1411, 4
      %v1414 = vshll.u32 %v1089, 16
      %v1416 = vrot.slane %v1414, 5
      %v1417 = vsel %vm1115, %v1412, %v1416
      %v1418 = vshrl.u32 %v1089, 16
      %v1420 = vrot.slane %v1418, 4
      %v1421 = vor.u32 %v1420, %v1416
      %v1422 = vrot.slane %v1421, 4
      %v1424 = vshll.u32 %v1109, 16
      %v1426 = vrot.slane %v1424, 5
      %v1427 = vsel %vm1115, %v1422, %v1426
      %v1429 = vshrl.u32 %v1090, 16
      %v1431 = vrot.slane %v1429, 4
      %v1432 = vshll.u32 %v1090, 16
      %v1434 = vrot.slane %v1432, 5
      %v1435 = vor.u32 %v1431, %v1434
      %v1436 = vrot.slane %v1435, 4
      %v1438 = vshll.u32 %v1091, 16
      %v1440 = vrot.slane %v1438, 5
      %v1441 = vsel %vm1115, %v1436, %v1440
      %v1442 = vshrl.u32 %v1091, 16
      %v1444 = vrot.slane %v1442, 4
      %v1445 = vor.u32 %v1444, %v1440
      %v1446 = vrot.slane %v1445, 4
      %v1448 = vshll.u32 %v1110, 16
      %v1450 = vrot.slane %v1448, 5
      %v1451 = vsel %vm1115, %v1446, %v1450
      %v1453 = vshrl.u32 %v1092, 16
      %v1455 = vrot.slane %v1453, 4
      %v1456 = vshll.u32 %v1092, 16
      %v1458 = vrot.slane %v1456, 5
      %v1459 = vor.u32 %v1455, %v1458
      %v1460 = vrot.slane %v1459, 4
      %v1462 = vshll.u32 %v1093, 16
      %v1464 = vrot.slane %v1462, 5
      %v1465 = vsel %vm1115, %v1460, %v1464
      %v1466 = vshrl.u32 %v1093, 16
      %v1468 = vrot.slane %v1466, 4
      %v1469 = vor.u32 %v1468, %v1464
      %v1470 = vrot.slane %v1469, 4
      %v1472 = vshll.u32 %v1111, 16
      %v1474 = vrot.slane %v1472, 5
      %v1475 = vsel %vm1115, %v1470, %v1474
      %v1477 = vshrl.u32 %v1094, 16
      %v1479 = vrot.slane %v1477, 4
      %v1480 = vshll.u32 %v1094, 16
      %v1482 = vrot.slane %v1480, 5
      %v1483 = vor.u32 %v1479, %v1482
      %v1484 = vrot.slane %v1483, 4
      %v1486 = vshll.u32 %v1095, 16
      %v1488 = vrot.slane %v1486, 5
      %v1489 = vsel %vm1115, %v1484, %v1488
      %v1490 = vshrl.u32 %v1095, 16
      %v1492 = vrot.slane %v1490, 4
      %v1493 = vor.u32 %v1492, %v1488
      %v1494 = vrot.slane %v1493, 4
      %v1496 = vshll.u32 %v1112, 16
      %v1498 = vrot.slane %v1496, 5
      %v1499 = vsel %vm1115, %v1494, %v1498
      %v1500 = vld [vmem:[%s387] sm:$0xc]
      %v1501 = vunpack.c.l.b16 %v1129
      %v1502 = vunpack.c.l.b16 %v1139
      %v1503 = vunpack.c.l.b16 %v1153
      %v1504 = vunpack.c.l.b16 %v1163
      %v1505 = vunpack.c.l.b16 %v1177
      %v1506 = vunpack.c.l.b16 %v1187
      %v1507 = vunpack.c.l.b16 %v1201
      %v1508 = vunpack.c.l.b16 %v1211
      %v1509 = vunpack.c.l.b16 %v1225
      %v1510 = vunpack.c.l.b16 %v1235
      %v1511 = vunpack.c.l.b16 %v1249
      %v1512 = vunpack.c.l.b16 %v1259
      %v1513 = vunpack.c.l.b16 %v1273
      %v1514 = vunpack.c.l.b16 %v1283
      %v1515 = vunpack.c.l.b16 %v1297
      %v1516 = vunpack.c.l.b16 %v1307
      %v1517 = vunpack.c.l.b16 %v1321
      %v1518 = vunpack.c.l.b16 %v1331
      %v1519 = vunpack.c.l.b16 %v1345
      %v1520 = vunpack.c.l.b16 %v1355
      %v1521 = vunpack.c.l.b16 %v1369
      %v1522 = vunpack.c.l.b16 %v1379
      %v1523 = vunpack.c.l.b16 %v1393
      %v1524 = vunpack.c.l.b16 %v1403
      %v1525 = vunpack.c.l.b16 %v1417
      %v1526 = vunpack.c.l.b16 %v1427
      %v1527 = vunpack.c.l.b16 %v1441
      %v1528 = vunpack.c.l.b16 %v1451
      %v1529 = vunpack.c.l.b16 %v1465
      %v1530 = vunpack.c.l.b16 %v1475
      %v1531 = vunpack.c.l.b16 %v1489
      %v1532 = vunpack.c.l.b16 %v1499
      %v1533 = vpack.c.b16 %v1502, %v1501
      %v1534 = vpack.c.b16 %v1504, %v1503
      %v1535 = vpack.c.b16 %v1506, %v1505
      %v1536 = vpack.c.b16 %v1508, %v1507
      %v1537 = vpack.c.b16 %v1510, %v1509
      %v1538 = vpack.c.b16 %v1512, %v1511
      %v1539 = vpack.c.b16 %v1514, %v1513
      %v1540 = vpack.c.b16 %v1516, %v1515
      %v1541 = vpack.c.b16 %v1518, %v1517
      %v1542 = vpack.c.b16 %v1520, %v1519
      %v1543 = vpack.c.b16 %v1522, %v1521
      %v1544 = vpack.c.b16 %v1524, %v1523
      %v1545 = vpack.c.b16 %v1526, %v1525
      %v1546 = vpack.c.b16 %v1528, %v1527
      %v1547 = vpack.c.b16 %v1530, %v1529
      %v1548 = vpack.c.b16 %v1532, %v1531
      %v1550 = vunpack.c.l.b16 %v1500
      %v1551 = vpack.c.b16 %v1550, %v1550
      %v1552 = vrot.slane %v1551, 2
      %vm1553 = vcmask 31744
      %v1555 = vsel %vm1553, %v1533, 0
      %v1558 = vsel %vm1553, %v1534, 0
      %v1561 = vsel %vm1553, %v1535, 0
      %v1564 = vsel %vm1553, %v1536, 0
      %v1567 = vsel %vm1553, %v1537, 0
      %v1570 = vsel %vm1553, %v1538, 0
      %v1573 = vsel %vm1553, %v1539, 0
      %v1576 = vsel %vm1553, %v1540, 0
      %v1579 = vsel %vm1553, %v1541, 0
      %v1582 = vsel %vm1553, %v1542, 0
      %v1585 = vsel %vm1553, %v1543, 0
      %v1588 = vsel %vm1553, %v1544, 0
      %v1591 = vsel %vm1553, %v1545, 0
      %v1594 = vsel %vm1553, %v1546, 0
      %v1597 = vsel %vm1553, %v1547, 0
      %v1600 = vsel %vm1553, %v1548, 0
      %vm1602 = vcmask 1041408
      %v1604 = vsel %vm1602, %v1552, 0
      %1606 = vmatprep.subr.bf16.mxu0 0
      %1607 = vmatpush1.bf16.msra.mxu0 %v1604
      %1608 = vmatprep.subr.bf16.mxu0 0
      %1609 = vmatpush1.bf16.msra.mxu0 0
      %1610 = vmatprep.subr.bf16.mxu0 0
      %1611 = vmatpush1.bf16.msra.mxu0 0
      %1612 = vmatprep.subr.bf16.mxu0 0
      %1613 = vmatpush1.bf16.msra.mxu0 0
      %1614 = vmatprep.subr.bf16.mxu0 0
      %1615 = vmatpush1.bf16.msra.mxu0 0
      %1616 = vmatprep.subr.bf16.mxu0 0
      %1617 = vmatpush1.bf16.msra.mxu0 0
      %1618 = vmatprep.subr.bf16.mxu0 0
      %1619 = vmatpush1.bf16.msra.mxu0 0
      %1620 = vmatprep.subr.bf16.mxu0 0
      %1621 = vmatpush1.bf16.msra.mxu0 0
      %1622 = vmatprep.subr.bf16.mxu0 0
      %1623 = vmatpush1.bf16.msra.mxu0 0
      %1624 = vmatprep.subr.bf16.mxu0 0
      %1625 = vmatpush1.bf16.msra.mxu0 0
      %1626 = vmatprep.subr.bf16.mxu0 0
      %1627 = vmatpush1.bf16.msra.mxu0 0
      %1628 = vmatprep.subr.bf16.mxu0 0
      %1629 = vmatpush1.bf16.msra.mxu0 0
      %1630 = vmatprep.subr.bf16.mxu0 0
      %1631 = vmatpush1.bf16.msra.mxu0 0
      %1632 = vmatprep.subr.bf16.mxu0 0
      %1633 = vmatpush1.bf16.msra.mxu0 0
      %1634 = vmatprep.subr.bf16.mxu0 0
      %1635 = vmatpush1.bf16.msra.mxu0 0
      %1636 = vmatprep.subr.bf16.mxu0 0
      %1637 = vmatpush1.bf16.msra.mxu0 0
      %1638 = vmatprep.mubr.bf16.mxu0 0
      %1639 = vmatmul.mubr.bf16.gmra.mrb[0].mxu0 %v1555
      %v1640 = vpop.f32.mrb[0].mxu0
      %v1641 = vadd.f32 0.0, %v1640
      %v1642 = vpop.f32.mrb[0].mxu0
      %v1643 = vpop.f32.mrb[0].mxu0
      %v1644 = vadd.f32 0.0, %v1643
      %v1645 = vpop.f32.mrb[0].mxu0
      %1646 = vmatprep.mubr.bf16.mxu0 0
      %1647 = vmatmul.mubr.bf16.gmra.mrb[0].mxu0 %v1558
      %v1648 = vpop.f32.mrb[0].mxu0
      %v1649 = vadd.f32 0.0, %v1648
      %v1650 = vpop.f32.mrb[0].mxu0
      %v1651 = vpop.f32.mrb[0].mxu0
      %v1652 = vadd.f32 0.0, %v1651
      %v1653 = vpop.f32.mrb[0].mxu0
      %1654 = vmatprep.mubr.bf16.mxu0 0
      %1655 = vmatmul.mubr.bf16.gmra.mrb[0].mxu0 %v1561
      %v1656 = vpop.f32.mrb[0].mxu0
      %v1657 = vadd.f32 0.0, %v1656
      %v1658 = vpop.f32.mrb[0].mxu0
      %v1659 = vpop.f32.mrb[0].mxu0
      %v1660 = vadd.f32 0.0, %v1659
      %v1661 = vpop.f32.mrb[0].mxu0
      %1662 = vmatprep.mubr.bf16.mxu0 0
      %1663 = vmatmul.mubr.bf16.gmra.mrb[0].mxu0 %v1564
      %v1664 = vpop.f32.mrb[0].mxu0
      %v1665 = vadd.f32 0.0, %v1664
      %v1666 = vpop.f32.mrb[0].mxu0
      %v1667 = vpop.f32.mrb[0].mxu0
      %v1668 = vadd.f32 0.0, %v1667
      %v1669 = vpop.f32.mrb[0].mxu0
      %1670 = vmatprep.mubr.bf16.mxu0 0
      %1671 = vmatmul.mubr.bf16.gmra.mrb[0].mxu0 %v1567
      %v1672 = vpop.f32.mrb[0].mxu0
      %v1673 = vadd.f32 0.0, %v1672
      %v1674 = vpop.f32.mrb[0].mxu0
      %v1675 = vpop.f32.mrb[0].mxu0
      %v1676 = vadd.f32 0.0, %v1675
      %v1677 = vpop.f32.mrb[0].mxu0
      %1678 = vmatprep.mubr.bf16.mxu0 0
      %1679 = vmatmul.mubr.bf16.gmra.mrb[0].mxu0 %v1570
      %v1680 = vpop.f32.mrb[0].mxu0
      %v1681 = vadd.f32 0.0, %v1680
      %v1682 = vpop.f32.mrb[0].mxu0
      %v1683 = vpop.f32.mrb[0].mxu0
      %v1684 = vadd.f32 0.0, %v1683
      %v1685 = vpop.f32.mrb[0].mxu0
      %1686 = vmatprep.mubr.bf16.mxu0 0
      %1687 = vmatmul.mubr.bf16.gmra.mrb[0].mxu0 %v1573
      %v1688 = vpop.f32.mrb[0].mxu0
      %v1689 = vadd.f32 0.0, %v1688
      %v1690 = vpop.f32.mrb[0].mxu0
      %v1691 = vpop.f32.mrb[0].mxu0
      %v1692 = vadd.f32 0.0, %v1691
      %v1693 = vpop.f32.mrb[0].mxu0
      %1694 = vmatprep.mubr.bf16.mxu0 0
      %1695 = vmatmul.mubr.bf16.gmra.mrb[0].mxu0 %v1576
      %v1696 = vpop.f32.mrb[0].mxu0
      %v1697 = vadd.f32 0.0, %v1696
      %v1698 = vpop.f32.mrb[0].mxu0
      %v1699 = vpop.f32.mrb[0].mxu0
      %v1700 = vadd.f32 0.0, %v1699
      %v1701 = vpop.f32.mrb[0].mxu0
      %1702 = vmatprep.mubr.bf16.mxu0 0
      %1703 = vmatmul.mubr.bf16.gmra.mrb[0].mxu0 %v1579
      %v1704 = vpop.f32.mrb[0].mxu0
      %v1705 = vadd.f32 0.0, %v1704
      %v1706 = vpop.f32.mrb[0].mxu0
      %v1707 = vpop.f32.mrb[0].mxu0
      %v1708 = vadd.f32 0.0, %v1707
      %v1709 = vpop.f32.mrb[0].mxu0
      %1710 = vmatprep.mubr.bf16.mxu0 0
      %1711 = vmatmul.mubr.bf16.gmra.mrb[0].mxu0 %v1582
      %v1712 = vpop.f32.mrb[0].mxu0
      %v1713 = vadd.f32 0.0, %v1712
      %v1714 = vpop.f32.mrb[0].mxu0
      %v1715 = vpop.f32.mrb[0].mxu0
      %v1716 = vadd.f32 0.0, %v1715
      %v1717 = vpop.f32.mrb[0].mxu0
      %1718 = vmatprep.mubr.bf16.mxu0 0
      %1719 = vmatmul.mubr.bf16.gmra.mrb[0].mxu0 %v1585
      %v1720 = vpop.f32.mrb[0].mxu0
      %v1721 = vadd.f32 0.0, %v1720
      %v1722 = vpop.f32.mrb[0].mxu0
      %v1723 = vpop.f32.mrb[0].mxu0
      %v1724 = vadd.f32 0.0, %v1723
      %v1725 = vpop.f32.mrb[0].mxu0
      %1726 = vmatprep.mubr.bf16.mxu0 0
      %1727 = vmatmul.mubr.bf16.gmra.mrb[0].mxu0 %v1588
      %v1728 = vpop.f32.mrb[0].mxu0
      %v1729 = vadd.f32 0.0, %v1728
      %v1730 = vpop.f32.mrb[0].mxu0
      %v1731 = vpop.f32.mrb[0].mxu0
      %v1732 = vadd.f32 0.0, %v1731
      %v1733 = vpop.f32.mrb[0].mxu0
      %1734 = vmatprep.mubr.bf16.mxu0 0
      %1735 = vmatmul.mubr.bf16.gmra.mrb[0].mxu0 %v1591
      %v1736 = vpop.f32.mrb[0].mxu0
      %v1737 = vadd.f32 0.0, %v1736
      %v1738 = vpop.f32.mrb[0].mxu0
      %v1739 = vpop.f32.mrb[0].mxu0
      %v1740 = vadd.f32 0.0, %v1739
      %v1741 = vpop.f32.mrb[0].mxu0
      %1742 = vmatprep.mubr.bf16.mxu0 0
      %1743 = vmatmul.mubr.bf16.gmra.mrb[0].mxu0 %v1594
      %v1744 = vpop.f32.mrb[0].mxu0
      %v1745 = vadd.f32 0.0, %v1744
      %v1746 = vpop.f32.mrb[0].mxu0
      %v1747 = vpop.f32.mrb[0].mxu0
      %v1748 = vadd.f32 0.0, %v1747
      %v1749 = vpop.f32.mrb[0].mxu0
      %1750 = vmatprep.mubr.bf16.mxu0 0
      %1751 = vmatmul.mubr.bf16.gmra.mrb[0].mxu0 %v1597
      %v1752 = vpop.f32.mrb[0].mxu0
      %v1753 = vadd.f32 0.0, %v1752
      %v1754 = vpop.f32.mrb[0].mxu0
      %v1755 = vpop.f32.mrb[0].mxu0
      %v1756 = vadd.f32 0.0, %v1755
      %v1757 = vpop.f32.mrb[0].mxu0
      %1758 = vmatprep.mubr.bf16.mxu0 0
      %1759 = vmatmul.mubr.bf16.gmra.mrb[0].mxu0 %v1600
      %v1760 = vpop.f32.mrb[0].mxu0
      %v1761 = vadd.f32 0.0, %v1760
      %v1762 = vpop.f32.mrb[0].mxu0
      %v1763 = vpop.f32.mrb[0].mxu0
      %v1764 = vadd.f32 0.0, %v1763
      %v1765 = vpop.f32.mrb[0].mxu0
      %1766 = vdwg.mxu0
      %v1799 = vunpack.c.l.b16 %v1064
      %v1800 = vunpack.c.l.b16 %v1065
      %v1801 = vunpack.c.l.b16 %v1066
      %v1802 = vunpack.c.l.b16 %v1067
      %v1803 = vunpack.c.l.b16 %v1068
      %v1804 = vunpack.c.l.b16 %v1069
      %v1805 = vunpack.c.l.b16 %v1070
      %v1806 = vunpack.c.l.b16 %v1071
      %v1807 = vunpack.c.l.b16 %v1072
      %v1808 = vunpack.c.l.b16 %v1073
      %v1809 = vunpack.c.l.b16 %v1074
      %v1810 = vunpack.c.l.b16 %v1075
      %v1811 = vunpack.c.l.b16 %v1076
      %v1812 = vunpack.c.l.b16 %v1077
      %v1813 = vunpack.c.l.b16 %v1078
      %v1814 = vunpack.c.l.b16 %v1079
      %v1815 = vunpack.c.l.b16 %v1080
      %v1816 = vunpack.c.l.b16 %v1081
      %v1817 = vunpack.c.l.b16 %v1082
      %v1818 = vunpack.c.l.b16 %v1083
      %v1819 = vunpack.c.l.b16 %v1084
      %v1820 = vunpack.c.l.b16 %v1085
      %v1821 = vunpack.c.l.b16 %v1086
      %v1822 = vunpack.c.l.b16 %v1087
      %v1823 = vunpack.c.l.b16 %v1088
      %v1824 = vunpack.c.l.b16 %v1089
      %v1825 = vunpack.c.l.b16 %v1090
      %v1826 = vunpack.c.l.b16 %v1091
      %v1827 = vunpack.c.l.b16 %v1092
      %v1828 = vunpack.c.l.b16 %v1093
      %v1829 = vunpack.c.l.b16 %v1094
      %v1830 = vunpack.c.l.b16 %v1095
      %v1831 = vpack.c.b16 %v1800, %v1799
      %v1832 = vpack.c.b16 %v1802, %v1801
      %v1833 = vpack.c.b16 %v1804, %v1803
      %v1834 = vpack.c.b16 %v1806, %v1805
      %v1835 = vpack.c.b16 %v1808, %v1807
      %v1836 = vpack.c.b16 %v1810, %v1809
      %v1837 = vpack.c.b16 %v1812, %v1811
      %v1838 = vpack.c.b16 %v1814, %v1813
      %v1839 = vpack.c.b16 %v1816, %v1815
      %v1840 = vpack.c.b16 %v1818, %v1817
      %v1841 = vpack.c.b16 %v1820, %v1819
      %v1842 = vpack.c.b16 %v1822, %v1821
      %v1843 = vpack.c.b16 %v1824, %v1823
      %v1844 = vpack.c.b16 %v1826, %v1825
      %v1845 = vpack.c.b16 %v1828, %v1827
      %v1846 = vpack.c.b16 %v1830, %v1829
      %v1848 = vsel %vm1553, %v1831, 0
      %v1851 = vsel %vm1553, %v1832, 0
      %v1854 = vsel %vm1553, %v1833, 0
      %v1857 = vsel %vm1553, %v1834, 0
      %v1860 = vsel %vm1553, %v1835, 0
      %v1863 = vsel %vm1553, %v1836, 0
      %v1866 = vsel %vm1553, %v1837, 0
      %v1869 = vsel %vm1553, %v1838, 0
      %v1872 = vsel %vm1553, %v1839, 0
      %v1875 = vsel %vm1553, %v1840, 0
      %v1878 = vsel %vm1553, %v1841, 0
      %v1881 = vsel %vm1553, %v1842, 0
      %v1884 = vsel %vm1553, %v1843, 0
      %v1887 = vsel %vm1553, %v1844, 0
      %v1890 = vsel %vm1553, %v1845, 0
      %v1893 = vsel %vm1553, %v1846, 0
      %v1896 = vsel %vm1602, %v1096, 0
      %1898 = vmatprep.subr.bf16.mxu0 0
      %1899 = vmatpush1.bf16.msra.mxu0 %v1896
      %1900 = vmatprep.subr.bf16.mxu0 0
      %1901 = vmatpush1.bf16.msra.mxu0 0
      %1902 = vmatprep.subr.bf16.mxu0 0
      %1903 = vmatpush1.bf16.msra.mxu0 0
      %1904 = vmatprep.subr.bf16.mxu0 0
      %1905 = vmatpush1.bf16.msra.mxu0 0
      %1906 = vmatprep.subr.bf16.mxu0 0
      %1907 = vmatpush1.bf16.msra.mxu0 0
      %1908 = vmatprep.subr.bf16.mxu0 0
      %1909 = vmatpush1.bf16.msra.mxu0 0
      %1910 = vmatprep.subr.bf16.mxu0 0
      %1911 = vmatpush1.bf16.msra.mxu0 0
      %1912 = vmatprep.subr.bf16.mxu0 0
      %1913 = vmatpush1.bf16.msra.mxu0 0
      %1914 = vmatprep.subr.bf16.mxu0 0
      %1915 = vmatpush1.bf16.msra.mxu0 0
      %1916 = vmatprep.subr.bf16.mxu0 0
      %1917 = vmatpush1.bf16.msra.mxu0 0
      %1918 = vmatprep.subr.bf16.mxu0 0
      %1919 = vmatpush1.bf16.msra.mxu0 0
      %1920 = vmatprep.subr.bf16.mxu0 0
      %1921 = vmatpush1.bf16.msra.mxu0 0
      %1922 = vmatprep.subr.bf16.mxu0 0
      %1923 = vmatpush1.bf16.msra.mxu0 0
      %1924 = vmatprep.subr.bf16.mxu0 0
      %1925 = vmatpush1.bf16.msra.mxu0 0
      %1926 = vmatprep.subr.bf16.mxu0 0
      %1927 = vmatpush1.bf16.msra.mxu0 0
      %1928 = vmatprep.subr.bf16.mxu0 0
      %1929 = vmatpush1.bf16.msra.mxu0 0
      %1930 = vmatprep.mubr.bf16.mxu0 0
      %1931 = vmatmul.mubr.bf16.gmra.mrb[0].mxu0 %v1848
      %v1932 = vpop.f32.mrb[0].mxu0
      %v1933 = vadd.f32 %v1641, %v1932
      %v1934 = vpop.f32.mrb[0].mxu0
      %v1935 = vpop.f32.mrb[0].mxu0
      %v1936 = vadd.f32 %v1644, %v1935
      %v1937 = vpop.f32.mrb[0].mxu0
      %1938 = vmatprep.mubr.bf16.mxu0 0
      %1939 = vmatmul.mubr.bf16.gmra.mrb[0].mxu0 %v1851
      %v1940 = vpop.f32.mrb[0].mxu0
      %v1941 = vadd.f32 %v1649, %v1940
      %v1942 = vpop.f32.mrb[0].mxu0
      %v1943 = vpop.f32.mrb[0].mxu0
      %v1944 = vadd.f32 %v1652, %v1943
      %v1945 = vpop.f32.mrb[0].mxu0
      %1946 = vmatprep.mubr.bf16.mxu0 0
      %1947 = vmatmul.mubr.bf16.gmra.mrb[0].mxu0 %v1854
      %v1948 = vpop.f32.mrb[0].mxu0
      %v1949 = vadd.f32 %v1657, %v1948
      %v1950 = vpop.f32.mrb[0].mxu0
      %v1951 = vpop.f32.mrb[0].mxu0
      %v1952 = vadd.f32 %v1660, %v1951
      %v1953 = vpop.f32.mrb[0].mxu0
      %1954 = vmatprep.mubr.bf16.mxu0 0
      %1955 = vmatmul.mubr.bf16.gmra.mrb[0].mxu0 %v1857
      %v1956 = vpop.f32.mrb[0].mxu0
      %v1957 = vadd.f32 %v1665, %v1956
      %v1958 = vpop.f32.mrb[0].mxu0
      %v1959 = vpop.f32.mrb[0].mxu0
      %v1960 = vadd.f32 %v1668, %v1959
      %v1961 = vpop.f32.mrb[0].mxu0
      %1962 = vmatprep.mubr.bf16.mxu0 0
      %1963 = vmatmul.mubr.bf16.gmra.mrb[0].mxu0 %v1860
      %v1964 = vpop.f32.mrb[0].mxu0
      %v1965 = vadd.f32 %v1673, %v1964
      %v1966 = vpop.f32.mrb[0].mxu0
      %v1967 = vpop.f32.mrb[0].mxu0
      %v1968 = vadd.f32 %v1676, %v1967
      %v1969 = vpop.f32.mrb[0].mxu0
      %1970 = vmatprep.mubr.bf16.mxu0 0
      %1971 = vmatmul.mubr.bf16.gmra.mrb[0].mxu0 %v1863
      %v1972 = vpop.f32.mrb[0].mxu0
      %v1973 = vadd.f32 %v1681, %v1972
      %v1974 = vpop.f32.mrb[0].mxu0
      %v1975 = vpop.f32.mrb[0].mxu0
      %v1976 = vadd.f32 %v1684, %v1975
      %v1977 = vpop.f32.mrb[0].mxu0
      %1978 = vmatprep.mubr.bf16.mxu0 0
      %1979 = vmatmul.mubr.bf16.gmra.mrb[0].mxu0 %v1866
      %v1980 = vpop.f32.mrb[0].mxu0
      %v1981 = vadd.f32 %v1689, %v1980
      %v1982 = vpop.f32.mrb[0].mxu0
      %v1983 = vpop.f32.mrb[0].mxu0
      %v1984 = vadd.f32 %v1692, %v1983
      %v1985 = vpop.f32.mrb[0].mxu0
      %1986 = vmatprep.mubr.bf16.mxu0 0
      %1987 = vmatmul.mubr.bf16.gmra.mrb[0].mxu0 %v1869
      %v1988 = vpop.f32.mrb[0].mxu0
      %v1989 = vadd.f32 %v1697, %v1988
      %v1990 = vpop.f32.mrb[0].mxu0
      %v1991 = vpop.f32.mrb[0].mxu0
      %v1992 = vadd.f32 %v1700, %v1991
      %v1993 = vpop.f32.mrb[0].mxu0
      %1994 = vmatprep.mubr.bf16.mxu0 0
      %1995 = vmatmul.mubr.bf16.gmra.mrb[0].mxu0 %v1872
      %v1996 = vpop.f32.mrb[0].mxu0
      %v1997 = vadd.f32 %v1705, %v1996
      %v1998 = vpop.f32.mrb[0].mxu0
      %v1999 = vpop.f32.mrb[0].mxu0
      %v2000 = vadd.f32 %v1708, %v1999
      %v2001 = vpop.f32.mrb[0].mxu0
      %2002 = vmatprep.mubr.bf16.mxu0 0
      %2003 = vmatmul.mubr.bf16.gmra.mrb[0].mxu0 %v1875
      %v2004 = vpop.f32.mrb[0].mxu0
      %v2005 = vadd.f32 %v1713, %v2004
      %v2006 = vpop.f32.mrb[0].mxu0
      %v2007 = vpop.f32.mrb[0].mxu0
      %v2008 = vadd.f32 %v1716, %v2007
      %v2009 = vpop.f32.mrb[0].mxu0
      %2010 = vmatprep.mubr.bf16.mxu0 0
      %2011 = vmatmul.mubr.bf16.gmra.mrb[0].mxu0 %v1878
      %v2012 = vpop.f32.mrb[0].mxu0
      %v2013 = vadd.f32 %v1721, %v2012
      %v2014 = vpop.f32.mrb[0].mxu0
      %v2015 = vpop.f32.mrb[0].mxu0
      %v2016 = vadd.f32 %v1724, %v2015
      %v2017 = vpop.f32.mrb[0].mxu0
      %2018 = vmatprep.mubr.bf16.mxu0 0
      %2019 = vmatmul.mubr.bf16.gmra.mrb[0].mxu0 %v1881
      %v2020 = vpop.f32.mrb[0].mxu0
      %v2021 = vadd.f32 %v1729, %v2020
      %v2022 = vpop.f32.mrb[0].mxu0
      %v2023 = vpop.f32.mrb[0].mxu0
      %v2024 = vadd.f32 %v1732, %v2023
      %v2025 = vpop.f32.mrb[0].mxu0
      %2026 = vmatprep.mubr.bf16.mxu0 0
      %2027 = vmatmul.mubr.bf16.gmra.mrb[0].mxu0 %v1884
      %v2028 = vpop.f32.mrb[0].mxu0
      %v2029 = vadd.f32 %v1737, %v2028
      %v2030 = vpop.f32.mrb[0].mxu0
      %v2031 = vpop.f32.mrb[0].mxu0
      %v2032 = vadd.f32 %v1740, %v2031
      %v2033 = vpop.f32.mrb[0].mxu0
      %2034 = vmatprep.mubr.bf16.mxu0 0
      %2035 = vmatmul.mubr.bf16.gmra.mrb[0].mxu0 %v1887
      %v2036 = vpop.f32.mrb[0].mxu0
      %v2037 = vadd.f32 %v1745, %v2036
      %v2038 = vpop.f32.mrb[0].mxu0
      %v2039 = vpop.f32.mrb[0].mxu0
      %v2040 = vadd.f32 %v1748, %v2039
      %v2041 = vpop.f32.mrb[0].mxu0
      %2042 = vmatprep.mubr.bf16.mxu0 0
      %2043 = vmatmul.mubr.bf16.gmra.mrb[0].mxu0 %v1890
      %v2044 = vpop.f32.mrb[0].mxu0
      %v2045 = vadd.f32 %v1753, %v2044
      %v2046 = vpop.f32.mrb[0].mxu0
      %v2047 = vpop.f32.mrb[0].mxu0
      %v2048 = vadd.f32 %v1756, %v2047
      %v2049 = vpop.f32.mrb[0].mxu0
      %2050 = vmatprep.mubr.bf16.mxu0 0
      %2051 = vmatmul.mubr.bf16.gmra.mrb[0].mxu0 %v1893
      %v2052 = vpop.f32.mrb[0].mxu0
      %v2053 = vadd.f32 %v1761, %v2052
      %v2054 = vpop.f32.mrb[0].mxu0
      %v2055 = vpop.f32.mrb[0].mxu0
      %v2056 = vadd.f32 %v1764, %v2055
      %v2057 = vpop.f32.mrb[0].mxu0
      %2058 = vdwg.mxu0
      %v2059 = vld [vmem:[#allocation2] sm:$0xe]
      %v2060 = vld [vmem:[#allocation2 + $0xc] sm:$0xe]
      %v2061 = vld [vmem:[#allocation2 + $0x18] sm:$0xe]
      %v2062 = vld [vmem:[#allocation2 + $0x24] sm:$0xe]
      %v2063 = vld [vmem:[#allocation2 + $0x30] sm:$0xe]
      %v2064 = vld [vmem:[#allocation2 + $0x3c] sm:$0xe]
      %v2065 = vld [vmem:[#allocation2 + $0x48] sm:$0xe]
      %v2066 = vld [vmem:[#allocation2 + $0x54] sm:$0xe]
      %v2067 = vld [vmem:[#allocation2 + $0x60] sm:$0xe]
      %v2068 = vld [vmem:[#allocation2 + $0x6c] sm:$0xe]
      %v2069 = vld [vmem:[#allocation2 + $0x78] sm:$0xe]
      %v2070 = vld [vmem:[#allocation2 + $0x84] sm:$0xe]
      %v2071 = vld [vmem:[#allocation2 + $0x90] sm:$0xe]
      %v2072 = vld [vmem:[#allocation2 + $0x9c] sm:$0xe]
      %v2073 = vld [vmem:[#allocation2 + $0xa8] sm:$0xe]
      %v2074 = vld [vmem:[#allocation2 + $0xb4] sm:$0xe]
      %vm2107 = vcmask 1042432
      %vm2108 = vcmask 1046532
      %vm2109 = vmor %vm2107, %vm2108
      %v2110 = vrot.slane %v2059, 5
      %v2111 = vrot.slane %v2110, 4
      %v2112 = vrot.slane %v1065, 5
      %v2113 = vsel %vm2109, %v2111, %v2112
      %v2114 = vrot.slane %v2112, 4
      %v2115 = vrot.slane %v1097, 5
      %v2116 = vsel %vm2109, %v2114, %v2115
      %v2117 = vrot.slane %v2060, 5
      %v2118 = vrot.slane %v2117, 4
      %v2119 = vrot.slane %v1067, 5
      %v2120 = vsel %vm2109, %v2118, %v2119
      %v2121 = vrot.slane %v2119, 4
      %v2122 = vrot.slane %v1098, 5
      %v2123 = vsel %vm2109, %v2121, %v2122
      %v2124 = vrot.slane %v2061, 5
      %v2125 = vrot.slane %v2124, 4
      %v2126 = vrot.slane %v1069, 5
      %v2127 = vsel %vm2109, %v2125, %v2126
      %v2128 = vrot.slane %v2126, 4
      %v2129 = vrot.slane %v1099, 5
      %v2130 = vsel %vm2109, %v2128, %v2129
      %v2131 = vrot.slane %v2062, 5
      %v2132 = vrot.slane %v2131, 4
      %v2133 = vrot.slane %v1071, 5
      %v2134 = vsel %vm2109, %v2132, %v2133
      %v2135 = vrot.slane %v2133, 4
      %v2136 = vrot.slane %v1100, 5
      %v2137 = vsel %vm2109, %v2135, %v2136
      %v2138 = vrot.slane %v2063, 5
      %v2139 = vrot.slane %v2138, 4
      %v2140 = vrot.slane %v1073, 5
      %v2141 = vsel %vm2109, %v2139, %v2140
      %v2142 = vrot.slane %v2140, 4
      %v2143 = vrot.slane %v1101, 5
      %v2144 = vsel %vm2109, %v2142, %v2143
      %v2145 = vrot.slane %v2064, 5
      %v2146 = vrot.slane %v2145, 4
      %v2147 = vrot.slane %v1075, 5
      %v2148 = vsel %vm2109, %v2146, %v2147
      %v2149 = vrot.slane %v2147, 4
      %v2150 = vrot.slane %v1102, 5
      %v2151 = vsel %vm2109, %v2149, %v2150
      %v2152 = vrot.slane %v2065, 5
      %v2153 = vrot.slane %v2152, 4
      %v2154 = vrot.slane %v1077, 5
      %v2155 = vsel %vm2109, %v2153, %v2154
      %v2156 = vrot.slane %v2154, 4
      %v2157 = vrot.slane %v1103, 5
      %v2158 = vsel %vm2109, %v2156, %v2157
      %v2159 = vrot.slane %v2066, 5
      %v2160 = vrot.slane %v2159, 4
      %v2161 = vrot.slane %v1079, 5
      %v2162 = vsel %vm2109, %v2160, %v2161
      %v2163 = vrot.slane %v2161, 4
      %v2164 = vrot.slane %v1104, 5
      %v2165 = vsel %vm2109, %v2163, %v2164
      %v2166 = vrot.slane %v2067, 5
      %v2167 = vrot.slane %v2166, 4
      %v2168 = vrot.slane %v1081, 5
      %v2169 = vsel %vm2109, %v2167, %v2168
      %v2170 = vrot.slane %v2168, 4
      %v2171 = vrot.slane %v1105, 5
      %v2172 = vsel %vm2109, %v2170, %v2171
      %v2173 = vrot.slane %v2068, 5
      %v2174 = vrot.slane %v2173, 4
      %v2175 = vrot.slane %v1083, 5
      %v2176 = vsel %vm2109, %v2174, %v2175
      %v2177 = vrot.slane %v2175, 4
      %v2178 = vrot.slane %v1106, 5
      %v2179 = vsel %vm2109, %v2177, %v2178
      %v2180 = vrot.slane %v2069, 5
      %v2181 = vrot.slane %v2180, 4
      %v2182 = vrot.slane %v1085, 5
      %v2183 = vsel %vm2109, %v2181, %v2182
      %v2184 = vrot.slane %v2182, 4
      %v2185 = vrot.slane %v1107, 5
      %v2186 = vsel %vm2109, %v2184, %v2185
      %v2187 = vrot.slane %v2070, 5
      %v2188 = vrot.slane %v2187, 4
      %v2189 = vrot.slane %v1087, 5
      %v2190 = vsel %vm2109, %v2188, %v2189
      %v2191 = vrot.slane %v2189, 4
      %v2192 = vrot.slane %v1108, 5
      %v2193 = vsel %vm2109, %v2191, %v2192
      %v2194 = vrot.slane %v2071, 5
      %v2195 = vrot.slane %v2194, 4
      %v2196 = vrot.slane %v1089, 5
      %v2197 = vsel %vm2109, %v2195, %v2196
      %v2198 = vrot.slane %v2196, 4
      %v2199 = vrot.slane %v1109, 5
      %v2200 = vsel %vm2109, %v2198, %v2199
      %v2201 = vrot.slane %v2072, 5
      %v2202 = vrot.slane %v2201, 4
      %v2203 = vrot.slane %v1091, 5
      %v2204 = vsel %vm2109, %v2202, %v2203
      %v2205 = vrot.slane %v2203, 4
      %v2206 = vrot.slane %v1110, 5
      %v2207 = vsel %vm2109, %v2205, %v2206
      %v2208 = vrot.slane %v2073, 5
      %v2209 = vrot.slane %v2208, 4
      %v2210 = vrot.slane %v1093, 5
      %v2211 = vsel %vm2109, %v2209, %v2210
      %v2212 = vrot.slane %v2210, 4
      %v2213 = vrot.slane %v1111, 5
      %v2214 = vsel %vm2109, %v2212, %v2213
      %v2215 = vrot.slane %v2074, 5
      %v2216 = vrot.slane %v2215, 4
      %v2217 = vrot.slane %v1095, 5
      %v2218 = vsel %vm2109, %v2216, %v2217
      %v2219 = vrot.slane %v2217, 4
      %v2220 = vrot.slane %v1112, 5
      %v2221 = vsel %vm2109, %v2219, %v2220
      %v2222 = vld [vmem:[%s387 + $0x4] sm:$0x3]
      %v2223 = vunpack.c.l.b16 %v2113
      %v2224 = vunpack.c.l.b16 %v2116
      %v2225 = vunpack.c.l.b16 %v2120
      %v2226 = vunpack.c.l.b16 %v2123
      %v2227 = vunpack.c.l.b16 %v2127
      %v2228 = vunpack.c.l.b16 %v2130
      %v2229 = vunpack.c.l.b16 %v2134
      %v2230 = vunpack.c.l.b16 %v2137
      %v2231 = vunpack.c.l.b16 %v2141
      %v2232 = vunpack.c.l.b16 %v2144
      %v2233 = vunpack.c.l.b16 %v2148
      %v2234 = vunpack.c.l.b16 %v2151
      %v2235 = vunpack.c.l.b16 %v2155
      %v2236 = vunpack.c.l.b16 %v2158
      %v2237 = vunpack.c.l.b16 %v2162
      %v2238 = vunpack.c.l.b16 %v2165
      %v2239 = vunpack.c.l.b16 %v2169
      %v2240 = vunpack.c.l.b16 %v2172
      %v2241 = vunpack.c.l.b16 %v2176
      %v2242 = vunpack.c.l.b16 %v2179
      %v2243 = vunpack.c.l.b16 %v2183
      %v2244 = vunpack.c.l.b16 %v2186
      %v2245 = vunpack.c.l.b16 %v2190
      %v2246 = vunpack.c.l.b16 %v2193
      %v2247 = vunpack.c.l.b16 %v2197
      %v2248 = vunpack.c.l.b16 %v2200
      %v2249 = vunpack.c.l.b16 %v2204
      %v2250 = vunpack.c.l.b16 %v2207
      %v2251 = vunpack.c.l.b16 %v2211
      %v2252 = vunpack.c.l.b16 %v2214
      %v2253 = vunpack.c.l.b16 %v2218
      %v2254 = vunpack.c.l.b16 %v2221
      %v2255 = vpack.c.b16 %v2224, %v2223
      %v2256 = vpack.c.b16 %v2226, %v2225
      %v2257 = vpack.c.b16 %v2228, %v2227
      %v2258 = vpack.c.b16 %v2230, %v2229
      %v2259 = vpack.c.b16 %v2232, %v2231
      %v2260 = vpack.c.b16 %v2234, %v2233
      %v2261 = vpack.c.b16 %v2236, %v2235
      %v2262 = vpack.c.b16 %v2238, %v2237
      %v2263 = vpack.c.b16 %v2240, %v2239
      %v2264 = vpack.c.b16 %v2242, %v2241
      %v2265 = vpack.c.b16 %v2244, %v2243
      %v2266 = vpack.c.b16 %v2246, %v2245
      %v2267 = vpack.c.b16 %v2248, %v2247
      %v2268 = vpack.c.b16 %v2250, %v2249
      %v2269 = vpack.c.b16 %v2252, %v2251
      %v2270 = vpack.c.b16 %v2254, %v2253
      %v2272 = vsel %vm1553, %v2255, 0
      %v2275 = vsel %vm1553, %v2256, 0
      %v2278 = vsel %vm1553, %v2257, 0
      %v2281 = vsel %vm1553, %v2258, 0
      %v2284 = vsel %vm1553, %v2259, 0
      %v2287 = vsel %vm1553, %v2260, 0
      %v2290 = vsel %vm1553, %v2261, 0
      %v2293 = vsel %vm1553, %v2262, 0
      %v2296 = vsel %vm1553, %v2263, 0
      %v2299 = vsel %vm1553, %v2264, 0
      %v2302 = vsel %vm1553, %v2265, 0
      %v2305 = vsel %vm1553, %v2266, 0
      %v2308 = vsel %vm1553, %v2267, 0
      %v2311 = vsel %vm1553, %v2268, 0
      %v2314 = vsel %vm1553, %v2269, 0
      %v2317 = vsel %vm1553, %v2270, 0
      %v2320 = vsel %vm1602, %v2222, 0
      %2322 = vmatprep.subr.bf16.mxu0 0
      %2323 = vmatpush1.bf16.msra.mxu0 %v2320
      %2324 = vmatprep.subr.bf16.mxu0 0
      %2325 = vmatpush1.bf16.msra.mxu0 0
      %2326 = vmatprep.subr.bf16.mxu0 0
      %2327 = vmatpush1.bf16.msra.mxu0 0
      %2328 = vmatprep.subr.bf16.mxu0 0
      %2329 = vmatpush1.bf16.msra.mxu0 0
      %2330 = vmatprep.subr.bf16.mxu0 0
      %2331 = vmatpush1.bf16.msra.mxu0 0
      %2332 = vmatprep.subr.bf16.mxu0 0
      %2333 = vmatpush1.bf16.msra.mxu0 0
      %2334 = vmatprep.subr.bf16.mxu0 0
      %2335 = vmatpush1.bf16.msra.mxu0 0
      %2336 = vmatprep.subr.bf16.mxu0 0
      %2337 = vmatpush1.bf16.msra.mxu0 0
      %2338 = vmatprep.subr.bf16.mxu0 0
      %2339 = vmatpush1.bf16.msra.mxu0 0
      %2340 = vmatprep.subr.bf16.mxu0 0
      %2341 = vmatpush1.bf16.msra.mxu0 0
      %2342 = vmatprep.subr.bf16.mxu0 0
      %2343 = vmatpush1.bf16.msra.mxu0 0
      %2344 = vmatprep.subr.bf16.mxu0 0
      %2345 = vmatpush1.bf16.msra.mxu0 0
      %2346 = vmatprep.subr.bf16.mxu0 0
      %2347 = vmatpush1.bf16.msra.mxu0 0
      %2348 = vmatprep.subr.bf16.mxu0 0
      %2349 = vmatpush1.bf16.msra.mxu0 0
      %2350 = vmatprep.subr.bf16.mxu0 0
      %2351 = vmatpush1.bf16.msra.mxu0 0
      %2352 = vmatprep.subr.bf16.mxu0 0
      %2353 = vmatpush1.bf16.msra.mxu0 0
      %2354 = vmatprep.mubr.bf16.mxu0 0
      %2355 = vmatmul.mubr.bf16.gmra.mrb[0].mxu0 %v2272
      %v2356 = vpop.f32.mrb[0].mxu0
      %v2357 = vadd.f32 0.0, %v2356
      %v2358 = vpop.f32.mrb[0].mxu0
      %v2359 = vpop.f32.mrb[0].mxu0
      %v2360 = vadd.f32 0.0, %v2359
      %v2361 = vpop.f32.mrb[0].mxu0
      %2362 = vmatprep.mubr.bf16.mxu0 0
      %2363 = vmatmul.mubr.bf16.gmra.mrb[0].mxu0 %v2275
      %v2364 = vpop.f32.mrb[0].mxu0
      %v2365 = vadd.f32 0.0, %v2364
      %v2366 = vpop.f32.mrb[0].mxu0
      %v2367 = vpop.f32.mrb[0].mxu0
      %v2368 = vadd.f32 0.0, %v2367
      %v2369 = vpop.f32.mrb[0].mxu0
      %2370 = vmatprep.mubr.bf16.mxu0 0
      %2371 = vmatmul.mubr.bf16.gmra.mrb[0].mxu0 %v2278
      %v2372 = vpop.f32.mrb[0].mxu0
      %v2373 = vadd.f32 0.0, %v2372
      %v2374 = vpop.f32.mrb[0].mxu0
      %v2375 = vpop.f32.mrb[0].mxu0
      %v2376 = vadd.f32 0.0, %v2375
      %v2377 = vpop.f32.mrb[0].mxu0
      %2378 = vmatprep.mubr.bf16.mxu0 0
      %2379 = vmatmul.mubr.bf16.gmra.mrb[0].mxu0 %v2281
      %v2380 = vpop.f32.mrb[0].mxu0
      %v2381 = vadd.f32 0.0, %v2380
      %v2382 = vpop.f32.mrb[0].mxu0
      %v2383 = vpop.f32.mrb[0].mxu0
      %v2384 = vadd.f32 0.0, %v2383
      %v2385 = vpop.f32.mrb[0].mxu0
      %2386 = vmatprep.mubr.bf16.mxu0 0
      %2387 = vmatmul.mubr.bf16.gmra.mrb[0].mxu0 %v2284
      %v2388 = vpop.f32.mrb[0].mxu0
      %v2389 = vadd.f32 0.0, %v2388
      %v2390 = vpop.f32.mrb[0].mxu0
      %v2391 = vpop.f32.mrb[0].mxu0
      %v2392 = vadd.f32 0.0, %v2391
      %v2393 = vpop.f32.mrb[0].mxu0
      %2394 = vmatprep.mubr.bf16.mxu0 0
      %2395 = vmatmul.mubr.bf16.gmra.mrb[0].mxu0 %v2287
      %v2396 = vpop.f32.mrb[0].mxu0
      %v2397 = vadd.f32 0.0, %v2396
      %v2398 = vpop.f32.mrb[0].mxu0
      %v2399 = vpop.f32.mrb[0].mxu0
      %v2400 = vadd.f32 0.0, %v2399
      %v2401 = vpop.f32.mrb[0].mxu0
      %2402 = vmatprep.mubr.bf16.mxu0 0
      %2403 = vmatmul.mubr.bf16.gmra.mrb[0].mxu0 %v2290
      %v2404 = vpop.f32.mrb[0].mxu0
      %v2405 = vadd.f32 0.0, %v2404
      %v2406 = vpop.f32.mrb[0].mxu0
      %v2407 = vpop.f32.mrb[0].mxu0
      %v2408 = vadd.f32 0.0, %v2407
      %v2409 = vpop.f32.mrb[0].mxu0
      %2410 = vmatprep.mubr.bf16.mxu0 0
      %2411 = vmatmul.mubr.bf16.gmra.mrb[0].mxu0 %v2293
      %v2412 = vpop.f32.mrb[0].mxu0
      %v2413 = vadd.f32 0.0, %v2412
      %v2414 = vpop.f32.mrb[0].mxu0
      %v2415 = vpop.f32.mrb[0].mxu0
      %v2416 = vadd.f32 0.0, %v2415
      %v2417 = vpop.f32.mrb[0].mxu0
      %2418 = vmatprep.mubr.bf16.mxu0 0
      %2419 = vmatmul.mubr.bf16.gmra.mrb[0].mxu0 %v2296
      %v2420 = vpop.f32.mrb[0].mxu0
      %v2421 = vadd.f32 0.0, %v2420
      %v2422 = vpop.f32.mrb[0].mxu0
      %v2423 = vpop.f32.mrb[0].mxu0
      %v2424 = vadd.f32 0.0, %v2423
      %v2425 = vpop.f32.mrb[0].mxu0
      %2426 = vmatprep.mubr.bf16.mxu0 0
      %2427 = vmatmul.mubr.bf16.gmra.mrb[0].mxu0 %v2299
      %v2428 = vpop.f32.mrb[0].mxu0
      %v2429 = vadd.f32 0.0, %v2428
      %v2430 = vpop.f32.mrb[0].mxu0
      %v2431 = vpop.f32.mrb[0].mxu0
      %v2432 = vadd.f32 0.0, %v2431
      %v2433 = vpop.f32.mrb[0].mxu0
      %2434 = vmatprep.mubr.bf16.mxu0 0
      %2435 = vmatmul.mubr.bf16.gmra.mrb[0].mxu0 %v2302
      %v2436 = vpop.f32.mrb[0].mxu0
      %v2437 = vadd.f32 0.0, %v2436
      %v2438 = vpop.f32.mrb[0].mxu0
      %v2439 = vpop.f32.mrb[0].mxu0
      %v2440 = vadd.f32 0.0, %v2439
      %v2441 = vpop.f32.mrb[0].mxu0
      %2442 = vmatprep.mubr.bf16.mxu0 0
      %2443 = vmatmul.mubr.bf16.gmra.mrb[0].mxu0 %v2305
      %v2444 = vpop.f32.mrb[0].mxu0
      %v2445 = vadd.f32 0.0, %v2444
      %v2446 = vpop.f32.mrb[0].mxu0
      %v2447 = vpop.f32.mrb[0].mxu0
      %v2448 = vadd.f32 0.0, %v2447
      %v2449 = vpop.f32.mrb[0].mxu0
      %2450 = vmatprep.mubr.bf16.mxu0 0
      %2451 = vmatmul.mubr.bf16.gmra.mrb[0].mxu0 %v2308
      %v2452 = vpop.f32.mrb[0].mxu0
      %v2453 = vadd.f32 0.0, %v2452
      %v2454 = vpop.f32.mrb[0].mxu0
      %v2455 = vpop.f32.mrb[0].mxu0
      %v2456 = vadd.f32 0.0, %v2455
      %v2457 = vpop.f32.mrb[0].mxu0
      %2458 = vmatprep.mubr.bf16.mxu0 0
      %2459 = vmatmul.mubr.bf16.gmra.mrb[0].mxu0 %v2311
      %v2460 = vpop.f32.mrb[0].mxu0
      %v2461 = vadd.f32 0.0, %v2460
      %v2462 = vpop.f32.mrb[0].mxu0
      %v2463 = vpop.f32.mrb[0].mxu0
      %v2464 = vadd.f32 0.0, %v2463
      %v2465 = vpop.f32.mrb[0].mxu0
      %2466 = vmatprep.mubr.bf16.mxu0 0
      %2467 = vmatmul.mubr.bf16.gmra.mrb[0].mxu0 %v2314
      %v2468 = vpop.f32.mrb[0].mxu0
      %v2469 = vadd.f32 0.0, %v2468
      %v2470 = vpop.f32.mrb[0].mxu0
      %v2471 = vpop.f32.mrb[0].mxu0
      %v2472 = vadd.f32 0.0, %v2471
      %v2473 = vpop.f32.mrb[0].mxu0
      %2474 = vmatprep.mubr.bf16.mxu0 0
      %2475 = vmatmul.mubr.bf16.gmra.mrb[0].mxu0 %v2317
      %v2476 = vpop.f32.mrb[0].mxu0
      %v2477 = vadd.f32 0.0, %v2476
      %v2478 = vpop.f32.mrb[0].mxu0
      %v2479 = vpop.f32.mrb[0].mxu0
      %v2480 = vadd.f32 0.0, %v2479
      %v2481 = vpop.f32.mrb[0].mxu0
      %2482 = vdwg.mxu0
      %v2483 = vadd.f32 %v1933, %v2357
      %v2484 = vadd.f32 %v1936, %v2360
      %v2485 = vadd.f32 %v1941, %v2365
      %v2486 = vadd.f32 %v1944, %v2368
      %v2487 = vadd.f32 %v1949, %v2373
      %v2488 = vadd.f32 %v1952, %v2376
      %v2489 = vadd.f32 %v1957, %v2381
      %v2490 = vadd.f32 %v1960, %v2384
      %v2491 = vadd.f32 %v1965, %v2389
      %v2492 = vadd.f32 %v1968, %v2392
      %v2493 = vadd.f32 %v1973, %v2397
      %v2494 = vadd.f32 %v1976, %v2400
      %v2495 = vadd.f32 %v1981, %v2405
      %v2496 = vadd.f32 %v1984, %v2408
      %v2497 = vadd.f32 %v1989, %v2413
      %v2498 = vadd.f32 %v1992, %v2416
      %v2499 = vadd.f32 %v1997, %v2421
      %v2500 = vadd.f32 %v2000, %v2424
      %v2501 = vadd.f32 %v2005, %v2429
      %v2502 = vadd.f32 %v2008, %v2432
      %v2503 = vadd.f32 %v2013, %v2437
      %v2504 = vadd.f32 %v2016, %v2440
      %v2505 = vadd.f32 %v2021, %v2445
      %v2506 = vadd.f32 %v2024, %v2448
      %v2507 = vadd.f32 %v2029, %v2453
      %v2508 = vadd.f32 %v2032, %v2456
      %v2509 = vadd.f32 %v2037, %v2461
      %v2510 = vadd.f32 %v2040, %v2464
      %v2511 = vadd.f32 %v2045, %v2469
      %v2512 = vadd.f32 %v2048, %v2472
      %v2513 = vadd.f32 %v2053, %v2477
      %v2514 = vadd.f32 %v2056, %v2480
      %v2515 = vld [vmem:[%s902] sm:$0xf]
      %v2516 = vld [vmem:[%s902 + $0x4] sm:$0xf]
      %v2517 = vld [vmem:[%s902 + $0xc] sm:$0xf]
      %v2518 = vld [vmem:[%s902 + $0x10] sm:$0xf]
      %v2519 = vld [vmem:[%s902 + $0x18] sm:$0xf]
      %v2520 = vld [vmem:[%s902 + $0x1c] sm:$0xf]
      %v2521 = vld [vmem:[%s902 + $0x24] sm:$0xf]
      %v2522 = vld [vmem:[%s902 + $0x28] sm:$0xf]
      %v2523 = vld [vmem:[%s902 + $0x30] sm:$0xf]
      %v2524 = vld [vmem:[%s902 + $0x34] sm:$0xf]
      %v2525 = vld [vmem:[%s902 + $0x3c] sm:$0xf]
      %v2526 = vld [vmem:[%s902 + $0x40] sm:$0xf]
      %v2527 = vld [vmem:[%s902 + $0x48] sm:$0xf]
      %v2528 = vld [vmem:[%s902 + $0x4c] sm:$0xf]
      %v2529 = vld [vmem:[%s902 + $0x54] sm:$0xf]
      %v2530 = vld [vmem:[%s902 + $0x58] sm:$0xf]
      %v2531 = vld [vmem:[%s902 + $0x60] sm:$0xf]
      %v2532 = vld [vmem:[%s902 + $0x64] sm:$0xf]
      %v2533 = vld [vmem:[%s902 + $0x6c] sm:$0xf]
      %v2534 = vld [vmem:[%s902 + $0x70] sm:$0xf]
      %v2535 = vld [vmem:[%s902 + $0x78] sm:$0xf]
      %v2536 = vld [vmem:[%s902 + $0x7c] sm:$0xf]
      %v2537 = vld [vmem:[%s902 + $0x84] sm:$0xf]
      %v2538 = vld [vmem:[%s902 + $0x88] sm:$0xf]
      %v2539 = vld [vmem:[%s902 + $0x90] sm:$0xf]
      %v2540 = vld [vmem:[%s902 + $0x94] sm:$0xf]
      %v2541 = vld [vmem:[%s902 + $0x9c] sm:$0xf]
      %v2542 = vld [vmem:[%s902 + $0xa0] sm:$0xf]
      %v2543 = vld [vmem:[%s902 + $0xa8] sm:$0xf]
      %v2544 = vld [vmem:[%s902 + $0xac] sm:$0xf]
      %v2545 = vld [vmem:[%s902 + $0xb4] sm:$0xf]
      %v2546 = vld [vmem:[%s902 + $0xb8] sm:$0xf]
      %v2547 = vld [vmem:[%s387 + $0x4] sm:$0xc]
      %v2580 = vunpack.c.l.b16 %v2515
      %v2581 = vunpack.c.l.b16 %v2516
      %v2582 = vunpack.c.l.b16 %v2517
      %v2583 = vunpack.c.l.b16 %v2518
      %v2584 = vunpack.c.l.b16 %v2519
      %v2585 = vunpack.c.l.b16 %v2520
      %v2586 = vunpack.c.l.b16 %v2521
      %v2587 = vunpack.c.l.b16 %v2522
      %v2588 = vunpack.c.l.b16 %v2523
      %v2589 = vunpack.c.l.b16 %v2524
      %v2590 = vunpack.c.l.b16 %v2525
      %v2591 = vunpack.c.l.b16 %v2526
      %v2592 = vunpack.c.l.b16 %v2527
      %v2593 = vunpack.c.l.b16 %v2528
      %v2594 = vunpack.c.l.b16 %v2529
      %v2595 = vunpack.c.l.b16 %v2530
      %v2596 = vunpack.c.l.b16 %v2531
      %v2597 = vunpack.c.l.b16 %v2532
      %v2598 = vunpack.c.l.b16 %v2533
      %v2599 = vunpack.c.l.b16 %v2534
      %v2600 = vunpack.c.l.b16 %v2535
      %v2601 = vunpack.c.l.b16 %v2536
      %v2602 = vunpack.c.l.b16 %v2537
      %v2603 = vunpack.c.l.b16 %v2538
      %v2604 = vunpack.c.l.b16 %v2539
      %v2605 = vunpack.c.l.b16 %v2540
      %v2606 = vunpack.c.l.b16 %v2541
      %v2607 = vunpack.c.l.b16 %v2542
      %v2608 = vunpack.c.l.b16 %v2543
      %v2609 = vunpack.c.l.b16 %v2544
      %v2610 = vunpack.c.l.b16 %v2545
      %v2611 = vunpack.c.l.b16 %v2546
      %v2612 = vpack.c.b16 %v2581, %v2580
      %v2613 = vpack.c.b16 %v2583, %v2582
      %v2614 = vpack.c.b16 %v2585, %v2584
      %v2615 = vpack.c.b16 %v2587, %v2586
      %v2616 = vpack.c.b16 %v2589, %v2588
      %v2617 = vpack.c.b16 %v2591, %v2590
      %v2618 = vpack.c.b16 %v2593, %v2592
      %v2619 = vpack.c.b16 %v2595, %v2594
      %v2620 = vpack.c.b16 %v2597, %v2596
      %v2621 = vpack.c.b16 %v2599, %v2598
      %v2622 = vpack.c.b16 %v2601, %v2600
      %v2623 = vpack.c.b16 %v2603, %v2602
      %v2624 = vpack.c.b16 %v2605, %v2604
      %v2625 = vpack.c.b16 %v2607, %v2606
      %v2626 = vpack.c.b16 %v2609, %v2608
      %v2627 = vpack.c.b16 %v2611, %v2610
      %v2629 = vunpack.c.l.b16 %v2547
      %v2630 = vpack.c.b16 %v2629, %v2629
      %v2631 = vrot.slane %v2630, 2
      %v2633 = vsel %vm1553, %v2612, 0
      %v2636 = vsel %vm1553, %v2613, 0
      %v2639 = vsel %vm1553, %v2614, 0
      %v2642 = vsel %vm1553, %v2615, 0
      %v2645 = vsel %vm1553, %v2616, 0
      %v2648 = vsel %vm1553, %v2617, 0
      %v2651 = vsel %vm1553, %v2618, 0
      %v2654 = vsel %vm1553, %v2619, 0
      %v2657 = vsel %vm1553, %v2620, 0
      %v2660 = vsel %vm1553, %v2621, 0
      %v2663 = vsel %vm1553, %v2622, 0
      %v2666 = vsel %vm1553, %v2623, 0
      %v2669 = vsel %vm1553, %v2624, 0
      %v2672 = vsel %vm1553, %v2625, 0
      %v2675 = vsel %vm1553, %v2626, 0
      %v2678 = vsel %vm1553, %v2627, 0
      %v2681 = vsel %vm1602, %v2631, 0
      %2683 = vmatprep.subr.bf16.mxu0 0
      %2684 = vmatpush1.bf16.msra.mxu0 %v2681
      %2685 = vmatprep.subr.bf16.mxu0 0
      %2686 = vmatpush1.bf16.msra.mxu0 0
      %2687 = vmatprep.subr.bf16.mxu0 0
      %2688 = vmatpush1.bf16.msra.mxu0 0
      %2689 = vmatprep.subr.bf16.mxu0 0
      %2690 = vmatpush1.bf16.msra.mxu0 0
      %2691 = vmatprep.subr.bf16.mxu0 0
      %2692 = vmatpush1.bf16.msra.mxu0 0
      %2693 = vmatprep.subr.bf16.mxu0 0
      %2694 = vmatpush1.bf16.msra.mxu0 0
      %2695 = vmatprep.subr.bf16.mxu0 0
      %2696 = vmatpush1.bf16.msra.mxu0 0
      %2697 = vmatprep.subr.bf16.mxu0 0
      %2698 = vmatpush1.bf16.msra.mxu0 0
      %2699 = vmatprep.subr.bf16.mxu0 0
      %2700 = vmatpush1.bf16.msra.mxu0 0
      %2701 = vmatprep.subr.bf16.mxu0 0
      %2702 = vmatpush1.bf16.msra.mxu0 0
      %2703 = vmatprep.subr.bf16.mxu0 0
      %2704 = vmatpush1.bf16.msra.mxu0 0
      %2705 = vmatprep.subr.bf16.mxu0 0
      %2706 = vmatpush1.bf16.msra.mxu0 0
      %2707 = vmatprep.subr.bf16.mxu0 0
      %2708 = vmatpush1.bf16.msra.mxu0 0
      %2709 = vmatprep.subr.bf16.mxu0 0
      %2710 = vmatpush1.bf16.msra.mxu0 0
      %2711 = vmatprep.subr.bf16.mxu0 0
      %2712 = vmatpush1.bf16.msra.mxu0 0
      %2713 = vmatprep.subr.bf16.mxu0 0
      %2714 = vmatpush1.bf16.msra.mxu0 0
      %2715 = vmatprep.mubr.bf16.mxu0 0
      %2716 = vmatmul.mubr.bf16.gmra.mrb[0].mxu0 %v2633
      %v2717 = vpop.f32.mrb[0].mxu0
      %v2718 = vadd.f32 0.0, %v2717
      %v2719 = vpop.f32.mrb[0].mxu0
      %v2720 = vpop.f32.mrb[0].mxu0
      %v2721 = vadd.f32 0.0, %v2720
      %v2722 = vpop.f32.mrb[0].mxu0
      %2723 = vmatprep.mubr.bf16.mxu0 0
      %2724 = vmatmul.mubr.bf16.gmra.mrb[0].mxu0 %v2636
      %v2725 = vpop.f32.mrb[0].mxu0
      %v2726 = vadd.f32 0.0, %v2725
      %v2727 = vpop.f32.mrb[0].mxu0
      %v2728 = vpop.f32.mrb[0].mxu0
      %v2729 = vadd.f32 0.0, %v2728
      %v2730 = vpop.f32.mrb[0].mxu0
      %2731 = vmatprep.mubr.bf16.mxu0 0
      %2732 = vmatmul.mubr.bf16.gmra.mrb[0].mxu0 %v2639
      %v2733 = vpop.f32.mrb[0].mxu0
      %v2734 = vadd.f32 0.0, %v2733
      %v2735 = vpop.f32.mrb[0].mxu0
      %v2736 = vpop.f32.mrb[0].mxu0
      %v2737 = vadd.f32 0.0, %v2736
      %v2738 = vpop.f32.mrb[0].mxu0
      %2739 = vmatprep.mubr.bf16.mxu0 0
      %2740 = vmatmul.mubr.bf16.gmra.mrb[0].mxu0 %v2642
      %v2741 = vpop.f32.mrb[0].mxu0
      %v2742 = vadd.f32 0.0, %v2741
      %v2743 = vpop.f32.mrb[0].mxu0
      %v2744 = vpop.f32.mrb[0].mxu0
      %v2745 = vadd.f32 0.0, %v2744
      %v2746 = vpop.f32.mrb[0].mxu0
      %2747 = vmatprep.mubr.bf16.mxu0 0
      %2748 = vmatmul.mubr.bf16.gmra.mrb[0].mxu0 %v2645
      %v2749 = vpop.f32.mrb[0].mxu0
      %v2750 = vadd.f32 0.0, %v2749
      %v2751 = vpop.f32.mrb[0].mxu0
      %v2752 = vpop.f32.mrb[0].mxu0
      %v2753 = vadd.f32 0.0, %v2752
      %v2754 = vpop.f32.mrb[0].mxu0
      %2755 = vmatprep.mubr.bf16.mxu0 0
      %2756 = vmatmul.mubr.bf16.gmra.mrb[0].mxu0 %v2648
      %v2757 = vpop.f32.mrb[0].mxu0
      %v2758 = vadd.f32 0.0, %v2757
      %v2759 = vpop.f32.mrb[0].mxu0
      %v2760 = vpop.f32.mrb[0].mxu0
      %v2761 = vadd.f32 0.0, %v2760
      %v2762 = vpop.f32.mrb[0].mxu0
      %2763 = vmatprep.mubr.bf16.mxu0 0
      %2764 = vmatmul.mubr.bf16.gmra.mrb[0].mxu0 %v2651
      %v2765 = vpop.f32.mrb[0].mxu0
      %v2766 = vadd.f32 0.0, %v2765
      %v2767 = vpop.f32.mrb[0].mxu0
      %v2768 = vpop.f32.mrb[0].mxu0
      %v2769 = vadd.f32 0.0, %v2768
      %v2770 = vpop.f32.mrb[0].mxu0
      %2771 = vmatprep.mubr.bf16.mxu0 0
      %2772 = vmatmul.mubr.bf16.gmra.mrb[0].mxu0 %v2654
      %v2773 = vpop.f32.mrb[0].mxu0
      %v2774 = vadd.f32 0.0, %v2773
      %v2775 = vpop.f32.mrb[0].mxu0
      %v2776 = vpop.f32.mrb[0].mxu0
      %v2777 = vadd.f32 0.0, %v2776
      %v2778 = vpop.f32.mrb[0].mxu0
      %2779 = vmatprep.mubr.bf16.mxu0 0
      %2780 = vmatmul.mubr.bf16.gmra.mrb[0].mxu0 %v2657
      %v2781 = vpop.f32.mrb[0].mxu0
      %v2782 = vadd.f32 0.0, %v2781
      %v2783 = vpop.f32.mrb[0].mxu0
      %v2784 = vpop.f32.mrb[0].mxu0
      %v2785 = vadd.f32 0.0, %v2784
      %v2786 = vpop.f32.mrb[0].mxu0
      %2787 = vmatprep.mubr.bf16.mxu0 0
      %2788 = vmatmul.mubr.bf16.gmra.mrb[0].mxu0 %v2660
      %v2789 = vpop.f32.mrb[0].mxu0
      %v2790 = vadd.f32 0.0, %v2789
      %v2791 = vpop.f32.mrb[0].mxu0
      %v2792 = vpop.f32.mrb[0].mxu0
      %v2793 = vadd.f32 0.0, %v2792
      %v2794 = vpop.f32.mrb[0].mxu0
      %2795 = vmatprep.mubr.bf16.mxu0 0
      %2796 = vmatmul.mubr.bf16.gmra.mrb[0].mxu0 %v2663
      %v2797 = vpop.f32.mrb[0].mxu0
      %v2798 = vadd.f32 0.0, %v2797
      %v2799 = vpop.f32.mrb[0].mxu0
      %v2800 = vpop.f32.mrb[0].mxu0
      %v2801 = vadd.f32 0.0, %v2800
      %v2802 = vpop.f32.mrb[0].mxu0
      %2803 = vmatprep.mubr.bf16.mxu0 0
      %2804 = vmatmul.mubr.bf16.gmra.mrb[0].mxu0 %v2666
      %v2805 = vpop.f32.mrb[0].mxu0
      %v2806 = vadd.f32 0.0, %v2805
      %v2807 = vpop.f32.mrb[0].mxu0
      %v2808 = vpop.f32.mrb[0].mxu0
      %v2809 = vadd.f32 0.0, %v2808
      %v2810 = vpop.f32.mrb[0].mxu0
      %2811 = vmatprep.mubr.bf16.mxu0 0
      %2812 = vmatmul.mubr.bf16.gmra.mrb[0].mxu0 %v2669
      %v2813 = vpop.f32.mrb[0].mxu0
      %v2814 = vadd.f32 0.0, %v2813
      %v2815 = vpop.f32.mrb[0].mxu0
      %v2816 = vpop.f32.mrb[0].mxu0
      %v2817 = vadd.f32 0.0, %v2816
      %v2818 = vpop.f32.mrb[0].mxu0
      %2819 = vmatprep.mubr.bf16.mxu0 0
      %2820 = vmatmul.mubr.bf16.gmra.mrb[0].mxu0 %v2672
      %v2821 = vpop.f32.mrb[0].mxu0
      %v2822 = vadd.f32 0.0, %v2821
      %v2823 = vpop.f32.mrb[0].mxu0
      %v2824 = vpop.f32.mrb[0].mxu0
      %v2825 = vadd.f32 0.0, %v2824
      %v2826 = vpop.f32.mrb[0].mxu0
      %2827 = vmatprep.mubr.bf16.mxu0 0
      %2828 = vmatmul.mubr.bf16.gmra.mrb[0].mxu0 %v2675
      %v2829 = vpop.f32.mrb[0].mxu0
      %v2830 = vadd.f32 0.0, %v2829
      %v2831 = vpop.f32.mrb[0].mxu0
      %v2832 = vpop.f32.mrb[0].mxu0
      %v2833 = vadd.f32 0.0, %v2832
      %v2834 = vpop.f32.mrb[0].mxu0
      %2835 = vmatprep.mubr.bf16.mxu0 0
      %2836 = vmatmul.mubr.bf16.gmra.mrb[0].mxu0 %v2678
      %v2837 = vpop.f32.mrb[0].mxu0
      %v2838 = vadd.f32 0.0, %v2837
      %v2839 = vpop.f32.mrb[0].mxu0
      %v2840 = vpop.f32.mrb[0].mxu0
      %v2841 = vadd.f32 0.0, %v2840
      %v2842 = vpop.f32.mrb[0].mxu0
      %2843 = vdwg.mxu0
      %v2844 = vadd.f32 %v2483, %v2718
      %v2845 = vadd.f32 %v2484, %v2721
      %v2846 = vadd.f32 %v2485, %v2726
      %v2847 = vadd.f32 %v2486, %v2729
      %v2848 = vadd.f32 %v2487, %v2734
      %v2849 = vadd.f32 %v2488, %v2737
      %v2850 = vadd.f32 %v2489, %v2742
      %v2851 = vadd.f32 %v2490, %v2745
      %v2852 = vadd.f32 %v2491, %v2750
      %v2853 = vadd.f32 %v2492, %v2753
      %v2854 = vadd.f32 %v2493, %v2758
      %v2855 = vadd.f32 %v2494, %v2761
      %v2856 = vadd.f32 %v2495, %v2766
      %v2857 = vadd.f32 %v2496, %v2769
      %v2858 = vadd.f32 %v2497, %v2774
      %v2859 = vadd.f32 %v2498, %v2777
      %v2860 = vadd.f32 %v2499, %v2782
      %v2861 = vadd.f32 %v2500, %v2785
      %v2862 = vadd.f32 %v2501, %v2790
      %v2863 = vadd.f32 %v2502, %v2793
      %v2864 = vadd.f32 %v2503, %v2798
      %v2865 = vadd.f32 %v2504, %v2801
      %v2866 = vadd.f32 %v2505, %v2806
      %v2867 = vadd.f32 %v2506, %v2809
      %v2868 = vadd.f32 %v2507, %v2814
      %v2869 = vadd.f32 %v2508, %v2817
      %v2870 = vadd.f32 %v2509, %v2822
      %v2871 = vadd.f32 %v2510, %v2825
      %v2872 = vadd.f32 %v2511, %v2830
      %v2873 = vadd.f32 %v2512, %v2833
      %v2874 = vadd.f32 %v2513, %v2838
      %v2875 = vadd.f32 %v2514, %v2841
      %v2876 = vld [vmem:[%s902] sm:$0xf]
      %v2877 = vld [vmem:[%s902 + $0x4] sm:$0xf]
      %v2878 = vld [vmem:[%s902 + $0x8] sm:$0x1]
      %v2879 = vld [vmem:[%s902 + $0xc] sm:$0xf]
      %v2880 = vld [vmem:[%s902 + $0x10] sm:$0xf]
      %v2881 = vld [vmem:[%s902 + $0x14] sm:$0x1]
      %v2882 = vld [vmem:[%s902 + $0x18] sm:$0xf]
      %v2883 = vld [vmem:[%s902 + $0x1c] sm:$0xf]
      %v2884 = vld [vmem:[%s902 + $0x20] sm:$0x1]
      %v2885 = vld [vmem:[%s902 + $0x24] sm:$0xf]
      %v2886 = vld [vmem:[%s902 + $0x28] sm:$0xf]
      %v2887 = vld [vmem:[%s902 + $0x2c] sm:$0x1]
      %v2888 = vld [vmem:[%s902 + $0x30] sm:$0xf]
      %v2889 = vld [vmem:[%s902 + $0x34] sm:$0xf]
      %v2890 = vld [vmem:[%s902 + $0x38] sm:$0x1]
      %v2891 = vld [vmem:[%s902 + $0x3c] sm:$0xf]
      %v2892 = vld [vmem:[%s902 + $0x40] sm:$0xf]
      %v2893 = vld [vmem:[%s902 + $0x44] sm:$0x1]
      %v2894 = vld [vmem:[%s902 + $0x48] sm:$0xf]
      %v2895 = vld [vmem:[%s902 + $0x4c] sm:$0xf]
      %v2896 = vld [vmem:[%s902 + $0x50] sm:$0x1]
      %v2897 = vld [vmem:[%s902 + $0x54] sm:$0xf]
      %v2898 = vld [vmem:[%s902 + $0x58] sm:$0xf]
      %v2899 = vld [vmem:[%s902 + $0x5c] sm:$0x1]
      %v2900 = vld [vmem:[%s902 + $0x60] sm:$0xf]
      %v2901 = vld [vmem:[%s902 + $0x64] sm:$0xf]
      %v2902 = vld [vmem:[%s902 + $0x68] sm:$0x1]
      %v2903 = vld [vmem:[%s902 + $0x6c] sm:$0xf]
      %v2904 = vld [vmem:[%s902 + $0x70] sm:$0xf]
      %v2905 = vld [vmem:[%s902 + $0x74] sm:$0x1]
      %v2906 = vld [vmem:[%s902 + $0x78] sm:$0xf]
      %v2907 = vld [vmem:[%s902 + $0x7c] sm:$0xf]
      %v2908 = vld [vmem:[%s902 + $0x80] sm:$0x1]
      %v2909 = vld [vmem:[%s902 + $0x84] sm:$0xf]
      %v2910 = vld [vmem:[%s902 + $0x88] sm:$0xf]
      %v2911 = vld [vmem:[%s902 + $0x8c] sm:$0x1]
      %v2912 = vld [vmem:[%s902 + $0x90] sm:$0xf]
      %v2913 = vld [vmem:[%s902 + $0x94] sm:$0xf]
      %v2914 = vld [vmem:[%s902 + $0x98] sm:$0x1]
      %v2915 = vld [vmem:[%s902 + $0x9c] sm:$0xf]
      %v2916 = vld [vmem:[%s902 + $0xa0] sm:$0xf]
      %v2917 = vld [vmem:[%s902 + $0xa4] sm:$0x1]
      %v2918 = vld [vmem:[%s902 + $0xa8] sm:$0xf]
      %v2919 = vld [vmem:[%s902 + $0xac] sm:$0xf]
      %v2920 = vld [vmem:[%s902 + $0xb0] sm:$0x1]
      %v2921 = vld [vmem:[%s902 + $0xb4] sm:$0xf]
      %v2922 = vld [vmem:[%s902 + $0xb8] sm:$0xf]
      %v2923 = vld [vmem:[%s902 + $0xbc] sm:$0x1]
      %v2925 = vshrl.u32 %v2876, 16
      %v2927 = vrot.slane %v2925, 4
      %v2928 = vshll.u32 %v2876, 16
      %v2930 = vrot.slane %v2928, 5
      %v2931 = vor.u32 %v2927, %v2930
      %v2932 = vrot.slane %v2931, 4
      %v2934 = vshll.u32 %v2877, 16
      %v2936 = vrot.slane %v2934, 5
      %v2937 = vsel %vm1115, %v2932, %v2936
      %v2938 = vshrl.u32 %v2877, 16
      %v2940 = vrot.slane %v2938, 4
      %v2941 = vor.u32 %v2940, %v2936
      %v2942 = vrot.slane %v2941, 4
      %v2944 = vshll.u32 %v2878, 16
      %v2946 = vrot.slane %v2944, 5
      %v2947 = vsel %vm1115, %v2942, %v2946
      %v2949 = vshrl.u32 %v2879, 16
      %v2951 = vrot.slane %v2949, 4
      %v2952 = vshll.u32 %v2879, 16
      %v2954 = vrot.slane %v2952, 5
      %v2955 = vor.u32 %v2951, %v2954
      %v2956 = vrot.slane %v2955, 4
      %v2958 = vshll.u32 %v2880, 16
      %v2960 = vrot.slane %v2958, 5
      %v2961 = vsel %vm1115, %v2956, %v2960
      %v2962 = vshrl.u32 %v2880, 16
      %v2964 = vrot.slane %v2962, 4
      %v2965 = vor.u32 %v2964, %v2960
      %v2966 = vrot.slane %v2965, 4
      %v2968 = vshll.u32 %v2881, 16
      %v2970 = vrot.slane %v2968, 5
      %v2971 = vsel %vm1115, %v2966, %v2970
      %v2973 = vshrl.u32 %v2882, 16
      %v2975 = vrot.slane %v2973, 4
      %v2976 = vshll.u32 %v2882, 16
      %v2978 = vrot.slane %v2976, 5
      %v2979 = vor.u32 %v2975, %v2978
      %v2980 = vrot.slane %v2979, 4
      %v2982 = vshll.u32 %v2883, 16
      %v2984 = vrot.slane %v2982, 5
      %v2985 = vsel %vm1115, %v2980, %v2984
      %v2986 = vshrl.u32 %v2883, 16
      %v2988 = vrot.slane %v2986, 4
      %v2989 = vor.u32 %v2988, %v2984
      %v2990 = vrot.slane %v2989, 4
      %v2992 = vshll.u32 %v2884, 16
      %v2994 = vrot.slane %v2992, 5
      %v2995 = vsel %vm1115, %v2990, %v2994
      %v2997 = vshrl.u32 %v2885, 16
      %v2999 = vrot.slane %v2997, 4
      %v3000 = vshll.u32 %v2885, 16
      %v3002 = vrot.slane %v3000, 5
      %v3003 = vor.u32 %v2999, %v3002
      %v3004 = vrot.slane %v3003, 4
      %v3006 = vshll.u32 %v2886, 16
      %v3008 = vrot.slane %v3006, 5
      %v3009 = vsel %vm1115, %v3004, %v3008
      %v3010 = vshrl.u32 %v2886, 16
      %v3012 = vrot.slane %v3010, 4
      %v3013 = vor.u32 %v3012, %v3008
      %v3014 = vrot.slane %v3013, 4
      %v3016 = vshll.u32 %v2887, 16
      %v3018 = vrot.slane %v3016, 5
      %v3019 = vsel %vm1115, %v3014, %v3018
      %v3021 = vshrl.u32 %v2888, 16
      %v3023 = vrot.slane %v3021, 4
      %v3024 = vshll.u32 %v2888, 16
      %v3026 = vrot.slane %v3024, 5
      %v3027 = vor.u32 %v3023, %v3026
      %v3028 = vrot.slane %v3027, 4
      %v3030 = vshll.u32 %v2889, 16
      %v3032 = vrot.slane %v3030, 5
      %v3033 = vsel %vm1115, %v3028, %v3032
      %v3034 = vshrl.u32 %v2889, 16
      %v3036 = vrot.slane %v3034, 4
      %v3037 = vor.u32 %v3036, %v3032
      %v3038 = vrot.slane %v3037, 4
      %v3040 = vshll.u32 %v2890, 16
      %v3042 = vrot.slane %v3040, 5
      %v3043 = vsel %vm1115, %v3038, %v3042
      %v3045 = vshrl.u32 %v2891, 16
      %v3047 = vrot.slane %v3045, 4
      %v3048 = vshll.u32 %v2891, 16
      %v3050 = vrot.slane %v3048, 5
      %v3051 = vor.u32 %v3047, %v3050
      %v3052 = vrot.slane %v3051, 4
      %v3054 = vshll.u32 %v2892, 16
      %v3056 = vrot.slane %v3054, 5
      %v3057 = vsel %vm1115, %v3052, %v3056
      %v3058 = vshrl.u32 %v2892, 16
      %v3060 = vrot.slane %v3058, 4
      %v3061 = vor.u32 %v3060, %v3056
      %v3062 = vrot.slane %v3061, 4
      %v3064 = vshll.u32 %v2893, 16
      %v3066 = vrot.slane %v3064, 5
      %v3067 = vsel %vm1115, %v3062, %v3066
      %v3069 = vshrl.u32 %v2894, 16
      %v3071 = vrot.slane %v3069, 4
      %v3072 = vshll.u32 %v2894, 16
      %v3074 = vrot.slane %v3072, 5
      %v3075 = vor.u32 %v3071, %v3074
      %v3076 = vrot.slane %v3075, 4
      %v3078 = vshll.u32 %v2895, 16
      %v3080 = vrot.slane %v3078, 5
      %v3081 = vsel %vm1115, %v3076, %v3080
      %v3082 = vshrl.u32 %v2895, 16
      %v3084 = vrot.slane %v3082, 4
      %v3085 = vor.u32 %v3084, %v3080
      %v3086 = vrot.slane %v3085, 4
      %v3088 = vshll.u32 %v2896, 16
      %v3090 = vrot.slane %v3088, 5
      %v3091 = vsel %vm1115, %v3086, %v3090
      %v3093 = vshrl.u32 %v2897, 16
      %v3095 = vrot.slane %v3093, 4
      %v3096 = vshll.u32 %v2897, 16
      %v3098 = vrot.slane %v3096, 5
      %v3099 = vor.u32 %v3095, %v3098
      %v3100 = vrot.slane %v3099, 4
      %v3102 = vshll.u32 %v2898, 16
      %v3104 = vrot.slane %v3102, 5
      %v3105 = vsel %vm1115, %v3100, %v3104
      %v3106 = vshrl.u32 %v2898, 16
      %v3108 = vrot.slane %v3106, 4
      %v3109 = vor.u32 %v3108, %v3104
      %v3110 = vrot.slane %v3109, 4
      %v3112 = vshll.u32 %v2899, 16
      %v3114 = vrot.slane %v3112, 5
      %v3115 = vsel %vm1115, %v3110, %v3114
      %v3117 = vshrl.u32 %v2900, 16
      %v3119 = vrot.slane %v3117, 4
      %v3120 = vshll.u32 %v2900, 16
      %v3122 = vrot.slane %v3120, 5
      %v3123 = vor.u32 %v3119, %v3122
      %v3124 = vrot.slane %v3123, 4
      %v3126 = vshll.u32 %v2901, 16
      %v3128 = vrot.slane %v3126, 5
      %v3129 = vsel %vm1115, %v3124, %v3128
      %v3130 = vshrl.u32 %v2901, 16
      %v3132 = vrot.slane %v3130, 4
      %v3133 = vor.u32 %v3132, %v3128
      %v3134 = vrot.slane %v3133, 4
      %v3136 = vshll.u32 %v2902, 16
      %v3138 = vrot.slane %v3136, 5
      %v3139 = vsel %vm1115, %v3134, %v3138
      %v3141 = vshrl.u32 %v2903, 16
      %v3143 = vrot.slane %v3141, 4
      %v3144 = vshll.u32 %v2903, 16
      %v3146 = vrot.slane %v3144, 5
      %v3147 = vor.u32 %v3143, %v3146
      %v3148 = vrot.slane %v3147, 4
      %v3150 = vshll.u32 %v2904, 16
      %v3152 = vrot.slane %v3150, 5
      %v3153 = vsel %vm1115, %v3148, %v3152
      %v3154 = vshrl.u32 %v2904, 16
      %v3156 = vrot.slane %v3154, 4
      %v3157 = vor.u32 %v3156, %v3152
      %v3158 = vrot.slane %v3157, 4
      %v3160 = vshll.u32 %v2905, 16
      %v3162 = vrot.slane %v3160, 5
      %v3163 = vsel %vm1115, %v3158, %v3162
      %v3165 = vshrl.u32 %v2906, 16
      %v3167 = vrot.slane %v3165, 4
      %v3168 = vshll.u32 %v2906, 16
      %v3170 = vrot.slane %v3168, 5
      %v3171 = vor.u32 %v3167, %v3170
      %v3172 = vrot.slane %v3171, 4
      %v3174 = vshll.u32 %v2907, 16
      %v3176 = vrot.slane %v3174, 5
      %v3177 = vsel %vm1115, %v3172, %v3176
      %v3178 = vshrl.u32 %v2907, 16
      %v3180 = vrot.slane %v3178, 4
      %v3181 = vor.u32 %v3180, %v3176
      %v3182 = vrot.slane %v3181, 4
      %v3184 = vshll.u32 %v2908, 16
      %v3186 = vrot.slane %v3184, 5
      %v3187 = vsel %vm1115, %v3182, %v3186
      %v3189 = vshrl.u32 %v2909, 16
      %v3191 = vrot.slane %v3189, 4
      %v3192 = vshll.u32 %v2909, 16
      %v3194 = vrot.slane %v3192, 5
      %v3195 = vor.u32 %v3191, %v3194
      %v3196 = vrot.slane %v3195, 4
      %v3198 = vshll.u32 %v2910, 16
      %v3200 = vrot.slane %v3198, 5
      %v3201 = vsel %vm1115, %v3196, %v3200
      %v3202 = vshrl.u32 %v2910, 16
      %v3204 = vrot.slane %v3202, 4
      %v3205 = vor.u32 %v3204, %v3200
      %v3206 = vrot.slane %v3205, 4
      %v3208 = vshll.u32 %v2911, 16
      %v3210 = vrot.slane %v3208, 5
      %v3211 = vsel %vm1115, %v3206, %v3210
      %v3213 = vshrl.u32 %v2912, 16
      %v3215 = vrot.slane %v3213, 4
      %v3216 = vshll.u32 %v2912, 16
      %v3218 = vrot.slane %v3216, 5
      %v3219 = vor.u32 %v3215, %v3218
      %v3220 = vrot.slane %v3219, 4
      %v3222 = vshll.u32 %v2913, 16
      %v3224 = vrot.slane %v3222, 5
      %v3225 = vsel %vm1115, %v3220, %v3224
      %v3226 = vshrl.u32 %v2913, 16
      %v3228 = vrot.slane %v3226, 4
      %v3229 = vor.u32 %v3228, %v3224
      %v3230 = vrot.slane %v3229, 4
      %v3232 = vshll.u32 %v2914, 16
      %v3234 = vrot.slane %v3232, 5
      %v3235 = vsel %vm1115, %v3230, %v3234
      %v3237 = vshrl.u32 %v2915, 16
      %v3239 = vrot.slane %v3237, 4
      %v3240 = vshll.u32 %v2915, 16
      %v3242 = vrot.slane %v3240, 5
      %v3243 = vor.u32 %v3239, %v3242
      %v3244 = vrot.slane %v3243, 4
      %v3246 = vshll.u32 %v2916, 16
      %v3248 = vrot.slane %v3246, 5
      %v3249 = vsel %vm1115, %v3244, %v3248
      %v3250 = vshrl.u32 %v2916, 16
      %v3252 = vrot.slane %v3250, 4
      %v3253 = vor.u32 %v3252, %v3248
      %v3254 = vrot.slane %v3253, 4
      %v3256 = vshll.u32 %v2917, 16
      %v3258 = vrot.slane %v3256, 5
      %v3259 = vsel %vm1115, %v3254, %v3258
      %v3261 = vshrl.u32 %v2918, 16
      %v3263 = vrot.slane %v3261, 4
      %v3264 = vshll.u32 %v2918, 16
      %v3266 = vrot.slane %v3264, 5
      %v3267 = vor.u32 %v3263, %v3266
      %v3268 = vrot.slane %v3267, 4
      %v3270 = vshll.u32 %v2919, 16
      %v3272 = vrot.slane %v3270, 5
      %v3273 = vsel %vm1115, %v3268, %v3272
      %v3274 = vshrl.u32 %v2919, 16
      %v3276 = vrot.slane %v3274, 4
      %v3277 = vor.u32 %v3276, %v3272
      %v3278 = vrot.slane %v3277, 4
      %v3280 = vshll.u32 %v2920, 16
      %v3282 = vrot.slane %v3280, 5
      %v3283 = vsel %vm1115, %v3278, %v3282
      %v3285 = vshrl.u32 %v2921, 16
      %v3287 = vrot.slane %v3285, 4
      %v3288 = vshll.u32 %v2921, 16
      %v3290 = vrot.slane %v3288, 5
      %v3291 = vor.u32 %v3287, %v3290
      %v3292 = vrot.slane %v3291, 4
      %v3294 = vshll.u32 %v2922, 16
      %v3296 = vrot.slane %v3294, 5
      %v3297 = vsel %vm1115, %v3292, %v3296
      %v3298 = vshrl.u32 %v2922, 16
      %v3300 = vrot.slane %v3298, 4
      %v3301 = vor.u32 %v3300, %v3296
      %v3302 = vrot.slane %v3301, 4
      %v3304 = vshll.u32 %v2923, 16
      %v3306 = vrot.slane %v3304, 5
      %v3307 = vsel %vm1115, %v3302, %v3306
      %v3308 = vld [vmem:[%s387 + $0x8] sm:$0x3]
      %v3309 = vunpack.c.l.b16 %v2937
      %v3310 = vunpack.c.l.b16 %v2947
      %v3311 = vunpack.c.l.b16 %v2961
      %v3312 = vunpack.c.l.b16 %v2971
      %v3313 = vunpack.c.l.b16 %v2985
      %v3314 = vunpack.c.l.b16 %v2995
      %v3315 = vunpack.c.l.b16 %v3009
      %v3316 = vunpack.c.l.b16 %v3019
      %v3317 = vunpack.c.l.b16 %v3033
      %v3318 = vunpack.c.l.b16 %v3043
      %v3319 = vunpack.c.l.b16 %v3057
      %v3320 = vunpack.c.l.b16 %v3067
      %v3321 = vunpack.c.l.b16 %v3081
      %v3322 = vunpack.c.l.b16 %v3091
      %v3323 = vunpack.c.l.b16 %v3105
      %v3324 = vunpack.c.l.b16 %v3115
      %v3325 = vunpack.c.l.b16 %v3129
      %v3326 = vunpack.c.l.b16 %v3139
      %v3327 = vunpack.c.l.b16 %v3153
      %v3328 = vunpack.c.l.b16 %v3163
      %v3329 = vunpack.c.l.b16 %v3177
      %v3330 = vunpack.c.l.b16 %v3187
      %v3331 = vunpack.c.l.b16 %v3201
      %v3332 = vunpack.c.l.b16 %v3211
      %v3333 = vunpack.c.l.b16 %v3225
      %v3334 = vunpack.c.l.b16 %v3235
      %v3335 = vunpack.c.l.b16 %v3249
      %v3336 = vunpack.c.l.b16 %v3259
      %v3337 = vunpack.c.l.b16 %v3273
      %v3338 = vunpack.c.l.b16 %v3283
      %v3339 = vunpack.c.l.b16 %v3297
      %v3340 = vunpack.c.l.b16 %v3307
      %v3341 = vpack.c.b16 %v3310, %v3309
      %v3342 = vpack.c.b16 %v3312, %v3311
      %v3343 = vpack.c.b16 %v3314, %v3313
      %v3344 = vpack.c.b16 %v3316, %v3315
      %v3345 = vpack.c.b16 %v3318, %v3317
      %v3346 = vpack.c.b16 %v3320, %v3319
      %v3347 = vpack.c.b16 %v3322, %v3321
      %v3348 = vpack.c.b16 %v3324, %v3323
      %v3349 = vpack.c.b16 %v3326, %v3325
      %v3350 = vpack.c.b16 %v3328, %v3327
      %v3351 = vpack.c.b16 %v3330, %v3329
      %v3352 = vpack.c.b16 %v3332, %v3331
      %v3353 = vpack.c.b16 %v3334, %v3333
      %v3354 = vpack.c.b16 %v3336, %v3335
      %v3355 = vpack.c.b16 %v3338, %v3337
      %v3356 = vpack.c.b16 %v3340, %v3339
      %v3358 = vsel %vm1553, %v3341, 0
      %v3361 = vsel %vm1553, %v3342, 0
      %v3364 = vsel %vm1553, %v3343, 0
      %v3367 = vsel %vm1553, %v3344, 0
      %v3370 = vsel %vm1553, %v3345, 0
      %v3373 = vsel %vm1553, %v3346, 0
      %v3376 = vsel %vm1553, %v3347, 0
      %v3379 = vsel %vm1553, %v3348, 0
      %v3382 = vsel %vm1553, %v3349, 0
      %v3385 = vsel %vm1553, %v3350, 0
      %v3388 = vsel %vm1553, %v3351, 0
      %v3391 = vsel %vm1553, %v3352, 0
      %v3394 = vsel %vm1553, %v3353, 0
      %v3397 = vsel %vm1553, %v3354, 0
      %v3400 = vsel %vm1553, %v3355, 0
      %v3403 = vsel %vm1553, %v3356, 0
      %v3406 = vsel %vm1602, %v3308, 0
      %3408 = vmatprep.subr.bf16.mxu0 0
      %3409 = vmatpush1.bf16.msra.mxu0 %v3406
      %3410 = vmatprep.subr.bf16.mxu0 0
      %3411 = vmatpush1.bf16.msra.mxu0 0
      %3412 = vmatprep.subr.bf16.mxu0 0
      %3413 = vmatpush1.bf16.msra.mxu0 0
      %3414 = vmatprep.subr.bf16.mxu0 0
      %3415 = vmatpush1.bf16.msra.mxu0 0
      %3416 = vmatprep.subr.bf16.mxu0 0
      %3417 = vmatpush1.bf16.msra.mxu0 0
      %3418 = vmatprep.subr.bf16.mxu0 0
      %3419 = vmatpush1.bf16.msra.mxu0 0
      %3420 = vmatprep.subr.bf16.mxu0 0
      %3421 = vmatpush1.bf16.msra.mxu0 0
      %3422 = vmatprep.subr.bf16.mxu0 0
      %3423 = vmatpush1.bf16.msra.mxu0 0
      %3424 = vmatprep.subr.bf16.mxu0 0
      %3425 = vmatpush1.bf16.msra.mxu0 0
      %3426 = vmatprep.subr.bf16.mxu0 0
      %3427 = vmatpush1.bf16.msra.mxu0 0
      %3428 = vmatprep.subr.bf16.mxu0 0
      %3429 = vmatpush1.bf16.msra.mxu0 0
      %3430 = vmatprep.subr.bf16.mxu0 0
      %3431 = vmatpush1.bf16.msra.mxu0 0
      %3432 = vmatprep.subr.bf16.mxu0 0
      %3433 = vmatpush1.bf16.msra.mxu0 0
      %3434 = vmatprep.subr.bf16.mxu0 0
      %3435 = vmatpush1.bf16.msra.mxu0 0
      %3436 = vmatprep.subr.bf16.mxu0 0
      %3437 = vmatpush1.bf16.msra.mxu0 0
      %3438 = vmatprep.subr.bf16.mxu0 0
      %3439 = vmatpush1.bf16.msra.mxu0 0
      %3440 = vmatprep.mubr.bf16.mxu0 0
      %3441 = vmatmul.mubr.bf16.gmra.mrb[0].mxu0 %v3358
      %v3442 = vpop.f32.mrb[0].mxu0
      %v3443 = vadd.f32 0.0, %v3442
      %v3444 = vpop.f32.mrb[0].mxu0
      %v3445 = vpop.f32.mrb[0].mxu0
      %v3446 = vadd.f32 0.0, %v3445
      %v3447 = vpop.f32.mrb[0].mxu0
      %3448 = vmatprep.mubr.bf16.mxu0 0
      %3449 = vmatmul.mubr.bf16.gmra.mrb[0].mxu0 %v3361
      %v3450 = vpop.f32.mrb[0].mxu0
      %v3451 = vadd.f32 0.0, %v3450
      %v3452 = vpop.f32.mrb[0].mxu0
      %v3453 = vpop.f32.mrb[0].mxu0
      %v3454 = vadd.f32 0.0, %v3453
      %v3455 = vpop.f32.mrb[0].mxu0
      %3456 = vmatprep.mubr.bf16.mxu0 0
      %3457 = vmatmul.mubr.bf16.gmra.mrb[0].mxu0 %v3364
      %v3458 = vpop.f32.mrb[0].mxu0
      %v3459 = vadd.f32 0.0, %v3458
      %v3460 = vpop.f32.mrb[0].mxu0
      %v3461 = vpop.f32.mrb[0].mxu0
      %v3462 = vadd.f32 0.0, %v3461
      %v3463 = vpop.f32.mrb[0].mxu0
      %3464 = vmatprep.mubr.bf16.mxu0 0
      %3465 = vmatmul.mubr.bf16.gmra.mrb[0].mxu0 %v3367
      %v3466 = vpop.f32.mrb[0].mxu0
      %v3467 = vadd.f32 0.0, %v3466
      %v3468 = vpop.f32.mrb[0].mxu0
      %v3469 = vpop.f32.mrb[0].mxu0
      %v3470 = vadd.f32 0.0, %v3469
      %v3471 = vpop.f32.mrb[0].mxu0
      %3472 = vmatprep.mubr.bf16.mxu0 0
      %3473 = vmatmul.mubr.bf16.gmra.mrb[0].mxu0 %v3370
      %v3474 = vpop.f32.mrb[0].mxu0
      %v3475 = vadd.f32 0.0, %v3474
      %v3476 = vpop.f32.mrb[0].mxu0
      %v3477 = vpop.f32.mrb[0].mxu0
      %v3478 = vadd.f32 0.0, %v3477
      %v3479 = vpop.f32.mrb[0].mxu0
      %3480 = vmatprep.mubr.bf16.mxu0 0
      %3481 = vmatmul.mubr.bf16.gmra.mrb[0].mxu0 %v3373
      %v3482 = vpop.f32.mrb[0].mxu0
      %v3483 = vadd.f32 0.0, %v3482
      %v3484 = vpop.f32.mrb[0].mxu0
      %v3485 = vpop.f32.mrb[0].mxu0
      %v3486 = vadd.f32 0.0, %v3485
      %v3487 = vpop.f32.mrb[0].mxu0
      %3488 = vmatprep.mubr.bf16.mxu0 0
      %3489 = vmatmul.mubr.bf16.gmra.mrb[0].mxu0 %v3376
      %v3490 = vpop.f32.mrb[0].mxu0
      %v3491 = vadd.f32 0.0, %v3490
      %v3492 = vpop.f32.mrb[0].mxu0
      %v3493 = vpop.f32.mrb[0].mxu0
      %v3494 = vadd.f32 0.0, %v3493
      %v3495 = vpop.f32.mrb[0].mxu0
      %3496 = vmatprep.mubr.bf16.mxu0 0
      %3497 = vmatmul.mubr.bf16.gmra.mrb[0].mxu0 %v3379
      %v3498 = vpop.f32.mrb[0].mxu0
      %v3499 = vadd.f32 0.0, %v3498
      %v3500 = vpop.f32.mrb[0].mxu0
      %v3501 = vpop.f32.mrb[0].mxu0
      %v3502 = vadd.f32 0.0, %v3501
      %v3503 = vpop.f32.mrb[0].mxu0
      %3504 = vmatprep.mubr.bf16.mxu0 0
      %3505 = vmatmul.mubr.bf16.gmra.mrb[0].mxu0 %v3382
      %v3506 = vpop.f32.mrb[0].mxu0
      %v3507 = vadd.f32 0.0, %v3506
      %v3508 = vpop.f32.mrb[0].mxu0
      %v3509 = vpop.f32.mrb[0].mxu0
      %v3510 = vadd.f32 0.0, %v3509
      %v3511 = vpop.f32.mrb[0].mxu0
      %3512 = vmatprep.mubr.bf16.mxu0 0
      %3513 = vmatmul.mubr.bf16.gmra.mrb[0].mxu0 %v3385
      %v3514 = vpop.f32.mrb[0].mxu0
      %v3515 = vadd.f32 0.0, %v3514
      %v3516 = vpop.f32.mrb[0].mxu0
      %v3517 = vpop.f32.mrb[0].mxu0
      %v3518 = vadd.f32 0.0, %v3517
      %v3519 = vpop.f32.mrb[0].mxu0
      %3520 = vmatprep.mubr.bf16.mxu0 0
      %3521 = vmatmul.mubr.bf16.gmra.mrb[0].mxu0 %v3388
      %v3522 = vpop.f32.mrb[0].mxu0
      %v3523 = vadd.f32 0.0, %v3522
      %v3524 = vpop.f32.mrb[0].mxu0
      %v3525 = vpop.f32.mrb[0].mxu0
      %v3526 = vadd.f32 0.0, %v3525
      %v3527 = vpop.f32.mrb[0].mxu0
      %3528 = vmatprep.mubr.bf16.mxu0 0
      %3529 = vmatmul.mubr.bf16.gmra.mrb[0].mxu0 %v3391
      %v3530 = vpop.f32.mrb[0].mxu0
      %v3531 = vadd.f32 0.0, %v3530
      %v3532 = vpop.f32.mrb[0].mxu0
      %v3533 = vpop.f32.mrb[0].mxu0
      %v3534 = vadd.f32 0.0, %v3533
      %v3535 = vpop.f32.mrb[0].mxu0
      %3536 = vmatprep.mubr.bf16.mxu0 0
      %3537 = vmatmul.mubr.bf16.gmra.mrb[0].mxu0 %v3394
      %v3538 = vpop.f32.mrb[0].mxu0
      %v3539 = vadd.f32 0.0, %v3538
      %v3540 = vpop.f32.mrb[0].mxu0
      %v3541 = vpop.f32.mrb[0].mxu0
      %v3542 = vadd.f32 0.0, %v3541
      %v3543 = vpop.f32.mrb[0].mxu0
      %3544 = vmatprep.mubr.bf16.mxu0 0
      %3545 = vmatmul.mubr.bf16.gmra.mrb[0].mxu0 %v3397
      %v3546 = vpop.f32.mrb[0].mxu0
      %v3547 = vadd.f32 0.0, %v3546
      %v3548 = vpop.f32.mrb[0].mxu0
      %v3549 = vpop.f32.mrb[0].mxu0
      %v3550 = vadd.f32 0.0, %v3549
      %v3551 = vpop.f32.mrb[0].mxu0
      %3552 = vmatprep.mubr.bf16.mxu0 0
      %3553 = vmatmul.mubr.bf16.gmra.mrb[0].mxu0 %v3400
      %v3554 = vpop.f32.mrb[0].mxu0
      %v3555 = vadd.f32 0.0, %v3554
      %v3556 = vpop.f32.mrb[0].mxu0
      %v3557 = vpop.f32.mrb[0].mxu0
      %v3558 = vadd.f32 0.0, %v3557
      %v3559 = vpop.f32.mrb[0].mxu0
      %3560 = vmatprep.mubr.bf16.mxu0 0
      %3561 = vmatmul.mubr.bf16.gmra.mrb[0].mxu0 %v3403
      %v3562 = vpop.f32.mrb[0].mxu0
      %v3563 = vadd.f32 0.0, %v3562
      %v3564 = vpop.f32.mrb[0].mxu0
      %v3565 = vpop.f32.mrb[0].mxu0
      %v3566 = vadd.f32 0.0, %v3565
      %v3567 = vpop.f32.mrb[0].mxu0
      %3568 = vdwg.mxu0
      %v3569 = vadd.f32 %v2844, %v3443
      %v3570 = vadd.f32 %v2845, %v3446
      %v3571 = vadd.f32 %v2846, %v3451
      %v3572 = vadd.f32 %v2847, %v3454
      %v3573 = vadd.f32 %v2848, %v3459
      %v3574 = vadd.f32 %v2849, %v3462
      %v3575 = vadd.f32 %v2850, %v3467
      %v3576 = vadd.f32 %v2851, %v3470
      %v3577 = vadd.f32 %v2852, %v3475
      %v3578 = vadd.f32 %v2853, %v3478
      %v3579 = vadd.f32 %v2854, %v3483
      %v3580 = vadd.f32 %v2855, %v3486
      %v3581 = vadd.f32 %v2856, %v3491
      %v3582 = vadd.f32 %v2857, %v3494
      %v3583 = vadd.f32 %v2858, %v3499
      %v3584 = vadd.f32 %v2859, %v3502
      %v3585 = vadd.f32 %v2860, %v3507
      %v3586 = vadd.f32 %v2861, %v3510
      %v3587 = vadd.f32 %v2862, %v3515
      %v3588 = vadd.f32 %v2863, %v3518
      %v3589 = vadd.f32 %v2864, %v3523
      %v3590 = vadd.f32 %v2865, %v3526
      %v3591 = vadd.f32 %v2866, %v3531
      %v3592 = vadd.f32 %v2867, %v3534
      %v3593 = vadd.f32 %v2868, %v3539
      %v3594 = vadd.f32 %v2869, %v3542
      %v3595 = vadd.f32 %v2870, %v3547
      %v3596 = vadd.f32 %v2871, %v3550
      %v3597 = vadd.f32 %v2872, %v3555
      %v3598 = vadd.f32 %v2873, %v3558
      %v3599 = vadd.f32 %v2874, %v3563
      %v3600 = vadd.f32 %v2875, %v3566
      %v3601 = vld [vmem:[%s902] sm:$0xe]
      %v3602 = vld [vmem:[%s902 + $0xc] sm:$0xe]
      %v3603 = vld [vmem:[%s902 + $0x18] sm:$0xe]
      %v3604 = vld [vmem:[%s902 + $0x24] sm:$0xe]
      %v3605 = vld [vmem:[%s902 + $0x30] sm:$0xe]
      %v3606 = vld [vmem:[%s902 + $0x3c] sm:$0xe]
      %v3607 = vld [vmem:[%s902 + $0x48] sm:$0xe]
      %v3608 = vld [vmem:[%s902 + $0x54] sm:$0xe]
      %v3609 = vld [vmem:[%s902 + $0x60] sm:$0xe]
      %v3610 = vld [vmem:[%s902 + $0x6c] sm:$0xe]
      %v3611 = vld [vmem:[%s902 + $0x78] sm:$0xe]
      %v3612 = vld [vmem:[%s902 + $0x84] sm:$0xe]
      %v3613 = vld [vmem:[%s902 + $0x90] sm:$0xe]
      %v3614 = vld [vmem:[%s902 + $0x9c] sm:$0xe]
      %v3615 = vld [vmem:[%s902 + $0xa8] sm:$0xe]
      %v3616 = vld [vmem:[%s902 + $0xb4] sm:$0xe]
      %v3665 = vrot.slane %v3601, 5
      %v3666 = vrot.slane %v3665, 4
      %v3667 = vrot.slane %v2877, 5
      %v3668 = vsel %vm2109, %v3666, %v3667
      %v3669 = vrot.slane %v3667, 4
      %v3670 = vrot.slane %v2878, 5
      %v3671 = vsel %vm2109, %v3669, %v3670
      %v3672 = vrot.slane %v3602, 5
      %v3673 = vrot.slane %v3672, 4
      %v3674 = vrot.slane %v2880, 5
      %v3675 = vsel %vm2109, %v3673, %v3674
      %v3676 = vrot.slane %v3674, 4
      %v3677 = vrot.slane %v2881, 5
      %v3678 = vsel %vm2109, %v3676, %v3677
      %v3679 = vrot.slane %v3603, 5
      %v3680 = vrot.slane %v3679, 4
      %v3681 = vrot.slane %v2883, 5
      %v3682 = vsel %vm2109, %v3680, %v3681
      %v3683 = vrot.slane %v3681, 4
      %v3684 = vrot.slane %v2884, 5
      %v3685 = vsel %vm2109, %v3683, %v3684
      %v3686 = vrot.slane %v3604, 5
      %v3687 = vrot.slane %v3686, 4
      %v3688 = vrot.slane %v2886, 5
      %v3689 = vsel %vm2109, %v3687, %v3688
      %v3690 = vrot.slane %v3688, 4
      %v3691 = vrot.slane %v2887, 5
      %v3692 = vsel %vm2109, %v3690, %v3691
      %v3693 = vrot.slane %v3605, 5
      %v3694 = vrot.slane %v3693, 4
      %v3695 = vrot.slane %v2889, 5
      %v3696 = vsel %vm2109, %v3694, %v3695
      %v3697 = vrot.slane %v3695, 4
      %v3698 = vrot.slane %v2890, 5
      %v3699 = vsel %vm2109, %v3697, %v3698
      %v3700 = vrot.slane %v3606, 5
      %v3701 = vrot.slane %v3700, 4
      %v3702 = vrot.slane %v2892, 5
      %v3703 = vsel %vm2109, %v3701, %v3702
      %v3704 = vrot.slane %v3702, 4
      %v3705 = vrot.slane %v2893, 5
      %v3706 = vsel %vm2109, %v3704, %v3705
      %v3707 = vrot.slane %v3607, 5
      %v3708 = vrot.slane %v3707, 4
      %v3709 = vrot.slane %v2895, 5
      %v3710 = vsel %vm2109, %v3708, %v3709
      %v3711 = vrot.slane %v3709, 4
      %v3712 = vrot.slane %v2896, 5
      %v3713 = vsel %vm2109, %v3711, %v3712
      %v3714 = vrot.slane %v3608, 5
      %v3715 = vrot.slane %v3714, 4
      %v3716 = vrot.slane %v2898, 5
      %v3717 = vsel %vm2109, %v3715, %v3716
      %v3718 = vrot.slane %v3716, 4
      %v3719 = vrot.slane %v2899, 5
      %v3720 = vsel %vm2109, %v3718, %v3719
      %v3721 = vrot.slane %v3609, 5
      %v3722 = vrot.slane %v3721, 4
      %v3723 = vrot.slane %v2901, 5
      %v3724 = vsel %vm2109, %v3722, %v3723
      %v3725 = vrot.slane %v3723, 4
      %v3726 = vrot.slane %v2902, 5
      %v3727 = vsel %vm2109, %v3725, %v3726
      %v3728 = vrot.slane %v3610, 5
      %v3729 = vrot.slane %v3728, 4
      %v3730 = vrot.slane %v2904, 5
      %v3731 = vsel %vm2109, %v3729, %v3730
      %v3732 = vrot.slane %v3730, 4
      %v3733 = vrot.slane %v2905, 5
      %v3734 = vsel %vm2109, %v3732, %v3733
      %v3735 = vrot.slane %v3611, 5
      %v3736 = vrot.slane %v3735, 4
      %v3737 = vrot.slane %v2907, 5
      %v3738 = vsel %vm2109, %v3736, %v3737
      %v3739 = vrot.slane %v3737, 4
      %v3740 = vrot.slane %v2908, 5
      %v3741 = vsel %vm2109, %v3739, %v3740
      %v3742 = vrot.slane %v3612, 5
      %v3743 = vrot.slane %v3742, 4
      %v3744 = vrot.slane %v2910, 5
      %v3745 = vsel %vm2109, %v3743, %v3744
      %v3746 = vrot.slane %v3744, 4
      %v3747 = vrot.slane %v2911, 5
      %v3748 = vsel %vm2109, %v3746, %v3747
      %v3749 = vrot.slane %v3613, 5
      %v3750 = vrot.slane %v3749, 4
      %v3751 = vrot.slane %v2913, 5
      %v3752 = vsel %vm2109, %v3750, %v3751
      %v3753 = vrot.slane %v3751, 4
      %v3754 = vrot.slane %v2914, 5
      %v3755 = vsel %vm2109, %v3753, %v3754
      %v3756 = vrot.slane %v3614, 5
      %v3757 = vrot.slane %v3756, 4
      %v3758 = vrot.slane %v2916, 5
      %v3759 = vsel %vm2109, %v3757, %v3758
      %v3760 = vrot.slane %v3758, 4
      %v3761 = vrot.slane %v2917, 5
      %v3762 = vsel %vm2109, %v3760, %v3761
      %v3763 = vrot.slane %v3615, 5
      %v3764 = vrot.slane %v3763, 4
      %v3765 = vrot.slane %v2919, 5
      %v3766 = vsel %vm2109, %v3764, %v3765
      %v3767 = vrot.slane %v3765, 4
      %v3768 = vrot.slane %v2920, 5
      %v3769 = vsel %vm2109, %v3767, %v3768
      %v3770 = vrot.slane %v3616, 5
      %v3771 = vrot.slane %v3770, 4
      %v3772 = vrot.slane %v2922, 5
      %v3773 = vsel %vm2109, %v3771, %v3772
      %v3774 = vrot.slane %v3772, 4
      %v3775 = vrot.slane %v2923, 5
      %v3776 = vsel %vm2109, %v3774, %v3775
      %v3777 = vld [vmem:[%s387 + $0x8] sm:$0xc]
      %v3778 = vunpack.c.l.b16 %v3668
      %v3779 = vunpack.c.l.b16 %v3671
      %v3780 = vunpack.c.l.b16 %v3675
      %v3781 = vunpack.c.l.b16 %v3678
      %v3782 = vunpack.c.l.b16 %v3682
      %v3783 = vunpack.c.l.b16 %v3685
      %v3784 = vunpack.c.l.b16 %v3689
      %v3785 = vunpack.c.l.b16 %v3692
      %v3786 = vunpack.c.l.b16 %v3696
      %v3787 = vunpack.c.l.b16 %v3699
      %v3788 = vunpack.c.l.b16 %v3703
      %v3789 = vunpack.c.l.b16 %v3706
      %v3790 = vunpack.c.l.b16 %v3710
      %v3791 = vunpack.c.l.b16 %v3713
      %v3792 = vunpack.c.l.b16 %v3717
      %v3793 = vunpack.c.l.b16 %v3720
      %v3794 = vunpack.c.l.b16 %v3724
      %v3795 = vunpack.c.l.b16 %v3727
      %v3796 = vunpack.c.l.b16 %v3731
      %v3797 = vunpack.c.l.b16 %v3734
      %v3798 = vunpack.c.l.b16 %v3738
      %v3799 = vunpack.c.l.b16 %v3741
      %v3800 = vunpack.c.l.b16 %v3745
      %v3801 = vunpack.c.l.b16 %v3748
      %v3802 = vunpack.c.l.b16 %v3752
      %v3803 = vunpack.c.l.b16 %v3755
      %v3804 = vunpack.c.l.b16 %v3759
      %v3805 = vunpack.c.l.b16 %v3762
      %v3806 = vunpack.c.l.b16 %v3766
      %v3807 = vunpack.c.l.b16 %v3769
      %v3808 = vunpack.c.l.b16 %v3773
      %v3809 = vunpack.c.l.b16 %v3776
      %v3810 = vpack.c.b16 %v3779, %v3778
      %v3811 = vpack.c.b16 %v3781, %v3780
      %v3812 = vpack.c.b16 %v3783, %v3782
      %v3813 = vpack.c.b16 %v3785, %v3784
      %v3814 = vpack.c.b16 %v3787, %v3786
      %v3815 = vpack.c.b16 %v3789, %v3788
      %v3816 = vpack.c.b16 %v3791, %v3790
      %v3817 = vpack.c.b16 %v3793, %v3792
      %v3818 = vpack.c.b16 %v3795, %v3794
      %v3819 = vpack.c.b16 %v3797, %v3796
      %v3820 = vpack.c.b16 %v3799, %v3798
      %v3821 = vpack.c.b16 %v3801, %v3800
      %v3822 = vpack.c.b16 %v3803, %v3802
      %v3823 = vpack.c.b16 %v3805, %v3804
      %v3824 = vpack.c.b16 %v3807, %v3806
      %v3825 = vpack.c.b16 %v3809, %v3808
      %v3827 = vunpack.c.l.b16 %v3777
      %v3828 = vpack.c.b16 %v3827, %v3827
      %v3829 = vrot.slane %v3828, 2
      %v3831 = vsel %vm1553, %v3810, 0
      %v3834 = vsel %vm1553, %v3811, 0
      %v3837 = vsel %vm1553, %v3812, 0
      %v3840 = vsel %vm1553, %v3813, 0
      %v3843 = vsel %vm1553, %v3814, 0
      %v3846 = vsel %vm1553, %v3815, 0
      %v3849 = vsel %vm1553, %v3816, 0
      %v3852 = vsel %vm1553, %v3817, 0
      %v3855 = vsel %vm1553, %v3818, 0
      %v3858 = vsel %vm1553, %v3819, 0
      %v3861 = vsel %vm1553, %v3820, 0
      %v3864 = vsel %vm1553, %v3821, 0
      %v3867 = vsel %vm1553, %v3822, 0
      %v3870 = vsel %vm1553, %v3823, 0
      %v3873 = vsel %vm1553, %v3824, 0
      %v3876 = vsel %vm1553, %v3825, 0
      %v3879 = vsel %vm1602, %v3829, 0
      %3881 = vmatprep.subr.bf16.mxu0 0
      %3882 = vmatpush1.bf16.msra.mxu0 %v3879
      %3883 = vmatprep.subr.bf16.mxu0 0
      %3884 = vmatpush1.bf16.msra.mxu0 0
      %3885 = vmatprep.subr.bf16.mxu0 0
      %3886 = vmatpush1.bf16.msra.mxu0 0
      %3887 = vmatprep.subr.bf16.mxu0 0
      %3888 = vmatpush1.bf16.msra.mxu0 0
      %3889 = vmatprep.subr.bf16.mxu0 0
      %3890 = vmatpush1.bf16.msra.mxu0 0
      %3891 = vmatprep.subr.bf16.mxu0 0
      %3892 = vmatpush1.bf16.msra.mxu0 0
      %3893 = vmatprep.subr.bf16.mxu0 0
      %3894 = vmatpush1.bf16.msra.mxu0 0
      %3895 = vmatprep.subr.bf16.mxu0 0
      %3896 = vmatpush1.bf16.msra.mxu0 0
      %3897 = vmatprep.subr.bf16.mxu0 0
      %3898 = vmatpush1.bf16.msra.mxu0 0
      %3899 = vmatprep.subr.bf16.mxu0 0
      %3900 = vmatpush1.bf16.msra.mxu0 0
      %3901 = vmatprep.subr.bf16.mxu0 0
      %3902 = vmatpush1.bf16.msra.mxu0 0
      %3903 = vmatprep.subr.bf16.mxu0 0
      %3904 = vmatpush1.bf16.msra.mxu0 0
      %3905 = vmatprep.subr.bf16.mxu0 0
      %3906 = vmatpush1.bf16.msra.mxu0 0
      %3907 = vmatprep.subr.bf16.mxu0 0
      %3908 = vmatpush1.bf16.msra.mxu0 0
      %3909 = vmatprep.subr.bf16.mxu0 0
      %3910 = vmatpush1.bf16.msra.mxu0 0
      %3911 = vmatprep.subr.bf16.mxu0 0
      %3912 = vmatpush1.bf16.msra.mxu0 0
      %3913 = vmatprep.mubr.bf16.mxu0 0
      %3914 = vmatmul.mubr.bf16.gmra.mrb[0].mxu0 %v3831
      %v3915 = vpop.f32.mrb[0].mxu0
      %v3916 = vadd.f32 0.0, %v3915
      %v3917 = vpop.f32.mrb[0].mxu0
      %v3918 = vpop.f32.mrb[0].mxu0
      %v3919 = vadd.f32 0.0, %v3918
      %v3920 = vpop.f32.mrb[0].mxu0
      %3921 = vmatprep.mubr.bf16.mxu0 0
      %3922 = vmatmul.mubr.bf16.gmra.mrb[0].mxu0 %v3834
      %v3923 = vpop.f32.mrb[0].mxu0
      %v3924 = vadd.f32 0.0, %v3923
      %v3925 = vpop.f32.mrb[0].mxu0
      %v3926 = vpop.f32.mrb[0].mxu0
      %v3927 = vadd.f32 0.0, %v3926
      %v3928 = vpop.f32.mrb[0].mxu0
      %3929 = vmatprep.mubr.bf16.mxu0 0
      %3930 = vmatmul.mubr.bf16.gmra.mrb[0].mxu0 %v3837
      %v3931 = vpop.f32.mrb[0].mxu0
      %v3932 = vadd.f32 0.0, %v3931
      %v3933 = vpop.f32.mrb[0].mxu0
      %v3934 = vpop.f32.mrb[0].mxu0
      %v3935 = vadd.f32 0.0, %v3934
      %v3936 = vpop.f32.mrb[0].mxu0
      %3937 = vmatprep.mubr.bf16.mxu0 0
      %3938 = vmatmul.mubr.bf16.gmra.mrb[0].mxu0 %v3840
      %v3939 = vpop.f32.mrb[0].mxu0
      %v3940 = vadd.f32 0.0, %v3939
      %v3941 = vpop.f32.mrb[0].mxu0
      %v3942 = vpop.f32.mrb[0].mxu0
      %v3943 = vadd.f32 0.0, %v3942
      %v3944 = vpop.f32.mrb[0].mxu0
      %3945 = vmatprep.mubr.bf16.mxu0 0
      %3946 = vmatmul.mubr.bf16.gmra.mrb[0].mxu0 %v3843
      %v3947 = vpop.f32.mrb[0].mxu0
      %v3948 = vadd.f32 0.0, %v3947
      %v3949 = vpop.f32.mrb[0].mxu0
      %v3950 = vpop.f32.mrb[0].mxu0
      %v3951 = vadd.f32 0.0, %v3950
      %v3952 = vpop.f32.mrb[0].mxu0
      %3953 = vmatprep.mubr.bf16.mxu0 0
      %3954 = vmatmul.mubr.bf16.gmra.mrb[0].mxu0 %v3846
      %v3955 = vpop.f32.mrb[0].mxu0
      %v3956 = vadd.f32 0.0, %v3955
      %v3957 = vpop.f32.mrb[0].mxu0
      %v3958 = vpop.f32.mrb[0].mxu0
      %v3959 = vadd.f32 0.0, %v3958
      %v3960 = vpop.f32.mrb[0].mxu0
      %3961 = vmatprep.mubr.bf16.mxu0 0
      %3962 = vmatmul.mubr.bf16.gmra.mrb[0].mxu0 %v3849
      %v3963 = vpop.f32.mrb[0].mxu0
      %v3964 = vadd.f32 0.0, %v3963
      %v3965 = vpop.f32.mrb[0].mxu0
      %v3966 = vpop.f32.mrb[0].mxu0
      %v3967 = vadd.f32 0.0, %v3966
      %v3968 = vpop.f32.mrb[0].mxu0
      %3969 = vmatprep.mubr.bf16.mxu0 0
      %3970 = vmatmul.mubr.bf16.gmra.mrb[0].mxu0 %v3852
      %v3971 = vpop.f32.mrb[0].mxu0
      %v3972 = vadd.f32 0.0, %v3971
      %v3973 = vpop.f32.mrb[0].mxu0
      %v3974 = vpop.f32.mrb[0].mxu0
      %v3975 = vadd.f32 0.0, %v3974
      %v3976 = vpop.f32.mrb[0].mxu0
      %3977 = vmatprep.mubr.bf16.mxu0 0
      %3978 = vmatmul.mubr.bf16.gmra.mrb[0].mxu0 %v3855
      %v3979 = vpop.f32.mrb[0].mxu0
      %v3980 = vadd.f32 0.0, %v3979
      %v3981 = vpop.f32.mrb[0].mxu0
      %v3982 = vpop.f32.mrb[0].mxu0
      %v3983 = vadd.f32 0.0, %v3982
      %v3984 = vpop.f32.mrb[0].mxu0
      %3985 = vmatprep.mubr.bf16.mxu0 0
      %3986 = vmatmul.mubr.bf16.gmra.mrb[0].mxu0 %v3858
      %v3987 = vpop.f32.mrb[0].mxu0
      %v3988 = vadd.f32 0.0, %v3987
      %v3989 = vpop.f32.mrb[0].mxu0
      %v3990 = vpop.f32.mrb[0].mxu0
      %v3991 = vadd.f32 0.0, %v3990
      %v3992 = vpop.f32.mrb[0].mxu0
      %3993 = vmatprep.mubr.bf16.mxu0 0
      %3994 = vmatmul.mubr.bf16.gmra.mrb[0].mxu0 %v3861
      %v3995 = vpop.f32.mrb[0].mxu0
      %v3996 = vadd.f32 0.0, %v3995
      %v3997 = vpop.f32.mrb[0].mxu0
      %v3998 = vpop.f32.mrb[0].mxu0
      %v3999 = vadd.f32 0.0, %v3998
      %v4000 = vpop.f32.mrb[0].mxu0
      %4001 = vmatprep.mubr.bf16.mxu0 0
      %4002 = vmatmul.mubr.bf16.gmra.mrb[0].mxu0 %v3864
      %v4003 = vpop.f32.mrb[0].mxu0
      %v4004 = vadd.f32 0.0, %v4003
      %v4005 = vpop.f32.mrb[0].mxu0
      %v4006 = vpop.f32.mrb[0].mxu0
      %v4007 = vadd.f32 0.0, %v4006
      %v4008 = vpop.f32.mrb[0].mxu0
      %4009 = vmatprep.mubr.bf16.mxu0 0
      %4010 = vmatmul.mubr.bf16.gmra.mrb[0].mxu0 %v3867
      %v4011 = vpop.f32.mrb[0].mxu0
      %v4012 = vadd.f32 0.0, %v4011
      %v4013 = vpop.f32.mrb[0].mxu0
      %v4014 = vpop.f32.mrb[0].mxu0
      %v4015 = vadd.f32 0.0, %v4014
      %v4016 = vpop.f32.mrb[0].mxu0
      %4017 = vmatprep.mubr.bf16.mxu0 0
      %4018 = vmatmul.mubr.bf16.gmra.mrb[0].mxu0 %v3870
      %v4019 = vpop.f32.mrb[0].mxu0
      %v4020 = vadd.f32 0.0, %v4019
      %v4021 = vpop.f32.mrb[0].mxu0
      %v4022 = vpop.f32.mrb[0].mxu0
      %v4023 = vadd.f32 0.0, %v4022
      %v4024 = vpop.f32.mrb[0].mxu0
      %4025 = vmatprep.mubr.bf16.mxu0 0
      %4026 = vmatmul.mubr.bf16.gmra.mrb[0].mxu0 %v3873
      %v4027 = vpop.f32.mrb[0].mxu0
      %v4028 = vadd.f32 0.0, %v4027
      %v4029 = vpop.f32.mrb[0].mxu0
      %v4030 = vpop.f32.mrb[0].mxu0
      %v4031 = vadd.f32 0.0, %v4030
      %v4032 = vpop.f32.mrb[0].mxu0
      %4033 = vmatprep.mubr.bf16.mxu0 0
      %4034 = vmatmul.mubr.bf16.gmra.mrb[0].mxu0 %v3876
      %v4035 = vpop.f32.mrb[0].mxu0
      %v4036 = vadd.f32 0.0, %v4035
      %v4037 = vpop.f32.mrb[0].mxu0
      %v4038 = vpop.f32.mrb[0].mxu0
      %v4039 = vadd.f32 0.0, %v4038
      %v4040 = vpop.f32.mrb[0].mxu0
      %4041 = vdwg.mxu0
      %v4042 = vadd.f32 %v3569, %v3916
      %v4043 = vadd.f32 %v3570, %v3919
      %v4044 = vadd.f32 %v3571, %v3924
      %v4045 = vadd.f32 %v3572, %v3927
      %v4046 = vadd.f32 %v3573, %v3932
      %v4047 = vadd.f32 %v3574, %v3935
      %v4048 = vadd.f32 %v3575, %v3940
      %v4049 = vadd.f32 %v3576, %v3943
      %v4050 = vadd.f32 %v3577, %v3948
      %v4051 = vadd.f32 %v3578, %v3951
      %v4052 = vadd.f32 %v3579, %v3956
      %v4053 = vadd.f32 %v3580, %v3959
      %v4054 = vadd.f32 %v3581, %v3964
      %v4055 = vadd.f32 %v3582, %v3967
      %v4056 = vadd.f32 %v3583, %v3972
      %v4057 = vadd.f32 %v3584, %v3975
      %v4058 = vadd.f32 %v3585, %v3980
      %v4059 = vadd.f32 %v3586, %v3983
      %v4060 = vadd.f32 %v3587, %v3988
      %v4061 = vadd.f32 %v3588, %v3991
      %v4062 = vadd.f32 %v3589, %v3996
      %v4063 = vadd.f32 %v3590, %v3999
      %v4064 = vadd.f32 %v3591, %v4004
      %v4065 = vadd.f32 %v3592, %v4007
      %v4066 = vadd.f32 %v3593, %v4012
      %v4067 = vadd.f32 %v3594, %v4015
      %v4068 = vadd.f32 %v3595, %v4020
      %v4069 = vadd.f32 %v3596, %v4023
      %v4070 = vadd.f32 %v3597, %v4028
      %v4071 = vadd.f32 %v3598, %v4031
      %v4072 = vadd.f32 %v3599, %v4036
      %v4073 = vadd.f32 %v3600, %v4039
      %s4074 = scalar_lea.vmem [#allocation2], 24
      %v4075 = vld [vmem:[%s4074] sm:$0xf]
      %v4076 = vld [vmem:[%s4074 + $0x4] sm:$0xf]
      %v4077 = vld [vmem:[%s4074 + $0xc] sm:$0xf]
      %v4078 = vld [vmem:[%s4074 + $0x10] sm:$0xf]
      %v4079 = vld [vmem:[%s4074 + $0x18] sm:$0xf]
      %v4080 = vld [vmem:[%s4074 + $0x1c] sm:$0xf]
      %v4081 = vld [vmem:[%s4074 + $0x24] sm:$0xf]
      %v4082 = vld [vmem:[%s4074 + $0x28] sm:$0xf]
      %v4083 = vld [vmem:[%s4074 + $0x30] sm:$0xf]
      %v4084 = vld [vmem:[%s4074 + $0x34] sm:$0xf]
      %v4085 = vld [vmem:[%s4074 + $0x3c] sm:$0xf]
      %v4086 = vld [vmem:[%s4074 + $0x40] sm:$0xf]
      %v4087 = vld [vmem:[%s4074 + $0x48] sm:$0xf]
      %v4088 = vld [vmem:[%s4074 + $0x4c] sm:$0xf]
      %v4089 = vld [vmem:[%s4074 + $0x54] sm:$0xf]
      %v4090 = vld [vmem:[%s4074 + $0x58] sm:$0xf]
      %v4091 = vld [vmem:[%s4074 + $0x60] sm:$0xf]
      %v4092 = vld [vmem:[%s4074 + $0x64] sm:$0xf]
      %v4093 = vld [vmem:[%s4074 + $0x6c] sm:$0xf]
      %v4094 = vld [vmem:[%s4074 + $0x70] sm:$0xf]
      %v4095 = vld [vmem:[%s4074 + $0x78] sm:$0xf]
      %v4096 = vld [vmem:[%s4074 + $0x7c] sm:$0xf]
      %v4097 = vld [vmem:[%s4074 + $0x84] sm:$0xf]
      %v4098 = vld [vmem:[%s4074 + $0x88] sm:$0xf]
      %v4099 = vld [vmem:[%s4074 + $0x90] sm:$0xf]
      %v4100 = vld [vmem:[%s4074 + $0x94] sm:$0xf]
      %v4101 = vld [vmem:[%s4074 + $0x9c] sm:$0xf]
      %v4102 = vld [vmem:[%s4074 + $0xa0] sm:$0xf]
      %v4103 = vld [vmem:[%s4074 + $0xa8] sm:$0xf]
      %v4104 = vld [vmem:[%s4074 + $0xac] sm:$0xf]
      %v4105 = vld [vmem:[%s4074 + $0xb4] sm:$0xf]
      %v4106 = vld [vmem:[%s4074 + $0xb8] sm:$0xf]
      %v4107 = vld [vmem:[%s387 + $0xc] sm:$0x3]
      %v4140 = vunpack.c.l.b16 %v4075
      %v4141 = vunpack.c.l.b16 %v4076
      %v4142 = vunpack.c.l.b16 %v4077
      %v4143 = vunpack.c.l.b16 %v4078
      %v4144 = vunpack.c.l.b16 %v4079
      %v4145 = vunpack.c.l.b16 %v4080
      %v4146 = vunpack.c.l.b16 %v4081
      %v4147 = vunpack.c.l.b16 %v4082
      %v4148 = vunpack.c.l.b16 %v4083
      %v4149 = vunpack.c.l.b16 %v4084
      %v4150 = vunpack.c.l.b16 %v4085
      %v4151 = vunpack.c.l.b16 %v4086
      %v4152 = vunpack.c.l.b16 %v4087
      %v4153 = vunpack.c.l.b16 %v4088
      %v4154 = vunpack.c.l.b16 %v4089
      %v4155 = vunpack.c.l.b16 %v4090
      %v4156 = vunpack.c.l.b16 %v4091
      %v4157 = vunpack.c.l.b16 %v4092
      %v4158 = vunpack.c.l.b16 %v4093
      %v4159 = vunpack.c.l.b16 %v4094
      %v4160 = vunpack.c.l.b16 %v4095
      %v4161 = vunpack.c.l.b16 %v4096
      %v4162 = vunpack.c.l.b16 %v4097
      %v4163 = vunpack.c.l.b16 %v4098
      %v4164 = vunpack.c.l.b16 %v4099
      %v4165 = vunpack.c.l.b16 %v4100
      %v4166 = vunpack.c.l.b16 %v4101
      %v4167 = vunpack.c.l.b16 %v4102
      %v4168 = vunpack.c.l.b16 %v4103
      %v4169 = vunpack.c.l.b16 %v4104
      %v4170 = vunpack.c.l.b16 %v4105
      %v4171 = vunpack.c.l.b16 %v4106
      %v4172 = vpack.c.b16 %v4141, %v4140
      %v4173 = vpack.c.b16 %v4143, %v4142
      %v4174 = vpack.c.b16 %v4145, %v4144
      %v4175 = vpack.c.b16 %v4147, %v4146
      %v4176 = vpack.c.b16 %v4149, %v4148
      %v4177 = vpack.c.b16 %v4151, %v4150
      %v4178 = vpack.c.b16 %v4153, %v4152
      %v4179 = vpack.c.b16 %v4155, %v4154
      %v4180 = vpack.c.b16 %v4157, %v4156
      %v4181 = vpack.c.b16 %v4159, %v4158
      %v4182 = vpack.c.b16 %v4161, %v4160
      %v4183 = vpack.c.b16 %v4163, %v4162
      %v4184 = vpack.c.b16 %v4165, %v4164
      %v4185 = vpack.c.b16 %v4167, %v4166
      %v4186 = vpack.c.b16 %v4169, %v4168
      %v4187 = vpack.c.b16 %v4171, %v4170
      %v4189 = vsel %vm1553, %v4172, 0
      %v4192 = vsel %vm1553, %v4173, 0
      %v4195 = vsel %vm1553, %v4174, 0
      %v4198 = vsel %vm1553, %v4175, 0
      %v4201 = vsel %vm1553, %v4176, 0
      %v4204 = vsel %vm1553, %v4177, 0
      %v4207 = vsel %vm1553, %v4178, 0
      %v4210 = vsel %vm1553, %v4179, 0
      %v4213 = vsel %vm1553, %v4180, 0
      %v4216 = vsel %vm1553, %v4181, 0
      %v4219 = vsel %vm1553, %v4182, 0
      %v4222 = vsel %vm1553, %v4183, 0
      %v4225 = vsel %vm1553, %v4184, 0
      %v4228 = vsel %vm1553, %v4185, 0
      %v4231 = vsel %vm1553, %v4186, 0
      %v4234 = vsel %vm1553, %v4187, 0
      %v4237 = vsel %vm1602, %v4107, 0
      %4239 = vmatprep.subr.bf16.mxu0 0
      %4240 = vmatpush1.bf16.msra.mxu0 %v4237
      %4241 = vmatprep.subr.bf16.mxu0 0
      %4242 = vmatpush1.bf16.msra.mxu0 0
      %4243 = vmatprep.subr.bf16.mxu0 0
      %4244 = vmatpush1.bf16.msra.mxu0 0
      %4245 = vmatprep.subr.bf16.mxu0 0
      %4246 = vmatpush1.bf16.msra.mxu0 0
      %4247 = vmatprep.subr.bf16.mxu0 0
      %4248 = vmatpush1.bf16.msra.mxu0 0
      %4249 = vmatprep.subr.bf16.mxu0 0
      %4250 = vmatpush1.bf16.msra.mxu0 0
      %4251 = vmatprep.subr.bf16.mxu0 0
      %4252 = vmatpush1.bf16.msra.mxu0 0
      %4253 = vmatprep.subr.bf16.mxu0 0
      %4254 = vmatpush1.bf16.msra.mxu0 0
      %4255 = vmatprep.subr.bf16.mxu0 0
      %4256 = vmatpush1.bf16.msra.mxu0 0
      %4257 = vmatprep.subr.bf16.mxu0 0
      %4258 = vmatpush1.bf16.msra.mxu0 0
      %4259 = vmatprep.subr.bf16.mxu0 0
      %4260 = vmatpush1.bf16.msra.mxu0 0
      %4261 = vmatprep.subr.bf16.mxu0 0
      %4262 = vmatpush1.bf16.msra.mxu0 0
      %4263 = vmatprep.subr.bf16.mxu0 0
      %4264 = vmatpush1.bf16.msra.mxu0 0
      %4265 = vmatprep.subr.bf16.mxu0 0
      %4266 = vmatpush1.bf16.msra.mxu0 0
      %4267 = vmatprep.subr.bf16.mxu0 0
      %4268 = vmatpush1.bf16.msra.mxu0 0
      %4269 = vmatprep.subr.bf16.mxu0 0
      %4270 = vmatpush1.bf16.msra.mxu0 0
      %4271 = vmatprep.mubr.bf16.mxu0 0
      %4272 = vmatmul.mubr.bf16.gmra.mrb[0].mxu0 %v4189
      %v4273 = vpop.f32.mrb[0].mxu0
      %v4274 = vadd.f32 0.0, %v4273
      %v4275 = vpop.f32.mrb[0].mxu0
      %v4276 = vpop.f32.mrb[0].mxu0
      %v4277 = vadd.f32 0.0, %v4276
      %v4278 = vpop.f32.mrb[0].mxu0
      %4279 = vmatprep.mubr.bf16.mxu0 0
      %4280 = vmatmul.mubr.bf16.gmra.mrb[0].mxu0 %v4192
      %v4281 = vpop.f32.mrb[0].mxu0
      %v4282 = vadd.f32 0.0, %v4281
      %v4283 = vpop.f32.mrb[0].mxu0
      %v4284 = vpop.f32.mrb[0].mxu0
      %v4285 = vadd.f32 0.0, %v4284
      %v4286 = vpop.f32.mrb[0].mxu0
      %4287 = vmatprep.mubr.bf16.mxu0 0
      %4288 = vmatmul.mubr.bf16.gmra.mrb[0].mxu0 %v4195
      %v4289 = vpop.f32.mrb[0].mxu0
      %v4290 = vadd.f32 0.0, %v4289
      %v4291 = vpop.f32.mrb[0].mxu0
      %v4292 = vpop.f32.mrb[0].mxu0
      %v4293 = vadd.f32 0.0, %v4292
      %v4294 = vpop.f32.mrb[0].mxu0
      %4295 = vmatprep.mubr.bf16.mxu0 0
      %4296 = vmatmul.mubr.bf16.gmra.mrb[0].mxu0 %v4198
      %v4297 = vpop.f32.mrb[0].mxu0
      %v4298 = vadd.f32 0.0, %v4297
      %v4299 = vpop.f32.mrb[0].mxu0
      %v4300 = vpop.f32.mrb[0].mxu0
      %v4301 = vadd.f32 0.0, %v4300
      %v4302 = vpop.f32.mrb[0].mxu0
      %4303 = vmatprep.mubr.bf16.mxu0 0
      %4304 = vmatmul.mubr.bf16.gmra.mrb[0].mxu0 %v4201
      %v4305 = vpop.f32.mrb[0].mxu0
      %v4306 = vadd.f32 0.0, %v4305
      %v4307 = vpop.f32.mrb[0].mxu0
      %v4308 = vpop.f32.mrb[0].mxu0
      %v4309 = vadd.f32 0.0, %v4308
      %v4310 = vpop.f32.mrb[0].mxu0
      %4311 = vmatprep.mubr.bf16.mxu0 0
      %4312 = vmatmul.mubr.bf16.gmra.mrb[0].mxu0 %v4204
      %v4313 = vpop.f32.mrb[0].mxu0
      %v4314 = vadd.f32 0.0, %v4313
      %v4315 = vpop.f32.mrb[0].mxu0
      %v4316 = vpop.f32.mrb[0].mxu0
      %v4317 = vadd.f32 0.0, %v4316
      %v4318 = vpop.f32.mrb[0].mxu0
      %4319 = vmatprep.mubr.bf16.mxu0 0
      %4320 = vmatmul.mubr.bf16.gmra.mrb[0].mxu0 %v4207
      %v4321 = vpop.f32.mrb[0].mxu0
      %v4322 = vadd.f32 0.0, %v4321
      %v4323 = vpop.f32.mrb[0].mxu0
      %v4324 = vpop.f32.mrb[0].mxu0
      %v4325 = vadd.f32 0.0, %v4324
      %v4326 = vpop.f32.mrb[0].mxu0
      %4327 = vmatprep.mubr.bf16.mxu0 0
      %4328 = vmatmul.mubr.bf16.gmra.mrb[0].mxu0 %v4210
      %v4329 = vpop.f32.mrb[0].mxu0
      %v4330 = vadd.f32 0.0, %v4329
      %v4331 = vpop.f32.mrb[0].mxu0
      %v4332 = vpop.f32.mrb[0].mxu0
      %v4333 = vadd.f32 0.0, %v4332
      %v4334 = vpop.f32.mrb[0].mxu0
      %4335 = vmatprep.mubr.bf16.mxu0 0
      %4336 = vmatmul.mubr.bf16.gmra.mrb[0].mxu0 %v4213
      %v4337 = vpop.f32.mrb[0].mxu0
      %v4338 = vadd.f32 0.0, %v4337
      %v4339 = vpop.f32.mrb[0].mxu0
      %v4340 = vpop.f32.mrb[0].mxu0
      %v4341 = vadd.f32 0.0, %v4340
      %v4342 = vpop.f32.mrb[0].mxu0
      %4343 = vmatprep.mubr.bf16.mxu0 0
      %4344 = vmatmul.mubr.bf16.gmra.mrb[0].mxu0 %v4216
      %v4345 = vpop.f32.mrb[0].mxu0
      %v4346 = vadd.f32 0.0, %v4345
      %v4347 = vpop.f32.mrb[0].mxu0
      %v4348 = vpop.f32.mrb[0].mxu0
      %v4349 = vadd.f32 0.0, %v4348
      %v4350 = vpop.f32.mrb[0].mxu0
      %4351 = vmatprep.mubr.bf16.mxu0 0
      %4352 = vmatmul.mubr.bf16.gmra.mrb[0].mxu0 %v4219
      %v4353 = vpop.f32.mrb[0].mxu0
      %v4354 = vadd.f32 0.0, %v4353
      %v4355 = vpop.f32.mrb[0].mxu0
      %v4356 = vpop.f32.mrb[0].mxu0
      %v4357 = vadd.f32 0.0, %v4356
      %v4358 = vpop.f32.mrb[0].mxu0
      %4359 = vmatprep.mubr.bf16.mxu0 0
      %4360 = vmatmul.mubr.bf16.gmra.mrb[0].mxu0 %v4222
      %v4361 = vpop.f32.mrb[0].mxu0
      %v4362 = vadd.f32 0.0, %v4361
      %v4363 = vpop.f32.mrb[0].mxu0
      %v4364 = vpop.f32.mrb[0].mxu0
      %v4365 = vadd.f32 0.0, %v4364
      %v4366 = vpop.f32.mrb[0].mxu0
      %4367 = vmatprep.mubr.bf16.mxu0 0
      %4368 = vmatmul.mubr.bf16.gmra.mrb[0].mxu0 %v4225
      %v4369 = vpop.f32.mrb[0].mxu0
      %v4370 = vadd.f32 0.0, %v4369
      %v4371 = vpop.f32.mrb[0].mxu0
      %v4372 = vpop.f32.mrb[0].mxu0
      %v4373 = vadd.f32 0.0, %v4372
      %v4374 = vpop.f32.mrb[0].mxu0
      %4375 = vmatprep.mubr.bf16.mxu0 0
      %4376 = vmatmul.mubr.bf16.gmra.mrb[0].mxu0 %v4228
      %v4377 = vpop.f32.mrb[0].mxu0
      %v4378 = vadd.f32 0.0, %v4377
      %v4379 = vpop.f32.mrb[0].mxu0
      %v4380 = vpop.f32.mrb[0].mxu0
      %v4381 = vadd.f32 0.0, %v4380
      %v4382 = vpop.f32.mrb[0].mxu0
      %4383 = vmatprep.mubr.bf16.mxu0 0
      %4384 = vmatmul.mubr.bf16.gmra.mrb[0].mxu0 %v4231
      %v4385 = vpop.f32.mrb[0].mxu0
      %v4386 = vadd.f32 0.0, %v4385
      %v4387 = vpop.f32.mrb[0].mxu0
      %v4388 = vpop.f32.mrb[0].mxu0
      %v4389 = vadd.f32 0.0, %v4388
      %v4390 = vpop.f32.mrb[0].mxu0
      %4391 = vmatprep.mubr.bf16.mxu0 0
      %4392 = vmatmul.mubr.bf16.gmra.mrb[0].mxu0 %v4234
      %v4393 = vpop.f32.mrb[0].mxu0
      %v4394 = vadd.f32 0.0, %v4393
      %v4395 = vpop.f32.mrb[0].mxu0
      %v4396 = vpop.f32.mrb[0].mxu0
      %v4397 = vadd.f32 0.0, %v4396
      %v4398 = vpop.f32.mrb[0].mxu0
      %4399 = vdwg.mxu0
      %v4400 = vadd.f32 %v4042, %v4274
      %v4401 = vadd.f32 %v4043, %v4277
      %v4402 = vadd.f32 %v4044, %v4282
      %v4403 = vadd.f32 %v4045, %v4285
      %v4404 = vadd.f32 %v4046, %v4290
      %v4405 = vadd.f32 %v4047, %v4293
      %v4406 = vadd.f32 %v4048, %v4298
      %v4407 = vadd.f32 %v4049, %v4301
      %v4408 = vadd.f32 %v4050, %v4306
      %v4409 = vadd.f32 %v4051, %v4309
      %v4410 = vadd.f32 %v4052, %v4314
      %v4411 = vadd.f32 %v4053, %v4317
      %v4412 = vadd.f32 %v4054, %v4322
      %v4413 = vadd.f32 %v4055, %v4325
      %v4414 = vadd.f32 %v4056, %v4330
      %v4415 = vadd.f32 %v4057, %v4333
      %v4416 = vadd.f32 %v4058, %v4338
      %v4417 = vadd.f32 %v4059, %v4341
      %v4418 = vadd.f32 %v4060, %v4346
      %v4419 = vadd.f32 %v4061, %v4349
      %v4420 = vadd.f32 %v4062, %v4354
      %v4421 = vadd.f32 %v4063, %v4357
      %v4422 = vadd.f32 %v4064, %v4362
      %v4423 = vadd.f32 %v4065, %v4365
      %v4424 = vadd.f32 %v4066, %v4370
      %v4425 = vadd.f32 %v4067, %v4373
      %v4426 = vadd.f32 %v4068, %v4378
      %v4427 = vadd.f32 %v4069, %v4381
      %v4428 = vadd.f32 %v4070, %v4386
      %v4429 = vadd.f32 %v4071, %v4389
      %v4430 = vadd.f32 %v4072, %v4394
      %v4431 = vadd.f32 %v4073, %v4397
      %v4432 = vld [vmem:[%s4074] sm:$0xf]
      %v4433 = vld [vmem:[%s4074 + $0x4] sm:$0xf]
      %v4434 = vld [vmem:[%s4074 + $0x8] sm:$0x1]
      %v4435 = vld [vmem:[%s4074 + $0xc] sm:$0xf]
      %v4436 = vld [vmem:[%s4074 + $0x10] sm:$0xf]
      %v4437 = vld [vmem:[%s4074 + $0x14] sm:$0x1]
      %v4438 = vld [vmem:[%s4074 + $0x18] sm:$0xf]
      %v4439 = vld [vmem:[%s4074 + $0x1c] sm:$0xf]
      %v4440 = vld [vmem:[%s4074 + $0x20] sm:$0x1]
      %v4441 = vld [vmem:[%s4074 + $0x24] sm:$0xf]
      %v4442 = vld [vmem:[%s4074 + $0x28] sm:$0xf]
      %v4443 = vld [vmem:[%s4074 + $0x2c] sm:$0x1]
      %v4444 = vld [vmem:[%s4074 + $0x30] sm:$0xf]
      %v4445 = vld [vmem:[%s4074 + $0x34] sm:$0xf]
      %v4446 = vld [vmem:[%s4074 + $0x38] sm:$0x1]
      %v4447 = vld [vmem:[%s4074 + $0x3c] sm:$0xf]
      %v4448 = vld [vmem:[%s4074 + $0x40] sm:$0xf]
      %v4449 = vld [vmem:[%s4074 + $0x44] sm:$0x1]
      %v4450 = vld [vmem:[%s4074 + $0x48] sm:$0xf]
      %v4451 = vld [vmem:[%s4074 + $0x4c] sm:$0xf]
      %v4452 = vld [vmem:[%s4074 + $0x50] sm:$0x1]
      %v4453 = vld [vmem:[%s4074 + $0x54] sm:$0xf]
      %v4454 = vld [vmem:[%s4074 + $0x58] sm:$0xf]
      %v4455 = vld [vmem:[%s4074 + $0x5c] sm:$0x1]
      %v4456 = vld [vmem:[%s4074 + $0x60] sm:$0xf]
      %v4457 = vld [vmem:[%s4074 + $0x64] sm:$0xf]
      %v4458 = vld [vmem:[%s4074 + $0x68] sm:$0x1]
      %v4459 = vld [vmem:[%s4074 + $0x6c] sm:$0xf]
      %v4460 = vld [vmem:[%s4074 + $0x70] sm:$0xf]
      %v4461 = vld [vmem:[%s4074 + $0x74] sm:$0x1]
      %v4462 = vld [vmem:[%s4074 + $0x78] sm:$0xf]
      %v4463 = vld [vmem:[%s4074 + $0x7c] sm:$0xf]
      %v4464 = vld [vmem:[%s4074 + $0x80] sm:$0x1]
      %v4465 = vld [vmem:[%s4074 + $0x84] sm:$0xf]
      %v4466 = vld [vmem:[%s4074 + $0x88] sm:$0xf]
      %v4467 = vld [vmem:[%s4074 + $0x8c] sm:$0x1]
      %v4468 = vld [vmem:[%s4074 + $0x90] sm:$0xf]
      %v4469 = vld [vmem:[%s4074 + $0x94] sm:$0xf]
      %v4470 = vld [vmem:[%s4074 + $0x98] sm:$0x1]
      %v4471 = vld [vmem:[%s4074 + $0x9c] sm:$0xf]
      %v4472 = vld [vmem:[%s4074 + $0xa0] sm:$0xf]
      %v4473 = vld [vmem:[%s4074 + $0xa4] sm:$0x1]
      %v4474 = vld [vmem:[%s4074 + $0xa8] sm:$0xf]
      %v4475 = vld [vmem:[%s4074 + $0xac] sm:$0xf]
      %v4476 = vld [vmem:[%s4074 + $0xb0] sm:$0x1]
      %v4477 = vld [vmem:[%s4074 + $0xb4] sm:$0xf]
      %v4478 = vld [vmem:[%s4074 + $0xb8] sm:$0xf]
      %v4479 = vld [vmem:[%s4074 + $0xbc] sm:$0x1]
      %v4481 = vshrl.u32 %v4432, 16
      %v4483 = vrot.slane %v4481, 4
      %v4484 = vshll.u32 %v4432, 16
      %v4486 = vrot.slane %v4484, 5
      %v4487 = vor.u32 %v4483, %v4486
      %v4488 = vrot.slane %v4487, 4
      %v4490 = vshll.u32 %v4433, 16
      %v4492 = vrot.slane %v4490, 5
      %v4493 = vsel %vm1115, %v4488, %v4492
      %v4494 = vshrl.u32 %v4433, 16
      %v4496 = vrot.slane %v4494, 4
      %v4497 = vor.u32 %v4496, %v4492
      %v4498 = vrot.slane %v4497, 4
      %v4500 = vshll.u32 %v4434, 16
      %v4502 = vrot.slane %v4500, 5
      %v4503 = vsel %vm1115, %v4498, %v4502
      %v4505 = vshrl.u32 %v4435, 16
      %v4507 = vrot.slane %v4505, 4
      %v4508 = vshll.u32 %v4435, 16
      %v4510 = vrot.slane %v4508, 5
      %v4511 = vor.u32 %v4507, %v4510
      %v4512 = vrot.slane %v4511, 4
      %v4514 = vshll.u32 %v4436, 16
      %v4516 = vrot.slane %v4514, 5
      %v4517 = vsel %vm1115, %v4512, %v4516
      %v4518 = vshrl.u32 %v4436, 16
      %v4520 = vrot.slane %v4518, 4
      %v4521 = vor.u32 %v4520, %v4516
      %v4522 = vrot.slane %v4521, 4
      %v4524 = vshll.u32 %v4437, 16
      %v4526 = vrot.slane %v4524, 5
      %v4527 = vsel %vm1115, %v4522, %v4526
      %v4529 = vshrl.u32 %v4438, 16
      %v4531 = vrot.slane %v4529, 4
      %v4532 = vshll.u32 %v4438, 16
      %v4534 = vrot.slane %v4532, 5
      %v4535 = vor.u32 %v4531, %v4534
      %v4536 = vrot.slane %v4535, 4
      %v4538 = vshll.u32 %v4439, 16
      %v4540 = vrot.slane %v4538, 5
      %v4541 = vsel %vm1115, %v4536, %v4540
      %v4542 = vshrl.u32 %v4439, 16
      %v4544 = vrot.slane %v4542, 4
      %v4545 = vor.u32 %v4544, %v4540
      %v4546 = vrot.slane %v4545, 4
      %v4548 = vshll.u32 %v4440, 16
      %v4550 = vrot.slane %v4548, 5
      %v4551 = vsel %vm1115, %v4546, %v4550
      %v4553 = vshrl.u32 %v4441, 16
      %v4555 = vrot.slane %v4553, 4
      %v4556 = vshll.u32 %v4441, 16
      %v4558 = vrot.slane %v4556, 5
      %v4559 = vor.u32 %v4555, %v4558
      %v4560 = vrot.slane %v4559, 4
      %v4562 = vshll.u32 %v4442, 16
      %v4564 = vrot.slane %v4562, 5
      %v4565 = vsel %vm1115, %v4560, %v4564
      %v4566 = vshrl.u32 %v4442, 16
      %v4568 = vrot.slane %v4566, 4
      %v4569 = vor.u32 %v4568, %v4564
      %v4570 = vrot.slane %v4569, 4
      %v4572 = vshll.u32 %v4443, 16
      %v4574 = vrot.slane %v4572, 5
      %v4575 = vsel %vm1115, %v4570, %v4574
      %v4577 = vshrl.u32 %v4444, 16
      %v4579 = vrot.slane %v4577, 4
      %v4580 = vshll.u32 %v4444, 16
      %v4582 = vrot.slane %v4580, 5
      %v4583 = vor.u32 %v4579, %v4582
      %v4584 = vrot.slane %v4583, 4
      %v4586 = vshll.u32 %v4445, 16
      %v4588 = vrot.slane %v4586, 5
      %v4589 = vsel %vm1115, %v4584, %v4588
      %v4590 = vshrl.u32 %v4445, 16
      %v4592 = vrot.slane %v4590, 4
      %v4593 = vor.u32 %v4592, %v4588
      %v4594 = vrot.slane %v4593, 4
      %v4596 = vshll.u32 %v4446, 16
      %v4598 = vrot.slane %v4596, 5
      %v4599 = vsel %vm1115, %v4594, %v4598
      %v4601 = vshrl.u32 %v4447, 16
      %v4603 = vrot.slane %v4601, 4
      %v4604 = vshll.u32 %v4447, 16
      %v4606 = vrot.slane %v4604, 5
      %v4607 = vor.u32 %v4603, %v4606
      %v4608 = vrot.slane %v4607, 4
      %v4610 = vshll.u32 %v4448, 16
      %v4612 = vrot.slane %v4610, 5
      %v4613 = vsel %vm1115, %v4608, %v4612
      %v4614 = vshrl.u32 %v4448, 16
      %v4616 = vrot.slane %v4614, 4
      %v4617 = vor.u32 %v4616, %v4612
      %v4618 = vrot.slane %v4617, 4
      %v4620 = vshll.u32 %v4449, 16
      %v4622 = vrot.slane %v4620, 5
      %v4623 = vsel %vm1115, %v4618, %v4622
      %v4625 = vshrl.u32 %v4450, 16
      %v4627 = vrot.slane %v4625, 4
      %v4628 = vshll.u32 %v4450, 16
      %v4630 = vrot.slane %v4628, 5
      %v4631 = vor.u32 %v4627, %v4630
      %v4632 = vrot.slane %v4631, 4
      %v4634 = vshll.u32 %v4451, 16
      %v4636 = vrot.slane %v4634, 5
      %v4637 = vsel %vm1115, %v4632, %v4636
      %v4638 = vshrl.u32 %v4451, 16
      %v4640 = vrot.slane %v4638, 4
      %v4641 = vor.u32 %v4640, %v4636
      %v4642 = vrot.slane %v4641, 4
      %v4644 = vshll.u32 %v4452, 16
      %v4646 = vrot.slane %v4644, 5
      %v4647 = vsel %vm1115, %v4642, %v4646
      %v4649 = vshrl.u32 %v4453, 16
      %v4651 = vrot.slane %v4649, 4
      %v4652 = vshll.u32 %v4453, 16
      %v4654 = vrot.slane %v4652, 5
      %v4655 = vor.u32 %v4651, %v4654
      %v4656 = vrot.slane %v4655, 4
      %v4658 = vshll.u32 %v4454, 16
      %v4660 = vrot.slane %v4658, 5
      %v4661 = vsel %vm1115, %v4656, %v4660
      %v4662 = vshrl.u32 %v4454, 16
      %v4664 = vrot.slane %v4662, 4
      %v4665 = vor.u32 %v4664, %v4660
      %v4666 = vrot.slane %v4665, 4
      %v4668 = vshll.u32 %v4455, 16
      %v4670 = vrot.slane %v4668, 5
      %v4671 = vsel %vm1115, %v4666, %v4670
      %v4673 = vshrl.u32 %v4456, 16
      %v4675 = vrot.slane %v4673, 4
      %v4676 = vshll.u32 %v4456, 16
      %v4678 = vrot.slane %v4676, 5
      %v4679 = vor.u32 %v4675, %v4678
      %v4680 = vrot.slane %v4679, 4
      %v4682 = vshll.u32 %v4457, 16
      %v4684 = vrot.slane %v4682, 5
      %v4685 = vsel %vm1115, %v4680, %v4684
      %v4686 = vshrl.u32 %v4457, 16
      %v4688 = vrot.slane %v4686, 4
      %v4689 = vor.u32 %v4688, %v4684
      %v4690 = vrot.slane %v4689, 4
      %v4692 = vshll.u32 %v4458, 16
      %v4694 = vrot.slane %v4692, 5
      %v4695 = vsel %vm1115, %v4690, %v4694
      %v4697 = vshrl.u32 %v4459, 16
      %v4699 = vrot.slane %v4697, 4
      %v4700 = vshll.u32 %v4459, 16
      %v4702 = vrot.slane %v4700, 5
      %v4703 = vor.u32 %v4699, %v4702
      %v4704 = vrot.slane %v4703, 4
      %v4706 = vshll.u32 %v4460, 16
      %v4708 = vrot.slane %v4706, 5
      %v4709 = vsel %vm1115, %v4704, %v4708
      %v4710 = vshrl.u32 %v4460, 16
      %v4712 = vrot.slane %v4710, 4
      %v4713 = vor.u32 %v4712, %v4708
      %v4714 = vrot.slane %v4713, 4
      %v4716 = vshll.u32 %v4461, 16
      %v4718 = vrot.slane %v4716, 5
      %v4719 = vsel %vm1115, %v4714, %v4718
      %v4721 = vshrl.u32 %v4462, 16
      %v4723 = vrot.slane %v4721, 4
      %v4724 = vshll.u32 %v4462, 16
      %v4726 = vrot.slane %v4724, 5
      %v4727 = vor.u32 %v4723, %v4726
      %v4728 = vrot.slane %v4727, 4
      %v4730 = vshll.u32 %v4463, 16
      %v4732 = vrot.slane %v4730, 5
      %v4733 = vsel %vm1115, %v4728, %v4732
      %v4734 = vshrl.u32 %v4463, 16
      %v4736 = vrot.slane %v4734, 4
      %v4737 = vor.u32 %v4736, %v4732
      %v4738 = vrot.slane %v4737, 4
      %v4740 = vshll.u32 %v4464, 16
      %v4742 = vrot.slane %v4740, 5
      %v4743 = vsel %vm1115, %v4738, %v4742
      %v4745 = vshrl.u32 %v4465, 16
      %v4747 = vrot.slane %v4745, 4
      %v4748 = vshll.u32 %v4465, 16
      %v4750 = vrot.slane %v4748, 5
      %v4751 = vor.u32 %v4747, %v4750
      %v4752 = vrot.slane %v4751, 4
      %v4754 = vshll.u32 %v4466, 16
      %v4756 = vrot.slane %v4754, 5
      %v4757 = vsel %vm1115, %v4752, %v4756
      %v4758 = vshrl.u32 %v4466, 16
      %v4760 = vrot.slane %v4758, 4
      %v4761 = vor.u32 %v4760, %v4756
      %v4762 = vrot.slane %v4761, 4
      %v4764 = vshll.u32 %v4467, 16
      %v4766 = vrot.slane %v4764, 5
      %v4767 = vsel %vm1115, %v4762, %v4766
      %v4769 = vshrl.u32 %v4468, 16
      %v4771 = vrot.slane %v4769, 4
      %v4772 = vshll.u32 %v4468, 16
      %v4774 = vrot.slane %v4772, 5
      %v4775 = vor.u32 %v4771, %v4774
      %v4776 = vrot.slane %v4775, 4
      %v4778 = vshll.u32 %v4469, 16
      %v4780 = vrot.slane %v4778, 5
      %v4781 = vsel %vm1115, %v4776, %v4780
      %v4782 = vshrl.u32 %v4469, 16
      %v4784 = vrot.slane %v4782, 4
      %v4785 = vor.u32 %v4784, %v4780
      %v4786 = vrot.slane %v4785, 4
      %v4788 = vshll.u32 %v4470, 16
      %v4790 = vrot.slane %v4788, 5
      %v4791 = vsel %vm1115, %v4786, %v4790
      %v4793 = vshrl.u32 %v4471, 16
      %v4795 = vrot.slane %v4793, 4
      %v4796 = vshll.u32 %v4471, 16
      %v4798 = vrot.slane %v4796, 5
      %v4799 = vor.u32 %v4795, %v4798
      %v4800 = vrot.slane %v4799, 4
      %v4802 = vshll.u32 %v4472, 16
      %v4804 = vrot.slane %v4802, 5
      %v4805 = vsel %vm1115, %v4800, %v4804
      %v4806 = vshrl.u32 %v4472, 16
      %v4808 = vrot.slane %v4806, 4
      %v4809 = vor.u32 %v4808, %v4804
      %v4810 = vrot.slane %v4809, 4
      %v4812 = vshll.u32 %v4473, 16
      %v4814 = vrot.slane %v4812, 5
      %v4815 = vsel %vm1115, %v4810, %v4814
      %v4817 = vshrl.u32 %v4474, 16
      %v4819 = vrot.slane %v4817, 4
      %v4820 = vshll.u32 %v4474, 16
      %v4822 = vrot.slane %v4820, 5
      %v4823 = vor.u32 %v4819, %v4822
      %v4824 = vrot.slane %v4823, 4
      %v4826 = vshll.u32 %v4475, 16
      %v4828 = vrot.slane %v4826, 5
      %v4829 = vsel %vm1115, %v4824, %v4828
      %v4830 = vshrl.u32 %v4475, 16
      %v4832 = vrot.slane %v4830, 4
      %v4833 = vor.u32 %v4832, %v4828
      %v4834 = vrot.slane %v4833, 4
      %v4836 = vshll.u32 %v4476, 16
      %v4838 = vrot.slane %v4836, 5
      %v4839 = vsel %vm1115, %v4834, %v4838
      %v4841 = vshrl.u32 %v4477, 16
      %v4843 = vrot.slane %v4841, 4
      %v4844 = vshll.u32 %v4477, 16
      %v4846 = vrot.slane %v4844, 5
      %v4847 = vor.u32 %v4843, %v4846
      %v4848 = vrot.slane %v4847, 4
      %v4850 = vshll.u32 %v4478, 16
      %v4852 = vrot.slane %v4850, 5
      %v4853 = vsel %vm1115, %v4848, %v4852
      %v4854 = vshrl.u32 %v4478, 16
      %v4856 = vrot.slane %v4854, 4
      %v4857 = vor.u32 %v4856, %v4852
      %v4858 = vrot.slane %v4857, 4
      %v4860 = vshll.u32 %v4479, 16
      %v4862 = vrot.slane %v4860, 5
      %v4863 = vsel %vm1115, %v4858, %v4862
      %v4864 = vld [vmem:[%s387 + $0xc] sm:$0xc]
      %v4865 = vunpack.c.l.b16 %v4493
      %v4866 = vunpack.c.l.b16 %v4503
      %v4867 = vunpack.c.l.b16 %v4517
      %v4868 = vunpack.c.l.b16 %v4527
      %v4869 = vunpack.c.l.b16 %v4541
      %v4870 = vunpack.c.l.b16 %v4551
      %v4871 = vunpack.c.l.b16 %v4565
      %v4872 = vunpack.c.l.b16 %v4575
      %v4873 = vunpack.c.l.b16 %v4589
      %v4874 = vunpack.c.l.b16 %v4599
      %v4875 = vunpack.c.l.b16 %v4613
      %v4876 = vunpack.c.l.b16 %v4623
      %v4877 = vunpack.c.l.b16 %v4637
      %v4878 = vunpack.c.l.b16 %v4647
      %v4879 = vunpack.c.l.b16 %v4661
      %v4880 = vunpack.c.l.b16 %v4671
      %v4881 = vunpack.c.l.b16 %v4685
      %v4882 = vunpack.c.l.b16 %v4695
      %v4883 = vunpack.c.l.b16 %v4709
      %v4884 = vunpack.c.l.b16 %v4719
      %v4885 = vunpack.c.l.b16 %v4733
      %v4886 = vunpack.c.l.b16 %v4743
      %v4887 = vunpack.c.l.b16 %v4757
      %v4888 = vunpack.c.l.b16 %v4767
      %v4889 = vunpack.c.l.b16 %v4781
      %v4890 = vunpack.c.l.b16 %v4791
      %v4891 = vunpack.c.l.b16 %v4805
      %v4892 = vunpack.c.l.b16 %v4815
      %v4893 = vunpack.c.l.b16 %v4829
      %v4894 = vunpack.c.l.b16 %v4839
      %v4895 = vunpack.c.l.b16 %v4853
      %v4896 = vunpack.c.l.b16 %v4863
      %v4897 = vpack.c.b16 %v4866, %v4865
      %v4898 = vpack.c.b16 %v4868, %v4867
      %v4899 = vpack.c.b16 %v4870, %v4869
      %v4900 = vpack.c.b16 %v4872, %v4871
      %v4901 = vpack.c.b16 %v4874, %v4873
      %v4902 = vpack.c.b16 %v4876, %v4875
      %v4903 = vpack.c.b16 %v4878, %v4877
      %v4904 = vpack.c.b16 %v4880, %v4879
      %v4905 = vpack.c.b16 %v4882, %v4881
      %v4906 = vpack.c.b16 %v4884, %v4883
      %v4907 = vpack.c.b16 %v4886, %v4885
      %v4908 = vpack.c.b16 %v4888, %v4887
      %v4909 = vpack.c.b16 %v4890, %v4889
      %v4910 = vpack.c.b16 %v4892, %v4891
      %v4911 = vpack.c.b16 %v4894, %v4893
      %v4912 = vpack.c.b16 %v4896, %v4895
      %v4914 = vunpack.c.l.b16 %v4864
      %v4915 = vpack.c.b16 %v4914, %v4914
      %v4916 = vrot.slane %v4915, 2
      %v4918 = vsel %vm1553, %v4897, 0
      %v4921 = vsel %vm1553, %v4898, 0
      %v4924 = vsel %vm1553, %v4899, 0
      %v4927 = vsel %vm1553, %v4900, 0
      %v4930 = vsel %vm1553, %v4901, 0
      %v4933 = vsel %vm1553, %v4902, 0
      %v4936 = vsel %vm1553, %v4903, 0
      %v4939 = vsel %vm1553, %v4904, 0
      %v4942 = vsel %vm1553, %v4905, 0
      %v4945 = vsel %vm1553, %v4906, 0
      %v4948 = vsel %vm1553, %v4907, 0
      %v4951 = vsel %vm1553, %v4908, 0
      %v4954 = vsel %vm1553, %v4909, 0
      %v4957 = vsel %vm1553, %v4910, 0
      %v4960 = vsel %vm1553, %v4911, 0
      %v4963 = vsel %vm1553, %v4912, 0
      %v4966 = vsel %vm1602, %v4916, 0
      %4968 = vmatprep.subr.bf16.mxu0 0
      %4969 = vmatpush1.bf16.msra.mxu0 %v4966
      %4970 = vmatprep.subr.bf16.mxu0 0
      %4971 = vmatpush1.bf16.msra.mxu0 0
      %4972 = vmatprep.subr.bf16.mxu0 0
      %4973 = vmatpush1.bf16.msra.mxu0 0
      %4974 = vmatprep.subr.bf16.mxu0 0
      %4975 = vmatpush1.bf16.msra.mxu0 0
      %4976 = vmatprep.subr.bf16.mxu0 0
      %4977 = vmatpush1.bf16.msra.mxu0 0
      %4978 = vmatprep.subr.bf16.mxu0 0
      %4979 = vmatpush1.bf16.msra.mxu0 0
      %4980 = vmatprep.subr.bf16.mxu0 0
      %4981 = vmatpush1.bf16.msra.mxu0 0
      %4982 = vmatprep.subr.bf16.mxu0 0
      %4983 = vmatpush1.bf16.msra.mxu0 0
      %4984 = vmatprep.subr.bf16.mxu0 0
      %4985 = vmatpush1.bf16.msra.mxu0 0
      %4986 = vmatprep.subr.bf16.mxu0 0
      %4987 = vmatpush1.bf16.msra.mxu0 0
      %4988 = vmatprep.subr.bf16.mxu0 0
      %4989 = vmatpush1.bf16.msra.mxu0 0
      %4990 = vmatprep.subr.bf16.mxu0 0
      %4991 = vmatpush1.bf16.msra.mxu0 0
      %4992 = vmatprep.subr.bf16.mxu0 0
      %4993 = vmatpush1.bf16.msra.mxu0 0
      %4994 = vmatprep.subr.bf16.mxu0 0
      %4995 = vmatpush1.bf16.msra.mxu0 0
      %4996 = vmatprep.subr.bf16.mxu0 0
      %4997 = vmatpush1.bf16.msra.mxu0 0
      %4998 = vmatprep.subr.bf16.mxu0 0
      %4999 = vmatpush1.bf16.msra.mxu0 0
      %5000 = vmatprep.mubr.bf16.mxu0 0
      %5001 = vmatmul.mubr.bf16.gmra.mrb[0].mxu0 %v4918
      %v5002 = vpop.f32.mrb[0].mxu0
      %v5003 = vadd.f32 0.0, %v5002
      %v5004 = vpop.f32.mrb[0].mxu0
      %v5005 = vpop.f32.mrb[0].mxu0
      %v5006 = vadd.f32 0.0, %v5005
      %v5007 = vpop.f32.mrb[0].mxu0
      %5008 = vmatprep.mubr.bf16.mxu0 0
      %5009 = vmatmul.mubr.bf16.gmra.mrb[0].mxu0 %v4921
      %v5010 = vpop.f32.mrb[0].mxu0
      %v5011 = vadd.f32 0.0, %v5010
      %v5012 = vpop.f32.mrb[0].mxu0
      %v5013 = vpop.f32.mrb[0].mxu0
      %v5014 = vadd.f32 0.0, %v5013
      %v5015 = vpop.f32.mrb[0].mxu0
      %5016 = vmatprep.mubr.bf16.mxu0 0
      %5017 = vmatmul.mubr.bf16.gmra.mrb[0].mxu0 %v4924
      %v5018 = vpop.f32.mrb[0].mxu0
      %v5019 = vadd.f32 0.0, %v5018
      %v5020 = vpop.f32.mrb[0].mxu0
      %v5021 = vpop.f32.mrb[0].mxu0
      %v5022 = vadd.f32 0.0, %v5021
      %v5023 = vpop.f32.mrb[0].mxu0
      %5024 = vmatprep.mubr.bf16.mxu0 0
      %5025 = vmatmul.mubr.bf16.gmra.mrb[0].mxu0 %v4927
      %v5026 = vpop.f32.mrb[0].mxu0
      %v5027 = vadd.f32 0.0, %v5026
      %v5028 = vpop.f32.mrb[0].mxu0
      %v5029 = vpop.f32.mrb[0].mxu0
      %v5030 = vadd.f32 0.0, %v5029
      %v5031 = vpop.f32.mrb[0].mxu0
      %5032 = vmatprep.mubr.bf16.mxu0 0
      %5033 = vmatmul.mubr.bf16.gmra.mrb[0].mxu0 %v4930
      %v5034 = vpop.f32.mrb[0].mxu0
      %v5035 = vadd.f32 0.0, %v5034
      %v5036 = vpop.f32.mrb[0].mxu0
      %v5037 = vpop.f32.mrb[0].mxu0
      %v5038 = vadd.f32 0.0, %v5037
      %v5039 = vpop.f32.mrb[0].mxu0
      %5040 = vmatprep.mubr.bf16.mxu0 0
      %5041 = vmatmul.mubr.bf16.gmra.mrb[0].mxu0 %v4933
      %v5042 = vpop.f32.mrb[0].mxu0
      %v5043 = vadd.f32 0.0, %v5042
      %v5044 = vpop.f32.mrb[0].mxu0
      %v5045 = vpop.f32.mrb[0].mxu0
      %v5046 = vadd.f32 0.0, %v5045
      %v5047 = vpop.f32.mrb[0].mxu0
      %5048 = vmatprep.mubr.bf16.mxu0 0
      %5049 = vmatmul.mubr.bf16.gmra.mrb[0].mxu0 %v4936
      %v5050 = vpop.f32.mrb[0].mxu0
      %v5051 = vadd.f32 0.0, %v5050
      %v5052 = vpop.f32.mrb[0].mxu0
      %v5053 = vpop.f32.mrb[0].mxu0
      %v5054 = vadd.f32 0.0, %v5053
      %v5055 = vpop.f32.mrb[0].mxu0
      %5056 = vmatprep.mubr.bf16.mxu0 0
      %5057 = vmatmul.mubr.bf16.gmra.mrb[0].mxu0 %v4939
      %v5058 = vpop.f32.mrb[0].mxu0
      %v5059 = vadd.f32 0.0, %v5058
      %v5060 = vpop.f32.mrb[0].mxu0
      %v5061 = vpop.f32.mrb[0].mxu0
      %v5062 = vadd.f32 0.0, %v5061
      %v5063 = vpop.f32.mrb[0].mxu0
      %5064 = vmatprep.mubr.bf16.mxu0 0
      %5065 = vmatmul.mubr.bf16.gmra.mrb[0].mxu0 %v4942
      %v5066 = vpop.f32.mrb[0].mxu0
      %v5067 = vadd.f32 0.0, %v5066
      %v5068 = vpop.f32.mrb[0].mxu0
      %v5069 = vpop.f32.mrb[0].mxu0
      %v5070 = vadd.f32 0.0, %v5069
      %v5071 = vpop.f32.mrb[0].mxu0
      %5072 = vmatprep.mubr.bf16.mxu0 0
      %5073 = vmatmul.mubr.bf16.gmra.mrb[0].mxu0 %v4945
      %v5074 = vpop.f32.mrb[0].mxu0
      %v5075 = vadd.f32 0.0, %v5074
      %v5076 = vpop.f32.mrb[0].mxu0
      %v5077 = vpop.f32.mrb[0].mxu0
      %v5078 = vadd.f32 0.0, %v5077
      %v5079 = vpop.f32.mrb[0].mxu0
      %5080 = vmatprep.mubr.bf16.mxu0 0
      %5081 = vmatmul.mubr.bf16.gmra.mrb[0].mxu0 %v4948
      %v5082 = vpop.f32.mrb[0].mxu0
      %v5083 = vadd.f32 0.0, %v5082
      %v5084 = vpop.f32.mrb[0].mxu0
      %v5085 = vpop.f32.mrb[0].mxu0
      %v5086 = vadd.f32 0.0, %v5085
      %v5087 = vpop.f32.mrb[0].mxu0
      %5088 = vmatprep.mubr.bf16.mxu0 0
      %5089 = vmatmul.mubr.bf16.gmra.mrb[0].mxu0 %v4951
      %v5090 = vpop.f32.mrb[0].mxu0
      %v5091 = vadd.f32 0.0, %v5090
      %v5092 = vpop.f32.mrb[0].mxu0
      %v5093 = vpop.f32.mrb[0].mxu0
      %v5094 = vadd.f32 0.0, %v5093
      %v5095 = vpop.f32.mrb[0].mxu0
      %5096 = vmatprep.mubr.bf16.mxu0 0
      %5097 = vmatmul.mubr.bf16.gmra.mrb[0].mxu0 %v4954
      %v5098 = vpop.f32.mrb[0].mxu0
      %v5099 = vadd.f32 0.0, %v5098
      %v5100 = vpop.f32.mrb[0].mxu0
      %v5101 = vpop.f32.mrb[0].mxu0
      %v5102 = vadd.f32 0.0, %v5101
      %v5103 = vpop.f32.mrb[0].mxu0
      %5104 = vmatprep.mubr.bf16.mxu0 0
      %5105 = vmatmul.mubr.bf16.gmra.mrb[0].mxu0 %v4957
      %v5106 = vpop.f32.mrb[0].mxu0
      %v5107 = vadd.f32 0.0, %v5106
      %v5108 = vpop.f32.mrb[0].mxu0
      %v5109 = vpop.f32.mrb[0].mxu0
      %v5110 = vadd.f32 0.0, %v5109
      %v5111 = vpop.f32.mrb[0].mxu0
      %5112 = vmatprep.mubr.bf16.mxu0 0
      %5113 = vmatmul.mubr.bf16.gmra.mrb[0].mxu0 %v4960
      %v5114 = vpop.f32.mrb[0].mxu0
      %v5115 = vadd.f32 0.0, %v5114
      %v5116 = vpop.f32.mrb[0].mxu0
      %v5117 = vpop.f32.mrb[0].mxu0
      %v5118 = vadd.f32 0.0, %v5117
      %v5119 = vpop.f32.mrb[0].mxu0
      %5120 = vmatprep.mubr.bf16.mxu0 0
      %5121 = vmatmul.mubr.bf16.gmra.mrb[0].mxu0 %v4963
      %v5122 = vpop.f32.mrb[0].mxu0
      %v5123 = vadd.f32 0.0, %v5122
      %v5124 = vpop.f32.mrb[0].mxu0
      %v5125 = vpop.f32.mrb[0].mxu0
      %v5126 = vadd.f32 0.0, %v5125
      %v5127 = vpop.f32.mrb[0].mxu0
      %5128 = vdwg.mxu0
      %v5129 = vadd.f32 %v4400, %v5003
      %v5130 = vadd.f32 %v4401, %v5006
      %v5131 = vadd.f32 %v4402, %v5011
      %v5132 = vadd.f32 %v4403, %v5014
      %v5133 = vadd.f32 %v4404, %v5019
      %v5134 = vadd.f32 %v4405, %v5022
      %v5135 = vadd.f32 %v4406, %v5027
      %v5136 = vadd.f32 %v4407, %v5030
      %v5137 = vadd.f32 %v4408, %v5035
      %v5138 = vadd.f32 %v4409, %v5038
      %v5139 = vadd.f32 %v4410, %v5043
      %v5140 = vadd.f32 %v4411, %v5046
      %v5141 = vadd.f32 %v4412, %v5051
      %v5142 = vadd.f32 %v4413, %v5054
      %v5143 = vadd.f32 %v4414, %v5059
      %v5144 = vadd.f32 %v4415, %v5062
      %v5145 = vadd.f32 %v4416, %v5067
      %v5146 = vadd.f32 %v4417, %v5070
      %v5147 = vadd.f32 %v4418, %v5075
      %v5148 = vadd.f32 %v4419, %v5078
      %v5149 = vadd.f32 %v4420, %v5083
      %v5150 = vadd.f32 %v4421, %v5086
      %v5151 = vadd.f32 %v4422, %v5091
      %v5152 = vadd.f32 %v4423, %v5094
      %v5153 = vadd.f32 %v4424, %v5099
      %v5154 = vadd.f32 %v4425, %v5102
      %v5155 = vadd.f32 %v4426, %v5107
      %v5156 = vadd.f32 %v4427, %v5110
      %v5157 = vadd.f32 %v4428, %v5115
      %v5158 = vadd.f32 %v4429, %v5118
      %v5159 = vadd.f32 %v4430, %v5123
      %v5160 = vadd.f32 %v4431, %v5126
      %v5161 = vld [vmem:[%s4074] sm:$0xe]
      %v5162 = vld [vmem:[%s4074 + $0xc] sm:$0xe]
      %v5163 = vld [vmem:[%s4074 + $0x18] sm:$0xe]
      %v5164 = vld [vmem:[%s4074 + $0x24] sm:$0xe]
      %v5165 = vld [vmem:[%s4074 + $0x30] sm:$0xe]
      %v5166 = vld [vmem:[%s4074 + $0x3c] sm:$0xe]
      %v5167 = vld [vmem:[%s4074 + $0x48] sm:$0xe]
      %v5168 = vld [vmem:[%s4074 + $0x54] sm:$0xe]
      %v5169 = vld [vmem:[%s4074 + $0x60] sm:$0xe]
      %v5170 = vld [vmem:[%s4074 + $0x6c] sm:$0xe]
      %v5171 = vld [vmem:[%s4074 + $0x78] sm:$0xe]
      %v5172 = vld [vmem:[%s4074 + $0x84] sm:$0xe]
      %v5173 = vld [vmem:[%s4074 + $0x90] sm:$0xe]
      %v5174 = vld [vmem:[%s4074 + $0x9c] sm:$0xe]
      %v5175 = vld [vmem:[%s4074 + $0xa8] sm:$0xe]
      %v5176 = vld [vmem:[%s4074 + $0xb4] sm:$0xe]
      %v5225 = vrot.slane %v5161, 5
      %v5226 = vrot.slane %v5225, 4
      %v5227 = vrot.slane %v4433, 5
      %v5228 = vsel %vm2109, %v5226, %v5227
      %v5229 = vrot.slane %v5227, 4
      %v5230 = vrot.slane %v4434, 5
      %v5231 = vsel %vm2109, %v5229, %v5230
      %v5232 = vrot.slane %v5162, 5
      %v5233 = vrot.slane %v5232, 4
      %v5234 = vrot.slane %v4436, 5
      %v5235 = vsel %vm2109, %v5233, %v5234
      %v5236 = vrot.slane %v5234, 4
      %v5237 = vrot.slane %v4437, 5
      %v5238 = vsel %vm2109, %v5236, %v5237
      %v5239 = vrot.slane %v5163, 5
      %v5240 = vrot.slane %v5239, 4
      %v5241 = vrot.slane %v4439, 5
      %v5242 = vsel %vm2109, %v5240, %v5241
      %v5243 = vrot.slane %v5241, 4
      %v5244 = vrot.slane %v4440, 5
      %v5245 = vsel %vm2109, %v5243, %v5244
      %v5246 = vrot.slane %v5164, 5
      %v5247 = vrot.slane %v5246, 4
      %v5248 = vrot.slane %v4442, 5
      %v5249 = vsel %vm2109, %v5247, %v5248
      %v5250 = vrot.slane %v5248, 4
      %v5251 = vrot.slane %v4443, 5
      %v5252 = vsel %vm2109, %v5250, %v5251
      %v5253 = vrot.slane %v5165, 5
      %v5254 = vrot.slane %v5253, 4
      %v5255 = vrot.slane %v4445, 5
      %v5256 = vsel %vm2109, %v5254, %v5255
      %v5257 = vrot.slane %v5255, 4
      %v5258 = vrot.slane %v4446, 5
      %v5259 = vsel %vm2109, %v5257, %v5258
      %v5260 = vrot.slane %v5166, 5
      %v5261 = vrot.slane %v5260, 4
      %v5262 = vrot.slane %v4448, 5
      %v5263 = vsel %vm2109, %v5261, %v5262
      %v5264 = vrot.slane %v5262, 4
      %v5265 = vrot.slane %v4449, 5
      %v5266 = vsel %vm2109, %v5264, %v5265
      %v5267 = vrot.slane %v5167, 5
      %v5268 = vrot.slane %v5267, 4
      %v5269 = vrot.slane %v4451, 5
      %v5270 = vsel %vm2109, %v5268, %v5269
      %v5271 = vrot.slane %v5269, 4
      %v5272 = vrot.slane %v4452, 5
      %v5273 = vsel %vm2109, %v5271, %v5272
      %v5274 = vrot.slane %v5168, 5
      %v5275 = vrot.slane %v5274, 4
      %v5276 = vrot.slane %v4454, 5
      %v5277 = vsel %vm2109, %v5275, %v5276
      %v5278 = vrot.slane %v5276, 4
      %v5279 = vrot.slane %v4455, 5
      %v5280 = vsel %vm2109, %v5278, %v5279
      %v5281 = vrot.slane %v5169, 5
      %v5282 = vrot.slane %v5281, 4
      %v5283 = vrot.slane %v4457, 5
      %v5284 = vsel %vm2109, %v5282, %v5283
      %v5285 = vrot.slane %v5283, 4
      %v5286 = vrot.slane %v4458, 5
      %v5287 = vsel %vm2109, %v5285, %v5286
      %v5288 = vrot.slane %v5170, 5
      %v5289 = vrot.slane %v5288, 4
      %v5290 = vrot.slane %v4460, 5
      %v5291 = vsel %vm2109, %v5289, %v5290
      %v5292 = vrot.slane %v5290, 4
      %v5293 = vrot.slane %v4461, 5
      %v5294 = vsel %vm2109, %v5292, %v5293
      %v5295 = vrot.slane %v5171, 5
      %v5296 = vrot.slane %v5295, 4
      %v5297 = vrot.slane %v4463, 5
      %v5298 = vsel %vm2109, %v5296, %v5297
      %v5299 = vrot.slane %v5297, 4
      %v5300 = vrot.slane %v4464, 5
      %v5301 = vsel %vm2109, %v5299, %v5300
      %v5302 = vrot.slane %v5172, 5
      %v5303 = vrot.slane %v5302, 4
      %v5304 = vrot.slane %v4466, 5
      %v5305 = vsel %vm2109, %v5303, %v5304
      %v5306 = vrot.slane %v5304, 4
      %v5307 = vrot.slane %v4467, 5
      %v5308 = vsel %vm2109, %v5306, %v5307
      %v5309 = vrot.slane %v5173, 5
      %v5310 = vrot.slane %v5309, 4
      %v5311 = vrot.slane %v4469, 5
      %v5312 = vsel %vm2109, %v5310, %v5311
      %v5313 = vrot.slane %v5311, 4
      %v5314 = vrot.slane %v4470, 5
      %v5315 = vsel %vm2109, %v5313, %v5314
      %v5316 = vrot.slane %v5174, 5
      %v5317 = vrot.slane %v5316, 4
      %v5318 = vrot.slane %v4472, 5
      %v5319 = vsel %vm2109, %v5317, %v5318
      %v5320 = vrot.slane %v5318, 4
      %v5321 = vrot.slane %v4473, 5
      %v5322 = vsel %vm2109, %v5320, %v5321
      %v5323 = vrot.slane %v5175, 5
      %v5324 = vrot.slane %v5323, 4
      %v5325 = vrot.slane %v4475, 5
      %v5326 = vsel %vm2109, %v5324, %v5325
      %v5327 = vrot.slane %v5325, 4
      %v5328 = vrot.slane %v4476, 5
      %v5329 = vsel %vm2109, %v5327, %v5328
      %v5330 = vrot.slane %v5176, 5
      %v5331 = vrot.slane %v5330, 4
      %v5332 = vrot.slane %v4478, 5
      %v5333 = vsel %vm2109, %v5331, %v5332
      %v5334 = vrot.slane %v5332, 4
      %v5335 = vrot.slane %v4479, 5
      %v5336 = vsel %vm2109, %v5334, %v5335
      %v5337 = vld [vmem:[%s387 + $0x10] sm:$0x3]
      %v5338 = vunpack.c.l.b16 %v5228
      %v5339 = vunpack.c.l.b16 %v5231
      %v5340 = vunpack.c.l.b16 %v5235
      %v5341 = vunpack.c.l.b16 %v5238
      %v5342 = vunpack.c.l.b16 %v5242
      %v5343 = vunpack.c.l.b16 %v5245
      %v5344 = vunpack.c.l.b16 %v5249
      %v5345 = vunpack.c.l.b16 %v5252
      %v5346 = vunpack.c.l.b16 %v5256
      %v5347 = vunpack.c.l.b16 %v5259
      %v5348 = vunpack.c.l.b16 %v5263
      %v5349 = vunpack.c.l.b16 %v5266
      %v5350 = vunpack.c.l.b16 %v5270
      %v5351 = vunpack.c.l.b16 %v5273
      %v5352 = vunpack.c.l.b16 %v5277
      %v5353 = vunpack.c.l.b16 %v5280
      %v5354 = vunpack.c.l.b16 %v5284
      %v5355 = vunpack.c.l.b16 %v5287
      %v5356 = vunpack.c.l.b16 %v5291
      %v5357 = vunpack.c.l.b16 %v5294
      %v5358 = vunpack.c.l.b16 %v5298
      %v5359 = vunpack.c.l.b16 %v5301
      %v5360 = vunpack.c.l.b16 %v5305
      %v5361 = vunpack.c.l.b16 %v5308
      %v5362 = vunpack.c.l.b16 %v5312
      %v5363 = vunpack.c.l.b16 %v5315
      %v5364 = vunpack.c.l.b16 %v5319
      %v5365 = vunpack.c.l.b16 %v5322
      %v5366 = vunpack.c.l.b16 %v5326
      %v5367 = vunpack.c.l.b16 %v5329
      %v5368 = vunpack.c.l.b16 %v5333
      %v5369 = vunpack.c.l.b16 %v5336
      %v5370 = vpack.c.b16 %v5339, %v5338
      %v5371 = vpack.c.b16 %v5341, %v5340
      %v5372 = vpack.c.b16 %v5343, %v5342
      %v5373 = vpack.c.b16 %v5345, %v5344
      %v5374 = vpack.c.b16 %v5347, %v5346
      %v5375 = vpack.c.b16 %v5349, %v5348
      %v5376 = vpack.c.b16 %v5351, %v5350
      %v5377 = vpack.c.b16 %v5353, %v5352
      %v5378 = vpack.c.b16 %v5355, %v5354
      %v5379 = vpack.c.b16 %v5357, %v5356
      %v5380 = vpack.c.b16 %v5359, %v5358
      %v5381 = vpack.c.b16 %v5361, %v5360
      %v5382 = vpack.c.b16 %v5363, %v5362
      %v5383 = vpack.c.b16 %v5365, %v5364
      %v5384 = vpack.c.b16 %v5367, %v5366
      %v5385 = vpack.c.b16 %v5369, %v5368
      %v5387 = vsel %vm1553, %v5370, 0
      %v5390 = vsel %vm1553, %v5371, 0
      %v5393 = vsel %vm1553, %v5372, 0
      %v5396 = vsel %vm1553, %v5373, 0
      %v5399 = vsel %vm1553, %v5374, 0
      %v5402 = vsel %vm1553, %v5375, 0
      %v5405 = vsel %vm1553, %v5376, 0
      %v5408 = vsel %vm1553, %v5377, 0
      %v5411 = vsel %vm1553, %v5378, 0
      %v5414 = vsel %vm1553, %v5379, 0
      %v5417 = vsel %vm1553, %v5380, 0
      %v5420 = vsel %vm1553, %v5381, 0
      %v5423 = vsel %vm1553, %v5382, 0
      %v5426 = vsel %vm1553, %v5383, 0
      %v5429 = vsel %vm1553, %v5384, 0
      %v5432 = vsel %vm1553, %v5385, 0
      %v5435 = vsel %vm1602, %v5337, 0
      %5437 = vmatprep.subr.bf16.mxu0 0
      %5438 = vmatpush1.bf16.msra.mxu0 %v5435
      %5439 = vmatprep.subr.bf16.mxu0 0
      %5440 = vmatpush1.bf16.msra.mxu0 0
      %5441 = vmatprep.subr.bf16.mxu0 0
      %5442 = vmatpush1.bf16.msra.mxu0 0
      %5443 = vmatprep.subr.bf16.mxu0 0
      %5444 = vmatpush1.bf16.msra.mxu0 0
      %5445 = vmatprep.subr.bf16.mxu0 0
      %5446 = vmatpush1.bf16.msra.mxu0 0
      %5447 = vmatprep.subr.bf16.mxu0 0
      %5448 = vmatpush1.bf16.msra.mxu0 0
      %5449 = vmatprep.subr.bf16.mxu0 0
      %5450 = vmatpush1.bf16.msra.mxu0 0
      %5451 = vmatprep.subr.bf16.mxu0 0
      %5452 = vmatpush1.bf16.msra.mxu0 0
      %5453 = vmatprep.subr.bf16.mxu0 0
      %5454 = vmatpush1.bf16.msra.mxu0 0
      %5455 = vmatprep.subr.bf16.mxu0 0
      %5456 = vmatpush1.bf16.msra.mxu0 0
      %5457 = vmatprep.subr.bf16.mxu0 0
      %5458 = vmatpush1.bf16.msra.mxu0 0
      %5459 = vmatprep.subr.bf16.mxu0 0
      %5460 = vmatpush1.bf16.msra.mxu0 0
      %5461 = vmatprep.subr.bf16.mxu0 0
      %5462 = vmatpush1.bf16.msra.mxu0 0
      %5463 = vmatprep.subr.bf16.mxu0 0
      %5464 = vmatpush1.bf16.msra.mxu0 0
      %5465 = vmatprep.subr.bf16.mxu0 0
      %5466 = vmatpush1.bf16.msra.mxu0 0
      %5467 = vmatprep.subr.bf16.mxu0 0
      %5468 = vmatpush1.bf16.msra.mxu0 0
      %5469 = vmatprep.mubr.bf16.mxu0 0
      %5470 = vmatmul.mubr.bf16.gmra.mrb[0].mxu0 %v5387
      %v5471 = vpop.f32.mrb[0].mxu0
      %v5472 = vadd.f32 0.0, %v5471
      %v5473 = vpop.f32.mrb[0].mxu0
      %v5474 = vpop.f32.mrb[0].mxu0
      %v5475 = vadd.f32 0.0, %v5474
      %v5476 = vpop.f32.mrb[0].mxu0
      %5477 = vmatprep.mubr.bf16.mxu0 0
      %5478 = vmatmul.mubr.bf16.gmra.mrb[0].mxu0 %v5390
      %v5479 = vpop.f32.mrb[0].mxu0
      %v5480 = vadd.f32 0.0, %v5479
      %v5481 = vpop.f32.mrb[0].mxu0
      %v5482 = vpop.f32.mrb[0].mxu0
      %v5483 = vadd.f32 0.0, %v5482
      %v5484 = vpop.f32.mrb[0].mxu0
      %5485 = vmatprep.mubr.bf16.mxu0 0
      %5486 = vmatmul.mubr.bf16.gmra.mrb[0].mxu0 %v5393
      %v5487 = vpop.f32.mrb[0].mxu0
      %v5488 = vadd.f32 0.0, %v5487
      %v5489 = vpop.f32.mrb[0].mxu0
      %v5490 = vpop.f32.mrb[0].mxu0
      %v5491 = vadd.f32 0.0, %v5490
      %v5492 = vpop.f32.mrb[0].mxu0
      %5493 = vmatprep.mubr.bf16.mxu0 0
      %5494 = vmatmul.mubr.bf16.gmra.mrb[0].mxu0 %v5396
      %v5495 = vpop.f32.mrb[0].mxu0
      %v5496 = vadd.f32 0.0, %v5495
      %v5497 = vpop.f32.mrb[0].mxu0
      %v5498 = vpop.f32.mrb[0].mxu0
      %v5499 = vadd.f32 0.0, %v5498
      %v5500 = vpop.f32.mrb[0].mxu0
      %5501 = vmatprep.mubr.bf16.mxu0 0
      %5502 = vmatmul.mubr.bf16.gmra.mrb[0].mxu0 %v5399
      %v5503 = vpop.f32.mrb[0].mxu0
      %v5504 = vadd.f32 0.0, %v5503
      %v5505 = vpop.f32.mrb[0].mxu0
      %v5506 = vpop.f32.mrb[0].mxu0
      %v5507 = vadd.f32 0.0, %v5506
      %v5508 = vpop.f32.mrb[0].mxu0
      %5509 = vmatprep.mubr.bf16.mxu0 0
      %5510 = vmatmul.mubr.bf16.gmra.mrb[0].mxu0 %v5402
      %v5511 = vpop.f32.mrb[0].mxu0
      %v5512 = vadd.f32 0.0, %v5511
      %v5513 = vpop.f32.mrb[0].mxu0
      %v5514 = vpop.f32.mrb[0].mxu0
      %v5515 = vadd.f32 0.0, %v5514
      %v5516 = vpop.f32.mrb[0].mxu0
      %5517 = vmatprep.mubr.bf16.mxu0 0
      %5518 = vmatmul.mubr.bf16.gmra.mrb[0].mxu0 %v5405
      %v5519 = vpop.f32.mrb[0].mxu0
      %v5520 = vadd.f32 0.0, %v5519
      %v5521 = vpop.f32.mrb[0].mxu0
      %v5522 = vpop.f32.mrb[0].mxu0
      %v5523 = vadd.f32 0.0, %v5522
      %v5524 = vpop.f32.mrb[0].mxu0
      %5525 = vmatprep.mubr.bf16.mxu0 0
      %5526 = vmatmul.mubr.bf16.gmra.mrb[0].mxu0 %v5408
      %v5527 = vpop.f32.mrb[0].mxu0
      %v5528 = vadd.f32 0.0, %v5527
      %v5529 = vpop.f32.mrb[0].mxu0
      %v5530 = vpop.f32.mrb[0].mxu0
      %v5531 = vadd.f32 0.0, %v5530
      %v5532 = vpop.f32.mrb[0].mxu0
      %5533 = vmatprep.mubr.bf16.mxu0 0
      %5534 = vmatmul.mubr.bf16.gmra.mrb[0].mxu0 %v5411
      %v5535 = vpop.f32.mrb[0].mxu0
      %v5536 = vadd.f32 0.0, %v5535
      %v5537 = vpop.f32.mrb[0].mxu0
      %v5538 = vpop.f32.mrb[0].mxu0
      %v5539 = vadd.f32 0.0, %v5538
      %v5540 = vpop.f32.mrb[0].mxu0
      %5541 = vmatprep.mubr.bf16.mxu0 0
      %5542 = vmatmul.mubr.bf16.gmra.mrb[0].mxu0 %v5414
      %v5543 = vpop.f32.mrb[0].mxu0
      %v5544 = vadd.f32 0.0, %v5543
      %v5545 = vpop.f32.mrb[0].mxu0
      %v5546 = vpop.f32.mrb[0].mxu0
      %v5547 = vadd.f32 0.0, %v5546
      %v5548 = vpop.f32.mrb[0].mxu0
      %5549 = vmatprep.mubr.bf16.mxu0 0
      %5550 = vmatmul.mubr.bf16.gmra.mrb[0].mxu0 %v5417
      %v5551 = vpop.f32.mrb[0].mxu0
      %v5552 = vadd.f32 0.0, %v5551
      %v5553 = vpop.f32.mrb[0].mxu0
      %v5554 = vpop.f32.mrb[0].mxu0
      %v5555 = vadd.f32 0.0, %v5554
      %v5556 = vpop.f32.mrb[0].mxu0
      %5557 = vmatprep.mubr.bf16.mxu0 0
      %5558 = vmatmul.mubr.bf16.gmra.mrb[0].mxu0 %v5420
      %v5559 = vpop.f32.mrb[0].mxu0
      %v5560 = vadd.f32 0.0, %v5559
      %v5561 = vpop.f32.mrb[0].mxu0
      %v5562 = vpop.f32.mrb[0].mxu0
      %v5563 = vadd.f32 0.0, %v5562
      %v5564 = vpop.f32.mrb[0].mxu0
      %5565 = vmatprep.mubr.bf16.mxu0 0
      %5566 = vmatmul.mubr.bf16.gmra.mrb[0].mxu0 %v5423
      %v5567 = vpop.f32.mrb[0].mxu0
      %v5568 = vadd.f32 0.0, %v5567
      %v5569 = vpop.f32.mrb[0].mxu0
      %v5570 = vpop.f32.mrb[0].mxu0
      %v5571 = vadd.f32 0.0, %v5570
      %v5572 = vpop.f32.mrb[0].mxu0
      %5573 = vmatprep.mubr.bf16.mxu0 0
      %5574 = vmatmul.mubr.bf16.gmra.mrb[0].mxu0 %v5426
      %v5575 = vpop.f32.mrb[0].mxu0
      %v5576 = vadd.f32 0.0, %v5575
      %v5577 = vpop.f32.mrb[0].mxu0
      %v5578 = vpop.f32.mrb[0].mxu0
      %v5579 = vadd.f32 0.0, %v5578
      %v5580 = vpop.f32.mrb[0].mxu0
      %5581 = vmatprep.mubr.bf16.mxu0 0
      %5582 = vmatmul.mubr.bf16.gmra.mrb[0].mxu0 %v5429
      %v5583 = vpop.f32.mrb[0].mxu0
      %v5584 = vadd.f32 0.0, %v5583
      %v5585 = vpop.f32.mrb[0].mxu0
      %v5586 = vpop.f32.mrb[0].mxu0
      %v5587 = vadd.f32 0.0, %v5586
      %v5588 = vpop.f32.mrb[0].mxu0
      %5589 = vmatprep.mubr.bf16.mxu0 0
      %5590 = vmatmul.mubr.bf16.gmra.mrb[0].mxu0 %v5432
      %v5591 = vpop.f32.mrb[0].mxu0
      %v5592 = vadd.f32 0.0, %v5591
      %v5593 = vpop.f32.mrb[0].mxu0
      %v5594 = vpop.f32.mrb[0].mxu0
      %v5595 = vadd.f32 0.0, %v5594
      %v5596 = vpop.f32.mrb[0].mxu0
      %5597 = vdwg.mxu0
      %v5598 = vadd.f32 %v5129, %v5472
      %v5599 = vadd.f32 %v5130, %v5475
      %v5600 = vadd.f32 %v5131, %v5480
      %v5601 = vadd.f32 %v5132, %v5483
      %v5602 = vadd.f32 %v5133, %v5488
      %v5603 = vadd.f32 %v5134, %v5491
      %v5604 = vadd.f32 %v5135, %v5496
      %v5605 = vadd.f32 %v5136, %v5499
      %v5606 = vadd.f32 %v5137, %v5504
      %v5607 = vadd.f32 %v5138, %v5507
      %v5608 = vadd.f32 %v5139, %v5512
      %v5609 = vadd.f32 %v5140, %v5515
      %v5610 = vadd.f32 %v5141, %v5520
      %v5611 = vadd.f32 %v5142, %v5523
      %v5612 = vadd.f32 %v5143, %v5528
      %v5613 = vadd.f32 %v5144, %v5531
      %v5614 = vadd.f32 %v5145, %v5536
      %v5615 = vadd.f32 %v5146, %v5539
      %v5616 = vadd.f32 %v5147, %v5544
      %v5617 = vadd.f32 %v5148, %v5547
      %v5618 = vadd.f32 %v5149, %v5552
      %v5619 = vadd.f32 %v5150, %v5555
      %v5620 = vadd.f32 %v5151, %v5560
      %v5621 = vadd.f32 %v5152, %v5563
      %v5622 = vadd.f32 %v5153, %v5568
      %v5623 = vadd.f32 %v5154, %v5571
      %v5624 = vadd.f32 %v5155, %v5576
      %v5625 = vadd.f32 %v5156, %v5579
      %v5626 = vadd.f32 %v5157, %v5584
      %v5627 = vadd.f32 %v5158, %v5587
      %v5628 = vadd.f32 %v5159, %v5592
      %v5629 = vadd.f32 %v5160, %v5595
      %v5630 = vpack.c.bf16 %v5599, %v5598
      %v5631 = vpack.c.bf16 %v5601, %v5600
      %v5632 = vpack.c.bf16 %v5603, %v5602
      %v5633 = vpack.c.bf16 %v5605, %v5604
      %v5634 = vpack.c.bf16 %v5607, %v5606
      %v5635 = vpack.c.bf16 %v5609, %v5608
      %v5636 = vpack.c.bf16 %v5611, %v5610
      %v5637 = vpack.c.bf16 %v5613, %v5612
      %v5638 = vpack.c.bf16 %v5615, %v5614
      %v5639 = vpack.c.bf16 %v5617, %v5616
      %v5640 = vpack.c.bf16 %v5619, %v5618
      %v5641 = vpack.c.bf16 %v5621, %v5620
      %v5642 = vpack.c.bf16 %v5623, %v5622
      %v5643 = vpack.c.bf16 %v5625, %v5624
      %v5644 = vpack.c.bf16 %v5627, %v5626
      %v5645 = vpack.c.bf16 %v5629, %v5628
      %v5662 = vunpack.c.l.b16 %v5630
      %v5663 = vunpack.c.h.b16 %v5630
      %v5664 = vunpack.c.l.b16 %v5631
      %v5665 = vunpack.c.h.b16 %v5631
      %v5666 = vunpack.c.l.b16 %v5632
      %v5667 = vunpack.c.h.b16 %v5632
      %v5668 = vunpack.c.l.b16 %v5633
      %v5669 = vunpack.c.h.b16 %v5633
      %v5670 = vunpack.c.l.b16 %v5634
      %v5671 = vunpack.c.h.b16 %v5634
      %v5672 = vunpack.c.l.b16 %v5635
      %v5673 = vunpack.c.h.b16 %v5635
      %v5674 = vunpack.c.l.b16 %v5636
      %v5675 = vunpack.c.h.b16 %v5636
      %v5676 = vunpack.c.l.b16 %v5637
      %v5677 = vunpack.c.h.b16 %v5637
      %v5678 = vunpack.c.l.b16 %v5638
      %v5679 = vunpack.c.h.b16 %v5638
      %v5680 = vunpack.c.l.b16 %v5639
      %v5681 = vunpack.c.h.b16 %v5639
      %v5682 = vunpack.c.l.b16 %v5640
      %v5683 = vunpack.c.h.b16 %v5640
      %v5684 = vunpack.c.l.b16 %v5641
      %v5685 = vunpack.c.h.b16 %v5641
      %v5686 = vunpack.c.l.b16 %v5642
      %v5687 = vunpack.c.h.b16 %v5642
      %v5688 = vunpack.c.l.b16 %v5643
      %v5689 = vunpack.c.h.b16 %v5643
      %v5690 = vunpack.c.l.b16 %v5644
      %v5691 = vunpack.c.h.b16 %v5644
      %v5692 = vunpack.c.l.b16 %v5645
      %v5693 = vunpack.c.h.b16 %v5645
      %v5694 = vpack.c.b16 %v5662, %v5662
      %v5695 = vpack.c.b16 %v5663, %v5663
      %v5696 = vpack.c.b16 %v5664, %v5664
      %v5697 = vpack.c.b16 %v5665, %v5665
      %v5698 = vpack.c.b16 %v5666, %v5666
      %v5699 = vpack.c.b16 %v5667, %v5667
      %v5700 = vpack.c.b16 %v5668, %v5668
      %v5701 = vpack.c.b16 %v5669, %v5669
      %v5702 = vpack.c.b16 %v5670, %v5670
      %v5703 = vpack.c.b16 %v5671, %v5671
      %v5704 = vpack.c.b16 %v5672, %v5672
      %v5705 = vpack.c.b16 %v5673, %v5673
      %v5706 = vpack.c.b16 %v5674, %v5674
      %v5707 = vpack.c.b16 %v5675, %v5675
      %v5708 = vpack.c.b16 %v5676, %v5676
      %v5709 = vpack.c.b16 %v5677, %v5677
      %v5710 = vpack.c.b16 %v5678, %v5678
      %v5711 = vpack.c.b16 %v5679, %v5679
      %v5712 = vpack.c.b16 %v5680, %v5680
      %v5713 = vpack.c.b16 %v5681, %v5681
      %v5714 = vpack.c.b16 %v5682, %v5682
      %v5715 = vpack.c.b16 %v5683, %v5683
      %v5716 = vpack.c.b16 %v5684, %v5684
      %v5717 = vpack.c.b16 %v5685, %v5685
      %v5718 = vpack.c.b16 %v5686, %v5686
      %v5719 = vpack.c.b16 %v5687, %v5687
      %v5720 = vpack.c.b16 %v5688, %v5688
      %v5721 = vpack.c.b16 %v5689, %v5689
      %v5722 = vpack.c.b16 %v5690, %v5690
      %v5723 = vpack.c.b16 %v5691, %v5691
      %v5724 = vpack.c.b16 %v5692, %v5692
      %v5725 = vpack.c.b16 %v5693, %v5693
      %vm5758 = vcmask 60416
      %5759 = vst.msk [vmem:[%s400] sm:$0xf] %vm5758, %v5694
      %5760 = vst.msk [vmem:[%s400 + $0x4] sm:$0xf] %vm5758, %v5695
      %5761 = vst.msk [vmem:[%s400 + $0x8] sm:$0xf] %vm5758, %v5696
      %5762 = vst.msk [vmem:[%s400 + $0xc] sm:$0xf] %vm5758, %v5697
      %5763 = vst.msk [vmem:[%s400 + $0x10] sm:$0xf] %vm5758, %v5698
      %5764 = vst.msk [vmem:[%s400 + $0x14] sm:$0xf] %vm5758, %v5699
      %5765 = vst.msk [vmem:[%s400 + $0x18] sm:$0xf] %vm5758, %v5700
      %5766 = vst.msk [vmem:[%s400 + $0x1c] sm:$0xf] %vm5758, %v5701
      %5767 = vst.msk [vmem:[%s400 + $0x20] sm:$0xf] %vm5758, %v5702
      %5768 = vst.msk [vmem:[%s400 + $0x24] sm:$0xf] %vm5758, %v5703
      %5769 = vst.msk [vmem:[%s400 + $0x28] sm:$0xf] %vm5758, %v5704
      %5770 = vst.msk [vmem:[%s400 + $0x2c] sm:$0xf] %vm5758, %v5705
      %5771 = vst.msk [vmem:[%s400 + $0x30] sm:$0xf] %vm5758, %v5706
      %5772 = vst.msk [vmem:[%s400 + $0x34] sm:$0xf] %vm5758, %v5707
      %5773 = vst.msk [vmem:[%s400 + $0x38] sm:$0xf] %vm5758, %v5708
      %5774 = vst.msk [vmem:[%s400 + $0x3c] sm:$0xf] %vm5758, %v5709
      %5775 = vst.msk [vmem:[%s400 + $0x40] sm:$0xf] %vm5758, %v5710
      %5776 = vst.msk [vmem:[%s400 + $0x44] sm:$0xf] %vm5758, %v5711
      %5777 = vst.msk [vmem:[%s400 + $0x48] sm:$0xf] %vm5758, %v5712
      %5778 = vst.msk [vmem:[%s400 + $0x4c] sm:$0xf] %vm5758, %v5713
      %5779 = vst.msk [vmem:[%s400 + $0x50] sm:$0xf] %vm5758, %v5714
      %5780 = vst.msk [vmem:[%s400 + $0x54] sm:$0xf] %vm5758, %v5715
      %5781 = vst.msk [vmem:[%s400 + $0x58] sm:$0xf] %vm5758, %v5716
      %5782 = vst.msk [vmem:[%s400 + $0x5c] sm:$0xf] %vm5758, %v5717
      %5783 = vst.msk [vmem:[%s400 + $0x60] sm:$0xf] %vm5758, %v5718
      %5784 = vst.msk [vmem:[%s400 + $0x64] sm:$0xf] %vm5758, %v5719
      %5785 = vst.msk [vmem:[%s400 + $0x68] sm:$0xf] %vm5758, %v5720
      %5786 = vst.msk [vmem:[%s400 + $0x6c] sm:$0xf] %vm5758, %v5721
      %5787 = vst.msk [vmem:[%s400 + $0x70] sm:$0xf] %vm5758, %v5722
      %5788 = vst.msk [vmem:[%s400 + $0x74] sm:$0xf] %vm5758, %v5723
      %5789 = vst.msk [vmem:[%s400 + $0x78] sm:$0xf] %vm5758, %v5724
      %5790 = vst.msk [vmem:[%s400 + $0x7c] sm:$0xf] %vm5758, %v5725
      %vm5791 = vcmask 64512
      %v5792 = vsel %vm5791, %v5598, 0.0
      %v5793 = vsel %vm5791, %v5599, 0.0
      %v5794 = vadd.f32 %v5792, %v5793
      %v5795 = vsel %vm5791, %v5600, 0.0
      %v5796 = vadd.f32 %v5794, %v5795
      %v5797 = vsel %vm5791, %v5601, 0.0
      %v5798 = vadd.f32 %v5796, %v5797
      %v5799 = vsel %vm5791, %v5602, 0.0
      %v5800 = vadd.f32 %v5798, %v5799
      %v5801 = vsel %vm5791, %v5603, 0.0
      %v5802 = vadd.f32 %v5800, %v5801
      %v5803 = vsel %vm5791, %v5604, 0.0
      %v5804 = vadd.f32 %v5802, %v5803
      %v5805 = vsel %vm5791, %v5605, 0.0
      %v5806 = vadd.f32 %v5804, %v5805
      %v5807 = vsel %vm5791, %v5606, 0.0
      %v5808 = vadd.f32 %v5806, %v5807
      %v5809 = vsel %vm5791, %v5607, 0.0
      %v5810 = vadd.f32 %v5808, %v5809
      %v5811 = vsel %vm5791, %v5608, 0.0
      %v5812 = vadd.f32 %v5810, %v5811
      %v5813 = vsel %vm5791, %v5609, 0.0
      %v5814 = vadd.f32 %v5812, %v5813
      %v5815 = vsel %vm5791, %v5610, 0.0
      %v5816 = vadd.f32 %v5814, %v5815
      %v5817 = vsel %vm5791, %v5611, 0.0
      %v5818 = vadd.f32 %v5816, %v5817
      %v5819 = vsel %vm5791, %v5612, 0.0
      %v5820 = vadd.f32 %v5818, %v5819
      %v5821 = vsel %vm5791, %v5613, 0.0
      %v5822 = vadd.f32 %v5820, %v5821
      %v5823 = vsel %vm5791, %v5614, 0.0
      %v5824 = vadd.f32 %v5822, %v5823
      %v5825 = vsel %vm5791, %v5615, 0.0
      %v5826 = vadd.f32 %v5824, %v5825
      %v5827 = vsel %vm5791, %v5616, 0.0
      %v5828 = vadd.f32 %v5826, %v5827
      %v5829 = vsel %vm5791, %v5617, 0.0
      %v5830 = vadd.f32 %v5828, %v5829
      %v5831 = vsel %vm5791, %v5618, 0.0
      %v5832 = vadd.f32 %v5830, %v5831
      %v5833 = vsel %vm5791, %v5619, 0.0
      %v5834 = vadd.f32 %v5832, %v5833
      %v5835 = vsel %vm5791, %v5620, 0.0
      %v5836 = vadd.f32 %v5834, %v5835
      %v5837 = vsel %vm5791, %v5621, 0.0
      %v5838 = vadd.f32 %v5836, %v5837
      %v5839 = vsel %vm5791, %v5622, 0.0
      %v5840 = vadd.f32 %v5838, %v5839
      %v5841 = vsel %vm5791, %v5623, 0.0
      %v5842 = vadd.f32 %v5840, %v5841
      %v5843 = vsel %vm5791, %v5624, 0.0
      %v5844 = vadd.f32 %v5842, %v5843
      %v5845 = vsel %vm5791, %v5625, 0.0
      %v5846 = vadd.f32 %v5844, %v5845
      %v5847 = vsel %vm5791, %v5626, 0.0
      %v5848 = vadd.f32 %v5846, %v5847
      %v5849 = vsel %vm5791, %v5627, 0.0
      %v5850 = vadd.f32 %v5848, %v5849
      %v5851 = vsel %vm5791, %v5628, 0.0
      %v5852 = vadd.f32 %v5850, %v5851
      %v5853 = vsel %vm5791, %v5629, 0.0
      %v5854 = vadd.f32 %v5852, %v5853
      %v5855 = vrot.slane %v5854, 4
      %v5856 = vadd.f32 %v5854, %v5855
      %v5857 = vrot.slane %v5856, 2
      %v5858 = vadd.f32 %v5856, %v5857
      %v5859 = vrot.slane %v5858, 1
      %v5860 = vadd.f32 %v5858, %v5859
      %v5861 = vmul.f32 %v5598, %v5598
      %v5862 = vmul.f32 %v5599, %v5599
      %v5863 = vmul.f32 %v5600, %v5600
      %v5864 = vmul.f32 %v5601, %v5601
      %v5865 = vmul.f32 %v5602, %v5602
      %v5866 = vmul.f32 %v5603, %v5603
      %v5867 = vmul.f32 %v5604, %v5604
      %v5868 = vmul.f32 %v5605, %v5605
      %v5869 = vmul.f32 %v5606, %v5606
      %v5870 = vmul.f32 %v5607, %v5607
      %v5871 = vmul.f32 %v5608, %v5608
      %v5872 = vmul.f32 %v5609, %v5609
      %v5873 = vmul.f32 %v5610, %v5610
      %v5874 = vmul.f32 %v5611, %v5611
      %v5875 = vmul.f32 %v5612, %v5612
      %v5876 = vmul.f32 %v5613, %v5613
      %v5877 = vmul.f32 %v5614, %v5614
      %v5878 = vmul.f32 %v5615, %v5615
      %v5879 = vmul.f32 %v5616, %v5616
      %v5880 = vmul.f32 %v5617, %v5617
      %v5881 = vmul.f32 %v5618, %v5618
      %v5882 = vmul.f32 %v5619, %v5619
      %v5883 = vmul.f32 %v5620, %v5620
      %v5884 = vmul.f32 %v5621, %v5621
      %v5885 = vmul.f32 %v5622, %v5622
      %v5886 = vmul.f32 %v5623, %v5623
      %v5887 = vmul.f32 %v5624, %v5624
      %v5888 = vmul.f32 %v5625, %v5625
      %v5889 = vmul.f32 %v5626, %v5626
      %v5890 = vmul.f32 %v5627, %v5627
      %v5891 = vmul.f32 %v5628, %v5628
      %v5892 = vmul.f32 %v5629, %v5629
      %v5893 = vsel %vm5791, %v5861, 0.0
      %v5894 = vsel %vm5791, %v5862, 0.0
      %v5895 = vadd.f32 %v5893, %v5894
      %v5896 = vsel %vm5791, %v5863, 0.0
      %v5897 = vadd.f32 %v5895, %v5896
      %v5898 = vsel %vm5791, %v5864, 0.0
      %v5899 = vadd.f32 %v5897, %v5898
      %v5900 = vsel %vm5791, %v5865, 0.0
      %v5901 = vadd.f32 %v5899, %v5900
      %v5902 = vsel %vm5791, %v5866, 0.0
      %v5903 = vadd.f32 %v5901, %v5902
      %v5904 = vsel %vm5791, %v5867, 0.0
      %v5905 = vadd.f32 %v5903, %v5904
      %v5906 = vsel %vm5791, %v5868, 0.0
      %v5907 = vadd.f32 %v5905, %v5906
      %v5908 = vsel %vm5791, %v5869, 0.0
      %v5909 = vadd.f32 %v5907, %v5908
      %v5910 = vsel %vm5791, %v5870, 0.0
      %v5911 = vadd.f32 %v5909, %v5910
      %v5912 = vsel %vm5791, %v5871, 0.0
      %v5913 = vadd.f32 %v5911, %v5912
      %v5914 = vsel %vm5791, %v5872, 0.0
      %v5915 = vadd.f32 %v5913, %v5914
      %v5916 = vsel %vm5791, %v5873, 0.0
      %v5917 = vadd.f32 %v5915, %v5916
      %v5918 = vsel %vm5791, %v5874, 0.0
      %v5919 = vadd.f32 %v5917, %v5918
      %v5920 = vsel %vm5791, %v5875, 0.0
      %v5921 = vadd.f32 %v5919, %v5920
      %v5922 = vsel %vm5791, %v5876, 0.0
      %v5923 = vadd.f32 %v5921, %v5922
      %v5924 = vsel %vm5791, %v5877, 0.0
      %v5925 = vadd.f32 %v5923, %v5924
      %v5926 = vsel %vm5791, %v5878, 0.0
      %v5927 = vadd.f32 %v5925, %v5926
      %v5928 = vsel %vm5791, %v5879, 0.0
      %v5929 = vadd.f32 %v5927, %v5928
      %v5930 = vsel %vm5791, %v5880, 0.0
      %v5931 = vadd.f32 %v5929, %v5930
      %v5932 = vsel %vm5791, %v5881, 0.0
      %v5933 = vadd.f32 %v5931, %v5932
      %v5934 = vsel %vm5791, %v5882, 0.0
      %v5935 = vadd.f32 %v5933, %v5934
      %v5936 = vsel %vm5791, %v5883, 0.0
      %v5937 = vadd.f32 %v5935, %v5936
      %v5938 = vsel %vm5791, %v5884, 0.0
      %v5939 = vadd.f32 %v5937, %v5938
      %v5940 = vsel %vm5791, %v5885, 0.0
      %v5941 = vadd.f32 %v5939, %v5940
      %v5942 = vsel %vm5791, %v5886, 0.0
      %v5943 = vadd.f32 %v5941, %v5942
      %v5944 = vsel %vm5791, %v5887, 0.0
      %v5945 = vadd.f32 %v5943, %v5944
      %v5946 = vsel %vm5791, %v5888, 0.0
      %v5947 = vadd.f32 %v5945, %v5946
      %v5948 = vsel %vm5791, %v5889, 0.0
      %v5949 = vadd.f32 %v5947, %v5948
      %v5950 = vsel %vm5791, %v5890, 0.0
      %v5951 = vadd.f32 %v5949, %v5950
      %v5952 = vsel %vm5791, %v5891, 0.0
      %v5953 = vadd.f32 %v5951, %v5952
      %v5954 = vsel %vm5791, %v5892, 0.0
      %v5955 = vadd.f32 %v5953, %v5954
      %v5956 = vrot.slane %v5955, 4
      %v5957 = vadd.f32 %v5955, %v5956
      %v5958 = vrot.slane %v5957, 2
      %v5959 = vadd.f32 %v5957, %v5958
      %v5960 = vrot.slane %v5959, 1
      %v5961 = vadd.f32 %v5959, %v5960
      %vm5962 = vcmask 1040384
      %v5963 = vsel %vm5962, %v5860, %v5961
      // Predicated region
      $region57: #{double_conv.3} parent=39 // pred_check
        %p5964 = pneg %p444
      $region58: #{double_conv.3} parent=39 // pred_check_branch
        %5966 = sbr.rel (%p5964) target = $region60
      $region59: #{double_conv.3} parent=39 // pred_region
        %vm5967 = vcmask 58368
        %5968 = vst.msk [vmem:[%s408] sm:$0x3] %vm5967, %v5963
      $region60: #{double_conv.3} parent=39 // pred_fallthru
        _
      // Predicated region
      $region61: #{double_conv.3} parent=39 // pred_check
        %p5969 = pneg %p566
      $region62: #{double_conv.3} parent=39 // pred_check_branch
        %5971 = sbr.rel (%p5969) target = $region64
      $region63: #{double_conv.3} parent=39 // pred_region
        %v5972 = vld [vmem:[%s408] sm:$0x3]
        %v5973 = vadd.f32 %v5972, %v5963
        %vm5974 = vcmask 58368
        %5975 = vst.msk [vmem:[%s408] sm:$0x3] %vm5974, %v5973
      $region64: #{double_conv.3} parent=39 // pred_fallthru
        _
      %s5976 = smul.u32 16, %s25
      %p5977 = scmp.lt.s32.totalorder %s23, 1
      %s5978 = scalar_select %p5977, %s23, 1
      %p5979 = scmp.lt.s32.totalorder %s5976, 15
      %s5980 = scalar_select %p5979, %s5976, 15
      %p5981 = scmp.lt.s32.totalorder %s24, 0
      %s5982 = scalar_select %p5981, %s24, 0
      %s5983 = smul.addr %s5980, 2
      %s5984 = sadd.s32 %s5982, %s5983
      %s5985 = smul.addr %s5978, 32
      %s5986 = sadd.s32 %s5984, %s5985
      %s5987 = smul.addr %s5986, 4
      %s5988 = scalar_lea.vmem %s5, %s5987
      %p5989 = scmp.lt.s32.totalorder %s23, 1
      %s5990 = scalar_select %p5989, %s23, 1
      %p5991 = scmp.lt.s32.totalorder %s24, 0
      %s5992 = scalar_select %p5991, %s24, 0
      %s5993 = sadd.s32 %s5992, %s5990
      %s5994 = smul.addr %s5993, 2
      %s5995 = scalar_lea.vmem %s6, %s5994
      // Predicated region
      $region65: #{double_conv.3} parent=39 // pred_check
        %p5996 = pneg %p191
      $region66: #{double_conv.3} parent=39 // pred_check_branch
        %5998 = sbr.rel (%p5996) target = $region68
      $region67: #{double_conv.3} parent=39 // pred_region
        %s5999 = smul.u32 16, %s25
      $region68: #{double_conv.3} parent=39 // pred_fallthru
        _
      // Predicated region
      $region69: #{double_conv.3} parent=39 // pred_check
        %p6000 = pneg %p219
      $region70: #{double_conv.3} parent=39 // pred_check_branch
        %6002 = sbr.rel (%p6000) target = $region72
      $region71: #{double_conv.3} parent=39 // pred_region
        _
      $region72: #{double_conv.3} parent=39 // pred_fallthru
        _
    $region40: #{double_conv.3} parent=5 // pred_fallthru
      _
    %p6003 = scmp.le.s32.totalorder 2, %s13
    // Predicated region
    $region73: #{double_conv.3} parent=5 // pred_check
      %p6004 = pneg %p6003
    $region74: #{double_conv.3} parent=5 // pred_check_branch
      %6006 = sbr.rel (%p6004) target = $region76
    $region75: #{double_conv.3} parent=5 // pred_region
      %s6007 = ssub.s32 %s13, 2
      // Predicated region
      $region77: #{double_conv.3} parent=75 // pred_check
        %p6008 = pneg %p197
      $region78: #{double_conv.3} parent=75 // pred_check_branch
        %6010 = sbr.rel (%p6008) target = $region80
      $region79: #{double_conv.3} parent=75 // pred_region
        %s6011 = smul.u32 16, %s28
        %p6012 = scmp.lt.s32.totalorder %s26, 1
        %s6013 = scalar_select %p6012, %s26, 1
        %p6014 = scmp.lt.s32.totalorder %s6011, 15
        %s6015 = scalar_select %p6014, %s6011, 15
        %p6016 = scmp.lt.s32.totalorder %s27, 0
        %s6017 = scalar_select %p6016, %s27, 0
        %s6018 = smul.addr %s6015, 2
        %s6019 = sadd.s32 %s6017, %s6018
        %s6020 = smul.addr %s6013, 32
        %s6021 = sadd.s32 %s6019, %s6020
        %s6022 = smul.addr %s6021, 4
        %s6023 = scalar_lea.vmem %s5, %s6022
      $region80: #{double_conv.3} parent=75 // pred_fallthru
        _
      // Predicated region
      $region81: #{double_conv.3} parent=75 // pred_check
        %p6024 = pneg %p225
      $region82: #{double_conv.3} parent=75 // pred_check_branch
        %6026 = sbr.rel (%p6024) target = $region84
      $region83: #{double_conv.3} parent=75 // pred_region
        %p6027 = scmp.lt.s32.totalorder %s26, 1
        %s6028 = scalar_select %p6027, %s26, 1
        %p6029 = scmp.lt.s32.totalorder %s27, 0
        %s6030 = scalar_select %p6029, %s27, 0
        %s6031 = sadd.s32 %s6030, %s6028
        %s6032 = smul.addr %s6031, 2
        %s6033 = scalar_lea.vmem %s6, %s6032
      $region84: #{double_conv.3} parent=75 // pred_fallthru
        _
    $region76: #{double_conv.3} parent=5 // pred_fallthru
      _
  $region6: #{double_conv.3} parent=0 // loop_footer
    %s17 = sadd.s32 1, %s13
  $region7: #{double_conv.3} parent=0 // loop_footer_branch
    %12 = sbr.rel target = $region3
  $region8: #{double_conv.3} parent=0 // loop_exit
    _

// kernel: double_conv.4
$region0: #{double_conv.4}
  #allocation0 [shape = 'u32[]', space=smem, size = 0x4, offset = 0x4, fixed_abs, tag = 'smem constant byte address 0x4 - core index']
  #allocation1 [shape = 'u32[144,128]{1,0:T(1,128)}', space=vmem, size = 0x12000, scoped, tag = 'internal scratch']
  #allocation2 [shape = 'bf16[18,18,8]{2,1,0:T(8,128)(2,1)}', space=vmem, size = 0x1b000, scoped, tag = 'scratch operand']
  %s0 = inlined_call_operand.vmem [shape: bf16[2,16,16,8], index: 0, kind: input, shape index: {}, may-alias: {0,1}]
  %s1 = inlined_call_operand.vmem [shape: bf16[2,16,16,8], index: 1, kind: input, shape index: {}, may-alias: {0,1}]
  %s2 = inlined_call_operand.vmem [shape: bf16[72,8], index: 2, kind: input, shape index: {}]
  %s3 = inlined_call_operand.vmem [shape: f32[1,8], index: 3, kind: input, shape index: {}]
  %s4 = inlined_call_operand.vmem [shape: f32[1,8], index: 4, kind: input, shape index: {}]
  %s5 = inlined_call_operand.vmem [shape: bf16[2,16,16,8], index: 5, kind: output, shape index: {0}]
  %s6 = inlined_call_operand.vmem [shape: f32[2,2,8], index: 6, kind: output, shape index: {1}]
  %7 = xla_tuple %s5, %s6
  %s8 = sld [smem:[#allocation0]]
  $region85: #{double_conv.4} parent=0
    _
  %s10 = ssub.s32 1, %s8
  %s11 = scalar_select 0, %s10, %s8
  loop: start=0, step=1, limit=4
  $region2: #{double_conv.4} parent=0 // loop_pre_header
    _
  $region3: #{double_conv.4} parent=0 // loop_header
    %s13 = sphi 0, %s17
    %p14 = scmp.ge.s32.totalorder %s13, 4
    %s20 = sphi 0, %s39
    %s21 = sphi 0, %s35
    %s22 = sphi 0, %s31
    %s23 = sphi 0, %s20
    %s24 = sphi 0, %s21
    %s25 = sphi 0, %s22
    %s26 = sphi 0, %s23
    %s27 = sphi 0, %s24
    %s28 = sphi 0, %s25
    %s44 = sphi 0, %s46
    %s47 = sphi 0, %s44
    %s48 = sphi 0, %s47
    %s64 = sphi 0, %s48
    %s80 = sphi 0, %s82
    %s83 = sphi 0, %s80
    %s84 = sphi 0, %s83
    %s100 = sphi 0, %s84
    %s106 = sphi 0, %s108
    %s109 = sphi 0, %s106
    %s110 = sphi 0, %s109
    %s126 = sphi 0, %s110
    %s130 = sphi 0, %s130
    %s132 = sphi 0, %s130
    %s133 = sphi 0, %s132
    %s147 = sphi 0, %s133
    %s151 = sphi 0, %s151
    %s153 = sphi 0, %s151
    %s154 = sphi 0, %s153
    %s168 = sphi 0, %s154
    %s178 = sphi 0, %s180
    %s181 = sphi 0, %s178
    %s182 = sphi 0, %s181
    %s198 = sphi 0, %s182
    %s206 = sphi 0, %s208
    %s209 = sphi 0, %s206
    %s210 = sphi 0, %s209
    %s226 = sphi 0, %s210
  $region4: #{double_conv.4} parent=0 // loop_header_branch
    %16 = sbr.rel (%p14) target = $region8
  $region5: #{double_conv.4} parent=0 // loop_body
    %s18 = ssub.s32 %s13, 1
    %s19 = ssub.s32 %s13, 2
    %s29 = sadd.s32 1, %s22
    %p30 = scmp.ge.s32.totalorder %s29, 1
    %s31 = scalar_select %p30, 0, %s29
    %s32 = sadd.s32 1, %s21
    %s33 = scalar_select %p30, %s32, %s21
    %p34 = scmp.ge.s32.totalorder %s33, 1
    %s35 = scalar_select %p34, 0, %s33
    %s36 = sadd.s32 1, %s20
    %s37 = scalar_select %p34, %s36, %s20
    %p38 = scmp.ge.s32.totalorder %s37, 2
    %s39 = scalar_select %p38, 0, %s37
    %s40 = ssub.s32 %s20, %s39
    %s41 = ssub.s32 %s22, %s31
    %s42 = sor.u32 %s40, %s41
    %p43 = scmp.eq.s32.totalorder %s42, 0
    %s45 = sadd.s32 %s44, 1
    %s46 = scalar_select %p43, %s44, %s45
    %p49 = pneg %p43
    %p50 = scmp.eq.s32.totalorder %s13, 1
    %p51 = por %p49, %p50
    %p52 = scmp.ne.s32.totalorder %s44, %s47
    %p53 = scmp.eq.s32.totalorder %s13, 0
    %p54 = por %p52, %p53
    %p55 = scmp.ne.s32.totalorder %s44, %s47
    %p56 = scmp.eq.s32.totalorder %s18, 1
    %p57 = por %p55, %p56
    %p58 = scmp.ne.s32.totalorder %s47, %s48
    %p59 = scmp.eq.s32.totalorder %s18, 0
    %p60 = por %p58, %p59
    %p61 = scmp.ne.s32.totalorder %s47, %s48
    %p62 = scmp.eq.s32.totalorder %s19, 1
    %p63 = por %p61, %p62
    %p65 = scmp.ne.s32.totalorder %s48, %s64
    %p66 = scmp.eq.s32.totalorder %s19, 0
    %p67 = por %p65, %p66
    %s68 = sadd.s32 %s22, 1
    %s69 = smul.u32 %s68, 16
    %p70 = scmp.lt.s32.totalorder %s69, 15
    %s71 = scalar_select %p70, %s69, 15
    %s72 = sadd.s32 %s31, 1
    %s73 = smul.u32 %s72, 16
    %p74 = scmp.lt.s32.totalorder %s73, 15
    %s75 = scalar_select %p74, %s73, 15
    %s76 = ssub.s32 %s20, %s39
    %s77 = ssub.s32 %s71, %s75
    %s78 = sor.u32 %s76, %s77
    %p79 = scmp.eq.s32.totalorder %s78, 0
    %s81 = sadd.s32 %s80, 1
    %s82 = scalar_select %p79, %s80, %s81
    %p85 = pneg %p79
    %p86 = scmp.eq.s32.totalorder %s13, 1
    %p87 = por %p85, %p86
    %p88 = scmp.ne.s32.totalorder %s80, %s83
    %p89 = scmp.eq.s32.totalorder %s13, 0
    %p90 = por %p88, %p89
    %p91 = scmp.ne.s32.totalorder %s80, %s83
    %p92 = scmp.eq.s32.totalorder %s18, 1
    %p93 = por %p91, %p92
    %p94 = scmp.ne.s32.totalorder %s83, %s84
    %p95 = scmp.eq.s32.totalorder %s18, 0
    %p96 = por %p94, %p95
    %p97 = scmp.ne.s32.totalorder %s83, %s84
    %p98 = scmp.eq.s32.totalorder %s19, 1
    %p99 = por %p97, %p98
    %p101 = scmp.ne.s32.totalorder %s84, %s100
    %p102 = scmp.eq.s32.totalorder %s19, 0
    %p103 = por %p101, %p102
    %s104 = ssub.s32 %s21, %s35
    %p105 = scmp.eq.s32.totalorder %s104, 0
    %s107 = sadd.s32 %s106, 1
    %s108 = scalar_select %p105, %s106, %s107
    %p111 = pneg %p105
    %p112 = scmp.eq.s32.totalorder %s13, 1
    %p113 = por %p111, %p112
    %p114 = scmp.ne.s32.totalorder %s106, %s109
    %p115 = scmp.eq.s32.totalorder %s13, 0
    %p116 = por %p114, %p115
    %p117 = scmp.ne.s32.totalorder %s106, %s109
    %p118 = scmp.eq.s32.totalorder %s18, 1
    %p119 = por %p117, %p118
    %p120 = scmp.ne.s32.totalorder %s109, %s110
    %p121 = scmp.eq.s32.totalorder %s18, 0
    %p122 = por %p120, %p121
    %p123 = scmp.ne.s32.totalorder %s109, %s110
    %p124 = scmp.eq.s32.totalorder %s19, 1
    %p125 = por %p123, %p124
    %p127 = scmp.ne.s32.totalorder %s110, %s126
    %p128 = scmp.eq.s32.totalorder %s19, 0
    %p129 = por %p127, %p128
    %s131 = sadd.s32 %s130, 1
    %p134 = scmp.eq.s32.totalorder %s13, 1
    %p135 = scmp.ne.s32.totalorder %s130, %s132
    %p136 = scmp.eq.s32.totalorder %s13, 0
    %p137 = por %p135, %p136
    %p138 = scmp.ne.s32.totalorder %s130, %s132
    %p139 = scmp.eq.s32.totalorder %s18, 1
    %p140 = por %p138, %p139
    %p141 = scmp.ne.s32.totalorder %s132, %s133
    %p142 = scmp.eq.s32.totalorder %s18, 0
    %p143 = por %p141, %p142
    %p144 = scmp.ne.s32.totalorder %s132, %s133
    %p145 = scmp.eq.s32.totalorder %s19, 1
    %p146 = por %p144, %p145
    %p148 = scmp.ne.s32.totalorder %s133, %s147
    %p149 = scmp.eq.s32.totalorder %s19, 0
    %p150 = por %p148, %p149
    %s152 = sadd.s32 %s151, 1
    %p155 = scmp.eq.s32.totalorder %s13, 1
    %p156 = scmp.ne.s32.totalorder %s151, %s153
    %p157 = scmp.eq.s32.totalorder %s13, 0
    %p158 = por %p156, %p157
    %p159 = scmp.ne.s32.totalorder %s151, %s153
    %p160 = scmp.eq.s32.totalorder %s18, 1
    %p161 = por %p159, %p160
    %p162 = scmp.ne.s32.totalorder %s153, %s154
    %p163 = scmp.eq.s32.totalorder %s18, 0
    %p164 = por %p162, %p163
    %p165 = scmp.ne.s32.totalorder %s153, %s154
    %p166 = scmp.eq.s32.totalorder %s19, 1
    %p167 = por %p165, %p166
    %p169 = scmp.ne.s32.totalorder %s154, %s168
    %p170 = scmp.eq.s32.totalorder %s19, 0
    %p171 = por %p169, %p170
    %s172 = ssub.s32 %s20, %s39
    %s173 = ssub.s32 %s22, %s31
    %s174 = sor.u32 %s172, %s173
    %s175 = ssub.s32 %s21, %s35
    %s176 = sor.u32 %s174, %s175
    %p177 = scmp.eq.s32.totalorder %s176, 0
    %s179 = sadd.s32 %s178, 1
    %s180 = scalar_select %p177, %s178, %s179
    %p183 = pneg %p177
    %p184 = scmp.eq.s32.totalorder %s13, 1
    %p185 = por %p183, %p184
    %p186 = scmp.ne.s32.totalorder %s178, %s181
    %p187 = scmp.eq.s32.totalorder %s13, 0
    %p188 = por %p186, %p187
    %p189 = scmp.ne.s32.totalorder %s178, %s181
    %p190 = scmp.eq.s32.totalorder %s18, 1
    %p191 = por %p189, %p190
    %p192 = scmp.ne.s32.totalorder %s181, %s182
    %p193 = scmp.eq.s32.totalorder %s18, 0
    %p194 = por %p192, %p193
    %p195 = scmp.ne.s32.totalorder %s181, %s182
    %p196 = scmp.eq.s32.totalorder %s19, 1
    %p197 = por %p195, %p196
    %p199 = scmp.ne.s32.totalorder %s182, %s198
    %p200 = scmp.eq.s32.totalorder %s19, 0
    %p201 = por %p199, %p200
    %s202 = ssub.s32 %s20, %s39
    %s203 = ssub.s32 %s21, %s35
    %s204 = sor.u32 %s202, %s203
    %p205 = scmp.eq.s32.totalorder %s204, 0
    %s207 = sadd.s32 %s206, 1
    %s208 = scalar_select %p205, %s206, %s207
    %p211 = pneg %p205
    %p212 = scmp.eq.s32.totalorder %s13, 1
    %p213 = por %p211, %p212
    %p214 = scmp.ne.s32.totalorder %s206, %s209
    %p215 = scmp.eq.s32.totalorder %s13, 0
    %p216 = por %p214, %p215
    %p217 = scmp.ne.s32.totalorder %s206, %s209
    %p218 = scmp.eq.s32.totalorder %s18, 1
    %p219 = por %p217, %p218
    %p220 = scmp.ne.s32.totalorder %s209, %s210
    %p221 = scmp.eq.s32.totalorder %s18, 0
    %p222 = por %p220, %p221
    %p223 = scmp.ne.s32.totalorder %s209, %s210
    %p224 = scmp.eq.s32.totalorder %s19, 1
    %p225 = por %p223, %p224
    %p227 = scmp.ne.s32.totalorder %s210, %s226
    %p228 = scmp.eq.s32.totalorder %s19, 0
    %p229 = por %p227, %p228
    %p230 = scmp.le.s32.totalorder 1, %s13
    %p231 = scmp.lt.s32.totalorder %s13, 3
    %p232 = pnand %p230, %p231
    %p233 = pneg %p232
    // Predicated region
    $region9: #{double_conv.4} parent=5 // pred_check
      _
    $region10: #{double_conv.4} parent=5 // pred_check_branch
      %235 = sbr.rel (%p232) target = $region12
    $region11: #{double_conv.4} parent=5 // pred_region
      %s236 = ssub.s32 %s13, 1
      // Predicated region
      $region13: #{double_conv.4} parent=11 // pred_check
        %p237 = pneg %p122
      $region14: #{double_conv.4} parent=11 // pred_check_branch
        %239 = sbr.rel (%p237) target = $region16
      $region15: #{double_conv.4} parent=11 // pred_region
        %p240 = scmp.lt.s32.totalorder %s24, 0
        %s241 = scalar_select %p240, %s24, 0
        %s242 = smul.addr %s241, 4
        %s243 = scalar_lea.vmem %s2, %s242
      $region16: #{double_conv.4} parent=11 // pred_fallthru
        _
      // Predicated region
      $region17: #{double_conv.4} parent=11 // pred_check
        %p244 = pneg %p143
      $region18: #{double_conv.4} parent=11 // pred_check_branch
        %246 = sbr.rel (%p244) target = $region20
      $region19: #{double_conv.4} parent=11 // pred_region
        _
      $region20: #{double_conv.4} parent=11 // pred_fallthru
        _
      // Predicated region
      $region21: #{double_conv.4} parent=11 // pred_check
        %p247 = pneg %p164
      $region22: #{double_conv.4} parent=11 // pred_check_branch
        %249 = sbr.rel (%p247) target = $region24
      $region23: #{double_conv.4} parent=11 // pred_region
        _
      $region24: #{double_conv.4} parent=11 // pred_fallthru
        _
    $region12: #{double_conv.4} parent=5 // pred_fallthru
      _
    %p250 = scmp.lt.s32.totalorder %s13, 2
    // Predicated region
    $region25: #{double_conv.4} parent=5 // pred_check
      %p251 = pneg %p250
    $region26: #{double_conv.4} parent=5 // pred_check_branch
      %253 = sbr.rel (%p251) target = $region28
    $region27: #{double_conv.4} parent=5 // pred_region
      // Predicated region
      $region29: #{double_conv.4} parent=27 // pred_check
        %p254 = pneg %p54
      $region30: #{double_conv.4} parent=27 // pred_check_branch
        %256 = sbr.rel (%p254) target = $region32
      $region31: #{double_conv.4} parent=27 // pred_region
        %s257 = smul.u32 16, %s22
        %p258 = scmp.lt.s32.totalorder %s20, 1
        %s259 = scalar_select %p258, %s20, 1
        %p260 = scmp.lt.s32.totalorder %s257, 15
        %s261 = scalar_select %p260, %s257, 15
        %s262 = smul.addr %s261, 2
        %s263 = smul.addr %s259, 32
        %s264 = sadd.s32 %s262, %s263
        %s265 = smul.addr %s264, 4
        %s266 = scalar_lea.vmem %s0, %s265
        %s267 = smul.u32 16, %s22
      $region32: #{double_conv.4} parent=27 // pred_fallthru
        _
      // Predicated region
      $region33: #{double_conv.4} parent=27 // pred_check
        %p268 = pneg %p90
      $region34: #{double_conv.4} parent=27 // pred_check_branch
        %270 = sbr.rel (%p268) target = $region36
      $region35: #{double_conv.4} parent=27 // pred_region
        %s271 = sadd.s32 %s22, 1
        %s272 = smul.u32 %s271, 16
        %p273 = scmp.lt.s32.totalorder %s272, 15
        %s274 = scalar_select %p273, %s272, 15
        %p275 = scmp.lt.s32.totalorder %s20, 1
        %s276 = scalar_select %p275, %s20, 1
        %p277 = scmp.lt.s32.totalorder %s274, 15
        %s278 = scalar_select %p277, %s274, 15
        %s279 = smul.addr %s278, 2
        %s280 = smul.addr %s276, 32
        %s281 = sadd.s32 %s279, %s280
        %s282 = smul.addr %s281, 4
        %s283 = scalar_lea.vmem %s1, %s282
        %s284 = sadd.s32 %s22, 1
        %s285 = smul.u32 %s284, 16
        %p286 = scmp.lt.s32.totalorder %s285, 15
        %s287 = scalar_select %p286, %s285, 15
      $region36: #{double_conv.4} parent=27 // pred_fallthru
        _
    $region28: #{double_conv.4} parent=5 // pred_fallthru
      _
    %p288 = scmp.le.s32.totalorder 1, %s13
    %p289 = scmp.lt.s32.totalorder %s13, 3
    %p290 = pnand %p288, %p289
    %p291 = pneg %p290
    // Predicated region
    $region37: #{double_conv.4} parent=5 // pred_check
      _
    $region38: #{double_conv.4} parent=5 // pred_check_branch
      %293 = sbr.rel (%p290) target = $region40
    $region39: #{double_conv.4} parent=5 // pred_region
      %s294 = ssub.s32 %s13, 1
      %s295 = smul.u32 16, %s25
      %p296 = scmp.lt.s32.totalorder %s23, 1
      %s297 = scalar_select %p296, %s23, 1
      %p298 = scmp.lt.s32.totalorder %s295, 15
      %s299 = scalar_select %p298, %s295, 15
      %s300 = smul.addr %s299, 2
      %s301 = smul.addr %s297, 32
      %s302 = sadd.s32 %s300, %s301
      %s303 = smul.addr %s302, 4
      %s304 = scalar_lea.vmem %s0, %s303
      %p305 = pneg %p60
      %p306 = pneg %p57
      %s307 = sadd.s32 %s25, 1
      %s308 = smul.u32 %s307, 16
      %p309 = scmp.lt.s32.totalorder %s308, 15
      %s310 = scalar_select %p309, %s308, 15
      %p311 = scmp.lt.s32.totalorder %s23, 1
      %s312 = scalar_select %p311, %s23, 1
      %p313 = scmp.lt.s32.totalorder %s310, 15
      %s314 = scalar_select %p313, %s310, 15
      %s315 = smul.addr %s314, 2
      %s316 = smul.addr %s312, 32
      %s317 = sadd.s32 %s315, %s316
      %s318 = smul.addr %s317, 4
      %s319 = scalar_lea.vmem %s1, %s318
      %p320 = pneg %p96
      %p321 = pneg %p93
      %p322 = scmp.lt.s32.totalorder %s24, 0
      %s323 = scalar_select %p322, %s24, 0
      %s324 = smul.addr %s323, 4
      %s325 = scalar_lea.vmem %s2, %s324
      %p326 = pneg %p122
      %p327 = pneg %p119
      %p328 = pneg %p143
      %p329 = pneg %p140
      %p330 = pneg %p164
      %p331 = pneg %p161
      %p332 = pneg %p194
      %p333 = pneg %p191
      %s334 = smul.u32 16, %s25
      %p335 = scmp.lt.s32.totalorder %s23, 1
      %s336 = scalar_select %p335, %s23, 1
      %p337 = scmp.lt.s32.totalorder %s334, 15
      %s338 = scalar_select %p337, %s334, 15
      %p339 = scmp.lt.s32.totalorder %s24, 0
      %s340 = scalar_select %p339, %s24, 0
      %s341 = smul.addr %s338, 2
      %s342 = sadd.s32 %s340, %s341
      %s343 = smul.addr %s336, 32
      %s344 = sadd.s32 %s342, %s343
      %s345 = smul.addr %s344, 4
      %s346 = scalar_lea.vmem %s5, %s345
      %p347 = pneg %p222
      %p348 = pneg %p219
      %p349 = scmp.lt.s32.totalorder %s23, 1
      %s350 = scalar_select %p349, %s23, 1
      %p351 = scmp.lt.s32.totalorder %s24, 0
      %s352 = scalar_select %p351, %s24, 0
      %s353 = sadd.s32 %s352, %s350
      %s354 = smul.addr %s353, 2
      %s355 = scalar_lea.vmem %s6, %s354
      %s356 = smul.u32 16, %s25
      %p357 = scmp.lt.s32.totalorder %s23, 1
      %s358 = scalar_select %p357, %s23, 1
      %p359 = scmp.lt.s32.totalorder %s356, 15
      %s360 = scalar_select %p359, %s356, 15
      %s361 = smul.addr %s360, 2
      %s362 = smul.addr %s358, 32
      %s363 = sadd.s32 %s361, %s362
      %s364 = smul.addr %s363, 4
      %s365 = scalar_lea.vmem %s0, %s364
      %s366 = smul.u32 16, %s25
      %s367 = sadd.s32 %s25, 1
      %s368 = smul.u32 %s367, 16
      %p369 = scmp.lt.s32.totalorder %s368, 15
      %s370 = scalar_select %p369, %s368, 15
      %p371 = scmp.lt.s32.totalorder %s23, 1
      %s372 = scalar_select %p371, %s23, 1
      %p373 = scmp.lt.s32.totalorder %s370, 15
      %s374 = scalar_select %p373, %s370, 15
      %s375 = smul.addr %s374, 2
      %s376 = smul.addr %s372, 32
      %s377 = sadd.s32 %s375, %s376
      %s378 = smul.addr %s377, 4
      %s379 = scalar_lea.vmem %s1, %s378
      %s380 = sadd.s32 %s25, 1
      %s381 = smul.u32 %s380, 16
      %p382 = scmp.lt.s32.totalorder %s381, 15
      %s383 = scalar_select %p382, %s381, 15
      %p384 = scmp.lt.s32.totalorder %s24, 0
      %s385 = scalar_select %p384, %s24, 0
      %s386 = smul.addr %s385, 4
      %s387 = scalar_lea.vmem %s2, %s386
      %s388 = smul.u32 16, %s25
      %p389 = scmp.lt.s32.totalorder %s23, 1
      %s390 = scalar_select %p389, %s23, 1
      %p391 = scmp.lt.s32.totalorder %s388, 15
      %s392 = scalar_select %p391, %s388, 15
      %p393 = scmp.lt.s32.totalorder %s24, 0
      %s394 = scalar_select %p393, %s24, 0
      %s395 = smul.addr %s392, 2
      %s396 = sadd.s32 %s394, %s395
      %s397 = smul.addr %s390, 32
      %s398 = sadd.s32 %s396, %s397
      %s399 = smul.addr %s398, 4
      %s400 = scalar_lea.vmem %s5, %s399
      %s401 = smul.u32 16, %s25
      %p402 = scmp.lt.s32.totalorder %s23, 1
      %s403 = scalar_select %p402, %s23, 1
      %p404 = scmp.lt.s32.totalorder %s24, 0
      %s405 = scalar_select %p404, %s24, 0
      %s406 = sadd.s32 %s405, %s403
      %s407 = smul.addr %s406, 2
      %s408 = scalar_lea.vmem %s6, %s407
      %v410 = vld [vmem:[%s365] sm:$0xf]
      %v411 = vld [vmem:[%s365 + $0x4] sm:$0xf]
      %v412 = vld [vmem:[%s365 + $0x8] sm:$0xf]
      %v413 = vld [vmem:[%s365 + $0xc] sm:$0xf]
      %v414 = vld [vmem:[%s365 + $0x10] sm:$0xf]
      %v415 = vld [vmem:[%s365 + $0x14] sm:$0xf]
      %v416 = vld [vmem:[%s365 + $0x18] sm:$0xf]
      %v417 = vld [vmem:[%s365 + $0x1c] sm:$0xf]
      %v418 = vld [vmem:[%s365 + $0x20] sm:$0xf]
      %v419 = vld [vmem:[%s365 + $0x24] sm:$0xf]
      %v420 = vld [vmem:[%s365 + $0x28] sm:$0xf]
      %v421 = vld [vmem:[%s365 + $0x2c] sm:$0xf]
      %v422 = vld [vmem:[%s365 + $0x30] sm:$0xf]
      %v423 = vld [vmem:[%s365 + $0x34] sm:$0xf]
      %v424 = vld [vmem:[%s365 + $0x38] sm:$0xf]
      %v425 = vld [vmem:[%s365 + $0x3c] sm:$0xf]
      %v426 = vld [vmem:[%s365 + $0x40] sm:$0xf]
      %v427 = vld [vmem:[%s365 + $0x44] sm:$0xf]
      %v428 = vld [vmem:[%s365 + $0x48] sm:$0xf]
      %v429 = vld [vmem:[%s365 + $0x4c] sm:$0xf]
      %v430 = vld [vmem:[%s365 + $0x50] sm:$0xf]
      %v431 = vld [vmem:[%s365 + $0x54] sm:$0xf]
      %v432 = vld [vmem:[%s365 + $0x58] sm:$0xf]
      %v433 = vld [vmem:[%s365 + $0x5c] sm:$0xf]
      %v434 = vld [vmem:[%s365 + $0x60] sm:$0xf]
      %v435 = vld [vmem:[%s365 + $0x64] sm:$0xf]
      %v436 = vld [vmem:[%s365 + $0x68] sm:$0xf]
      %v437 = vld [vmem:[%s365 + $0x6c] sm:$0xf]
      %v438 = vld [vmem:[%s365 + $0x70] sm:$0xf]
      %v439 = vld [vmem:[%s365 + $0x74] sm:$0xf]
      %v440 = vld [vmem:[%s365 + $0x78] sm:$0xf]
      %v441 = vld [vmem:[%s365 + $0x7c] sm:$0xf]
      %v442 = vld [vmem:[%s379] sm:$0xf]
      %v443 = vld [vmem:[%s379 + $0x4] sm:$0xf]
      %v444 = vld [vmem:[%s3] sm:$0x1]
      %v445 = vld [vmem:[%s4] sm:$0x1]
      %v446 = vunpack.c.l.bf16 %v410
      %v447 = vunpack.c.l.bf16 %v411
      %v448 = vunpack.c.l.bf16 %v412
      %v449 = vunpack.c.l.bf16 %v413
      %v450 = vunpack.c.l.bf16 %v414
      %v451 = vunpack.c.l.bf16 %v415
      %v452 = vunpack.c.l.bf16 %v416
      %v453 = vunpack.c.l.bf16 %v417
      %v454 = vunpack.c.l.bf16 %v418
      %v455 = vunpack.c.l.bf16 %v419
      %v456 = vunpack.c.l.bf16 %v420
      %v457 = vunpack.c.l.bf16 %v421
      %v458 = vunpack.c.l.bf16 %v422
      %v459 = vunpack.c.l.bf16 %v423
      %v460 = vunpack.c.l.bf16 %v424
      %v461 = vunpack.c.l.bf16 %v425
      %v462 = vunpack.c.l.bf16 %v426
      %v463 = vunpack.c.l.bf16 %v427
      %v464 = vunpack.c.l.bf16 %v428
      %v465 = vunpack.c.l.bf16 %v429
      %v466 = vunpack.c.l.bf16 %v430
      %v467 = vunpack.c.l.bf16 %v431
      %v468 = vunpack.c.l.bf16 %v432
      %v469 = vunpack.c.l.bf16 %v433
      %v470 = vunpack.c.l.bf16 %v434
      %v471 = vunpack.c.l.bf16 %v435
      %v472 = vunpack.c.l.bf16 %v436
      %v473 = vunpack.c.l.bf16 %v437
      %v474 = vunpack.c.l.bf16 %v438
      %v475 = vunpack.c.l.bf16 %v439
      %v476 = vunpack.c.l.bf16 %v440
      %v477 = vunpack.c.l.bf16 %v441
      %v479 = vlaneseq
      %v480 = vshrl.u32 %v479, 7
      %v481 = vsub.s32 0, %v480
      %v482 = vrot.slane %v444, %v481
      %v484 = vmul.f32 %v446, %v482
      %v485 = vmul.f32 %v447, %v482
      %v486 = vmul.f32 %v448, %v482
      %v487 = vmul.f32 %v449, %v482
      %v488 = vmul.f32 %v450, %v482
      %v489 = vmul.f32 %v451, %v482
      %v490 = vmul.f32 %v452, %v482
      %v491 = vmul.f32 %v453, %v482
      %v492 = vmul.f32 %v454, %v482
      %v493 = vmul.f32 %v455, %v482
      %v494 = vmul.f32 %v456, %v482
      %v495 = vmul.f32 %v457, %v482
      %v496 = vmul.f32 %v458, %v482
      %v497 = vmul.f32 %v459, %v482
      %v498 = vmul.f32 %v460, %v482
      %v499 = vmul.f32 %v461, %v482
      %v500 = vmul.f32 %v462, %v482
      %v501 = vmul.f32 %v463, %v482
      %v502 = vmul.f32 %v464, %v482
      %v503 = vmul.f32 %v465, %v482
      %v504 = vmul.f32 %v466, %v482
      %v505 = vmul.f32 %v467, %v482
      %v506 = vmul.f32 %v468, %v482
      %v507 = vmul.f32 %v469, %v482
      %v508 = vmul.f32 %v470, %v482
      %v509 = vmul.f32 %v471, %v482
      %v510 = vmul.f32 %v472, %v482
      %v511 = vmul.f32 %v473, %v482
      %v512 = vmul.f32 %v474, %v482
      %v513 = vmul.f32 %v475, %v482
      %v514 = vmul.f32 %v476, %v482
      %v515 = vmul.f32 %v477, %v482
      %v517 = vlaneseq
      %v518 = vshrl.u32 %v517, 7
      %v519 = vsub.s32 0, %v518
      %v520 = vrot.slane %v445, %v519
      %v522 = vadd.f32 %v484, %v520
      %v523 = vadd.f32 %v485, %v520
      %v524 = vadd.f32 %v486, %v520
      %v525 = vadd.f32 %v487, %v520
      %v526 = vadd.f32 %v488, %v520
      %v527 = vadd.f32 %v489, %v520
      %v528 = vadd.f32 %v490, %v520
      %v529 = vadd.f32 %v491, %v520
      %v530 = vadd.f32 %v492, %v520
      %v531 = vadd.f32 %v493, %v520
      %v532 = vadd.f32 %v494, %v520
      %v533 = vadd.f32 %v495, %v520
      %v534 = vadd.f32 %v496, %v520
      %v535 = vadd.f32 %v497, %v520
      %v536 = vadd.f32 %v498, %v520
      %v537 = vadd.f32 %v499, %v520
      %v538 = vadd.f32 %v500, %v520
      %v539 = vadd.f32 %v501, %v520
      %v540 = vadd.f32 %v502, %v520
      %v541 = vadd.f32 %v503, %v520
      %v542 = vadd.f32 %v504, %v520
      %v543 = vadd.f32 %v505, %v520
      %v544 = vadd.f32 %v506, %v520
      %v545 = vadd.f32 %v507, %v520
      %v546 = vadd.f32 %v508, %v520
      %v547 = vadd.f32 %v509, %v520
      %v548 = vadd.f32 %v510, %v520
      %v549 = vadd.f32 %v511, %v520
      %v550 = vadd.f32 %v512, %v520
      %v551 = vadd.f32 %v513, %v520
      %v552 = vadd.f32 %v514, %v520
      %v553 = vadd.f32 %v515, %v520
      %v554 = vmax.f32 %v522, 0.0
      %v555 = vmax.f32 %v523, 0.0
      %v556 = vmax.f32 %v524, 0.0
      %v557 = vmax.f32 %v525, 0.0
      %v558 = vmax.f32 %v526, 0.0
      %v559 = vmax.f32 %v527, 0.0
      %v560 = vmax.f32 %v528, 0.0
      %v561 = vmax.f32 %v529, 0.0
      %v562 = vmax.f32 %v530, 0.0
      %v563 = vmax.f32 %v531, 0.0
      %v564 = vmax.f32 %v532, 0.0
      %v565 = vmax.f32 %v533, 0.0
      %v566 = vmax.f32 %v534, 0.0
      %v567 = vmax.f32 %v535, 0.0
      %v568 = vmax.f32 %v536, 0.0
      %v569 = vmax.f32 %v537, 0.0
      %v570 = vmax.f32 %v538, 0.0
      %v571 = vmax.f32 %v539, 0.0
      %v572 = vmax.f32 %v540, 0.0
      %v573 = vmax.f32 %v541, 0.0
      %v574 = vmax.f32 %v542, 0.0
      %v575 = vmax.f32 %v543, 0.0
      %v576 = vmax.f32 %v544, 0.0
      %v577 = vmax.f32 %v545, 0.0
      %v578 = vmax.f32 %v546, 0.0
      %v579 = vmax.f32 %v547, 0.0
      %v580 = vmax.f32 %v548, 0.0
      %v581 = vmax.f32 %v549, 0.0
      %v582 = vmax.f32 %v550, 0.0
      %v583 = vmax.f32 %v551, 0.0
      %v584 = vmax.f32 %v552, 0.0
      %v585 = vmax.f32 %v553, 0.0
      %v586 = vpack.c.bf16 %v555, %v554
      %v587 = vpack.c.bf16 %v557, %v556
      %v588 = vpack.c.bf16 %v559, %v558
      %v589 = vpack.c.bf16 %v561, %v560
      %v590 = vpack.c.bf16 %v563, %v562
      %v591 = vpack.c.bf16 %v565, %v564
      %v592 = vpack.c.bf16 %v567, %v566
      %v593 = vpack.c.bf16 %v569, %v568
      %v594 = vpack.c.bf16 %v571, %v570
      %v595 = vpack.c.bf16 %v573, %v572
      %v596 = vpack.c.bf16 %v575, %v574
      %v597 = vpack.c.bf16 %v577, %v576
      %v598 = vpack.c.bf16 %v579, %v578
      %v599 = vpack.c.bf16 %v581, %v580
      %v600 = vpack.c.bf16 %v583, %v582
      %v601 = vpack.c.bf16 %v585, %v584
      %v602 = vunpack.c.l.bf16 %v442
      %v603 = vunpack.c.l.bf16 %v443
      %v604 = vmul.f32 %v602, %v482
      %v605 = vmul.f32 %v603, %v482
      %v606 = vadd.f32 %v604, %v520
      %v607 = vadd.f32 %v605, %v520
      %v608 = vmax.f32 %v606, 0.0
      %v609 = vmax.f32 %v607, 0.0
      %v610 = vpack.c.bf16 %v609, %v608
      %p611 = scmp.eq.s32.totalorder %s25, 0
      // Predicated region
      $region41: #{double_conv.4} parent=39 // pred_check
        %p612 = pneg %p611
      $region42: #{double_conv.4} parent=39 // pred_check_branch
        %614 = sbr.rel (%p612) target = $region44
      $region43: #{double_conv.4} parent=39 // pred_region
        %vm615 = vcmask 60416
        %616 = vst.msk [vmem:[#allocation2] sm:$0xf] %vm615, 0
        %617 = vst.msk [vmem:[#allocation2 + $0x4] sm:$0xf] %vm615, 0
        %vm618 = vcmask 57344
        %619 = vst.msk [vmem:[#allocation2 + $0x8] sm:$0x1] %vm618, 0
        %vm620 = vcmask 57344
        %vm621 = vsmask.f32 256
        %vm622 = vmand %vm620, %vm621
        %v623 = vld [vmem:[#allocation2] sm:$0x1]
        %v624 = vsel %vm622, 0, %v623
        %625 = vst [vmem:[#allocation2] sm:$0x1] %v624
        %v626 = vld [vmem:[#allocation2 + $0xc] sm:$0x1]
        %v627 = vsel %vm622, 0, %v626
        %628 = vst [vmem:[#allocation2 + $0xc] sm:$0x1] %v627
        %v629 = vld [vmem:[#allocation2 + $0x18] sm:$0x1]
        %v630 = vsel %vm622, 0, %v629
        %631 = vst [vmem:[#allocation2 + $0x18] sm:$0x1] %v630
        %v632 = vld [vmem:[#allocation2 + $0x24] sm:$0x1]
        %v633 = vsel %vm622, 0, %v632
        %634 = vst [vmem:[#allocation2 + $0x24] sm:$0x1] %v633
        %v635 = vld [vmem:[#allocation2 + $0x30] sm:$0x1]
        %v636 = vsel %vm622, 0, %v635
        %637 = vst [vmem:[#allocation2 + $0x30] sm:$0x1] %v636
        %v638 = vld [vmem:[#allocation2 + $0x3c] sm:$0x1]
        %v639 = vsel %vm622, 0, %v638
        %640 = vst [vmem:[#allocation2 + $0x3c] sm:$0x1] %v639
        %v641 = vld [vmem:[#allocation2 + $0x48] sm:$0x1]
        %v642 = vsel %vm622, 0, %v641
        %643 = vst [vmem:[#allocation2 + $0x48] sm:$0x1] %v642
        %v644 = vld [vmem:[#allocation2 + $0x54] sm:$0x1]
        %v645 = vsel %vm622, 0, %v644
        %646 = vst [vmem:[#allocation2 + $0x54] sm:$0x1] %v645
        %v647 = vld [vmem:[#allocation2 + $0x60] sm:$0x1]
        %v648 = vsel %vm622, 0, %v647
        %649 = vst [vmem:[#allocation2 + $0x60] sm:$0x1] %v648
        %v650 = vld [vmem:[#allocation2 + $0x6c] sm:$0x1]
        %v651 = vsel %vm622, 0, %v650
        %652 = vst [vmem:[#allocation2 + $0x6c] sm:$0x1] %v651
        %v653 = vld [vmem:[#allocation2 + $0x78] sm:$0x1]
        %v654 = vsel %vm622, 0, %v653
        %655 = vst [vmem:[#allocation2 + $0x78] sm:$0x1] %v654
        %v656 = vld [vmem:[#allocation2 + $0x84] sm:$0x1]
        %v657 = vsel %vm622, 0, %v656
        %658 = vst [vmem:[#allocation2 + $0x84] sm:$0x1] %v657
        %v659 = vld [vmem:[#allocation2 + $0x90] sm:$0x1]
        %v660 = vsel %vm622, 0, %v659
        %661 = vst [vmem:[#allocation2 + $0x90] sm:$0x1] %v660
        %v662 = vld [vmem:[#allocation2 + $0x9c] sm:$0x1]
        %v663 = vsel %vm622, 0, %v662
        %664 = vst [vmem:[#allocation2 + $0x9c] sm:$0x1] %v663
        %v665 = vld [vmem:[#allocation2 + $0xa8] sm:$0x1]
        %v666 = vsel %vm622, 0, %v665
        %667 = vst [vmem:[#allocation2 + $0xa8] sm:$0x1] %v666
        %v668 = vld [vmem:[#allocation2 + $0xb4] sm:$0x1]
        %v669 = vsel %vm622, 0, %v668
        %670 = vst [vmem:[#allocation2 + $0xb4] sm:$0x1] %v669
        %v671 = vld [vmem:[#allocation2 + $0xc0] sm:$0x1]
        %v672 = vsel %vm622, 0, %v671
        %673 = vst [vmem:[#allocation2 + $0xc0] sm:$0x1] %v672
        %v674 = vld [vmem:[#allocation2 + $0xcc] sm:$0x1]
        %v675 = vsel %vm622, 0, %v674
        %676 = vst [vmem:[#allocation2 + $0xcc] sm:$0x1] %v675
        %vm677 = vsmask.f32 7938
        %vm678 = vmand %vm620, %vm677
        %v679 = vld [vmem:[#allocation2 + $0x8] sm:$0x1]
        %v680 = vsel %vm678, 0, %v679
        %681 = vst [vmem:[#allocation2 + $0x8] sm:$0x1] %v680
        %v682 = vld [vmem:[#allocation2 + $0x14] sm:$0x1]
        %v683 = vsel %vm678, 0, %v682
        %684 = vst [vmem:[#allocation2 + $0x14] sm:$0x1] %v683
        %v685 = vld [vmem:[#allocation2 + $0x20] sm:$0x1]
        %v686 = vsel %vm678, 0, %v685
        %687 = vst [vmem:[#allocation2 + $0x20] sm:$0x1] %v686
        %v688 = vld [vmem:[#allocation2 + $0x2c] sm:$0x1]
        %v689 = vsel %vm678, 0, %v688
        %690 = vst [vmem:[#allocation2 + $0x2c] sm:$0x1] %v689
        %v691 = vld [vmem:[#allocation2 + $0x38] sm:$0x1]
        %v692 = vsel %vm678, 0, %v691
        %693 = vst [vmem:[#allocation2 + $0x38] sm:$0x1] %v692
        %v694 = vld [vmem:[#allocation2 + $0x44] sm:$0x1]
        %v695 = vsel %vm678, 0, %v694
        %696 = vst [vmem:[#allocation2 + $0x44] sm:$0x1] %v695
        %v697 = vld [vmem:[#allocation2 + $0x50] sm:$0x1]
        %v698 = vsel %vm678, 0, %v697
        %699 = vst [vmem:[#allocation2 + $0x50] sm:$0x1] %v698
        %v700 = vld [vmem:[#allocation2 + $0x5c] sm:$0x1]
        %v701 = vsel %vm678, 0, %v700
        %702 = vst [vmem:[#allocation2 + $0x5c] sm:$0x1] %v701
        %v703 = vld [vmem:[#allocation2 + $0x68] sm:$0x1]
        %v704 = vsel %vm678, 0, %v703
        %705 = vst [vmem:[#allocation2 + $0x68] sm:$0x1] %v704
        %v706 = vld [vmem:[#allocation2 + $0x74] sm:$0x1]
        %v707 = vsel %vm678, 0, %v706
        %708 = vst [vmem:[#allocation2 + $0x74] sm:$0x1] %v707
        %v709 = vld [vmem:[#allocation2 + $0x80] sm:$0x1]
        %v710 = vsel %vm678, 0, %v709
        %711 = vst [vmem:[#allocation2 + $0x80] sm:$0x1] %v710
        %v712 = vld [vmem:[#allocation2 + $0x8c] sm:$0x1]
        %v713 = vsel %vm678, 0, %v712
        %714 = vst [vmem:[#allocation2 + $0x8c] sm:$0x1] %v713
        %v715 = vld [vmem:[#allocation2 + $0x98] sm:$0x1]
        %v716 = vsel %vm678, 0, %v715
        %717 = vst [vmem:[#allocation2 + $0x98] sm:$0x1] %v716
        %v718 = vld [vmem:[#allocation2 + $0xa4] sm:$0x1]
        %v719 = vsel %vm678, 0, %v718
        %720 = vst [vmem:[#allocation2 + $0xa4] sm:$0x1] %v719
        %v721 = vld [vmem:[#allocation2 + $0xb0] sm:$0x1]
        %v722 = vsel %vm678, 0, %v721
        %723 = vst [vmem:[#allocation2 + $0xb0] sm:$0x1] %v722
        %v724 = vld [vmem:[#allocation2 + $0xbc] sm:$0x1]
        %v725 = vsel %vm678, 0, %v724
        %726 = vst [vmem:[#allocation2 + $0xbc] sm:$0x1] %v725
        %v727 = vld [vmem:[#allocation2 + $0xc8] sm:$0x1]
        %v728 = vsel %vm678, 0, %v727
        %729 = vst [vmem:[#allocation2 + $0xc8] sm:$0x1] %v728
        %v730 = vld [vmem:[#allocation2 + $0xd4] sm:$0x1]
        %v731 = vsel %vm678, 0, %v730
        %732 = vst [vmem:[#allocation2 + $0xd4] sm:$0x1] %v731
      $region44: #{double_conv.4} parent=39 // pred_fallthru
        _
      %p733 = scmp.gt.s32.totalorder %s25, 0
      // Predicated region
      $region45: #{double_conv.4} parent=39 // pred_check
        %p734 = pneg %p733
      $region46: #{double_conv.4} parent=39 // pred_check_branch
        %736 = sbr.rel (%p734) target = $region48
      $region47: #{double_conv.4} parent=39 // pred_region
        %s737 = scalar_lea.vmem [#allocation2], 192
        %v738 = vld [vmem:[%s737] sm:$0xf]
        %v739 = vld [vmem:[%s737 + $0x4] sm:$0xf]
        %v740 = vld [vmem:[%s737 + $0x8] sm:$0x1]
        %vm741 = vcmask 60416
        %742 = vst.msk [vmem:[#allocation2] sm:$0xf] %vm741, %v738
        %743 = vst.msk [vmem:[#allocation2 + $0x4] sm:$0xf] %vm741, %v739
        %vm744 = vcmask 57344
        %745 = vst.msk [vmem:[#allocation2 + $0x8] sm:$0x1] %vm744, %v740
      $region48: #{double_conv.4} parent=39 // pred_fallthru
        _
      %v762 = vunpack.c.l.b16 %v586
      %v763 = vunpack.c.h.b16 %v586
      %v764 = vunpack.c.l.b16 %v587
      %v765 = vunpack.c.h.b16 %v587
      %v766 = vunpack.c.l.b16 %v588
      %v767 = vunpack.c.h.b16 %v588
      %v768 = vunpack.c.l.b16 %v589
      %v769 = vunpack.c.h.b16 %v589
      %v770 = vunpack.c.l.b16 %v590
      %v771 = vunpack.c.h.b16 %v590
      %v772 = vunpack.c.l.b16 %v591
      %v773 = vunpack.c.h.b16 %v591
      %v774 = vunpack.c.l.b16 %v592
      %v775 = vunpack.c.h.b16 %v592
      %v776 = vunpack.c.l.b16 %v593
      %v777 = vunpack.c.h.b16 %v593
      %v778 = vunpack.c.l.b16 %v594
      %v779 = vunpack.c.h.b16 %v594
      %v780 = vunpack.c.l.b16 %v595
      %v781 = vunpack.c.h.b16 %v595
      %v782 = vunpack.c.l.b16 %v596
      %v783 = vunpack.c.h.b16 %v596
      %v784 = vunpack.c.l.b16 %v597
      %v785 = vunpack.c.h.b16 %v597
      %v786 = vunpack.c.l.b16 %v598
      %v787 = vunpack.c.h.b16 %v598
      %v788 = vunpack.c.l.b16 %v599
      %v789 = vunpack.c.h.b16 %v599
      %v790 = vunpack.c.l.b16 %v600
      %v791 = vunpack.c.h.b16 %v600
      %v792 = vunpack.c.l.b16 %v601
      %v793 = vunpack.c.h.b16 %v601
      %v794 = vpack.c.b16 %v762, %v762
      %v795 = vpack.c.b16 %v763, %v763
      %v796 = vpack.c.b16 %v764, %v764
      %v797 = vpack.c.b16 %v765, %v765
      %v798 = vpack.c.b16 %v766, %v766
      %v799 = vpack.c.b16 %v767, %v767
      %v800 = vpack.c.b16 %v768, %v768
      %v801 = vpack.c.b16 %v769, %v769
      %v802 = vpack.c.b16 %v770, %v770
      %v803 = vpack.c.b16 %v771, %v771
      %v804 = vpack.c.b16 %v772, %v772
      %v805 = vpack.c.b16 %v773, %v773
      %v806 = vpack.c.b16 %v774, %v774
      %v807 = vpack.c.b16 %v775, %v775
      %v808 = vpack.c.b16 %v776, %v776
      %v809 = vpack.c.b16 %v777, %v777
      %v810 = vpack.c.b16 %v778, %v778
      %v811 = vpack.c.b16 %v779, %v779
      %v812 = vpack.c.b16 %v780, %v780
      %v813 = vpack.c.b16 %v781, %v781
      %v814 = vpack.c.b16 %v782, %v782
      %v815 = vpack.c.b16 %v783, %v783
      %v816 = vpack.c.b16 %v784, %v784
      %v817 = vpack.c.b16 %v785, %v785
      %v818 = vpack.c.b16 %v786, %v786
      %v819 = vpack.c.b16 %v787, %v787
      %v820 = vpack.c.b16 %v788, %v788
      %v821 = vpack.c.b16 %v789, %v789
      %v822 = vpack.c.b16 %v790, %v790
      %v823 = vpack.c.b16 %v791, %v791
      %v824 = vpack.c.b16 %v792, %v792
      %v825 = vpack.c.b16 %v793, %v793
      %vm826 = vsmask.f32 256
      %vm827 = vsmask.f32 4368
      %vm828 = vmor %vm826, %vm827
      %v830 = vshrl.u32 %v794, 16
      %v832 = vrot.slane %v830, 7
      %v833 = vshll.u32 %v794, 16
      %v835 = vor.u32 %v832, %v833
      %v836 = vrot.slane %v832, 4
      %v838 = vshrl.u32 %v795, 16
      %v840 = vrot.slane %v838, 7
      %v841 = vshll.u32 %v795, 16
      %v843 = vor.u32 %v840, %v841
      %v844 = vsel %vm828, %v836, %v843
      %v845 = vrot.slane %v840, 4
      %v847 = vshrl.u32 %v796, 16
      %v849 = vrot.slane %v847, 7
      %v850 = vshll.u32 %v796, 16
      %v852 = vor.u32 %v849, %v850
      %v853 = vrot.slane %v849, 4
      %v855 = vshrl.u32 %v797, 16
      %v857 = vrot.slane %v855, 7
      %v858 = vshll.u32 %v797, 16
      %v860 = vor.u32 %v857, %v858
      %v861 = vsel %vm828, %v853, %v860
      %v862 = vrot.slane %v857, 4
      %v864 = vshrl.u32 %v798, 16
      %v866 = vrot.slane %v864, 7
      %v867 = vshll.u32 %v798, 16
      %v869 = vor.u32 %v866, %v867
      %v870 = vrot.slane %v866, 4
      %v872 = vshrl.u32 %v799, 16
      %v874 = vrot.slane %v872, 7
      %v875 = vshll.u32 %v799, 16
      %v877 = vor.u32 %v874, %v875
      %v878 = vsel %vm828, %v870, %v877
      %v879 = vrot.slane %v874, 4
      %v881 = vshrl.u32 %v800, 16
      %v883 = vrot.slane %v881, 7
      %v884 = vshll.u32 %v800, 16
      %v886 = vor.u32 %v883, %v884
      %v887 = vrot.slane %v883, 4
      %v889 = vshrl.u32 %v801, 16
      %v891 = vrot.slane %v889, 7
      %v892 = vshll.u32 %v801, 16
      %v894 = vor.u32 %v891, %v892
      %v895 = vsel %vm828, %v887, %v894
      %v896 = vrot.slane %v891, 4
      %v898 = vshrl.u32 %v802, 16
      %v900 = vrot.slane %v898, 7
      %v901 = vshll.u32 %v802, 16
      %v903 = vor.u32 %v900, %v901
      %v904 = vrot.slane %v900, 4
      %v906 = vshrl.u32 %v803, 16
      %v908 = vrot.slane %v906, 7
      %v909 = vshll.u32 %v803, 16
      %v911 = vor.u32 %v908, %v909
      %v912 = vsel %vm828, %v904, %v911
      %v913 = vrot.slane %v908, 4
      %v915 = vshrl.u32 %v804, 16
      %v917 = vrot.slane %v915, 7
      %v918 = vshll.u32 %v804, 16
      %v920 = vor.u32 %v917, %v918
      %v921 = vrot.slane %v917, 4
      %v923 = vshrl.u32 %v805, 16
      %v925 = vrot.slane %v923, 7
      %v926 = vshll.u32 %v805, 16
      %v928 = vor.u32 %v925, %v926
      %v929 = vsel %vm828, %v921, %v928
      %v930 = vrot.slane %v925, 4
      %v932 = vshrl.u32 %v806, 16
      %v934 = vrot.slane %v932, 7
      %v935 = vshll.u32 %v806, 16
      %v937 = vor.u32 %v934, %v935
      %v938 = vrot.slane %v934, 4
      %v940 = vshrl.u32 %v807, 16
      %v942 = vrot.slane %v940, 7
      %v943 = vshll.u32 %v807, 16
      %v945 = vor.u32 %v942, %v943
      %v946 = vsel %vm828, %v938, %v945
      %v947 = vrot.slane %v942, 4
      %v949 = vshrl.u32 %v808, 16
      %v951 = vrot.slane %v949, 7
      %v952 = vshll.u32 %v808, 16
      %v954 = vor.u32 %v951, %v952
      %v955 = vrot.slane %v951, 4
      %v957 = vshrl.u32 %v809, 16
      %v959 = vrot.slane %v957, 7
      %v960 = vshll.u32 %v809, 16
      %v962 = vor.u32 %v959, %v960
      %v963 = vsel %vm828, %v955, %v962
      %v964 = vrot.slane %v959, 4
      %v966 = vshrl.u32 %v810, 16
      %v968 = vrot.slane %v966, 7
      %v969 = vshll.u32 %v810, 16
      %v971 = vor.u32 %v968, %v969
      %v972 = vrot.slane %v968, 4
      %v974 = vshrl.u32 %v811, 16
      %v976 = vrot.slane %v974, 7
      %v977 = vshll.u32 %v811, 16
      %v979 = vor.u32 %v976, %v977
      %v980 = vsel %vm828, %v972, %v979
      %v981 = vrot.slane %v976, 4
      %v983 = vshrl.u32 %v812, 16
      %v985 = vrot.slane %v983, 7
      %v986 = vshll.u32 %v812, 16
      %v988 = vor.u32 %v985, %v986
      %v989 = vrot.slane %v985, 4
      %v991 = vshrl.u32 %v813, 16
      %v993 = vrot.slane %v991, 7
      %v994 = vshll.u32 %v813, 16
      %v996 = vor.u32 %v993, %v994
      %v997 = vsel %vm828, %v989, %v996
      %v998 = vrot.slane %v993, 4
      %v1000 = vshrl.u32 %v814, 16
      %v1002 = vrot.slane %v1000, 7
      %v1003 = vshll.u32 %v814, 16
      %v1005 = vor.u32 %v1002, %v1003
      %v1006 = vrot.slane %v1002, 4
      %v1008 = vshrl.u32 %v815, 16
      %v1010 = vrot.slane %v1008, 7
      %v1011 = vshll.u32 %v815, 16
      %v1013 = vor.u32 %v1010, %v1011
      %v1014 = vsel %vm828, %v1006, %v1013
      %v1015 = vrot.slane %v1010, 4
      %v1017 = vshrl.u32 %v816, 16
      %v1019 = vrot.slane %v1017, 7
      %v1020 = vshll.u32 %v816, 16
      %v1022 = vor.u32 %v1019, %v1020
      %v1023 = vrot.slane %v1019, 4
      %v1025 = vshrl.u32 %v817, 16
      %v1027 = vrot.slane %v1025, 7
      %v1028 = vshll.u32 %v817, 16
      %v1030 = vor.u32 %v1027, %v1028
      %v1031 = vsel %vm828, %v1023, %v1030
      %v1032 = vrot.slane %v1027, 4
      %v1034 = vshrl.u32 %v818, 16
      %v1036 = vrot.slane %v1034, 7
      %v1037 = vshll.u32 %v818, 16
      %v1039 = vor.u32 %v1036, %v1037
      %v1040 = vrot.slane %v1036, 4
      %v1042 = vshrl.u32 %v819, 16
      %v1044 = vrot.slane %v1042, 7
      %v1045 = vshll.u32 %v819, 16
      %v1047 = vor.u32 %v1044, %v1045
      %v1048 = vsel %vm828, %v1040, %v1047
      %v1049 = vrot.slane %v1044, 4
      %v1051 = vshrl.u32 %v820, 16
      %v1053 = vrot.slane %v1051, 7
      %v1054 = vshll.u32 %v820, 16
      %v1056 = vor.u32 %v1053, %v1054
      %v1057 = vrot.slane %v1053, 4
      %v1059 = vshrl.u32 %v821, 16
      %v1061 = vrot.slane %v1059, 7
      %v1062 = vshll.u32 %v821, 16
      %v1064 = vor.u32 %v1061, %v1062
      %v1065 = vsel %vm828, %v1057, %v1064
      %v1066 = vrot.slane %v1061, 4
      %v1068 = vshrl.u32 %v822, 16
      %v1070 = vrot.slane %v1068, 7
      %v1071 = vshll.u32 %v822, 16
      %v1073 = vor.u32 %v1070, %v1071
      %v1074 = vrot.slane %v1070, 4
      %v1076 = vshrl.u32 %v823, 16
      %v1078 = vrot.slane %v1076, 7
      %v1079 = vshll.u32 %v823, 16
      %v1081 = vor.u32 %v1078, %v1079
      %v1082 = vsel %vm828, %v1074, %v1081
      %v1083 = vrot.slane %v1078, 4
      %v1085 = vshrl.u32 %v824, 16
      %v1087 = vrot.slane %v1085, 7
      %v1088 = vshll.u32 %v824, 16
      %v1090 = vor.u32 %v1087, %v1088
      %v1091 = vrot.slane %v1087, 4
      %v1093 = vshrl.u32 %v825, 16
      %v1095 = vrot.slane %v1093, 7
      %v1096 = vshll.u32 %v825, 16
      %v1098 = vor.u32 %v1095, %v1096
      %v1099 = vsel %vm828, %v1091, %v1098
      %v1100 = vrot.slane %v1095, 4
      %s1149 = scalar_lea.vmem [#allocation2], 12
      %vm1150 = vcmask 60416
      %vm1151 = vsmask.f32 7938
      %vm1152 = vmand %vm1150, %vm1151
      %v1153 = vld [vmem:[%s1149] sm:$0xf]
      %v1154 = vsel %vm1152, %v835, %v1153
      %1155 = vst [vmem:[%s1149] sm:$0xf] %v1154
      %vm1156 = vcmask 60416
      %1157 = vst.msk [vmem:[%s1149 + $0x4] sm:$0xf] %vm1156, %v844
      %vm1158 = vcmask 57344
      %vm1159 = vmand %vm1158, %vm826
      %v1160 = vld [vmem:[%s1149 + $0x8] sm:$0x1]
      %v1161 = vsel %vm1159, %v845, %v1160
      %1162 = vst [vmem:[%s1149 + $0x8] sm:$0x1] %v1161
      %v1163 = vld [vmem:[%s1149 + $0xc] sm:$0xf]
      %v1164 = vsel %vm1152, %v852, %v1163
      %1165 = vst [vmem:[%s1149 + $0xc] sm:$0xf] %v1164
      %1166 = vst.msk [vmem:[%s1149 + $0x10] sm:$0xf] %vm1156, %v861
      %v1167 = vld [vmem:[%s1149 + $0x14] sm:$0x1]
      %v1168 = vsel %vm1159, %v862, %v1167
      %1169 = vst [vmem:[%s1149 + $0x14] sm:$0x1] %v1168
      %v1170 = vld [vmem:[%s1149 + $0x18] sm:$0xf]
      %v1171 = vsel %vm1152, %v869, %v1170
      %1172 = vst [vmem:[%s1149 + $0x18] sm:$0xf] %v1171
      %1173 = vst.msk [vmem:[%s1149 + $0x1c] sm:$0xf] %vm1156, %v878
      %v1174 = vld [vmem:[%s1149 + $0x20] sm:$0x1]
      %v1175 = vsel %vm1159, %v879, %v1174
      %1176 = vst [vmem:[%s1149 + $0x20] sm:$0x1] %v1175
      %v1177 = vld [vmem:[%s1149 + $0x24] sm:$0xf]
      %v1178 = vsel %vm1152, %v886, %v1177
      %1179 = vst [vmem:[%s1149 + $0x24] sm:$0xf] %v1178
      %1180 = vst.msk [vmem:[%s1149 + $0x28] sm:$0xf] %vm1156, %v895
      %v1181 = vld [vmem:[%s1149 + $0x2c] sm:$0x1]
      %v1182 = vsel %vm1159, %v896, %v1181
      %1183 = vst [vmem:[%s1149 + $0x2c] sm:$0x1] %v1182
      %v1184 = vld [vmem:[%s1149 + $0x30] sm:$0xf]
      %v1185 = vsel %vm1152, %v903, %v1184
      %1186 = vst [vmem:[%s1149 + $0x30] sm:$0xf] %v1185
      %1187 = vst.msk [vmem:[%s1149 + $0x34] sm:$0xf] %vm1156, %v912
      %v1188 = vld [vmem:[%s1149 + $0x38] sm:$0x1]
      %v1189 = vsel %vm1159, %v913, %v1188
      %1190 = vst [vmem:[%s1149 + $0x38] sm:$0x1] %v1189
      %v1191 = vld [vmem:[%s1149 + $0x3c] sm:$0xf]
      %v1192 = vsel %vm1152, %v920, %v1191
      %1193 = vst [vmem:[%s1149 + $0x3c] sm:$0xf] %v1192
      %1194 = vst.msk [vmem:[%s1149 + $0x40] sm:$0xf] %vm1156, %v929
      %v1195 = vld [vmem:[%s1149 + $0x44] sm:$0x1]
      %v1196 = vsel %vm1159, %v930, %v1195
      %1197 = vst [vmem:[%s1149 + $0x44] sm:$0x1] %v1196
      %v1198 = vld [vmem:[%s1149 + $0x48] sm:$0xf]
      %v1199 = vsel %vm1152, %v937, %v1198
      %1200 = vst [vmem:[%s1149 + $0x48] sm:$0xf] %v1199
      %1201 = vst.msk [vmem:[%s1149 + $0x4c] sm:$0xf] %vm1156, %v946
      %v1202 = vld [vmem:[%s1149 + $0x50] sm:$0x1]
      %v1203 = vsel %vm1159, %v947, %v1202
      %1204 = vst [vmem:[%s1149 + $0x50] sm:$0x1] %v1203
      %v1205 = vld [vmem:[%s1149 + $0x54] sm:$0xf]
      %v1206 = vsel %vm1152, %v954, %v1205
      %1207 = vst [vmem:[%s1149 + $0x54] sm:$0xf] %v1206
      %1208 = vst.msk [vmem:[%s1149 + $0x58] sm:$0xf] %vm1156, %v963
      %v1209 = vld [vmem:[%s1149 + $0x5c] sm:$0x1]
      %v1210 = vsel %vm1159, %v964, %v1209
      %1211 = vst [vmem:[%s1149 + $0x5c] sm:$0x1] %v1210
      %v1212 = vld [vmem:[%s1149 + $0x60] sm:$0xf]
      %v1213 = vsel %vm1152, %v971, %v1212
      %1214 = vst [vmem:[%s1149 + $0x60] sm:$0xf] %v1213
      %1215 = vst.msk [vmem:[%s1149 + $0x64] sm:$0xf] %vm1156, %v980
      %v1216 = vld [vmem:[%s1149 + $0x68] sm:$0x1]
      %v1217 = vsel %vm1159, %v981, %v1216
      %1218 = vst [vmem:[%s1149 + $0x68] sm:$0x1] %v1217
      %v1219 = vld [vmem:[%s1149 + $0x6c] sm:$0xf]
      %v1220 = vsel %vm1152, %v988, %v1219
      %1221 = vst [vmem:[%s1149 + $0x6c] sm:$0xf] %v1220
      %1222 = vst.msk [vmem:[%s1149 + $0x70] sm:$0xf] %vm1156, %v997
      %v1223 = vld [vmem:[%s1149 + $0x74] sm:$0x1]
      %v1224 = vsel %vm1159, %v998, %v1223
      %1225 = vst [vmem:[%s1149 + $0x74] sm:$0x1] %v1224
      %v1226 = vld [vmem:[%s1149 + $0x78] sm:$0xf]
      %v1227 = vsel %vm1152, %v1005, %v1226
      %1228 = vst [vmem:[%s1149 + $0x78] sm:$0xf] %v1227
      %1229 = vst.msk [vmem:[%s1149 + $0x7c] sm:$0xf] %vm1156, %v1014
      %v1230 = vld [vmem:[%s1149 + $0x80] sm:$0x1]
      %v1231 = vsel %vm1159, %v1015, %v1230
      %1232 = vst [vmem:[%s1149 + $0x80] sm:$0x1] %v1231
      %v1233 = vld [vmem:[%s1149 + $0x84] sm:$0xf]
      %v1234 = vsel %vm1152, %v1022, %v1233
      %1235 = vst [vmem:[%s1149 + $0x84] sm:$0xf] %v1234
      %1236 = vst.msk [vmem:[%s1149 + $0x88] sm:$0xf] %vm1156, %v1031
      %v1237 = vld [vmem:[%s1149 + $0x8c] sm:$0x1]
      %v1238 = vsel %vm1159, %v1032, %v1237
      %1239 = vst [vmem:[%s1149 + $0x8c] sm:$0x1] %v1238
      %v1240 = vld [vmem:[%s1149 + $0x90] sm:$0xf]
      %v1241 = vsel %vm1152, %v1039, %v1240
      %1242 = vst [vmem:[%s1149 + $0x90] sm:$0xf] %v1241
      %1243 = vst.msk [vmem:[%s1149 + $0x94] sm:$0xf] %vm1156, %v1048
      %v1244 = vld [vmem:[%s1149 + $0x98] sm:$0x1]
      %v1245 = vsel %vm1159, %v1049, %v1244
      %1246 = vst [vmem:[%s1149 + $0x98] sm:$0x1] %v1245
      %v1247 = vld [vmem:[%s1149 + $0x9c] sm:$0xf]
      %v1248 = vsel %vm1152, %v1056, %v1247
      %1249 = vst [vmem:[%s1149 + $0x9c] sm:$0xf] %v1248
      %1250 = vst.msk [vmem:[%s1149 + $0xa0] sm:$0xf] %vm1156, %v1065
      %v1251 = vld [vmem:[%s1149 + $0xa4] sm:$0x1]
      %v1252 = vsel %vm1159, %v1066, %v1251
      %1253 = vst [vmem:[%s1149 + $0xa4] sm:$0x1] %v1252
      %v1254 = vld [vmem:[%s1149 + $0xa8] sm:$0xf]
      %v1255 = vsel %vm1152, %v1073, %v1254
      %1256 = vst [vmem:[%s1149 + $0xa8] sm:$0xf] %v1255
      %1257 = vst.msk [vmem:[%s1149 + $0xac] sm:$0xf] %vm1156, %v1082
      %v1258 = vld [vmem:[%s1149 + $0xb0] sm:$0x1]
      %v1259 = vsel %vm1159, %v1083, %v1258
      %1260 = vst [vmem:[%s1149 + $0xb0] sm:$0x1] %v1259
      %v1261 = vld [vmem:[%s1149 + $0xb4] sm:$0xf]
      %v1262 = vsel %vm1152, %v1090, %v1261
      %1263 = vst [vmem:[%s1149 + $0xb4] sm:$0xf] %v1262
      %1264 = vst.msk [vmem:[%s1149 + $0xb8] sm:$0xf] %vm1156, %v1099
      %v1265 = vld [vmem:[%s1149 + $0xbc] sm:$0x1]
      %v1266 = vsel %vm1159, %v1100, %v1265
      %1267 = vst [vmem:[%s1149 + $0xbc] sm:$0x1] %v1266
      %p1268 = scmp.lt.s32.totalorder %s25, 0
      // Predicated region
      $region49: #{double_conv.4} parent=39 // pred_check
        %p1269 = pneg %p1268
      $region50: #{double_conv.4} parent=39 // pred_check_branch
        %1271 = sbr.rel (%p1269) target = $region52
      $region51: #{double_conv.4} parent=39 // pred_region
        %v1273 = vunpack.c.l.b16 %v610
        %v1274 = vunpack.c.h.b16 %v610
        %v1275 = vpack.c.b16 %v1273, %v1273
        %v1276 = vpack.c.b16 %v1274, %v1274
        %v1278 = vshrl.u32 %v1275, 16
        %v1280 = vrot.slane %v1278, 7
        %v1281 = vshll.u32 %v1275, 16
        %v1283 = vor.u32 %v1280, %v1281
        %v1284 = vrot.slane %v1280, 4
        %v1286 = vshrl.u32 %v1276, 16
        %v1288 = vrot.slane %v1286, 7
        %v1289 = vshll.u32 %v1276, 16
        %v1291 = vor.u32 %v1288, %v1289
        %v1292 = vsel %vm828, %v1284, %v1291
        %v1293 = vrot.slane %v1288, 4
        %s1297 = scalar_lea.vmem [#allocation2], 204
        %v1298 = vld [vmem:[%s1297] sm:$0xf]
        %v1299 = vsel %vm1152, %v1283, %v1298
        %1300 = vst [vmem:[%s1297] sm:$0xf] %v1299
        %1301 = vst.msk [vmem:[%s1297 + $0x4] sm:$0xf] %vm1156, %v1292
        %v1302 = vld [vmem:[%s1297 + $0x8] sm:$0x1]
        %v1303 = vsel %vm1159, %v1293, %v1302
        %1304 = vst [vmem:[%s1297 + $0x8] sm:$0x1] %v1303
      $region52: #{double_conv.4} parent=39 // pred_fallthru
        _
      // Predicated region
      $region53: #{double_conv.4} parent=39 // pred_check
        %p1305 = pneg %p611
      $region54: #{double_conv.4} parent=39 // pred_check_branch
        %1307 = sbr.rel (%p1305) target = $region56
      $region55: #{double_conv.4} parent=39 // pred_region
        %s1308 = scalar_lea.vmem [#allocation2], 204
        %v1309 = vld [vmem:[%s1308] sm:$0xf]
        %v1310 = vsel %vm1152, 0, %v1309
        %1311 = vst [vmem:[%s1308] sm:$0xf] %v1310
        %1312 = vst.msk [vmem:[%s1308 + $0x4] sm:$0xf] %vm1156, 0
        %v1313 = vld [vmem:[%s1308 + $0x8] sm:$0x1]
        %v1314 = vsel %vm1159, 0, %v1313
        %1315 = vst [vmem:[%s1308 + $0x8] sm:$0x1] %v1314
      $region56: #{double_conv.4} parent=39 // pred_fallthru
        _
      %v1316 = vld [vmem:[#allocation2] sm:$0xf]
      %v1317 = vld [vmem:[#allocation2 + $0x4] sm:$0xf]
      %v1318 = vld [vmem:[#allocation2 + $0xc] sm:$0xf]
      %v1319 = vld [vmem:[#allocation2 + $0x10] sm:$0xf]
      %v1320 = vld [vmem:[#allocation2 + $0x18] sm:$0xf]
      %v1321 = vld [vmem:[#allocation2 + $0x1c] sm:$0xf]
      %v1322 = vld [vmem:[#allocation2 + $0x24] sm:$0xf]
      %v1323 = vld [vmem:[#allocation2 + $0x28] sm:$0xf]
      %v1324 = vld [vmem:[#allocation2 + $0x30] sm:$0xf]
      %v1325 = vld [vmem:[#allocation2 + $0x34] sm:$0xf]
      %v1326 = vld [vmem:[#allocation2 + $0x3c] sm:$0xf]
      %v1327 = vld [vmem:[#allocation2 + $0x40] sm:$0xf]
      %v1328 = vld [vmem:[#allocation2 + $0x48] sm:$0xf]
      %v1329 = vld [vmem:[#allocation2 + $0x4c] sm:$0xf]
      %v1330 = vld [vmem:[#allocation2 + $0x54] sm:$0xf]
      %v1331 = vld [vmem:[#allocation2 + $0x58] sm:$0xf]
      %v1332 = vld [vmem:[#allocation2 + $0x60] sm:$0xf]
      %v1333 = vld [vmem:[#allocation2 + $0x64] sm:$0xf]
      %v1334 = vld [vmem:[#allocation2 + $0x6c] sm:$0xf]
      %v1335 = vld [vmem:[#allocation2 + $0x70] sm:$0xf]
      %v1336 = vld [vmem:[#allocation2 + $0x78] sm:$0xf]
      %v1337 = vld [vmem:[#allocation2 + $0x7c] sm:$0xf]
      %v1338 = vld [vmem:[#allocation2 + $0x84] sm:$0xf]
      %v1339 = vld [vmem:[#allocation2 + $0x88] sm:$0xf]
      %v1340 = vld [vmem:[#allocation2 + $0x90] sm:$0xf]
      %v1341 = vld [vmem:[#allocation2 + $0x94] sm:$0xf]
      %v1342 = vld [vmem:[#allocation2 + $0x9c] sm:$0xf]
      %v1343 = vld [vmem:[#allocation2 + $0xa0] sm:$0xf]
      %v1344 = vld [vmem:[#allocation2 + $0xa8] sm:$0xf]
      %v1345 = vld [vmem:[#allocation2 + $0xac] sm:$0xf]
      %v1346 = vld [vmem:[#allocation2 + $0xb4] sm:$0xf]
      %v1347 = vld [vmem:[#allocation2 + $0xb8] sm:$0xf]
      %v1348 = vld [vmem:[%s387] sm:$0xf]
      %v1349 = vld [vmem:[#allocation2 + $0x8] sm:$0x1]
      %v1350 = vld [vmem:[#allocation2 + $0x14] sm:$0x1]
      %v1351 = vld [vmem:[#allocation2 + $0x20] sm:$0x1]
      %v1352 = vld [vmem:[#allocation2 + $0x2c] sm:$0x1]
      %v1353 = vld [vmem:[#allocation2 + $0x38] sm:$0x1]
      %v1354 = vld [vmem:[#allocation2 + $0x44] sm:$0x1]
      %v1355 = vld [vmem:[#allocation2 + $0x50] sm:$0x1]
      %v1356 = vld [vmem:[#allocation2 + $0x5c] sm:$0x1]
      %v1357 = vld [vmem:[#allocation2 + $0x68] sm:$0x1]
      %v1358 = vld [vmem:[#allocation2 + $0x74] sm:$0x1]
      %v1359 = vld [vmem:[#allocation2 + $0x80] sm:$0x1]
      %v1360 = vld [vmem:[#allocation2 + $0x8c] sm:$0x1]
      %v1361 = vld [vmem:[#allocation2 + $0x98] sm:$0x1]
      %v1362 = vld [vmem:[#allocation2 + $0xa4] sm:$0x1]
      %v1363 = vld [vmem:[#allocation2 + $0xb0] sm:$0x1]
      %v1364 = vld [vmem:[#allocation2 + $0xbc] sm:$0x1]
      %vm1365 = vsmask.f32 3328
      %vm1366 = vsmask.f32 7440
      %vm1367 = vmor %vm1365, %vm1366
      %v1369 = vshrl.u32 %v1316, 16
      %v1371 = vrot.slane %v1369, 4
      %v1372 = vshll.u32 %v1316, 16
      %v1374 = vrot.slane %v1372, 5
      %v1375 = vor.u32 %v1371, %v1374
      %v1376 = vrot.slane %v1375, 4
      %v1378 = vshll.u32 %v1317, 16
      %v1380 = vrot.slane %v1378, 5
      %v1381 = vsel %vm1367, %v1376, %v1380
      %v1382 = vshrl.u32 %v1317, 16
      %v1384 = vrot.slane %v1382, 4
      %v1385 = vor.u32 %v1384, %v1380
      %v1386 = vrot.slane %v1385, 4
      %v1388 = vshll.u32 %v1349, 16
      %v1390 = vrot.slane %v1388, 5
      %v1391 = vsel %vm1367, %v1386, %v1390
      %v1393 = vshrl.u32 %v1318, 16
      %v1395 = vrot.slane %v1393, 4
      %v1396 = vshll.u32 %v1318, 16
      %v1398 = vrot.slane %v1396, 5
      %v1399 = vor.u32 %v1395, %v1398
      %v1400 = vrot.slane %v1399, 4
      %v1402 = vshll.u32 %v1319, 16
      %v1404 = vrot.slane %v1402, 5
      %v1405 = vsel %vm1367, %v1400, %v1404
      %v1406 = vshrl.u32 %v1319, 16
      %v1408 = vrot.slane %v1406, 4
      %v1409 = vor.u32 %v1408, %v1404
      %v1410 = vrot.slane %v1409, 4
      %v1412 = vshll.u32 %v1350, 16
      %v1414 = vrot.slane %v1412, 5
      %v1415 = vsel %vm1367, %v1410, %v1414
      %v1417 = vshrl.u32 %v1320, 16
      %v1419 = vrot.slane %v1417, 4
      %v1420 = vshll.u32 %v1320, 16
      %v1422 = vrot.slane %v1420, 5
      %v1423 = vor.u32 %v1419, %v1422
      %v1424 = vrot.slane %v1423, 4
      %v1426 = vshll.u32 %v1321, 16
      %v1428 = vrot.slane %v1426, 5
      %v1429 = vsel %vm1367, %v1424, %v1428
      %v1430 = vshrl.u32 %v1321, 16
      %v1432 = vrot.slane %v1430, 4
      %v1433 = vor.u32 %v1432, %v1428
      %v1434 = vrot.slane %v1433, 4
      %v1436 = vshll.u32 %v1351, 16
      %v1438 = vrot.slane %v1436, 5
      %v1439 = vsel %vm1367, %v1434, %v1438
      %v1441 = vshrl.u32 %v1322, 16
      %v1443 = vrot.slane %v1441, 4
      %v1444 = vshll.u32 %v1322, 16
      %v1446 = vrot.slane %v1444, 5
      %v1447 = vor.u32 %v1443, %v1446
      %v1448 = vrot.slane %v1447, 4
      %v1450 = vshll.u32 %v1323, 16
      %v1452 = vrot.slane %v1450, 5
      %v1453 = vsel %vm1367, %v1448, %v1452
      %v1454 = vshrl.u32 %v1323, 16
      %v1456 = vrot.slane %v1454, 4
      %v1457 = vor.u32 %v1456, %v1452
      %v1458 = vrot.slane %v1457, 4
      %v1460 = vshll.u32 %v1352, 16
      %v1462 = vrot.slane %v1460, 5
      %v1463 = vsel %vm1367, %v1458, %v1462
      %v1465 = vshrl.u32 %v1324, 16
      %v1467 = vrot.slane %v1465, 4
      %v1468 = vshll.u32 %v1324, 16
      %v1470 = vrot.slane %v1468, 5
      %v1471 = vor.u32 %v1467, %v1470
      %v1472 = vrot.slane %v1471, 4
      %v1474 = vshll.u32 %v1325, 16
      %v1476 = vrot.slane %v1474, 5
      %v1477 = vsel %vm1367, %v1472, %v1476
      %v1478 = vshrl.u32 %v1325, 16
      %v1480 = vrot.slane %v1478, 4
      %v1481 = vor.u32 %v1480, %v1476
      %v1482 = vrot.slane %v1481, 4
      %v1484 = vshll.u32 %v1353, 16
      %v1486 = vrot.slane %v1484, 5
      %v1487 = vsel %vm1367, %v1482, %v1486
      %v1489 = vshrl.u32 %v1326, 16
      %v1491 = vrot.slane %v1489, 4
      %v1492 = vshll.u32 %v1326, 16
      %v1494 = vrot.slane %v1492, 5
      %v1495 = vor.u32 %v1491, %v1494
      %v1496 = vrot.slane %v1495, 4
      %v1498 = vshll.u32 %v1327, 16
      %v1500 = vrot.slane %v1498, 5
      %v1501 = vsel %vm1367, %v1496, %v1500
      %v1502 = vshrl.u32 %v1327, 16
      %v1504 = vrot.slane %v1502, 4
      %v1505 = vor.u32 %v1504, %v1500
      %v1506 = vrot.slane %v1505, 4
      %v1508 = vshll.u32 %v1354, 16
      %v1510 = vrot.slane %v1508, 5
      %v1511 = vsel %vm1367, %v1506, %v1510
      %v1513 = vshrl.u32 %v1328, 16
      %v1515 = vrot.slane %v1513, 4
      %v1516 = vshll.u32 %v1328, 16
      %v1518 = vrot.slane %v1516, 5
      %v1519 = vor.u32 %v1515, %v1518
      %v1520 = vrot.slane %v1519, 4
      %v1522 = vshll.u32 %v1329, 16
      %v1524 = vrot.slane %v1522, 5
      %v1525 = vsel %vm1367, %v1520, %v1524
      %v1526 = vshrl.u32 %v1329, 16
      %v1528 = vrot.slane %v1526, 4
      %v1529 = vor.u32 %v1528, %v1524
      %v1530 = vrot.slane %v1529, 4
      %v1532 = vshll.u32 %v1355, 16
      %v1534 = vrot.slane %v1532, 5
      %v1535 = vsel %vm1367, %v1530, %v1534
      %v1537 = vshrl.u32 %v1330, 16
      %v1539 = vrot.slane %v1537, 4
      %v1540 = vshll.u32 %v1330, 16
      %v1542 = vrot.slane %v1540, 5
      %v1543 = vor.u32 %v1539, %v1542
      %v1544 = vrot.slane %v1543, 4
      %v1546 = vshll.u32 %v1331, 16
      %v1548 = vrot.slane %v1546, 5
      %v1549 = vsel %vm1367, %v1544, %v1548
      %v1550 = vshrl.u32 %v1331, 16
      %v1552 = vrot.slane %v1550, 4
      %v1553 = vor.u32 %v1552, %v1548
      %v1554 = vrot.slane %v1553, 4
      %v1556 = vshll.u32 %v1356, 16
      %v1558 = vrot.slane %v1556, 5
      %v1559 = vsel %vm1367, %v1554, %v1558
      %v1561 = vshrl.u32 %v1332, 16
      %v1563 = vrot.slane %v1561, 4
      %v1564 = vshll.u32 %v1332, 16
      %v1566 = vrot.slane %v1564, 5
      %v1567 = vor.u32 %v1563, %v1566
      %v1568 = vrot.slane %v1567, 4
      %v1570 = vshll.u32 %v1333, 16
      %v1572 = vrot.slane %v1570, 5
      %v1573 = vsel %vm1367, %v1568, %v1572
      %v1574 = vshrl.u32 %v1333, 16
      %v1576 = vrot.slane %v1574, 4
      %v1577 = vor.u32 %v1576, %v1572
      %v1578 = vrot.slane %v1577, 4
      %v1580 = vshll.u32 %v1357, 16
      %v1582 = vrot.slane %v1580, 5
      %v1583 = vsel %vm1367, %v1578, %v1582
      %v1585 = vshrl.u32 %v1334, 16
      %v1587 = vrot.slane %v1585, 4
      %v1588 = vshll.u32 %v1334, 16
      %v1590 = vrot.slane %v1588, 5
      %v1591 = vor.u32 %v1587, %v1590
      %v1592 = vrot.slane %v1591, 4
      %v1594 = vshll.u32 %v1335, 16
      %v1596 = vrot.slane %v1594, 5
      %v1597 = vsel %vm1367, %v1592, %v1596
      %v1598 = vshrl.u32 %v1335, 16
      %v1600 = vrot.slane %v1598, 4
      %v1601 = vor.u32 %v1600, %v1596
      %v1602 = vrot.slane %v1601, 4
      %v1604 = vshll.u32 %v1358, 16
      %v1606 = vrot.slane %v1604, 5
      %v1607 = vsel %vm1367, %v1602, %v1606
      %v1609 = vshrl.u32 %v1336, 16
      %v1611 = vrot.slane %v1609, 4
      %v1612 = vshll.u32 %v1336, 16
      %v1614 = vrot.slane %v1612, 5
      %v1615 = vor.u32 %v1611, %v1614
      %v1616 = vrot.slane %v1615, 4
      %v1618 = vshll.u32 %v1337, 16
      %v1620 = vrot.slane %v1618, 5
      %v1621 = vsel %vm1367, %v1616, %v1620
      %v1622 = vshrl.u32 %v1337, 16
      %v1624 = vrot.slane %v1622, 4
      %v1625 = vor.u32 %v1624, %v1620
      %v1626 = vrot.slane %v1625, 4
      %v1628 = vshll.u32 %v1359, 16
      %v1630 = vrot.slane %v1628, 5
      %v1631 = vsel %vm1367, %v1626, %v1630
      %v1633 = vshrl.u32 %v1338, 16
      %v1635 = vrot.slane %v1633, 4
      %v1636 = vshll.u32 %v1338, 16
      %v1638 = vrot.slane %v1636, 5
      %v1639 = vor.u32 %v1635, %v1638
      %v1640 = vrot.slane %v1639, 4
      %v1642 = vshll.u32 %v1339, 16
      %v1644 = vrot.slane %v1642, 5
      %v1645 = vsel %vm1367, %v1640, %v1644
      %v1646 = vshrl.u32 %v1339, 16
      %v1648 = vrot.slane %v1646, 4
      %v1649 = vor.u32 %v1648, %v1644
      %v1650 = vrot.slane %v1649, 4
      %v1652 = vshll.u32 %v1360, 16
      %v1654 = vrot.slane %v1652, 5
      %v1655 = vsel %vm1367, %v1650, %v1654
      %v1657 = vshrl.u32 %v1340, 16
      %v1659 = vrot.slane %v1657, 4
      %v1660 = vshll.u32 %v1340, 16
      %v1662 = vrot.slane %v1660, 5
      %v1663 = vor.u32 %v1659, %v1662
      %v1664 = vrot.slane %v1663, 4
      %v1666 = vshll.u32 %v1341, 16
      %v1668 = vrot.slane %v1666, 5
      %v1669 = vsel %vm1367, %v1664, %v1668
      %v1670 = vshrl.u32 %v1341, 16
      %v1672 = vrot.slane %v1670, 4
      %v1673 = vor.u32 %v1672, %v1668
      %v1674 = vrot.slane %v1673, 4
      %v1676 = vshll.u32 %v1361, 16
      %v1678 = vrot.slane %v1676, 5
      %v1679 = vsel %vm1367, %v1674, %v1678
      %v1681 = vshrl.u32 %v1342, 16
      %v1683 = vrot.slane %v1681, 4
      %v1684 = vshll.u32 %v1342, 16
      %v1686 = vrot.slane %v1684, 5
      %v1687 = vor.u32 %v1683, %v1686
      %v1688 = vrot.slane %v1687, 4
      %v1690 = vshll.u32 %v1343, 16
      %v1692 = vrot.slane %v1690, 5
      %v1693 = vsel %vm1367, %v1688, %v1692
      %v1694 = vshrl.u32 %v1343, 16
      %v1696 = vrot.slane %v1694, 4
      %v1697 = vor.u32 %v1696, %v1692
      %v1698 = vrot.slane %v1697, 4
      %v1700 = vshll.u32 %v1362, 16
      %v1702 = vrot.slane %v1700, 5
      %v1703 = vsel %vm1367, %v1698, %v1702
      %v1705 = vshrl.u32 %v1344, 16
      %v1707 = vrot.slane %v1705, 4
      %v1708 = vshll.u32 %v1344, 16
      %v1710 = vrot.slane %v1708, 5
      %v1711 = vor.u32 %v1707, %v1710
      %v1712 = vrot.slane %v1711, 4
      %v1714 = vshll.u32 %v1345, 16
      %v1716 = vrot.slane %v1714, 5
      %v1717 = vsel %vm1367, %v1712, %v1716
      %v1718 = vshrl.u32 %v1345, 16
      %v1720 = vrot.slane %v1718, 4
      %v1721 = vor.u32 %v1720, %v1716
      %v1722 = vrot.slane %v1721, 4
      %v1724 = vshll.u32 %v1363, 16
      %v1726 = vrot.slane %v1724, 5
      %v1727 = vsel %vm1367, %v1722, %v1726
      %v1729 = vshrl.u32 %v1346, 16
      %v1731 = vrot.slane %v1729, 4
      %v1732 = vshll.u32 %v1346, 16
      %v1734 = vrot.slane %v1732, 5
      %v1735 = vor.u32 %v1731, %v1734
      %v1736 = vrot.slane %v1735, 4
      %v1738 = vshll.u32 %v1347, 16
      %v1740 = vrot.slane %v1738, 5
      %v1741 = vsel %vm1367, %v1736, %v1740
      %v1742 = vshrl.u32 %v1347, 16
      %v1744 = vrot.slane %v1742, 4
      %v1745 = vor.u32 %v1744, %v1740
      %v1746 = vrot.slane %v1745, 4
      %v1748 = vshll.u32 %v1364, 16
      %v1750 = vrot.slane %v1748, 5
      %v1751 = vsel %vm1367, %v1746, %v1750
      %v1752 = vld [vmem:[%s387 + $0x4] sm:$0xf]
      %v1753 = vunpack.c.l.b16 %v1381
      %v1754 = vunpack.c.l.b16 %v1391
      %v1755 = vunpack.c.l.b16 %v1405
      %v1756 = vunpack.c.l.b16 %v1415
      %v1757 = vunpack.c.l.b16 %v1429
      %v1758 = vunpack.c.l.b16 %v1439
      %v1759 = vunpack.c.l.b16 %v1453
      %v1760 = vunpack.c.l.b16 %v1463
      %v1761 = vunpack.c.l.b16 %v1477
      %v1762 = vunpack.c.l.b16 %v1487
      %v1763 = vunpack.c.l.b16 %v1501
      %v1764 = vunpack.c.l.b16 %v1511
      %v1765 = vunpack.c.l.b16 %v1525
      %v1766 = vunpack.c.l.b16 %v1535
      %v1767 = vunpack.c.l.b16 %v1549
      %v1768 = vunpack.c.l.b16 %v1559
      %v1769 = vunpack.c.l.b16 %v1573
      %v1770 = vunpack.c.l.b16 %v1583
      %v1771 = vunpack.c.l.b16 %v1597
      %v1772 = vunpack.c.l.b16 %v1607
      %v1773 = vunpack.c.l.b16 %v1621
      %v1774 = vunpack.c.l.b16 %v1631
      %v1775 = vunpack.c.l.b16 %v1645
      %v1776 = vunpack.c.l.b16 %v1655
      %v1777 = vunpack.c.l.b16 %v1669
      %v1778 = vunpack.c.l.b16 %v1679
      %v1779 = vunpack.c.l.b16 %v1693
      %v1780 = vunpack.c.l.b16 %v1703
      %v1781 = vunpack.c.l.b16 %v1717
      %v1782 = vunpack.c.l.b16 %v1727
      %v1783 = vunpack.c.l.b16 %v1741
      %v1784 = vunpack.c.l.b16 %v1751
      %v1785 = vpack.c.b16 %v1754, %v1753
      %v1786 = vpack.c.b16 %v1756, %v1755
      %v1787 = vpack.c.b16 %v1758, %v1757
      %v1788 = vpack.c.b16 %v1760, %v1759
      %v1789 = vpack.c.b16 %v1762, %v1761
      %v1790 = vpack.c.b16 %v1764, %v1763
      %v1791 = vpack.c.b16 %v1766, %v1765
      %v1792 = vpack.c.b16 %v1768, %v1767
      %v1793 = vpack.c.b16 %v1770, %v1769
      %v1794 = vpack.c.b16 %v1772, %v1771
      %v1795 = vpack.c.b16 %v1774, %v1773
      %v1796 = vpack.c.b16 %v1776, %v1775
      %v1797 = vpack.c.b16 %v1778, %v1777
      %v1798 = vpack.c.b16 %v1780, %v1779
      %v1799 = vpack.c.b16 %v1782, %v1781
      %v1800 = vpack.c.b16 %v1784, %v1783
      %vm1801 = vcmask 64512
      %v1803 = vsel %vm1801, %v1785, 0
      %v1806 = vsel %vm1801, %v1786, 0
      %v1809 = vsel %vm1801, %v1787, 0
      %v1812 = vsel %vm1801, %v1788, 0
      %v1815 = vsel %vm1801, %v1789, 0
      %v1818 = vsel %vm1801, %v1790, 0
      %v1821 = vsel %vm1801, %v1791, 0
      %v1824 = vsel %vm1801, %v1792, 0
      %v1827 = vsel %vm1801, %v1793, 0
      %v1830 = vsel %vm1801, %v1794, 0
      %v1833 = vsel %vm1801, %v1795, 0
      %v1836 = vsel %vm1801, %v1796, 0
      %v1839 = vsel %vm1801, %v1797, 0
      %v1842 = vsel %vm1801, %v1798, 0
      %v1845 = vsel %vm1801, %v1799, 0
      %v1848 = vsel %vm1801, %v1800, 0
      %vm1850 = vcmask 1043456
      %v1852 = vsel %vm1850, %v1752, 0
      %1854 = vmatprep.subr.bf16.mxu0 0
      %1855 = vmatpush1.bf16.msra.mxu0 %v1852
      %1856 = vmatprep.subr.bf16.mxu0 0
      %1857 = vmatpush1.bf16.msra.mxu0 0
      %1858 = vmatprep.subr.bf16.mxu0 0
      %1859 = vmatpush1.bf16.msra.mxu0 0
      %1860 = vmatprep.subr.bf16.mxu0 0
      %1861 = vmatpush1.bf16.msra.mxu0 0
      %1862 = vmatprep.subr.bf16.mxu0 0
      %1863 = vmatpush1.bf16.msra.mxu0 0
      %1864 = vmatprep.subr.bf16.mxu0 0
      %1865 = vmatpush1.bf16.msra.mxu0 0
      %1866 = vmatprep.subr.bf16.mxu0 0
      %1867 = vmatpush1.bf16.msra.mxu0 0
      %1868 = vmatprep.subr.bf16.mxu0 0
      %1869 = vmatpush1.bf16.msra.mxu0 0
      %1870 = vmatprep.subr.bf16.mxu0 0
      %1871 = vmatpush1.bf16.msra.mxu0 0
      %1872 = vmatprep.subr.bf16.mxu0 0
      %1873 = vmatpush1.bf16.msra.mxu0 0
      %1874 = vmatprep.subr.bf16.mxu0 0
      %1875 = vmatpush1.bf16.msra.mxu0 0
      %1876 = vmatprep.subr.bf16.mxu0 0
      %1877 = vmatpush1.bf16.msra.mxu0 0
      %1878 = vmatprep.subr.bf16.mxu0 0
      %1879 = vmatpush1.bf16.msra.mxu0 0
      %1880 = vmatprep.subr.bf16.mxu0 0
      %1881 = vmatpush1.bf16.msra.mxu0 0
      %1882 = vmatprep.subr.bf16.mxu0 0
      %1883 = vmatpush1.bf16.msra.mxu0 0
      %1884 = vmatprep.subr.bf16.mxu0 0
      %1885 = vmatpush1.bf16.msra.mxu0 0
      %1886 = vmatprep.mubr.bf16.mxu0 0
      %1887 = vmatmul.mubr.bf16.gmra.mrb[0].mxu0 %v1803
      %v1888 = vpop.f32.mrb[0].mxu0
      %v1889 = vadd.f32 0.0, %v1888
      %v1890 = vpop.f32.mrb[0].mxu0
      %v1891 = vpop.f32.mrb[0].mxu0
      %v1892 = vadd.f32 0.0, %v1891
      %v1893 = vpop.f32.mrb[0].mxu0
      %1894 = vmatprep.mubr.bf16.mxu0 0
      %1895 = vmatmul.mubr.bf16.gmra.mrb[0].mxu0 %v1806
      %v1896 = vpop.f32.mrb[0].mxu0
      %v1897 = vadd.f32 0.0, %v1896
      %v1898 = vpop.f32.mrb[0].mxu0
      %v1899 = vpop.f32.mrb[0].mxu0
      %v1900 = vadd.f32 0.0, %v1899
      %v1901 = vpop.f32.mrb[0].mxu0
      %1902 = vmatprep.mubr.bf16.mxu0 0
      %1903 = vmatmul.mubr.bf16.gmra.mrb[0].mxu0 %v1809
      %v1904 = vpop.f32.mrb[0].mxu0
      %v1905 = vadd.f32 0.0, %v1904
      %v1906 = vpop.f32.mrb[0].mxu0
      %v1907 = vpop.f32.mrb[0].mxu0
      %v1908 = vadd.f32 0.0, %v1907
      %v1909 = vpop.f32.mrb[0].mxu0
      %1910 = vmatprep.mubr.bf16.mxu0 0
      %1911 = vmatmul.mubr.bf16.gmra.mrb[0].mxu0 %v1812
      %v1912 = vpop.f32.mrb[0].mxu0
      %v1913 = vadd.f32 0.0, %v1912
      %v1914 = vpop.f32.mrb[0].mxu0
      %v1915 = vpop.f32.mrb[0].mxu0
      %v1916 = vadd.f32 0.0, %v1915
      %v1917 = vpop.f32.mrb[0].mxu0
      %1918 = vmatprep.mubr.bf16.mxu0 0
      %1919 = vmatmul.mubr.bf16.gmra.mrb[0].mxu0 %v1815
      %v1920 = vpop.f32.mrb[0].mxu0
      %v1921 = vadd.f32 0.0, %v1920
      %v1922 = vpop.f32.mrb[0].mxu0
      %v1923 = vpop.f32.mrb[0].mxu0
      %v1924 = vadd.f32 0.0, %v1923
      %v1925 = vpop.f32.mrb[0].mxu0
      %1926 = vmatprep.mubr.bf16.mxu0 0
      %1927 = vmatmul.mubr.bf16.gmra.mrb[0].mxu0 %v1818
      %v1928 = vpop.f32.mrb[0].mxu0
      %v1929 = vadd.f32 0.0, %v1928
      %v1930 = vpop.f32.mrb[0].mxu0
      %v1931 = vpop.f32.mrb[0].mxu0
      %v1932 = vadd.f32 0.0, %v1931
      %v1933 = vpop.f32.mrb[0].mxu0
      %1934 = vmatprep.mubr.bf16.mxu0 0
      %1935 = vmatmul.mubr.bf16.gmra.mrb[0].mxu0 %v1821
      %v1936 = vpop.f32.mrb[0].mxu0
      %v1937 = vadd.f32 0.0, %v1936
      %v1938 = vpop.f32.mrb[0].mxu0
      %v1939 = vpop.f32.mrb[0].mxu0
      %v1940 = vadd.f32 0.0, %v1939
      %v1941 = vpop.f32.mrb[0].mxu0
      %1942 = vmatprep.mubr.bf16.mxu0 0
      %1943 = vmatmul.mubr.bf16.gmra.mrb[0].mxu0 %v1824
      %v1944 = vpop.f32.mrb[0].mxu0
      %v1945 = vadd.f32 0.0, %v1944
      %v1946 = vpop.f32.mrb[0].mxu0
      %v1947 = vpop.f32.mrb[0].mxu0
      %v1948 = vadd.f32 0.0, %v1947
      %v1949 = vpop.f32.mrb[0].mxu0
      %1950 = vmatprep.mubr.bf16.mxu0 0
      %1951 = vmatmul.mubr.bf16.gmra.mrb[0].mxu0 %v1827
      %v1952 = vpop.f32.mrb[0].mxu0
      %v1953 = vadd.f32 0.0, %v1952
      %v1954 = vpop.f32.mrb[0].mxu0
      %v1955 = vpop.f32.mrb[0].mxu0
      %v1956 = vadd.f32 0.0, %v1955
      %v1957 = vpop.f32.mrb[0].mxu0
      %1958 = vmatprep.mubr.bf16.mxu0 0
      %1959 = vmatmul.mubr.bf16.gmra.mrb[0].mxu0 %v1830
      %v1960 = vpop.f32.mrb[0].mxu0
      %v1961 = vadd.f32 0.0, %v1960
      %v1962 = vpop.f32.mrb[0].mxu0
      %v1963 = vpop.f32.mrb[0].mxu0
      %v1964 = vadd.f32 0.0, %v1963
      %v1965 = vpop.f32.mrb[0].mxu0
      %1966 = vmatprep.mubr.bf16.mxu0 0
      %1967 = vmatmul.mubr.bf16.gmra.mrb[0].mxu0 %v1833
      %v1968 = vpop.f32.mrb[0].mxu0
      %v1969 = vadd.f32 0.0, %v1968
      %v1970 = vpop.f32.mrb[0].mxu0
      %v1971 = vpop.f32.mrb[0].mxu0
      %v1972 = vadd.f32 0.0, %v1971
      %v1973 = vpop.f32.mrb[0].mxu0
      %1974 = vmatprep.mubr.bf16.mxu0 0
      %1975 = vmatmul.mubr.bf16.gmra.mrb[0].mxu0 %v1836
      %v1976 = vpop.f32.mrb[0].mxu0
      %v1977 = vadd.f32 0.0, %v1976
      %v1978 = vpop.f32.mrb[0].mxu0
      %v1979 = vpop.f32.mrb[0].mxu0
      %v1980 = vadd.f32 0.0, %v1979
      %v1981 = vpop.f32.mrb[0].mxu0
      %1982 = vmatprep.mubr.bf16.mxu0 0
      %1983 = vmatmul.mubr.bf16.gmra.mrb[0].mxu0 %v1839
      %v1984 = vpop.f32.mrb[0].mxu0
      %v1985 = vadd.f32 0.0, %v1984
      %v1986 = vpop.f32.mrb[0].mxu0
      %v1987 = vpop.f32.mrb[0].mxu0
      %v1988 = vadd.f32 0.0, %v1987
      %v1989 = vpop.f32.mrb[0].mxu0
      %1990 = vmatprep.mubr.bf16.mxu0 0
      %1991 = vmatmul.mubr.bf16.gmra.mrb[0].mxu0 %v1842
      %v1992 = vpop.f32.mrb[0].mxu0
      %v1993 = vadd.f32 0.0, %v1992
      %v1994 = vpop.f32.mrb[0].mxu0
      %v1995 = vpop.f32.mrb[0].mxu0
      %v1996 = vadd.f32 0.0, %v1995
      %v1997 = vpop.f32.mrb[0].mxu0
      %1998 = vmatprep.mubr.bf16.mxu0 0
      %1999 = vmatmul.mubr.bf16.gmra.mrb[0].mxu0 %v1845
      %v2000 = vpop.f32.mrb[0].mxu0
      %v2001 = vadd.f32 0.0, %v2000
      %v2002 = vpop.f32.mrb[0].mxu0
      %v2003 = vpop.f32.mrb[0].mxu0
      %v2004 = vadd.f32 0.0, %v2003
      %v2005 = vpop.f32.mrb[0].mxu0
      %2006 = vmatprep.mubr.bf16.mxu0 0
      %2007 = vmatmul.mubr.bf16.gmra.mrb[0].mxu0 %v1848
      %v2008 = vpop.f32.mrb[0].mxu0
      %v2009 = vadd.f32 0.0, %v2008
      %v2010 = vpop.f32.mrb[0].mxu0
      %v2011 = vpop.f32.mrb[0].mxu0
      %v2012 = vadd.f32 0.0, %v2011
      %v2013 = vpop.f32.mrb[0].mxu0
      %2014 = vdwg.mxu0
      %v2047 = vunpack.c.l.b16 %v1316
      %v2048 = vunpack.c.l.b16 %v1317
      %v2049 = vunpack.c.l.b16 %v1318
      %v2050 = vunpack.c.l.b16 %v1319
      %v2051 = vunpack.c.l.b16 %v1320
      %v2052 = vunpack.c.l.b16 %v1321
      %v2053 = vunpack.c.l.b16 %v1322
      %v2054 = vunpack.c.l.b16 %v1323
      %v2055 = vunpack.c.l.b16 %v1324
      %v2056 = vunpack.c.l.b16 %v1325
      %v2057 = vunpack.c.l.b16 %v1326
      %v2058 = vunpack.c.l.b16 %v1327
      %v2059 = vunpack.c.l.b16 %v1328
      %v2060 = vunpack.c.l.b16 %v1329
      %v2061 = vunpack.c.l.b16 %v1330
      %v2062 = vunpack.c.l.b16 %v1331
      %v2063 = vunpack.c.l.b16 %v1332
      %v2064 = vunpack.c.l.b16 %v1333
      %v2065 = vunpack.c.l.b16 %v1334
      %v2066 = vunpack.c.l.b16 %v1335
      %v2067 = vunpack.c.l.b16 %v1336
      %v2068 = vunpack.c.l.b16 %v1337
      %v2069 = vunpack.c.l.b16 %v1338
      %v2070 = vunpack.c.l.b16 %v1339
      %v2071 = vunpack.c.l.b16 %v1340
      %v2072 = vunpack.c.l.b16 %v1341
      %v2073 = vunpack.c.l.b16 %v1342
      %v2074 = vunpack.c.l.b16 %v1343
      %v2075 = vunpack.c.l.b16 %v1344
      %v2076 = vunpack.c.l.b16 %v1345
      %v2077 = vunpack.c.l.b16 %v1346
      %v2078 = vunpack.c.l.b16 %v1347
      %v2079 = vpack.c.b16 %v2048, %v2047
      %v2080 = vpack.c.b16 %v2050, %v2049
      %v2081 = vpack.c.b16 %v2052, %v2051
      %v2082 = vpack.c.b16 %v2054, %v2053
      %v2083 = vpack.c.b16 %v2056, %v2055
      %v2084 = vpack.c.b16 %v2058, %v2057
      %v2085 = vpack.c.b16 %v2060, %v2059
      %v2086 = vpack.c.b16 %v2062, %v2061
      %v2087 = vpack.c.b16 %v2064, %v2063
      %v2088 = vpack.c.b16 %v2066, %v2065
      %v2089 = vpack.c.b16 %v2068, %v2067
      %v2090 = vpack.c.b16 %v2070, %v2069
      %v2091 = vpack.c.b16 %v2072, %v2071
      %v2092 = vpack.c.b16 %v2074, %v2073
      %v2093 = vpack.c.b16 %v2076, %v2075
      %v2094 = vpack.c.b16 %v2078, %v2077
      %v2096 = vsel %vm1801, %v2079, 0
      %v2099 = vsel %vm1801, %v2080, 0
      %v2102 = vsel %vm1801, %v2081, 0
      %v2105 = vsel %vm1801, %v2082, 0
      %v2108 = vsel %vm1801, %v2083, 0
      %v2111 = vsel %vm1801, %v2084, 0
      %v2114 = vsel %vm1801, %v2085, 0
      %v2117 = vsel %vm1801, %v2086, 0
      %v2120 = vsel %vm1801, %v2087, 0
      %v2123 = vsel %vm1801, %v2088, 0
      %v2126 = vsel %vm1801, %v2089, 0
      %v2129 = vsel %vm1801, %v2090, 0
      %v2132 = vsel %vm1801, %v2091, 0
      %v2135 = vsel %vm1801, %v2092, 0
      %v2138 = vsel %vm1801, %v2093, 0
      %v2141 = vsel %vm1801, %v2094, 0
      %v2144 = vsel %vm1850, %v1348, 0
      %2146 = vmatprep.subr.bf16.mxu0 0
      %2147 = vmatpush1.bf16.msra.mxu0 %v2144
      %2148 = vmatprep.subr.bf16.mxu0 0
      %2149 = vmatpush1.bf16.msra.mxu0 0
      %2150 = vmatprep.subr.bf16.mxu0 0
      %2151 = vmatpush1.bf16.msra.mxu0 0
      %2152 = vmatprep.subr.bf16.mxu0 0
      %2153 = vmatpush1.bf16.msra.mxu0 0
      %2154 = vmatprep.subr.bf16.mxu0 0
      %2155 = vmatpush1.bf16.msra.mxu0 0
      %2156 = vmatprep.subr.bf16.mxu0 0
      %2157 = vmatpush1.bf16.msra.mxu0 0
      %2158 = vmatprep.subr.bf16.mxu0 0
      %2159 = vmatpush1.bf16.msra.mxu0 0
      %2160 = vmatprep.subr.bf16.mxu0 0
      %2161 = vmatpush1.bf16.msra.mxu0 0
      %2162 = vmatprep.subr.bf16.mxu0 0
      %2163 = vmatpush1.bf16.msra.mxu0 0
      %2164 = vmatprep.subr.bf16.mxu0 0
      %2165 = vmatpush1.bf16.msra.mxu0 0
      %2166 = vmatprep.subr.bf16.mxu0 0
      %2167 = vmatpush1.bf16.msra.mxu0 0
      %2168 = vmatprep.subr.bf16.mxu0 0
      %2169 = vmatpush1.bf16.msra.mxu0 0
      %2170 = vmatprep.subr.bf16.mxu0 0
      %2171 = vmatpush1.bf16.msra.mxu0 0
      %2172 = vmatprep.subr.bf16.mxu0 0
      %2173 = vmatpush1.bf16.msra.mxu0 0
      %2174 = vmatprep.subr.bf16.mxu0 0
      %2175 = vmatpush1.bf16.msra.mxu0 0
      %2176 = vmatprep.subr.bf16.mxu0 0
      %2177 = vmatpush1.bf16.msra.mxu0 0
      %2178 = vmatprep.mubr.bf16.mxu0 0
      %2179 = vmatmul.mubr.bf16.gmra.mrb[0].mxu0 %v2096
      %v2180 = vpop.f32.mrb[0].mxu0
      %v2181 = vadd.f32 %v1889, %v2180
      %v2182 = vpop.f32.mrb[0].mxu0
      %v2183 = vpop.f32.mrb[0].mxu0
      %v2184 = vadd.f32 %v1892, %v2183
      %v2185 = vpop.f32.mrb[0].mxu0
      %2186 = vmatprep.mubr.bf16.mxu0 0
      %2187 = vmatmul.mubr.bf16.gmra.mrb[0].mxu0 %v2099
      %v2188 = vpop.f32.mrb[0].mxu0
      %v2189 = vadd.f32 %v1897, %v2188
      %v2190 = vpop.f32.mrb[0].mxu0
      %v2191 = vpop.f32.mrb[0].mxu0
      %v2192 = vadd.f32 %v1900, %v2191
      %v2193 = vpop.f32.mrb[0].mxu0
      %2194 = vmatprep.mubr.bf16.mxu0 0
      %2195 = vmatmul.mubr.bf16.gmra.mrb[0].mxu0 %v2102
      %v2196 = vpop.f32.mrb[0].mxu0
      %v2197 = vadd.f32 %v1905, %v2196
      %v2198 = vpop.f32.mrb[0].mxu0
      %v2199 = vpop.f32.mrb[0].mxu0
      %v2200 = vadd.f32 %v1908, %v2199
      %v2201 = vpop.f32.mrb[0].mxu0
      %2202 = vmatprep.mubr.bf16.mxu0 0
      %2203 = vmatmul.mubr.bf16.gmra.mrb[0].mxu0 %v2105
      %v2204 = vpop.f32.mrb[0].mxu0
      %v2205 = vadd.f32 %v1913, %v2204
      %v2206 = vpop.f32.mrb[0].mxu0
      %v2207 = vpop.f32.mrb[0].mxu0
      %v2208 = vadd.f32 %v1916, %v2207
      %v2209 = vpop.f32.mrb[0].mxu0
      %2210 = vmatprep.mubr.bf16.mxu0 0
      %2211 = vmatmul.mubr.bf16.gmra.mrb[0].mxu0 %v2108
      %v2212 = vpop.f32.mrb[0].mxu0
      %v2213 = vadd.f32 %v1921, %v2212
      %v2214 = vpop.f32.mrb[0].mxu0
      %v2215 = vpop.f32.mrb[0].mxu0
      %v2216 = vadd.f32 %v1924, %v2215
      %v2217 = vpop.f32.mrb[0].mxu0
      %2218 = vmatprep.mubr.bf16.mxu0 0
      %2219 = vmatmul.mubr.bf16.gmra.mrb[0].mxu0 %v2111
      %v2220 = vpop.f32.mrb[0].mxu0
      %v2221 = vadd.f32 %v1929, %v2220
      %v2222 = vpop.f32.mrb[0].mxu0
      %v2223 = vpop.f32.mrb[0].mxu0
      %v2224 = vadd.f32 %v1932, %v2223
      %v2225 = vpop.f32.mrb[0].mxu0
      %2226 = vmatprep.mubr.bf16.mxu0 0
      %2227 = vmatmul.mubr.bf16.gmra.mrb[0].mxu0 %v2114
      %v2228 = vpop.f32.mrb[0].mxu0
      %v2229 = vadd.f32 %v1937, %v2228
      %v2230 = vpop.f32.mrb[0].mxu0
      %v2231 = vpop.f32.mrb[0].mxu0
      %v2232 = vadd.f32 %v1940, %v2231
      %v2233 = vpop.f32.mrb[0].mxu0
      %2234 = vmatprep.mubr.bf16.mxu0 0
      %2235 = vmatmul.mubr.bf16.gmra.mrb[0].mxu0 %v2117
      %v2236 = vpop.f32.mrb[0].mxu0
      %v2237 = vadd.f32 %v1945, %v2236
      %v2238 = vpop.f32.mrb[0].mxu0
      %v2239 = vpop.f32.mrb[0].mxu0
      %v2240 = vadd.f32 %v1948, %v2239
      %v2241 = vpop.f32.mrb[0].mxu0
      %2242 = vmatprep.mubr.bf16.mxu0 0
      %2243 = vmatmul.mubr.bf16.gmra.mrb[0].mxu0 %v2120
      %v2244 = vpop.f32.mrb[0].mxu0
      %v2245 = vadd.f32 %v1953, %v2244
      %v2246 = vpop.f32.mrb[0].mxu0
      %v2247 = vpop.f32.mrb[0].mxu0
      %v2248 = vadd.f32 %v1956, %v2247
      %v2249 = vpop.f32.mrb[0].mxu0
      %2250 = vmatprep.mubr.bf16.mxu0 0
      %2251 = vmatmul.mubr.bf16.gmra.mrb[0].mxu0 %v2123
      %v2252 = vpop.f32.mrb[0].mxu0
      %v2253 = vadd.f32 %v1961, %v2252
      %v2254 = vpop.f32.mrb[0].mxu0
      %v2255 = vpop.f32.mrb[0].mxu0
      %v2256 = vadd.f32 %v1964, %v2255
      %v2257 = vpop.f32.mrb[0].mxu0
      %2258 = vmatprep.mubr.bf16.mxu0 0
      %2259 = vmatmul.mubr.bf16.gmra.mrb[0].mxu0 %v2126
      %v2260 = vpop.f32.mrb[0].mxu0
      %v2261 = vadd.f32 %v1969, %v2260
      %v2262 = vpop.f32.mrb[0].mxu0
      %v2263 = vpop.f32.mrb[0].mxu0
      %v2264 = vadd.f32 %v1972, %v2263
      %v2265 = vpop.f32.mrb[0].mxu0
      %2266 = vmatprep.mubr.bf16.mxu0 0
      %2267 = vmatmul.mubr.bf16.gmra.mrb[0].mxu0 %v2129
      %v2268 = vpop.f32.mrb[0].mxu0
      %v2269 = vadd.f32 %v1977, %v2268
      %v2270 = vpop.f32.mrb[0].mxu0
      %v2271 = vpop.f32.mrb[0].mxu0
      %v2272 = vadd.f32 %v1980, %v2271
      %v2273 = vpop.f32.mrb[0].mxu0
      %2274 = vmatprep.mubr.bf16.mxu0 0
      %2275 = vmatmul.mubr.bf16.gmra.mrb[0].mxu0 %v2132
      %v2276 = vpop.f32.mrb[0].mxu0
      %v2277 = vadd.f32 %v1985, %v2276
      %v2278 = vpop.f32.mrb[0].mxu0
      %v2279 = vpop.f32.mrb[0].mxu0
      %v2280 = vadd.f32 %v1988, %v2279
      %v2281 = vpop.f32.mrb[0].mxu0
      %2282 = vmatprep.mubr.bf16.mxu0 0
      %2283 = vmatmul.mubr.bf16.gmra.mrb[0].mxu0 %v2135
      %v2284 = vpop.f32.mrb[0].mxu0
      %v2285 = vadd.f32 %v1993, %v2284
      %v2286 = vpop.f32.mrb[0].mxu0
      %v2287 = vpop.f32.mrb[0].mxu0
      %v2288 = vadd.f32 %v1996, %v2287
      %v2289 = vpop.f32.mrb[0].mxu0
      %2290 = vmatprep.mubr.bf16.mxu0 0
      %2291 = vmatmul.mubr.bf16.gmra.mrb[0].mxu0 %v2138
      %v2292 = vpop.f32.mrb[0].mxu0
      %v2293 = vadd.f32 %v2001, %v2292
      %v2294 = vpop.f32.mrb[0].mxu0
      %v2295 = vpop.f32.mrb[0].mxu0
      %v2296 = vadd.f32 %v2004, %v2295
      %v2297 = vpop.f32.mrb[0].mxu0
      %2298 = vmatprep.mubr.bf16.mxu0 0
      %2299 = vmatmul.mubr.bf16.gmra.mrb[0].mxu0 %v2141
      %v2300 = vpop.f32.mrb[0].mxu0
      %v2301 = vadd.f32 %v2009, %v2300
      %v2302 = vpop.f32.mrb[0].mxu0
      %v2303 = vpop.f32.mrb[0].mxu0
      %v2304 = vadd.f32 %v2012, %v2303
      %v2305 = vpop.f32.mrb[0].mxu0
      %2306 = vdwg.mxu0
      %v2307 = vld [vmem:[#allocation2] sm:$0xe]
      %v2308 = vld [vmem:[#allocation2 + $0xc] sm:$0xe]
      %v2309 = vld [vmem:[#allocation2 + $0x18] sm:$0xe]
      %v2310 = vld [vmem:[#allocation2 + $0x24] sm:$0xe]
      %v2311 = vld [vmem:[#allocation2 + $0x30] sm:$0xe]
      %v2312 = vld [vmem:[#allocation2 + $0x3c] sm:$0xe]
      %v2313 = vld [vmem:[#allocation2 + $0x48] sm:$0xe]
      %v2314 = vld [vmem:[#allocation2 + $0x54] sm:$0xe]
      %v2315 = vld [vmem:[#allocation2 + $0x60] sm:$0xe]
      %v2316 = vld [vmem:[#allocation2 + $0x6c] sm:$0xe]
      %v2317 = vld [vmem:[#allocation2 + $0x78] sm:$0xe]
      %v2318 = vld [vmem:[#allocation2 + $0x84] sm:$0xe]
      %v2319 = vld [vmem:[#allocation2 + $0x90] sm:$0xe]
      %v2320 = vld [vmem:[#allocation2 + $0x9c] sm:$0xe]
      %v2321 = vld [vmem:[#allocation2 + $0xa8] sm:$0xe]
      %v2322 = vld [vmem:[#allocation2 + $0xb4] sm:$0xe]
      %vm2355 = vcmask 1042432
      %vm2356 = vcmask 1046532
      %vm2357 = vmor %vm2355, %vm2356
      %v2358 = vrot.slane %v2307, 5
      %v2359 = vrot.slane %v2358, 4
      %v2360 = vrot.slane %v1317, 5
      %v2361 = vsel %vm2357, %v2359, %v2360
      %v2362 = vrot.slane %v2360, 4
      %v2363 = vrot.slane %v1349, 5
      %v2364 = vsel %vm2357, %v2362, %v2363
      %v2365 = vrot.slane %v2308, 5
      %v2366 = vrot.slane %v2365, 4
      %v2367 = vrot.slane %v1319, 5
      %v2368 = vsel %vm2357, %v2366, %v2367
      %v2369 = vrot.slane %v2367, 4
      %v2370 = vrot.slane %v1350, 5
      %v2371 = vsel %vm2357, %v2369, %v2370
      %v2372 = vrot.slane %v2309, 5
      %v2373 = vrot.slane %v2372, 4
      %v2374 = vrot.slane %v1321, 5
      %v2375 = vsel %vm2357, %v2373, %v2374
      %v2376 = vrot.slane %v2374, 4
      %v2377 = vrot.slane %v1351, 5
      %v2378 = vsel %vm2357, %v2376, %v2377
      %v2379 = vrot.slane %v2310, 5
      %v2380 = vrot.slane %v2379, 4
      %v2381 = vrot.slane %v1323, 5
      %v2382 = vsel %vm2357, %v2380, %v2381
      %v2383 = vrot.slane %v2381, 4
      %v2384 = vrot.slane %v1352, 5
      %v2385 = vsel %vm2357, %v2383, %v2384
      %v2386 = vrot.slane %v2311, 5
      %v2387 = vrot.slane %v2386, 4
      %v2388 = vrot.slane %v1325, 5
      %v2389 = vsel %vm2357, %v2387, %v2388
      %v2390 = vrot.slane %v2388, 4
      %v2391 = vrot.slane %v1353, 5
      %v2392 = vsel %vm2357, %v2390, %v2391
      %v2393 = vrot.slane %v2312, 5
      %v2394 = vrot.slane %v2393, 4
      %v2395 = vrot.slane %v1327, 5
      %v2396 = vsel %vm2357, %v2394, %v2395
      %v2397 = vrot.slane %v2395, 4
      %v2398 = vrot.slane %v1354, 5
      %v2399 = vsel %vm2357, %v2397, %v2398
      %v2400 = vrot.slane %v2313, 5
      %v2401 = vrot.slane %v2400, 4
      %v2402 = vrot.slane %v1329, 5
      %v2403 = vsel %vm2357, %v2401, %v2402
      %v2404 = vrot.slane %v2402, 4
      %v2405 = vrot.slane %v1355, 5
      %v2406 = vsel %vm2357, %v2404, %v2405
      %v2407 = vrot.slane %v2314, 5
      %v2408 = vrot.slane %v2407, 4
      %v2409 = vrot.slane %v1331, 5
      %v2410 = vsel %vm2357, %v2408, %v2409
      %v2411 = vrot.slane %v2409, 4
      %v2412 = vrot.slane %v1356, 5
      %v2413 = vsel %vm2357, %v2411, %v2412
      %v2414 = vrot.slane %v2315, 5
      %v2415 = vrot.slane %v2414, 4
      %v2416 = vrot.slane %v1333, 5
      %v2417 = vsel %vm2357, %v2415, %v2416
      %v2418 = vrot.slane %v2416, 4
      %v2419 = vrot.slane %v1357, 5
      %v2420 = vsel %vm2357, %v2418, %v2419
      %v2421 = vrot.slane %v2316, 5
      %v2422 = vrot.slane %v2421, 4
      %v2423 = vrot.slane %v1335, 5
      %v2424 = vsel %vm2357, %v2422, %v2423
      %v2425 = vrot.slane %v2423, 4
      %v2426 = vrot.slane %v1358, 5
      %v2427 = vsel %vm2357, %v2425, %v2426
      %v2428 = vrot.slane %v2317, 5
      %v2429 = vrot.slane %v2428, 4
      %v2430 = vrot.slane %v1337, 5
      %v2431 = vsel %vm2357, %v2429, %v2430
      %v2432 = vrot.slane %v2430, 4
      %v2433 = vrot.slane %v1359, 5
      %v2434 = vsel %vm2357, %v2432, %v2433
      %v2435 = vrot.slane %v2318, 5
      %v2436 = vrot.slane %v2435, 4
      %v2437 = vrot.slane %v1339, 5
      %v2438 = vsel %vm2357, %v2436, %v2437
      %v2439 = vrot.slane %v2437, 4
      %v2440 = vrot.slane %v1360, 5
      %v2441 = vsel %vm2357, %v2439, %v2440
      %v2442 = vrot.slane %v2319, 5
      %v2443 = vrot.slane %v2442, 4
      %v2444 = vrot.slane %v1341, 5
      %v2445 = vsel %vm2357, %v2443, %v2444
      %v2446 = vrot.slane %v2444, 4
      %v2447 = vrot.slane %v1361, 5
      %v2448 = vsel %vm2357, %v2446, %v2447
      %v2449 = vrot.slane %v2320, 5
      %v2450 = vrot.slane %v2449, 4
      %v2451 = vrot.slane %v1343, 5
      %v2452 = vsel %vm2357, %v2450, %v2451
      %v2453 = vrot.slane %v2451, 4
      %v2454 = vrot.slane %v1362, 5
      %v2455 = vsel %vm2357, %v2453, %v2454
      %v2456 = vrot.slane %v2321, 5
      %v2457 = vrot.slane %v2456, 4
      %v2458 = vrot.slane %v1345, 5
      %v2459 = vsel %vm2357, %v2457, %v2458
      %v2460 = vrot.slane %v2458, 4
      %v2461 = vrot.slane %v1363, 5
      %v2462 = vsel %vm2357, %v2460, %v2461
      %v2463 = vrot.slane %v2322, 5
      %v2464 = vrot.slane %v2463, 4
      %v2465 = vrot.slane %v1347, 5
      %v2466 = vsel %vm2357, %v2464, %v2465
      %v2467 = vrot.slane %v2465, 4
      %v2468 = vrot.slane %v1364, 5
      %v2469 = vsel %vm2357, %v2467, %v2468
      %v2470 = vld [vmem:[%s387 + $0x8] sm:$0xf]
      %v2471 = vunpack.c.l.b16 %v2361
      %v2472 = vunpack.c.l.b16 %v2364
      %v2473 = vunpack.c.l.b16 %v2368
      %v2474 = vunpack.c.l.b16 %v2371
      %v2475 = vunpack.c.l.b16 %v2375
      %v2476 = vunpack.c.l.b16 %v2378
      %v2477 = vunpack.c.l.b16 %v2382
      %v2478 = vunpack.c.l.b16 %v2385
      %v2479 = vunpack.c.l.b16 %v2389
      %v2480 = vunpack.c.l.b16 %v2392
      %v2481 = vunpack.c.l.b16 %v2396
      %v2482 = vunpack.c.l.b16 %v2399
      %v2483 = vunpack.c.l.b16 %v2403
      %v2484 = vunpack.c.l.b16 %v2406
      %v2485 = vunpack.c.l.b16 %v2410
      %v2486 = vunpack.c.l.b16 %v2413
      %v2487 = vunpack.c.l.b16 %v2417
      %v2488 = vunpack.c.l.b16 %v2420
      %v2489 = vunpack.c.l.b16 %v2424
      %v2490 = vunpack.c.l.b16 %v2427
      %v2491 = vunpack.c.l.b16 %v2431
      %v2492 = vunpack.c.l.b16 %v2434
      %v2493 = vunpack.c.l.b16 %v2438
      %v2494 = vunpack.c.l.b16 %v2441
      %v2495 = vunpack.c.l.b16 %v2445
      %v2496 = vunpack.c.l.b16 %v2448
      %v2497 = vunpack.c.l.b16 %v2452
      %v2498 = vunpack.c.l.b16 %v2455
      %v2499 = vunpack.c.l.b16 %v2459
      %v2500 = vunpack.c.l.b16 %v2462
      %v2501 = vunpack.c.l.b16 %v2466
      %v2502 = vunpack.c.l.b16 %v2469
      %v2503 = vpack.c.b16 %v2472, %v2471
      %v2504 = vpack.c.b16 %v2474, %v2473
      %v2505 = vpack.c.b16 %v2476, %v2475
      %v2506 = vpack.c.b16 %v2478, %v2477
      %v2507 = vpack.c.b16 %v2480, %v2479
      %v2508 = vpack.c.b16 %v2482, %v2481
      %v2509 = vpack.c.b16 %v2484, %v2483
      %v2510 = vpack.c.b16 %v2486, %v2485
      %v2511 = vpack.c.b16 %v2488, %v2487
      %v2512 = vpack.c.b16 %v2490, %v2489
      %v2513 = vpack.c.b16 %v2492, %v2491
      %v2514 = vpack.c.b16 %v2494, %v2493
      %v2515 = vpack.c.b16 %v2496, %v2495
      %v2516 = vpack.c.b16 %v2498, %v2497
      %v2517 = vpack.c.b16 %v2500, %v2499
      %v2518 = vpack.c.b16 %v2502, %v2501
      %v2520 = vsel %vm1801, %v2503, 0
      %v2523 = vsel %vm1801, %v2504, 0
      %v2526 = vsel %vm1801, %v2505, 0
      %v2529 = vsel %vm1801, %v2506, 0
      %v2532 = vsel %vm1801, %v2507, 0
      %v2535 = vsel %vm1801, %v2508, 0
      %v2538 = vsel %vm1801, %v2509, 0
      %v2541 = vsel %vm1801, %v2510, 0
      %v2544 = vsel %vm1801, %v2511, 0
      %v2547 = vsel %vm1801, %v2512, 0
      %v2550 = vsel %vm1801, %v2513, 0
      %v2553 = vsel %vm1801, %v2514, 0
      %v2556 = vsel %vm1801, %v2515, 0
      %v2559 = vsel %vm1801, %v2516, 0
      %v2562 = vsel %vm1801, %v2517, 0
      %v2565 = vsel %vm1801, %v2518, 0
      %v2568 = vsel %vm1850, %v2470, 0
      %2570 = vmatprep.subr.bf16.mxu0 0
      %2571 = vmatpush1.bf16.msra.mxu0 %v2568
      %2572 = vmatprep.subr.bf16.mxu0 0
      %2573 = vmatpush1.bf16.msra.mxu0 0
      %2574 = vmatprep.subr.bf16.mxu0 0
      %2575 = vmatpush1.bf16.msra.mxu0 0
      %2576 = vmatprep.subr.bf16.mxu0 0
      %2577 = vmatpush1.bf16.msra.mxu0 0
      %2578 = vmatprep.subr.bf16.mxu0 0
      %2579 = vmatpush1.bf16.msra.mxu0 0
      %2580 = vmatprep.subr.bf16.mxu0 0
      %2581 = vmatpush1.bf16.msra.mxu0 0
      %2582 = vmatprep.subr.bf16.mxu0 0
      %2583 = vmatpush1.bf16.msra.mxu0 0
      %2584 = vmatprep.subr.bf16.mxu0 0
      %2585 = vmatpush1.bf16.msra.mxu0 0
      %2586 = vmatprep.subr.bf16.mxu0 0
      %2587 = vmatpush1.bf16.msra.mxu0 0
      %2588 = vmatprep.subr.bf16.mxu0 0
      %2589 = vmatpush1.bf16.msra.mxu0 0
      %2590 = vmatprep.subr.bf16.mxu0 0
      %2591 = vmatpush1.bf16.msra.mxu0 0
      %2592 = vmatprep.subr.bf16.mxu0 0
      %2593 = vmatpush1.bf16.msra.mxu0 0
      %2594 = vmatprep.subr.bf16.mxu0 0
      %2595 = vmatpush1.bf16.msra.mxu0 0
      %2596 = vmatprep.subr.bf16.mxu0 0
      %2597 = vmatpush1.bf16.msra.mxu0 0
      %2598 = vmatprep.subr.bf16.mxu0 0
      %2599 = vmatpush1.bf16.msra.mxu0 0
      %2600 = vmatprep.subr.bf16.mxu0 0
      %2601 = vmatpush1.bf16.msra.mxu0 0
      %2602 = vmatprep.mubr.bf16.mxu0 0
      %2603 = vmatmul.mubr.bf16.gmra.mrb[0].mxu0 %v2520
      %v2604 = vpop.f32.mrb[0].mxu0
      %v2605 = vadd.f32 0.0, %v2604
      %v2606 = vpop.f32.mrb[0].mxu0
      %v2607 = vpop.f32.mrb[0].mxu0
      %v2608 = vadd.f32 0.0, %v2607
      %v2609 = vpop.f32.mrb[0].mxu0
      %2610 = vmatprep.mubr.bf16.mxu0 0
      %2611 = vmatmul.mubr.bf16.gmra.mrb[0].mxu0 %v2523
      %v2612 = vpop.f32.mrb[0].mxu0
      %v2613 = vadd.f32 0.0, %v2612
      %v2614 = vpop.f32.mrb[0].mxu0
      %v2615 = vpop.f32.mrb[0].mxu0
      %v2616 = vadd.f32 0.0, %v2615
      %v2617 = vpop.f32.mrb[0].mxu0
      %2618 = vmatprep.mubr.bf16.mxu0 0
      %2619 = vmatmul.mubr.bf16.gmra.mrb[0].mxu0 %v2526
      %v2620 = vpop.f32.mrb[0].mxu0
      %v2621 = vadd.f32 0.0, %v2620
      %v2622 = vpop.f32.mrb[0].mxu0
      %v2623 = vpop.f32.mrb[0].mxu0
      %v2624 = vadd.f32 0.0, %v2623
      %v2625 = vpop.f32.mrb[0].mxu0
      %2626 = vmatprep.mubr.bf16.mxu0 0
      %2627 = vmatmul.mubr.bf16.gmra.mrb[0].mxu0 %v2529
      %v2628 = vpop.f32.mrb[0].mxu0
      %v2629 = vadd.f32 0.0, %v2628
      %v2630 = vpop.f32.mrb[0].mxu0
      %v2631 = vpop.f32.mrb[0].mxu0
      %v2632 = vadd.f32 0.0, %v2631
      %v2633 = vpop.f32.mrb[0].mxu0
      %2634 = vmatprep.mubr.bf16.mxu0 0
      %2635 = vmatmul.mubr.bf16.gmra.mrb[0].mxu0 %v2532
      %v2636 = vpop.f32.mrb[0].mxu0
      %v2637 = vadd.f32 0.0, %v2636
      %v2638 = vpop.f32.mrb[0].mxu0
      %v2639 = vpop.f32.mrb[0].mxu0
      %v2640 = vadd.f32 0.0, %v2639
      %v2641 = vpop.f32.mrb[0].mxu0
      %2642 = vmatprep.mubr.bf16.mxu0 0
      %2643 = vmatmul.mubr.bf16.gmra.mrb[0].mxu0 %v2535
      %v2644 = vpop.f32.mrb[0].mxu0
      %v2645 = vadd.f32 0.0, %v2644
      %v2646 = vpop.f32.mrb[0].mxu0
      %v2647 = vpop.f32.mrb[0].mxu0
      %v2648 = vadd.f32 0.0, %v2647
      %v2649 = vpop.f32.mrb[0].mxu0
      %2650 = vmatprep.mubr.bf16.mxu0 0
      %2651 = vmatmul.mubr.bf16.gmra.mrb[0].mxu0 %v2538
      %v2652 = vpop.f32.mrb[0].mxu0
      %v2653 = vadd.f32 0.0, %v2652
      %v2654 = vpop.f32.mrb[0].mxu0
      %v2655 = vpop.f32.mrb[0].mxu0
      %v2656 = vadd.f32 0.0, %v2655
      %v2657 = vpop.f32.mrb[0].mxu0
      %2658 = vmatprep.mubr.bf16.mxu0 0
      %2659 = vmatmul.mubr.bf16.gmra.mrb[0].mxu0 %v2541
      %v2660 = vpop.f32.mrb[0].mxu0
      %v2661 = vadd.f32 0.0, %v2660
      %v2662 = vpop.f32.mrb[0].mxu0
      %v2663 = vpop.f32.mrb[0].mxu0
      %v2664 = vadd.f32 0.0, %v2663
      %v2665 = vpop.f32.mrb[0].mxu0
      %2666 = vmatprep.mubr.bf16.mxu0 0
      %2667 = vmatmul.mubr.bf16.gmra.mrb[0].mxu0 %v2544
      %v2668 = vpop.f32.mrb[0].mxu0
      %v2669 = vadd.f32 0.0, %v2668
      %v2670 = vpop.f32.mrb[0].mxu0
      %v2671 = vpop.f32.mrb[0].mxu0
      %v2672 = vadd.f32 0.0, %v2671
      %v2673 = vpop.f32.mrb[0].mxu0
      %2674 = vmatprep.mubr.bf16.mxu0 0
      %2675 = vmatmul.mubr.bf16.gmra.mrb[0].mxu0 %v2547
      %v2676 = vpop.f32.mrb[0].mxu0
      %v2677 = vadd.f32 0.0, %v2676
      %v2678 = vpop.f32.mrb[0].mxu0
      %v2679 = vpop.f32.mrb[0].mxu0
      %v2680 = vadd.f32 0.0, %v2679
      %v2681 = vpop.f32.mrb[0].mxu0
      %2682 = vmatprep.mubr.bf16.mxu0 0
      %2683 = vmatmul.mubr.bf16.gmra.mrb[0].mxu0 %v2550
      %v2684 = vpop.f32.mrb[0].mxu0
      %v2685 = vadd.f32 0.0, %v2684
      %v2686 = vpop.f32.mrb[0].mxu0
      %v2687 = vpop.f32.mrb[0].mxu0
      %v2688 = vadd.f32 0.0, %v2687
      %v2689 = vpop.f32.mrb[0].mxu0
      %2690 = vmatprep.mubr.bf16.mxu0 0
      %2691 = vmatmul.mubr.bf16.gmra.mrb[0].mxu0 %v2553
      %v2692 = vpop.f32.mrb[0].mxu0
      %v2693 = vadd.f32 0.0, %v2692
      %v2694 = vpop.f32.mrb[0].mxu0
      %v2695 = vpop.f32.mrb[0].mxu0
      %v2696 = vadd.f32 0.0, %v2695
      %v2697 = vpop.f32.mrb[0].mxu0
      %2698 = vmatprep.mubr.bf16.mxu0 0
      %2699 = vmatmul.mubr.bf16.gmra.mrb[0].mxu0 %v2556
      %v2700 = vpop.f32.mrb[0].mxu0
      %v2701 = vadd.f32 0.0, %v2700
      %v2702 = vpop.f32.mrb[0].mxu0
      %v2703 = vpop.f32.mrb[0].mxu0
      %v2704 = vadd.f32 0.0, %v2703
      %v2705 = vpop.f32.mrb[0].mxu0
      %2706 = vmatprep.mubr.bf16.mxu0 0
      %2707 = vmatmul.mubr.bf16.gmra.mrb[0].mxu0 %v2559
      %v2708 = vpop.f32.mrb[0].mxu0
      %v2709 = vadd.f32 0.0, %v2708
      %v2710 = vpop.f32.mrb[0].mxu0
      %v2711 = vpop.f32.mrb[0].mxu0
      %v2712 = vadd.f32 0.0, %v2711
      %v2713 = vpop.f32.mrb[0].mxu0
      %2714 = vmatprep.mubr.bf16.mxu0 0
      %2715 = vmatmul.mubr.bf16.gmra.mrb[0].mxu0 %v2562
      %v2716 = vpop.f32.mrb[0].mxu0
      %v2717 = vadd.f32 0.0, %v2716
      %v2718 = vpop.f32.mrb[0].mxu0
      %v2719 = vpop.f32.mrb[0].mxu0
      %v2720 = vadd.f32 0.0, %v2719
      %v2721 = vpop.f32.mrb[0].mxu0
      %2722 = vmatprep.mubr.bf16.mxu0 0
      %2723 = vmatmul.mubr.bf16.gmra.mrb[0].mxu0 %v2565
      %v2724 = vpop.f32.mrb[0].mxu0
      %v2725 = vadd.f32 0.0, %v2724
      %v2726 = vpop.f32.mrb[0].mxu0
      %v2727 = vpop.f32.mrb[0].mxu0
      %v2728 = vadd.f32 0.0, %v2727
      %v2729 = vpop.f32.mrb[0].mxu0
      %2730 = vdwg.mxu0
      %v2731 = vadd.f32 %v2181, %v2605
      %v2732 = vadd.f32 %v2184, %v2608
      %v2733 = vadd.f32 %v2189, %v2613
      %v2734 = vadd.f32 %v2192, %v2616
      %v2735 = vadd.f32 %v2197, %v2621
      %v2736 = vadd.f32 %v2200, %v2624
      %v2737 = vadd.f32 %v2205, %v2629
      %v2738 = vadd.f32 %v2208, %v2632
      %v2739 = vadd.f32 %v2213, %v2637
      %v2740 = vadd.f32 %v2216, %v2640
      %v2741 = vadd.f32 %v2221, %v2645
      %v2742 = vadd.f32 %v2224, %v2648
      %v2743 = vadd.f32 %v2229, %v2653
      %v2744 = vadd.f32 %v2232, %v2656
      %v2745 = vadd.f32 %v2237, %v2661
      %v2746 = vadd.f32 %v2240, %v2664
      %v2747 = vadd.f32 %v2245, %v2669
      %v2748 = vadd.f32 %v2248, %v2672
      %v2749 = vadd.f32 %v2253, %v2677
      %v2750 = vadd.f32 %v2256, %v2680
      %v2751 = vadd.f32 %v2261, %v2685
      %v2752 = vadd.f32 %v2264, %v2688
      %v2753 = vadd.f32 %v2269, %v2693
      %v2754 = vadd.f32 %v2272, %v2696
      %v2755 = vadd.f32 %v2277, %v2701
      %v2756 = vadd.f32 %v2280, %v2704
      %v2757 = vadd.f32 %v2285, %v2709
      %v2758 = vadd.f32 %v2288, %v2712
      %v2759 = vadd.f32 %v2293, %v2717
      %v2760 = vadd.f32 %v2296, %v2720
      %v2761 = vadd.f32 %v2301, %v2725
      %v2762 = vadd.f32 %v2304, %v2728
      %v2763 = vld [vmem:[%s1149] sm:$0xf]
      %v2764 = vld [vmem:[%s1149 + $0x4] sm:$0xf]
      %v2765 = vld [vmem:[%s1149 + $0xc] sm:$0xf]
      %v2766 = vld [vmem:[%s1149 + $0x10] sm:$0xf]
      %v2767 = vld [vmem:[%s1149 + $0x18] sm:$0xf]
      %v2768 = vld [vmem:[%s1149 + $0x1c] sm:$0xf]
      %v2769 = vld [vmem:[%s1149 + $0x24] sm:$0xf]
      %v2770 = vld [vmem:[%s1149 + $0x28] sm:$0xf]
      %v2771 = vld [vmem:[%s1149 + $0x30] sm:$0xf]
      %v2772 = vld [vmem:[%s1149 + $0x34] sm:$0xf]
      %v2773 = vld [vmem:[%s1149 + $0x3c] sm:$0xf]
      %v2774 = vld [vmem:[%s1149 + $0x40] sm:$0xf]
      %v2775 = vld [vmem:[%s1149 + $0x48] sm:$0xf]
      %v2776 = vld [vmem:[%s1149 + $0x4c] sm:$0xf]
      %v2777 = vld [vmem:[%s1149 + $0x54] sm:$0xf]
      %v2778 = vld [vmem:[%s1149 + $0x58] sm:$0xf]
      %v2779 = vld [vmem:[%s1149 + $0x60] sm:$0xf]
      %v2780 = vld [vmem:[%s1149 + $0x64] sm:$0xf]
      %v2781 = vld [vmem:[%s1149 + $0x6c] sm:$0xf]
      %v2782 = vld [vmem:[%s1149 + $0x70] sm:$0xf]
      %v2783 = vld [vmem:[%s1149 + $0x78] sm:$0xf]
      %v2784 = vld [vmem:[%s1149 + $0x7c] sm:$0xf]
      %v2785 = vld [vmem:[%s1149 + $0x84] sm:$0xf]
      %v2786 = vld [vmem:[%s1149 + $0x88] sm:$0xf]
      %v2787 = vld [vmem:[%s1149 + $0x90] sm:$0xf]
      %v2788 = vld [vmem:[%s1149 + $0x94] sm:$0xf]
      %v2789 = vld [vmem:[%s1149 + $0x9c] sm:$0xf]
      %v2790 = vld [vmem:[%s1149 + $0xa0] sm:$0xf]
      %v2791 = vld [vmem:[%s1149 + $0xa8] sm:$0xf]
      %v2792 = vld [vmem:[%s1149 + $0xac] sm:$0xf]
      %v2793 = vld [vmem:[%s1149 + $0xb4] sm:$0xf]
      %v2794 = vld [vmem:[%s1149 + $0xb8] sm:$0xf]
      %v2795 = vld [vmem:[%s387 + $0xc] sm:$0xf]
      %v2828 = vunpack.c.l.b16 %v2763
      %v2829 = vunpack.c.l.b16 %v2764
      %v2830 = vunpack.c.l.b16 %v2765
      %v2831 = vunpack.c.l.b16 %v2766
      %v2832 = vunpack.c.l.b16 %v2767
      %v2833 = vunpack.c.l.b16 %v2768
      %v2834 = vunpack.c.l.b16 %v2769
      %v2835 = vunpack.c.l.b16 %v2770
      %v2836 = vunpack.c.l.b16 %v2771
      %v2837 = vunpack.c.l.b16 %v2772
      %v2838 = vunpack.c.l.b16 %v2773
      %v2839 = vunpack.c.l.b16 %v2774
      %v2840 = vunpack.c.l.b16 %v2775
      %v2841 = vunpack.c.l.b16 %v2776
      %v2842 = vunpack.c.l.b16 %v2777
      %v2843 = vunpack.c.l.b16 %v2778
      %v2844 = vunpack.c.l.b16 %v2779
      %v2845 = vunpack.c.l.b16 %v2780
      %v2846 = vunpack.c.l.b16 %v2781
      %v2847 = vunpack.c.l.b16 %v2782
      %v2848 = vunpack.c.l.b16 %v2783
      %v2849 = vunpack.c.l.b16 %v2784
      %v2850 = vunpack.c.l.b16 %v2785
      %v2851 = vunpack.c.l.b16 %v2786
      %v2852 = vunpack.c.l.b16 %v2787
      %v2853 = vunpack.c.l.b16 %v2788
      %v2854 = vunpack.c.l.b16 %v2789
      %v2855 = vunpack.c.l.b16 %v2790
      %v2856 = vunpack.c.l.b16 %v2791
      %v2857 = vunpack.c.l.b16 %v2792
      %v2858 = vunpack.c.l.b16 %v2793
      %v2859 = vunpack.c.l.b16 %v2794
      %v2860 = vpack.c.b16 %v2829, %v2828
      %v2861 = vpack.c.b16 %v2831, %v2830
      %v2862 = vpack.c.b16 %v2833, %v2832
      %v2863 = vpack.c.b16 %v2835, %v2834
      %v2864 = vpack.c.b16 %v2837, %v2836
      %v2865 = vpack.c.b16 %v2839, %v2838
      %v2866 = vpack.c.b16 %v2841, %v2840
      %v2867 = vpack.c.b16 %v2843, %v2842
      %v2868 = vpack.c.b16 %v2845, %v2844
      %v2869 = vpack.c.b16 %v2847, %v2846
      %v2870 = vpack.c.b16 %v2849, %v2848
      %v2871 = vpack.c.b16 %v2851, %v2850
      %v2872 = vpack.c.b16 %v2853, %v2852
      %v2873 = vpack.c.b16 %v2855, %v2854
      %v2874 = vpack.c.b16 %v2857, %v2856
      %v2875 = vpack.c.b16 %v2859, %v2858
      %v2877 = vsel %vm1801, %v2860, 0
      %v2880 = vsel %vm1801, %v2861, 0
      %v2883 = vsel %vm1801, %v2862, 0
      %v2886 = vsel %vm1801, %v2863, 0
      %v2889 = vsel %vm1801, %v2864, 0
      %v2892 = vsel %vm1801, %v2865, 0
      %v2895 = vsel %vm1801, %v2866, 0
      %v2898 = vsel %vm1801, %v2867, 0
      %v2901 = vsel %vm1801, %v2868, 0
      %v2904 = vsel %vm1801, %v2869, 0
      %v2907 = vsel %vm1801, %v2870, 0
      %v2910 = vsel %vm1801, %v2871, 0
      %v2913 = vsel %vm1801, %v2872, 0
      %v2916 = vsel %vm1801, %v2873, 0
      %v2919 = vsel %vm1801, %v2874, 0
      %v2922 = vsel %vm1801, %v2875, 0
      %v2925 = vsel %vm1850, %v2795, 0
      %2927 = vmatprep.subr.bf16.mxu0 0
      %2928 = vmatpush1.bf16.msra.mxu0 %v2925
      %2929 = vmatprep.subr.bf16.mxu0 0
      %2930 = vmatpush1.bf16.msra.mxu0 0
      %2931 = vmatprep.subr.bf16.mxu0 0
      %2932 = vmatpush1.bf16.msra.mxu0 0
      %2933 = vmatprep.subr.bf16.mxu0 0
      %2934 = vmatpush1.bf16.msra.mxu0 0
      %2935 = vmatprep.subr.bf16.mxu0 0
      %2936 = vmatpush1.bf16.msra.mxu0 0
      %2937 = vmatprep.subr.bf16.mxu0 0
      %2938 = vmatpush1.bf16.msra.mxu0 0
      %2939 = vmatprep.subr.bf16.mxu0 0
      %2940 = vmatpush1.bf16.msra.mxu0 0
      %2941 = vmatprep.subr.bf16.mxu0 0
      %2942 = vmatpush1.bf16.msra.mxu0 0
      %2943 = vmatprep.subr.bf16.mxu0 0
      %2944 = vmatpush1.bf16.msra.mxu0 0
      %2945 = vmatprep.subr.bf16.mxu0 0
      %2946 = vmatpush1.bf16.msra.mxu0 0
      %2947 = vmatprep.subr.bf16.mxu0 0
      %2948 = vmatpush1.bf16.msra.mxu0 0
      %2949 = vmatprep.subr.bf16.mxu0 0
      %2950 = vmatpush1.bf16.msra.mxu0 0
      %2951 = vmatprep.subr.bf16.mxu0 0
      %2952 = vmatpush1.bf16.msra.mxu0 0
      %2953 = vmatprep.subr.bf16.mxu0 0
      %2954 = vmatpush1.bf16.msra.mxu0 0
      %2955 = vmatprep.subr.bf16.mxu0 0
      %2956 = vmatpush1.bf16.msra.mxu0 0
      %2957 = vmatprep.subr.bf16.mxu0 0
      %2958 = vmatpush1.bf16.msra.mxu0 0
      %2959 = vmatprep.mubr.bf16.mxu0 0
      %2960 = vmatmul.mubr.bf16.gmra.mrb[0].mxu0 %v2877
      %v2961 = vpop.f32.mrb[0].mxu0
      %v2962 = vadd.f32 0.0, %v2961
      %v2963 = vpop.f32.mrb[0].mxu0
      %v2964 = vpop.f32.mrb[0].mxu0
      %v2965 = vadd.f32 0.0, %v2964
      %v2966 = vpop.f32.mrb[0].mxu0
      %2967 = vmatprep.mubr.bf16.mxu0 0
      %2968 = vmatmul.mubr.bf16.gmra.mrb[0].mxu0 %v2880
      %v2969 = vpop.f32.mrb[0].mxu0
      %v2970 = vadd.f32 0.0, %v2969
      %v2971 = vpop.f32.mrb[0].mxu0
      %v2972 = vpop.f32.mrb[0].mxu0
      %v2973 = vadd.f32 0.0, %v2972
      %v2974 = vpop.f32.mrb[0].mxu0
      %2975 = vmatprep.mubr.bf16.mxu0 0
      %2976 = vmatmul.mubr.bf16.gmra.mrb[0].mxu0 %v2883
      %v2977 = vpop.f32.mrb[0].mxu0
      %v2978 = vadd.f32 0.0, %v2977
      %v2979 = vpop.f32.mrb[0].mxu0
      %v2980 = vpop.f32.mrb[0].mxu0
      %v2981 = vadd.f32 0.0, %v2980
      %v2982 = vpop.f32.mrb[0].mxu0
      %2983 = vmatprep.mubr.bf16.mxu0 0
      %2984 = vmatmul.mubr.bf16.gmra.mrb[0].mxu0 %v2886
      %v2985 = vpop.f32.mrb[0].mxu0
      %v2986 = vadd.f32 0.0, %v2985
      %v2987 = vpop.f32.mrb[0].mxu0
      %v2988 = vpop.f32.mrb[0].mxu0
      %v2989 = vadd.f32 0.0, %v2988
      %v2990 = vpop.f32.mrb[0].mxu0
      %2991 = vmatprep.mubr.bf16.mxu0 0
      %2992 = vmatmul.mubr.bf16.gmra.mrb[0].mxu0 %v2889
      %v2993 = vpop.f32.mrb[0].mxu0
      %v2994 = vadd.f32 0.0, %v2993
      %v2995 = vpop.f32.mrb[0].mxu0
      %v2996 = vpop.f32.mrb[0].mxu0
      %v2997 = vadd.f32 0.0, %v2996
      %v2998 = vpop.f32.mrb[0].mxu0
      %2999 = vmatprep.mubr.bf16.mxu0 0
      %3000 = vmatmul.mubr.bf16.gmra.mrb[0].mxu0 %v2892
      %v3001 = vpop.f32.mrb[0].mxu0
      %v3002 = vadd.f32 0.0, %v3001
      %v3003 = vpop.f32.mrb[0].mxu0
      %v3004 = vpop.f32.mrb[0].mxu0
      %v3005 = vadd.f32 0.0, %v3004
      %v3006 = vpop.f32.mrb[0].mxu0
      %3007 = vmatprep.mubr.bf16.mxu0 0
      %3008 = vmatmul.mubr.bf16.gmra.mrb[0].mxu0 %v2895
      %v3009 = vpop.f32.mrb[0].mxu0
      %v3010 = vadd.f32 0.0, %v3009
      %v3011 = vpop.f32.mrb[0].mxu0
      %v3012 = vpop.f32.mrb[0].mxu0
      %v3013 = vadd.f32 0.0, %v3012
      %v3014 = vpop.f32.mrb[0].mxu0
      %3015 = vmatprep.mubr.bf16.mxu0 0
      %3016 = vmatmul.mubr.bf16.gmra.mrb[0].mxu0 %v2898
      %v3017 = vpop.f32.mrb[0].mxu0
      %v3018 = vadd.f32 0.0, %v3017
      %v3019 = vpop.f32.mrb[0].mxu0
      %v3020 = vpop.f32.mrb[0].mxu0
      %v3021 = vadd.f32 0.0, %v3020
      %v3022 = vpop.f32.mrb[0].mxu0
      %3023 = vmatprep.mubr.bf16.mxu0 0
      %3024 = vmatmul.mubr.bf16.gmra.mrb[0].mxu0 %v2901
      %v3025 = vpop.f32.mrb[0].mxu0
      %v3026 = vadd.f32 0.0, %v3025
      %v3027 = vpop.f32.mrb[0].mxu0
      %v3028 = vpop.f32.mrb[0].mxu0
      %v3029 = vadd.f32 0.0, %v3028
      %v3030 = vpop.f32.mrb[0].mxu0
      %3031 = vmatprep.mubr.bf16.mxu0 0
      %3032 = vmatmul.mubr.bf16.gmra.mrb[0].mxu0 %v2904
      %v3033 = vpop.f32.mrb[0].mxu0
      %v3034 = vadd.f32 0.0, %v3033
      %v3035 = vpop.f32.mrb[0].mxu0
      %v3036 = vpop.f32.mrb[0].mxu0
      %v3037 = vadd.f32 0.0, %v3036
      %v3038 = vpop.f32.mrb[0].mxu0
      %3039 = vmatprep.mubr.bf16.mxu0 0
      %3040 = vmatmul.mubr.bf16.gmra.mrb[0].mxu0 %v2907
      %v3041 = vpop.f32.mrb[0].mxu0
      %v3042 = vadd.f32 0.0, %v3041
      %v3043 = vpop.f32.mrb[0].mxu0
      %v3044 = vpop.f32.mrb[0].mxu0
      %v3045 = vadd.f32 0.0, %v3044
      %v3046 = vpop.f32.mrb[0].mxu0
      %3047 = vmatprep.mubr.bf16.mxu0 0
      %3048 = vmatmul.mubr.bf16.gmra.mrb[0].mxu0 %v2910
      %v3049 = vpop.f32.mrb[0].mxu0
      %v3050 = vadd.f32 0.0, %v3049
      %v3051 = vpop.f32.mrb[0].mxu0
      %v3052 = vpop.f32.mrb[0].mxu0
      %v3053 = vadd.f32 0.0, %v3052
      %v3054 = vpop.f32.mrb[0].mxu0
      %3055 = vmatprep.mubr.bf16.mxu0 0
      %3056 = vmatmul.mubr.bf16.gmra.mrb[0].mxu0 %v2913
      %v3057 = vpop.f32.mrb[0].mxu0
      %v3058 = vadd.f32 0.0, %v3057
      %v3059 = vpop.f32.mrb[0].mxu0
      %v3060 = vpop.f32.mrb[0].mxu0
      %v3061 = vadd.f32 0.0, %v3060
      %v3062 = vpop.f32.mrb[0].mxu0
      %3063 = vmatprep.mubr.bf16.mxu0 0
      %3064 = vmatmul.mubr.bf16.gmra.mrb[0].mxu0 %v2916
      %v3065 = vpop.f32.mrb[0].mxu0
      %v3066 = vadd.f32 0.0, %v3065
      %v3067 = vpop.f32.mrb[0].mxu0
      %v3068 = vpop.f32.mrb[0].mxu0
      %v3069 = vadd.f32 0.0, %v3068
      %v3070 = vpop.f32.mrb[0].mxu0
      %3071 = vmatprep.mubr.bf16.mxu0 0
      %3072 = vmatmul.mubr.bf16.gmra.mrb[0].mxu0 %v2919
      %v3073 = vpop.f32.mrb[0].mxu0
      %v3074 = vadd.f32 0.0, %v3073
      %v3075 = vpop.f32.mrb[0].mxu0
      %v3076 = vpop.f32.mrb[0].mxu0
      %v3077 = vadd.f32 0.0, %v3076
      %v3078 = vpop.f32.mrb[0].mxu0
      %3079 = vmatprep.mubr.bf16.mxu0 0
      %3080 = vmatmul.mubr.bf16.gmra.mrb[0].mxu0 %v2922
      %v3081 = vpop.f32.mrb[0].mxu0
      %v3082 = vadd.f32 0.0, %v3081
      %v3083 = vpop.f32.mrb[0].mxu0
      %v3084 = vpop.f32.mrb[0].mxu0
      %v3085 = vadd.f32 0.0, %v3084
      %v3086 = vpop.f32.mrb[0].mxu0
      %3087 = vdwg.mxu0
      %v3088 = vadd.f32 %v2731, %v2962
      %v3089 = vadd.f32 %v2732, %v2965
      %v3090 = vadd.f32 %v2733, %v2970
      %v3091 = vadd.f32 %v2734, %v2973
      %v3092 = vadd.f32 %v2735, %v2978
      %v3093 = vadd.f32 %v2736, %v2981
      %v3094 = vadd.f32 %v2737, %v2986
      %v3095 = vadd.f32 %v2738, %v2989
      %v3096 = vadd.f32 %v2739, %v2994
      %v3097 = vadd.f32 %v2740, %v2997
      %v3098 = vadd.f32 %v2741, %v3002
      %v3099 = vadd.f32 %v2742, %v3005
      %v3100 = vadd.f32 %v2743, %v3010
      %v3101 = vadd.f32 %v2744, %v3013
      %v3102 = vadd.f32 %v2745, %v3018
      %v3103 = vadd.f32 %v2746, %v3021
      %v3104 = vadd.f32 %v2747, %v3026
      %v3105 = vadd.f32 %v2748, %v3029
      %v3106 = vadd.f32 %v2749, %v3034
      %v3107 = vadd.f32 %v2750, %v3037
      %v3108 = vadd.f32 %v2751, %v3042
      %v3109 = vadd.f32 %v2752, %v3045
      %v3110 = vadd.f32 %v2753, %v3050
      %v3111 = vadd.f32 %v2754, %v3053
      %v3112 = vadd.f32 %v2755, %v3058
      %v3113 = vadd.f32 %v2756, %v3061
      %v3114 = vadd.f32 %v2757, %v3066
      %v3115 = vadd.f32 %v2758, %v3069
      %v3116 = vadd.f32 %v2759, %v3074
      %v3117 = vadd.f32 %v2760, %v3077
      %v3118 = vadd.f32 %v2761, %v3082
      %v3119 = vadd.f32 %v2762, %v3085
      %v3120 = vld [vmem:[%s1149] sm:$0xf]
      %v3121 = vld [vmem:[%s1149 + $0x4] sm:$0xf]
      %v3122 = vld [vmem:[%s1149 + $0x8] sm:$0x1]
      %v3123 = vld [vmem:[%s1149 + $0xc] sm:$0xf]
      %v3124 = vld [vmem:[%s1149 + $0x10] sm:$0xf]
      %v3125 = vld [vmem:[%s1149 + $0x14] sm:$0x1]
      %v3126 = vld [vmem:[%s1149 + $0x18] sm:$0xf]
      %v3127 = vld [vmem:[%s1149 + $0x1c] sm:$0xf]
      %v3128 = vld [vmem:[%s1149 + $0x20] sm:$0x1]
      %v3129 = vld [vmem:[%s1149 + $0x24] sm:$0xf]
      %v3130 = vld [vmem:[%s1149 + $0x28] sm:$0xf]
      %v3131 = vld [vmem:[%s1149 + $0x2c] sm:$0x1]
      %v3132 = vld [vmem:[%s1149 + $0x30] sm:$0xf]
      %v3133 = vld [vmem:[%s1149 + $0x34] sm:$0xf]
      %v3134 = vld [vmem:[%s1149 + $0x38] sm:$0x1]
      %v3135 = vld [vmem:[%s1149 + $0x3c] sm:$0xf]
      %v3136 = vld [vmem:[%s1149 + $0x40] sm:$0xf]
      %v3137 = vld [vmem:[%s1149 + $0x44] sm:$0x1]
      %v3138 = vld [vmem:[%s1149 + $0x48] sm:$0xf]
      %v3139 = vld [vmem:[%s1149 + $0x4c] sm:$0xf]
      %v3140 = vld [vmem:[%s1149 + $0x50] sm:$0x1]
      %v3141 = vld [vmem:[%s1149 + $0x54] sm:$0xf]
      %v3142 = vld [vmem:[%s1149 + $0x58] sm:$0xf]
      %v3143 = vld [vmem:[%s1149 + $0x5c] sm:$0x1]
      %v3144 = vld [vmem:[%s1149 + $0x60] sm:$0xf]
      %v3145 = vld [vmem:[%s1149 + $0x64] sm:$0xf]
      %v3146 = vld [vmem:[%s1149 + $0x68] sm:$0x1]
      %v3147 = vld [vmem:[%s1149 + $0x6c] sm:$0xf]
      %v3148 = vld [vmem:[%s1149 + $0x70] sm:$0xf]
      %v3149 = vld [vmem:[%s1149 + $0x74] sm:$0x1]
      %v3150 = vld [vmem:[%s1149 + $0x78] sm:$0xf]
      %v3151 = vld [vmem:[%s1149 + $0x7c] sm:$0xf]
      %v3152 = vld [vmem:[%s1149 + $0x80] sm:$0x1]
      %v3153 = vld [vmem:[%s1149 + $0x84] sm:$0xf]
      %v3154 = vld [vmem:[%s1149 + $0x88] sm:$0xf]
      %v3155 = vld [vmem:[%s1149 + $0x8c] sm:$0x1]
      %v3156 = vld [vmem:[%s1149 + $0x90] sm:$0xf]
      %v3157 = vld [vmem:[%s1149 + $0x94] sm:$0xf]
      %v3158 = vld [vmem:[%s1149 + $0x98] sm:$0x1]
      %v3159 = vld [vmem:[%s1149 + $0x9c] sm:$0xf]
      %v3160 = vld [vmem:[%s1149 + $0xa0] sm:$0xf]
      %v3161 = vld [vmem:[%s1149 + $0xa4] sm:$0x1]
      %v3162 = vld [vmem:[%s1149 + $0xa8] sm:$0xf]
      %v3163 = vld [vmem:[%s1149 + $0xac] sm:$0xf]
      %v3164 = vld [vmem:[%s1149 + $0xb0] sm:$0x1]
      %v3165 = vld [vmem:[%s1149 + $0xb4] sm:$0xf]
      %v3166 = vld [vmem:[%s1149 + $0xb8] sm:$0xf]
      %v3167 = vld [vmem:[%s1149 + $0xbc] sm:$0x1]
      %v3169 = vshrl.u32 %v3120, 16
      %v3171 = vrot.slane %v3169, 4
      %v3172 = vshll.u32 %v3120, 16
      %v3174 = vrot.slane %v3172, 5
      %v3175 = vor.u32 %v3171, %v3174
      %v3176 = vrot.slane %v3175, 4
      %v3178 = vshll.u32 %v3121, 16
      %v3180 = vrot.slane %v3178, 5
      %v3181 = vsel %vm1367, %v3176, %v3180
      %v3182 = vshrl.u32 %v3121, 16
      %v3184 = vrot.slane %v3182, 4
      %v3185 = vor.u32 %v3184, %v3180
      %v3186 = vrot.slane %v3185, 4
      %v3188 = vshll.u32 %v3122, 16
      %v3190 = vrot.slane %v3188, 5
      %v3191 = vsel %vm1367, %v3186, %v3190
      %v3193 = vshrl.u32 %v3123, 16
      %v3195 = vrot.slane %v3193, 4
      %v3196 = vshll.u32 %v3123, 16
      %v3198 = vrot.slane %v3196, 5
      %v3199 = vor.u32 %v3195, %v3198
      %v3200 = vrot.slane %v3199, 4
      %v3202 = vshll.u32 %v3124, 16
      %v3204 = vrot.slane %v3202, 5
      %v3205 = vsel %vm1367, %v3200, %v3204
      %v3206 = vshrl.u32 %v3124, 16
      %v3208 = vrot.slane %v3206, 4
      %v3209 = vor.u32 %v3208, %v3204
      %v3210 = vrot.slane %v3209, 4
      %v3212 = vshll.u32 %v3125, 16
      %v3214 = vrot.slane %v3212, 5
      %v3215 = vsel %vm1367, %v3210, %v3214
      %v3217 = vshrl.u32 %v3126, 16
      %v3219 = vrot.slane %v3217, 4
      %v3220 = vshll.u32 %v3126, 16
      %v3222 = vrot.slane %v3220, 5
      %v3223 = vor.u32 %v3219, %v3222
      %v3224 = vrot.slane %v3223, 4
      %v3226 = vshll.u32 %v3127, 16
      %v3228 = vrot.slane %v3226, 5
      %v3229 = vsel %vm1367, %v3224, %v3228
      %v3230 = vshrl.u32 %v3127, 16
      %v3232 = vrot.slane %v3230, 4
      %v3233 = vor.u32 %v3232, %v3228
      %v3234 = vrot.slane %v3233, 4
      %v3236 = vshll.u32 %v3128, 16
      %v3238 = vrot.slane %v3236, 5
      %v3239 = vsel %vm1367, %v3234, %v3238
      %v3241 = vshrl.u32 %v3129, 16
      %v3243 = vrot.slane %v3241, 4
      %v3244 = vshll.u32 %v3129, 16
      %v3246 = vrot.slane %v3244, 5
      %v3247 = vor.u32 %v3243, %v3246
      %v3248 = vrot.slane %v3247, 4
      %v3250 = vshll.u32 %v3130, 16
      %v3252 = vrot.slane %v3250, 5
      %v3253 = vsel %vm1367, %v3248, %v3252
      %v3254 = vshrl.u32 %v3130, 16
      %v3256 = vrot.slane %v3254, 4
      %v3257 = vor.u32 %v3256, %v3252
      %v3258 = vrot.slane %v3257, 4
      %v3260 = vshll.u32 %v3131, 16
      %v3262 = vrot.slane %v3260, 5
      %v3263 = vsel %vm1367, %v3258, %v3262
      %v3265 = vshrl.u32 %v3132, 16
      %v3267 = vrot.slane %v3265, 4
      %v3268 = vshll.u32 %v3132, 16
      %v3270 = vrot.slane %v3268, 5
      %v3271 = vor.u32 %v3267, %v3270
      %v3272 = vrot.slane %v3271, 4
      %v3274 = vshll.u32 %v3133, 16
      %v3276 = vrot.slane %v3274, 5
      %v3277 = vsel %vm1367, %v3272, %v3276
      %v3278 = vshrl.u32 %v3133, 16
      %v3280 = vrot.slane %v3278, 4
      %v3281 = vor.u32 %v3280, %v3276
      %v3282 = vrot.slane %v3281, 4
      %v3284 = vshll.u32 %v3134, 16
      %v3286 = vrot.slane %v3284, 5
      %v3287 = vsel %vm1367, %v3282, %v3286
      %v3289 = vshrl.u32 %v3135, 16
      %v3291 = vrot.slane %v3289, 4
      %v3292 = vshll.u32 %v3135, 16
      %v3294 = vrot.slane %v3292, 5
      %v3295 = vor.u32 %v3291, %v3294
      %v3296 = vrot.slane %v3295, 4
      %v3298 = vshll.u32 %v3136, 16
      %v3300 = vrot.slane %v3298, 5
      %v3301 = vsel %vm1367, %v3296, %v3300
      %v3302 = vshrl.u32 %v3136, 16
      %v3304 = vrot.slane %v3302, 4
      %v3305 = vor.u32 %v3304, %v3300
      %v3306 = vrot.slane %v3305, 4
      %v3308 = vshll.u32 %v3137, 16
      %v3310 = vrot.slane %v3308, 5
      %v3311 = vsel %vm1367, %v3306, %v3310
      %v3313 = vshrl.u32 %v3138, 16
      %v3315 = vrot.slane %v3313, 4
      %v3316 = vshll.u32 %v3138, 16
      %v3318 = vrot.slane %v3316, 5
      %v3319 = vor.u32 %v3315, %v3318
      %v3320 = vrot.slane %v3319, 4
      %v3322 = vshll.u32 %v3139, 16
      %v3324 = vrot.slane %v3322, 5
      %v3325 = vsel %vm1367, %v3320, %v3324
      %v3326 = vshrl.u32 %v3139, 16
      %v3328 = vrot.slane %v3326, 4
      %v3329 = vor.u32 %v3328, %v3324
      %v3330 = vrot.slane %v3329, 4
      %v3332 = vshll.u32 %v3140, 16
      %v3334 = vrot.slane %v3332, 5
      %v3335 = vsel %vm1367, %v3330, %v3334
      %v3337 = vshrl.u32 %v3141, 16
      %v3339 = vrot.slane %v3337, 4
      %v3340 = vshll.u32 %v3141, 16
      %v3342 = vrot.slane %v3340, 5
      %v3343 = vor.u32 %v3339, %v3342
      %v3344 = vrot.slane %v3343, 4
      %v3346 = vshll.u32 %v3142, 16
      %v3348 = vrot.slane %v3346, 5
      %v3349 = vsel %vm1367, %v3344, %v3348
      %v3350 = vshrl.u32 %v3142, 16
      %v3352 = vrot.slane %v3350, 4
      %v3353 = vor.u32 %v3352, %v3348
      %v3354 = vrot.slane %v3353, 4
      %v3356 = vshll.u32 %v3143, 16
      %v3358 = vrot.slane %v3356, 5
      %v3359 = vsel %vm1367, %v3354, %v3358
      %v3361 = vshrl.u32 %v3144, 16
      %v3363 = vrot.slane %v3361, 4
      %v3364 = vshll.u32 %v3144, 16
      %v3366 = vrot.slane %v3364, 5
      %v3367 = vor.u32 %v3363, %v3366
      %v3368 = vrot.slane %v3367, 4
      %v3370 = vshll.u32 %v3145, 16
      %v3372 = vrot.slane %v3370, 5
      %v3373 = vsel %vm1367, %v3368, %v3372
      %v3374 = vshrl.u32 %v3145, 16
      %v3376 = vrot.slane %v3374, 4
      %v3377 = vor.u32 %v3376, %v3372
      %v3378 = vrot.slane %v3377, 4
      %v3380 = vshll.u32 %v3146, 16
      %v3382 = vrot.slane %v3380, 5
      %v3383 = vsel %vm1367, %v3378, %v3382
      %v3385 = vshrl.u32 %v3147, 16
      %v3387 = vrot.slane %v3385, 4
      %v3388 = vshll.u32 %v3147, 16
      %v3390 = vrot.slane %v3388, 5
      %v3391 = vor.u32 %v3387, %v3390
      %v3392 = vrot.slane %v3391, 4
      %v3394 = vshll.u32 %v3148, 16
      %v3396 = vrot.slane %v3394, 5
      %v3397 = vsel %vm1367, %v3392, %v3396
      %v3398 = vshrl.u32 %v3148, 16
      %v3400 = vrot.slane %v3398, 4
      %v3401 = vor.u32 %v3400, %v3396
      %v3402 = vrot.slane %v3401, 4
      %v3404 = vshll.u32 %v3149, 16
      %v3406 = vrot.slane %v3404, 5
      %v3407 = vsel %vm1367, %v3402, %v3406
      %v3409 = vshrl.u32 %v3150, 16
      %v3411 = vrot.slane %v3409, 4
      %v3412 = vshll.u32 %v3150, 16
      %v3414 = vrot.slane %v3412, 5
      %v3415 = vor.u32 %v3411, %v3414
      %v3416 = vrot.slane %v3415, 4
      %v3418 = vshll.u32 %v3151, 16
      %v3420 = vrot.slane %v3418, 5
      %v3421 = vsel %vm1367, %v3416, %v3420
      %v3422 = vshrl.u32 %v3151, 16
      %v3424 = vrot.slane %v3422, 4
      %v3425 = vor.u32 %v3424, %v3420
      %v3426 = vrot.slane %v3425, 4
      %v3428 = vshll.u32 %v3152, 16
      %v3430 = vrot.slane %v3428, 5
      %v3431 = vsel %vm1367, %v3426, %v3430
      %v3433 = vshrl.u32 %v3153, 16
      %v3435 = vrot.slane %v3433, 4
      %v3436 = vshll.u32 %v3153, 16
      %v3438 = vrot.slane %v3436, 5
      %v3439 = vor.u32 %v3435, %v3438
      %v3440 = vrot.slane %v3439, 4
      %v3442 = vshll.u32 %v3154, 16
      %v3444 = vrot.slane %v3442, 5
      %v3445 = vsel %vm1367, %v3440, %v3444
      %v3446 = vshrl.u32 %v3154, 16
      %v3448 = vrot.slane %v3446, 4
      %v3449 = vor.u32 %v3448, %v3444
      %v3450 = vrot.slane %v3449, 4
      %v3452 = vshll.u32 %v3155, 16
      %v3454 = vrot.slane %v3452, 5
      %v3455 = vsel %vm1367, %v3450, %v3454
      %v3457 = vshrl.u32 %v3156, 16
      %v3459 = vrot.slane %v3457, 4
      %v3460 = vshll.u32 %v3156, 16
      %v3462 = vrot.slane %v3460, 5
      %v3463 = vor.u32 %v3459, %v3462
      %v3464 = vrot.slane %v3463, 4
      %v3466 = vshll.u32 %v3157, 16
      %v3468 = vrot.slane %v3466, 5
      %v3469 = vsel %vm1367, %v3464, %v3468
      %v3470 = vshrl.u32 %v3157, 16
      %v3472 = vrot.slane %v3470, 4
      %v3473 = vor.u32 %v3472, %v3468
      %v3474 = vrot.slane %v3473, 4
      %v3476 = vshll.u32 %v3158, 16
      %v3478 = vrot.slane %v3476, 5
      %v3479 = vsel %vm1367, %v3474, %v3478
      %v3481 = vshrl.u32 %v3159, 16
      %v3483 = vrot.slane %v3481, 4
      %v3484 = vshll.u32 %v3159, 16
      %v3486 = vrot.slane %v3484, 5
      %v3487 = vor.u32 %v3483, %v3486
      %v3488 = vrot.slane %v3487, 4
      %v3490 = vshll.u32 %v3160, 16
      %v3492 = vrot.slane %v3490, 5
      %v3493 = vsel %vm1367, %v3488, %v3492
      %v3494 = vshrl.u32 %v3160, 16
      %v3496 = vrot.slane %v3494, 4
      %v3497 = vor.u32 %v3496, %v3492
      %v3498 = vrot.slane %v3497, 4
      %v3500 = vshll.u32 %v3161, 16
      %v3502 = vrot.slane %v3500, 5
      %v3503 = vsel %vm1367, %v3498, %v3502
      %v3505 = vshrl.u32 %v3162, 16
      %v3507 = vrot.slane %v3505, 4
      %v3508 = vshll.u32 %v3162, 16
      %v3510 = vrot.slane %v3508, 5
      %v3511 = vor.u32 %v3507, %v3510
      %v3512 = vrot.slane %v3511, 4
      %v3514 = vshll.u32 %v3163, 16
      %v3516 = vrot.slane %v3514, 5
      %v3517 = vsel %vm1367, %v3512, %v3516
      %v3518 = vshrl.u32 %v3163, 16
      %v3520 = vrot.slane %v3518, 4
      %v3521 = vor.u32 %v3520, %v3516
      %v3522 = vrot.slane %v3521, 4
      %v3524 = vshll.u32 %v3164, 16
      %v3526 = vrot.slane %v3524, 5
      %v3527 = vsel %vm1367, %v3522, %v3526
      %v3529 = vshrl.u32 %v3165, 16
      %v3531 = vrot.slane %v3529, 4
      %v3532 = vshll.u32 %v3165, 16
      %v3534 = vrot.slane %v3532, 5
      %v3535 = vor.u32 %v3531, %v3534
      %v3536 = vrot.slane %v3535, 4
      %v3538 = vshll.u32 %v3166, 16
      %v3540 = vrot.slane %v3538, 5
      %v3541 = vsel %vm1367, %v3536, %v3540
      %v3542 = vshrl.u32 %v3166, 16
      %v3544 = vrot.slane %v3542, 4
      %v3545 = vor.u32 %v3544, %v3540
      %v3546 = vrot.slane %v3545, 4
      %v3548 = vshll.u32 %v3167, 16
      %v3550 = vrot.slane %v3548, 5
      %v3551 = vsel %vm1367, %v3546, %v3550
      %v3552 = vld [vmem:[%s387 + $0x10] sm:$0xf]
      %v3553 = vunpack.c.l.b16 %v3181
      %v3554 = vunpack.c.l.b16 %v3191
      %v3555 = vunpack.c.l.b16 %v3205
      %v3556 = vunpack.c.l.b16 %v3215
      %v3557 = vunpack.c.l.b16 %v3229
      %v3558 = vunpack.c.l.b16 %v3239
      %v3559 = vunpack.c.l.b16 %v3253
      %v3560 = vunpack.c.l.b16 %v3263
      %v3561 = vunpack.c.l.b16 %v3277
      %v3562 = vunpack.c.l.b16 %v3287
      %v3563 = vunpack.c.l.b16 %v3301
      %v3564 = vunpack.c.l.b16 %v3311
      %v3565 = vunpack.c.l.b16 %v3325
      %v3566 = vunpack.c.l.b16 %v3335
      %v3567 = vunpack.c.l.b16 %v3349
      %v3568 = vunpack.c.l.b16 %v3359
      %v3569 = vunpack.c.l.b16 %v3373
      %v3570 = vunpack.c.l.b16 %v3383
      %v3571 = vunpack.c.l.b16 %v3397
      %v3572 = vunpack.c.l.b16 %v3407
      %v3573 = vunpack.c.l.b16 %v3421
      %v3574 = vunpack.c.l.b16 %v3431
      %v3575 = vunpack.c.l.b16 %v3445
      %v3576 = vunpack.c.l.b16 %v3455
      %v3577 = vunpack.c.l.b16 %v3469
      %v3578 = vunpack.c.l.b16 %v3479
      %v3579 = vunpack.c.l.b16 %v3493
      %v3580 = vunpack.c.l.b16 %v3503
      %v3581 = vunpack.c.l.b16 %v3517
      %v3582 = vunpack.c.l.b16 %v3527
      %v3583 = vunpack.c.l.b16 %v3541
      %v3584 = vunpack.c.l.b16 %v3551
      %v3585 = vpack.c.b16 %v3554, %v3553
      %v3586 = vpack.c.b16 %v3556, %v3555
      %v3587 = vpack.c.b16 %v3558, %v3557
      %v3588 = vpack.c.b16 %v3560, %v3559
      %v3589 = vpack.c.b16 %v3562, %v3561
      %v3590 = vpack.c.b16 %v3564, %v3563
      %v3591 = vpack.c.b16 %v3566, %v3565
      %v3592 = vpack.c.b16 %v3568, %v3567
      %v3593 = vpack.c.b16 %v3570, %v3569
      %v3594 = vpack.c.b16 %v3572, %v3571
      %v3595 = vpack.c.b16 %v3574, %v3573
      %v3596 = vpack.c.b16 %v3576, %v3575
      %v3597 = vpack.c.b16 %v3578, %v3577
      %v3598 = vpack.c.b16 %v3580, %v3579
      %v3599 = vpack.c.b16 %v3582, %v3581
      %v3600 = vpack.c.b16 %v3584, %v3583
      %v3602 = vsel %vm1801, %v3585, 0
      %v3605 = vsel %vm1801, %v3586, 0
      %v3608 = vsel %vm1801, %v3587, 0
      %v3611 = vsel %vm1801, %v3588, 0
      %v3614 = vsel %vm1801, %v3589, 0
      %v3617 = vsel %vm1801, %v3590, 0
      %v3620 = vsel %vm1801, %v3591, 0
      %v3623 = vsel %vm1801, %v3592, 0
      %v3626 = vsel %vm1801, %v3593, 0
      %v3629 = vsel %vm1801, %v3594, 0
      %v3632 = vsel %vm1801, %v3595, 0
      %v3635 = vsel %vm1801, %v3596, 0
      %v3638 = vsel %vm1801, %v3597, 0
      %v3641 = vsel %vm1801, %v3598, 0
      %v3644 = vsel %vm1801, %v3599, 0
      %v3647 = vsel %vm1801, %v3600, 0
      %v3650 = vsel %vm1850, %v3552, 0
      %3652 = vmatprep.subr.bf16.mxu0 0
      %3653 = vmatpush1.bf16.msra.mxu0 %v3650
      %3654 = vmatprep.subr.bf16.mxu0 0
      %3655 = vmatpush1.bf16.msra.mxu0 0
      %3656 = vmatprep.subr.bf16.mxu0 0
      %3657 = vmatpush1.bf16.msra.mxu0 0
      %3658 = vmatprep.subr.bf16.mxu0 0
      %3659 = vmatpush1.bf16.msra.mxu0 0
      %3660 = vmatprep.subr.bf16.mxu0 0
      %3661 = vmatpush1.bf16.msra.mxu0 0
      %3662 = vmatprep.subr.bf16.mxu0 0
      %3663 = vmatpush1.bf16.msra.mxu0 0
      %3664 = vmatprep.subr.bf16.mxu0 0
      %3665 = vmatpush1.bf16.msra.mxu0 0
      %3666 = vmatprep.subr.bf16.mxu0 0
      %3667 = vmatpush1.bf16.msra.mxu0 0
      %3668 = vmatprep.subr.bf16.mxu0 0
      %3669 = vmatpush1.bf16.msra.mxu0 0
      %3670 = vmatprep.subr.bf16.mxu0 0
      %3671 = vmatpush1.bf16.msra.mxu0 0
      %3672 = vmatprep.subr.bf16.mxu0 0
      %3673 = vmatpush1.bf16.msra.mxu0 0
      %3674 = vmatprep.subr.bf16.mxu0 0
      %3675 = vmatpush1.bf16.msra.mxu0 0
      %3676 = vmatprep.subr.bf16.mxu0 0
      %3677 = vmatpush1.bf16.msra.mxu0 0
      %3678 = vmatprep.subr.bf16.mxu0 0
      %3679 = vmatpush1.bf16.msra.mxu0 0
      %3680 = vmatprep.subr.bf16.mxu0 0
      %3681 = vmatpush1.bf16.msra.mxu0 0
      %3682 = vmatprep.subr.bf16.mxu0 0
      %3683 = vmatpush1.bf16.msra.mxu0 0
      %3684 = vmatprep.mubr.bf16.mxu0 0
      %3685 = vmatmul.mubr.bf16.gmra.mrb[0].mxu0 %v3602
      %v3686 = vpop.f32.mrb[0].mxu0
      %v3687 = vadd.f32 0.0, %v3686
      %v3688 = vpop.f32.mrb[0].mxu0
      %v3689 = vpop.f32.mrb[0].mxu0
      %v3690 = vadd.f32 0.0, %v3689
      %v3691 = vpop.f32.mrb[0].mxu0
      %3692 = vmatprep.mubr.bf16.mxu0 0
      %3693 = vmatmul.mubr.bf16.gmra.mrb[0].mxu0 %v3605
      %v3694 = vpop.f32.mrb[0].mxu0
      %v3695 = vadd.f32 0.0, %v3694
      %v3696 = vpop.f32.mrb[0].mxu0
      %v3697 = vpop.f32.mrb[0].mxu0
      %v3698 = vadd.f32 0.0, %v3697
      %v3699 = vpop.f32.mrb[0].mxu0
      %3700 = vmatprep.mubr.bf16.mxu0 0
      %3701 = vmatmul.mubr.bf16.gmra.mrb[0].mxu0 %v3608
      %v3702 = vpop.f32.mrb[0].mxu0
      %v3703 = vadd.f32 0.0, %v3702
      %v3704 = vpop.f32.mrb[0].mxu0
      %v3705 = vpop.f32.mrb[0].mxu0
      %v3706 = vadd.f32 0.0, %v3705
      %v3707 = vpop.f32.mrb[0].mxu0
      %3708 = vmatprep.mubr.bf16.mxu0 0
      %3709 = vmatmul.mubr.bf16.gmra.mrb[0].mxu0 %v3611
      %v3710 = vpop.f32.mrb[0].mxu0
      %v3711 = vadd.f32 0.0, %v3710
      %v3712 = vpop.f32.mrb[0].mxu0
      %v3713 = vpop.f32.mrb[0].mxu0
      %v3714 = vadd.f32 0.0, %v3713
      %v3715 = vpop.f32.mrb[0].mxu0
      %3716 = vmatprep.mubr.bf16.mxu0 0
      %3717 = vmatmul.mubr.bf16.gmra.mrb[0].mxu0 %v3614
      %v3718 = vpop.f32.mrb[0].mxu0
      %v3719 = vadd.f32 0.0, %v3718
      %v3720 = vpop.f32.mrb[0].mxu0
      %v3721 = vpop.f32.mrb[0].mxu0
      %v3722 = vadd.f32 0.0, %v3721
      %v3723 = vpop.f32.mrb[0].mxu0
      %3724 = vmatprep.mubr.bf16.mxu0 0
      %3725 = vmatmul.mubr.bf16.gmra.mrb[0].mxu0 %v3617
      %v3726 = vpop.f32.mrb[0].mxu0
      %v3727 = vadd.f32 0.0, %v3726
      %v3728 = vpop.f32.mrb[0].mxu0
      %v3729 = vpop.f32.mrb[0].mxu0
      %v3730 = vadd.f32 0.0, %v3729
      %v3731 = vpop.f32.mrb[0].mxu0
      %3732 = vmatprep.mubr.bf16.mxu0 0
      %3733 = vmatmul.mubr.bf16.gmra.mrb[0].mxu0 %v3620
      %v3734 = vpop.f32.mrb[0].mxu0
      %v3735 = vadd.f32 0.0, %v3734
      %v3736 = vpop.f32.mrb[0].mxu0
      %v3737 = vpop.f32.mrb[0].mxu0
      %v3738 = vadd.f32 0.0, %v3737
      %v3739 = vpop.f32.mrb[0].mxu0
      %3740 = vmatprep.mubr.bf16.mxu0 0
      %3741 = vmatmul.mubr.bf16.gmra.mrb[0].mxu0 %v3623
      %v3742 = vpop.f32.mrb[0].mxu0
      %v3743 = vadd.f32 0.0, %v3742
      %v3744 = vpop.f32.mrb[0].mxu0
      %v3745 = vpop.f32.mrb[0].mxu0
      %v3746 = vadd.f32 0.0, %v3745
      %v3747 = vpop.f32.mrb[0].mxu0
      %3748 = vmatprep.mubr.bf16.mxu0 0
      %3749 = vmatmul.mubr.bf16.gmra.mrb[0].mxu0 %v3626
      %v3750 = vpop.f32.mrb[0].mxu0
      %v3751 = vadd.f32 0.0, %v3750
      %v3752 = vpop.f32.mrb[0].mxu0
      %v3753 = vpop.f32.mrb[0].mxu0
      %v3754 = vadd.f32 0.0, %v3753
      %v3755 = vpop.f32.mrb[0].mxu0
      %3756 = vmatprep.mubr.bf16.mxu0 0
      %3757 = vmatmul.mubr.bf16.gmra.mrb[0].mxu0 %v3629
      %v3758 = vpop.f32.mrb[0].mxu0
      %v3759 = vadd.f32 0.0, %v3758
      %v3760 = vpop.f32.mrb[0].mxu0
      %v3761 = vpop.f32.mrb[0].mxu0
      %v3762 = vadd.f32 0.0, %v3761
      %v3763 = vpop.f32.mrb[0].mxu0
      %3764 = vmatprep.mubr.bf16.mxu0 0
      %3765 = vmatmul.mubr.bf16.gmra.mrb[0].mxu0 %v3632
      %v3766 = vpop.f32.mrb[0].mxu0
      %v3767 = vadd.f32 0.0, %v3766
      %v3768 = vpop.f32.mrb[0].mxu0
      %v3769 = vpop.f32.mrb[0].mxu0
      %v3770 = vadd.f32 0.0, %v3769
      %v3771 = vpop.f32.mrb[0].mxu0
      %3772 = vmatprep.mubr.bf16.mxu0 0
      %3773 = vmatmul.mubr.bf16.gmra.mrb[0].mxu0 %v3635
      %v3774 = vpop.f32.mrb[0].mxu0
      %v3775 = vadd.f32 0.0, %v3774
      %v3776 = vpop.f32.mrb[0].mxu0
      %v3777 = vpop.f32.mrb[0].mxu0
      %v3778 = vadd.f32 0.0, %v3777
      %v3779 = vpop.f32.mrb[0].mxu0
      %3780 = vmatprep.mubr.bf16.mxu0 0
      %3781 = vmatmul.mubr.bf16.gmra.mrb[0].mxu0 %v3638
      %v3782 = vpop.f32.mrb[0].mxu0
      %v3783 = vadd.f32 0.0, %v3782
      %v3784 = vpop.f32.mrb[0].mxu0
      %v3785 = vpop.f32.mrb[0].mxu0
      %v3786 = vadd.f32 0.0, %v3785
      %v3787 = vpop.f32.mrb[0].mxu0
      %3788 = vmatprep.mubr.bf16.mxu0 0
      %3789 = vmatmul.mubr.bf16.gmra.mrb[0].mxu0 %v3641
      %v3790 = vpop.f32.mrb[0].mxu0
      %v3791 = vadd.f32 0.0, %v3790
      %v3792 = vpop.f32.mrb[0].mxu0
      %v3793 = vpop.f32.mrb[0].mxu0
      %v3794 = vadd.f32 0.0, %v3793
      %v3795 = vpop.f32.mrb[0].mxu0
      %3796 = vmatprep.mubr.bf16.mxu0 0
      %3797 = vmatmul.mubr.bf16.gmra.mrb[0].mxu0 %v3644
      %v3798 = vpop.f32.mrb[0].mxu0
      %v3799 = vadd.f32 0.0, %v3798
      %v3800 = vpop.f32.mrb[0].mxu0
      %v3801 = vpop.f32.mrb[0].mxu0
      %v3802 = vadd.f32 0.0, %v3801
      %v3803 = vpop.f32.mrb[0].mxu0
      %3804 = vmatprep.mubr.bf16.mxu0 0
      %3805 = vmatmul.mubr.bf16.gmra.mrb[0].mxu0 %v3647
      %v3806 = vpop.f32.mrb[0].mxu0
      %v3807 = vadd.f32 0.0, %v3806
      %v3808 = vpop.f32.mrb[0].mxu0
      %v3809 = vpop.f32.mrb[0].mxu0
      %v3810 = vadd.f32 0.0, %v3809
      %v3811 = vpop.f32.mrb[0].mxu0
      %3812 = vdwg.mxu0
      %v3813 = vadd.f32 %v3088, %v3687
      %v3814 = vadd.f32 %v3089, %v3690
      %v3815 = vadd.f32 %v3090, %v3695
      %v3816 = vadd.f32 %v3091, %v3698
      %v3817 = vadd.f32 %v3092, %v3703
      %v3818 = vadd.f32 %v3093, %v3706
      %v3819 = vadd.f32 %v3094, %v3711
      %v3820 = vadd.f32 %v3095, %v3714
      %v3821 = vadd.f32 %v3096, %v3719
      %v3822 = vadd.f32 %v3097, %v3722
      %v3823 = vadd.f32 %v3098, %v3727
      %v3824 = vadd.f32 %v3099, %v3730
      %v3825 = vadd.f32 %v3100, %v3735
      %v3826 = vadd.f32 %v3101, %v3738
      %v3827 = vadd.f32 %v3102, %v3743
      %v3828 = vadd.f32 %v3103, %v3746
      %v3829 = vadd.f32 %v3104, %v3751
      %v3830 = vadd.f32 %v3105, %v3754
      %v3831 = vadd.f32 %v3106, %v3759
      %v3832 = vadd.f32 %v3107, %v3762
      %v3833 = vadd.f32 %v3108, %v3767
      %v3834 = vadd.f32 %v3109, %v3770
      %v3835 = vadd.f32 %v3110, %v3775
      %v3836 = vadd.f32 %v3111, %v3778
      %v3837 = vadd.f32 %v3112, %v3783
      %v3838 = vadd.f32 %v3113, %v3786
      %v3839 = vadd.f32 %v3114, %v3791
      %v3840 = vadd.f32 %v3115, %v3794
      %v3841 = vadd.f32 %v3116, %v3799
      %v3842 = vadd.f32 %v3117, %v3802
      %v3843 = vadd.f32 %v3118, %v3807
      %v3844 = vadd.f32 %v3119, %v3810
      %v3845 = vld [vmem:[%s1149] sm:$0xe]
      %v3846 = vld [vmem:[%s1149 + $0xc] sm:$0xe]
      %v3847 = vld [vmem:[%s1149 + $0x18] sm:$0xe]
      %v3848 = vld [vmem:[%s1149 + $0x24] sm:$0xe]
      %v3849 = vld [vmem:[%s1149 + $0x30] sm:$0xe]
      %v3850 = vld [vmem:[%s1149 + $0x3c] sm:$0xe]
      %v3851 = vld [vmem:[%s1149 + $0x48] sm:$0xe]
      %v3852 = vld [vmem:[%s1149 + $0x54] sm:$0xe]
      %v3853 = vld [vmem:[%s1149 + $0x60] sm:$0xe]
      %v3854 = vld [vmem:[%s1149 + $0x6c] sm:$0xe]
      %v3855 = vld [vmem:[%s1149 + $0x78] sm:$0xe]
      %v3856 = vld [vmem:[%s1149 + $0x84] sm:$0xe]
      %v3857 = vld [vmem:[%s1149 + $0x90] sm:$0xe]
      %v3858 = vld [vmem:[%s1149 + $0x9c] sm:$0xe]
      %v3859 = vld [vmem:[%s1149 + $0xa8] sm:$0xe]
      %v3860 = vld [vmem:[%s1149 + $0xb4] sm:$0xe]
      %v3909 = vrot.slane %v3845, 5
      %v3910 = vrot.slane %v3909, 4
      %v3911 = vrot.slane %v3121, 5
      %v3912 = vsel %vm2357, %v3910, %v3911
      %v3913 = vrot.slane %v3911, 4
      %v3914 = vrot.slane %v3122, 5
      %v3915 = vsel %vm2357, %v3913, %v3914
      %v3916 = vrot.slane %v3846, 5
      %v3917 = vrot.slane %v3916, 4
      %v3918 = vrot.slane %v3124, 5
      %v3919 = vsel %vm2357, %v3917, %v3918
      %v3920 = vrot.slane %v3918, 4
      %v3921 = vrot.slane %v3125, 5
      %v3922 = vsel %vm2357, %v3920, %v3921
      %v3923 = vrot.slane %v3847, 5
      %v3924 = vrot.slane %v3923, 4
      %v3925 = vrot.slane %v3127, 5
      %v3926 = vsel %vm2357, %v3924, %v3925
      %v3927 = vrot.slane %v3925, 4
      %v3928 = vrot.slane %v3128, 5
      %v3929 = vsel %vm2357, %v3927, %v3928
      %v3930 = vrot.slane %v3848, 5
      %v3931 = vrot.slane %v3930, 4
      %v3932 = vrot.slane %v3130, 5
      %v3933 = vsel %vm2357, %v3931, %v3932
      %v3934 = vrot.slane %v3932, 4
      %v3935 = vrot.slane %v3131, 5
      %v3936 = vsel %vm2357, %v3934, %v3935
      %v3937 = vrot.slane %v3849, 5
      %v3938 = vrot.slane %v3937, 4
      %v3939 = vrot.slane %v3133, 5
      %v3940 = vsel %vm2357, %v3938, %v3939
      %v3941 = vrot.slane %v3939, 4
      %v3942 = vrot.slane %v3134, 5
      %v3943 = vsel %vm2357, %v3941, %v3942
      %v3944 = vrot.slane %v3850, 5
      %v3945 = vrot.slane %v3944, 4
      %v3946 = vrot.slane %v3136, 5
      %v3947 = vsel %vm2357, %v3945, %v3946
      %v3948 = vrot.slane %v3946, 4
      %v3949 = vrot.slane %v3137, 5
      %v3950 = vsel %vm2357, %v3948, %v3949
      %v3951 = vrot.slane %v3851, 5
      %v3952 = vrot.slane %v3951, 4
      %v3953 = vrot.slane %v3139, 5
      %v3954 = vsel %vm2357, %v3952, %v3953
      %v3955 = vrot.slane %v3953, 4
      %v3956 = vrot.slane %v3140, 5
      %v3957 = vsel %vm2357, %v3955, %v3956
      %v3958 = vrot.slane %v3852, 5
      %v3959 = vrot.slane %v3958, 4
      %v3960 = vrot.slane %v3142, 5
      %v3961 = vsel %vm2357, %v3959, %v3960
      %v3962 = vrot.slane %v3960, 4
      %v3963 = vrot.slane %v3143, 5
      %v3964 = vsel %vm2357, %v3962, %v3963
      %v3965 = vrot.slane %v3853, 5
      %v3966 = vrot.slane %v3965, 4
      %v3967 = vrot.slane %v3145, 5
      %v3968 = vsel %vm2357, %v3966, %v3967
      %v3969 = vrot.slane %v3967, 4
      %v3970 = vrot.slane %v3146, 5
      %v3971 = vsel %vm2357, %v3969, %v3970
      %v3972 = vrot.slane %v3854, 5
      %v3973 = vrot.slane %v3972, 4
      %v3974 = vrot.slane %v3148, 5
      %v3975 = vsel %vm2357, %v3973, %v3974
      %v3976 = vrot.slane %v3974, 4
      %v3977 = vrot.slane %v3149, 5
      %v3978 = vsel %vm2357, %v3976, %v3977
      %v3979 = vrot.slane %v3855, 5
      %v3980 = vrot.slane %v3979, 4
      %v3981 = vrot.slane %v3151, 5
      %v3982 = vsel %vm2357, %v3980, %v3981
      %v3983 = vrot.slane %v3981, 4
      %v3984 = vrot.slane %v3152, 5
      %v3985 = vsel %vm2357, %v3983, %v3984
      %v3986 = vrot.slane %v3856, 5
      %v3987 = vrot.slane %v3986, 4
      %v3988 = vrot.slane %v3154, 5
      %v3989 = vsel %vm2357, %v3987, %v3988
      %v3990 = vrot.slane %v3988, 4
      %v3991 = vrot.slane %v3155, 5
      %v3992 = vsel %vm2357, %v3990, %v3991
      %v3993 = vrot.slane %v3857, 5
      %v3994 = vrot.slane %v3993, 4
      %v3995 = vrot.slane %v3157, 5
      %v3996 = vsel %vm2357, %v3994, %v3995
      %v3997 = vrot.slane %v3995, 4
      %v3998 = vrot.slane %v3158, 5
      %v3999 = vsel %vm2357, %v3997, %v3998
      %v4000 = vrot.slane %v3858, 5
      %v4001 = vrot.slane %v4000, 4
      %v4002 = vrot.slane %v3160, 5
      %v4003 = vsel %vm2357, %v4001, %v4002
      %v4004 = vrot.slane %v4002, 4
      %v4005 = vrot.slane %v3161, 5
      %v4006 = vsel %vm2357, %v4004, %v4005
      %v4007 = vrot.slane %v3859, 5
      %v4008 = vrot.slane %v4007, 4
      %v4009 = vrot.slane %v3163, 5
      %v4010 = vsel %vm2357, %v4008, %v4009
      %v4011 = vrot.slane %v4009, 4
      %v4012 = vrot.slane %v3164, 5
      %v4013 = vsel %vm2357, %v4011, %v4012
      %v4014 = vrot.slane %v3860, 5
      %v4015 = vrot.slane %v4014, 4
      %v4016 = vrot.slane %v3166, 5
      %v4017 = vsel %vm2357, %v4015, %v4016
      %v4018 = vrot.slane %v4016, 4
      %v4019 = vrot.slane %v3167, 5
      %v4020 = vsel %vm2357, %v4018, %v4019
      %v4021 = vld [vmem:[%s387 + $0x14] sm:$0xf]
      %v4022 = vunpack.c.l.b16 %v3912
      %v4023 = vunpack.c.l.b16 %v3915
      %v4024 = vunpack.c.l.b16 %v3919
      %v4025 = vunpack.c.l.b16 %v3922
      %v4026 = vunpack.c.l.b16 %v3926
      %v4027 = vunpack.c.l.b16 %v3929
      %v4028 = vunpack.c.l.b16 %v3933
      %v4029 = vunpack.c.l.b16 %v3936
      %v4030 = vunpack.c.l.b16 %v3940
      %v4031 = vunpack.c.l.b16 %v3943
      %v4032 = vunpack.c.l.b16 %v3947
      %v4033 = vunpack.c.l.b16 %v3950
      %v4034 = vunpack.c.l.b16 %v3954
      %v4035 = vunpack.c.l.b16 %v3957
      %v4036 = vunpack.c.l.b16 %v3961
      %v4037 = vunpack.c.l.b16 %v3964
      %v4038 = vunpack.c.l.b16 %v3968
      %v4039 = vunpack.c.l.b16 %v3971
      %v4040 = vunpack.c.l.b16 %v3975
      %v4041 = vunpack.c.l.b16 %v3978
      %v4042 = vunpack.c.l.b16 %v3982
      %v4043 = vunpack.c.l.b16 %v3985
      %v4044 = vunpack.c.l.b16 %v3989
      %v4045 = vunpack.c.l.b16 %v3992
      %v4046 = vunpack.c.l.b16 %v3996
      %v4047 = vunpack.c.l.b16 %v3999
      %v4048 = vunpack.c.l.b16 %v4003
      %v4049 = vunpack.c.l.b16 %v4006
      %v4050 = vunpack.c.l.b16 %v4010
      %v4051 = vunpack.c.l.b16 %v4013
      %v4052 = vunpack.c.l.b16 %v4017
      %v4053 = vunpack.c.l.b16 %v4020
      %v4054 = vpack.c.b16 %v4023, %v4022
      %v4055 = vpack.c.b16 %v4025, %v4024
      %v4056 = vpack.c.b16 %v4027, %v4026
      %v4057 = vpack.c.b16 %v4029, %v4028
      %v4058 = vpack.c.b16 %v4031, %v4030
      %v4059 = vpack.c.b16 %v4033, %v4032
      %v4060 = vpack.c.b16 %v4035, %v4034
      %v4061 = vpack.c.b16 %v4037, %v4036
      %v4062 = vpack.c.b16 %v4039, %v4038
      %v4063 = vpack.c.b16 %v4041, %v4040
      %v4064 = vpack.c.b16 %v4043, %v4042
      %v4065 = vpack.c.b16 %v4045, %v4044
      %v4066 = vpack.c.b16 %v4047, %v4046
      %v4067 = vpack.c.b16 %v4049, %v4048
      %v4068 = vpack.c.b16 %v4051, %v4050
      %v4069 = vpack.c.b16 %v4053, %v4052
      %v4071 = vsel %vm1801, %v4054, 0
      %v4074 = vsel %vm1801, %v4055, 0
      %v4077 = vsel %vm1801, %v4056, 0
      %v4080 = vsel %vm1801, %v4057, 0
      %v4083 = vsel %vm1801, %v4058, 0
      %v4086 = vsel %vm1801, %v4059, 0
      %v4089 = vsel %vm1801, %v4060, 0
      %v4092 = vsel %vm1801, %v4061, 0
      %v4095 = vsel %vm1801, %v4062, 0
      %v4098 = vsel %vm1801, %v4063, 0
      %v4101 = vsel %vm1801, %v4064, 0
      %v4104 = vsel %vm1801, %v4065, 0
      %v4107 = vsel %vm1801, %v4066, 0
      %v4110 = vsel %vm1801, %v4067, 0
      %v4113 = vsel %vm1801, %v4068, 0
      %v4116 = vsel %vm1801, %v4069, 0
      %v4119 = vsel %vm1850, %v4021, 0
      %4121 = vmatprep.subr.bf16.mxu0 0
      %4122 = vmatpush1.bf16.msra.mxu0 %v4119
      %4123 = vmatprep.subr.bf16.mxu0 0
      %4124 = vmatpush1.bf16.msra.mxu0 0
      %4125 = vmatprep.subr.bf16.mxu0 0
      %4126 = vmatpush1.bf16.msra.mxu0 0
      %4127 = vmatprep.subr.bf16.mxu0 0
      %4128 = vmatpush1.bf16.msra.mxu0 0
      %4129 = vmatprep.subr.bf16.mxu0 0
      %4130 = vmatpush1.bf16.msra.mxu0 0
      %4131 = vmatprep.subr.bf16.mxu0 0
      %4132 = vmatpush1.bf16.msra.mxu0 0
      %4133 = vmatprep.subr.bf16.mxu0 0
      %4134 = vmatpush1.bf16.msra.mxu0 0
      %4135 = vmatprep.subr.bf16.mxu0 0
      %4136 = vmatpush1.bf16.msra.mxu0 0
      %4137 = vmatprep.subr.bf16.mxu0 0
      %4138 = vmatpush1.bf16.msra.mxu0 0
      %4139 = vmatprep.subr.bf16.mxu0 0
      %4140 = vmatpush1.bf16.msra.mxu0 0
      %4141 = vmatprep.subr.bf16.mxu0 0
      %4142 = vmatpush1.bf16.msra.mxu0 0
      %4143 = vmatprep.subr.bf16.mxu0 0
      %4144 = vmatpush1.bf16.msra.mxu0 0
      %4145 = vmatprep.subr.bf16.mxu0 0
      %4146 = vmatpush1.bf16.msra.mxu0 0
      %4147 = vmatprep.subr.bf16.mxu0 0
      %4148 = vmatpush1.bf16.msra.mxu0 0
      %4149 = vmatprep.subr.bf16.mxu0 0
      %4150 = vmatpush1.bf16.msra.mxu0 0
      %4151 = vmatprep.subr.bf16.mxu0 0
      %4152 = vmatpush1.bf16.msra.mxu0 0
      %4153 = vmatprep.mubr.bf16.mxu0 0
      %4154 = vmatmul.mubr.bf16.gmra.mrb[0].mxu0 %v4071
      %v4155 = vpop.f32.mrb[0].mxu0
      %v4156 = vadd.f32 0.0, %v4155
      %v4157 = vpop.f32.mrb[0].mxu0
      %v4158 = vpop.f32.mrb[0].mxu0
      %v4159 = vadd.f32 0.0, %v4158
      %v4160 = vpop.f32.mrb[0].mxu0
      %4161 = vmatprep.mubr.bf16.mxu0 0
      %4162 = vmatmul.mubr.bf16.gmra.mrb[0].mxu0 %v4074
      %v4163 = vpop.f32.mrb[0].mxu0
      %v4164 = vadd.f32 0.0, %v4163
      %v4165 = vpop.f32.mrb[0].mxu0
      %v4166 = vpop.f32.mrb[0].mxu0
      %v4167 = vadd.f32 0.0, %v4166
      %v4168 = vpop.f32.mrb[0].mxu0
      %4169 = vmatprep.mubr.bf16.mxu0 0
      %4170 = vmatmul.mubr.bf16.gmra.mrb[0].mxu0 %v4077
      %v4171 = vpop.f32.mrb[0].mxu0
      %v4172 = vadd.f32 0.0, %v4171
      %v4173 = vpop.f32.mrb[0].mxu0
      %v4174 = vpop.f32.mrb[0].mxu0
      %v4175 = vadd.f32 0.0, %v4174
      %v4176 = vpop.f32.mrb[0].mxu0
      %4177 = vmatprep.mubr.bf16.mxu0 0
      %4178 = vmatmul.mubr.bf16.gmra.mrb[0].mxu0 %v4080
      %v4179 = vpop.f32.mrb[0].mxu0
      %v4180 = vadd.f32 0.0, %v4179
      %v4181 = vpop.f32.mrb[0].mxu0
      %v4182 = vpop.f32.mrb[0].mxu0
      %v4183 = vadd.f32 0.0, %v4182
      %v4184 = vpop.f32.mrb[0].mxu0
      %4185 = vmatprep.mubr.bf16.mxu0 0
      %4186 = vmatmul.mubr.bf16.gmra.mrb[0].mxu0 %v4083
      %v4187 = vpop.f32.mrb[0].mxu0
      %v4188 = vadd.f32 0.0, %v4187
      %v4189 = vpop.f32.mrb[0].mxu0
      %v4190 = vpop.f32.mrb[0].mxu0
      %v4191 = vadd.f32 0.0, %v4190
      %v4192 = vpop.f32.mrb[0].mxu0
      %4193 = vmatprep.mubr.bf16.mxu0 0
      %4194 = vmatmul.mubr.bf16.gmra.mrb[0].mxu0 %v4086
      %v4195 = vpop.f32.mrb[0].mxu0
      %v4196 = vadd.f32 0.0, %v4195
      %v4197 = vpop.f32.mrb[0].mxu0
      %v4198 = vpop.f32.mrb[0].mxu0
      %v4199 = vadd.f32 0.0, %v4198
      %v4200 = vpop.f32.mrb[0].mxu0
      %4201 = vmatprep.mubr.bf16.mxu0 0
      %4202 = vmatmul.mubr.bf16.gmra.mrb[0].mxu0 %v4089
      %v4203 = vpop.f32.mrb[0].mxu0
      %v4204 = vadd.f32 0.0, %v4203
      %v4205 = vpop.f32.mrb[0].mxu0
      %v4206 = vpop.f32.mrb[0].mxu0
      %v4207 = vadd.f32 0.0, %v4206
      %v4208 = vpop.f32.mrb[0].mxu0
      %4209 = vmatprep.mubr.bf16.mxu0 0
      %4210 = vmatmul.mubr.bf16.gmra.mrb[0].mxu0 %v4092
      %v4211 = vpop.f32.mrb[0].mxu0
      %v4212 = vadd.f32 0.0, %v4211
      %v4213 = vpop.f32.mrb[0].mxu0
      %v4214 = vpop.f32.mrb[0].mxu0
      %v4215 = vadd.f32 0.0, %v4214
      %v4216 = vpop.f32.mrb[0].mxu0
      %4217 = vmatprep.mubr.bf16.mxu0 0
      %4218 = vmatmul.mubr.bf16.gmra.mrb[0].mxu0 %v4095
      %v4219 = vpop.f32.mrb[0].mxu0
      %v4220 = vadd.f32 0.0, %v4219
      %v4221 = vpop.f32.mrb[0].mxu0
      %v4222 = vpop.f32.mrb[0].mxu0
      %v4223 = vadd.f32 0.0, %v4222
      %v4224 = vpop.f32.mrb[0].mxu0
      %4225 = vmatprep.mubr.bf16.mxu0 0
      %4226 = vmatmul.mubr.bf16.gmra.mrb[0].mxu0 %v4098
      %v4227 = vpop.f32.mrb[0].mxu0
      %v4228 = vadd.f32 0.0, %v4227
      %v4229 = vpop.f32.mrb[0].mxu0
      %v4230 = vpop.f32.mrb[0].mxu0
      %v4231 = vadd.f32 0.0, %v4230
      %v4232 = vpop.f32.mrb[0].mxu0
      %4233 = vmatprep.mubr.bf16.mxu0 0
      %4234 = vmatmul.mubr.bf16.gmra.mrb[0].mxu0 %v4101
      %v4235 = vpop.f32.mrb[0].mxu0
      %v4236 = vadd.f32 0.0, %v4235
      %v4237 = vpop.f32.mrb[0].mxu0
      %v4238 = vpop.f32.mrb[0].mxu0
      %v4239 = vadd.f32 0.0, %v4238
      %v4240 = vpop.f32.mrb[0].mxu0
      %4241 = vmatprep.mubr.bf16.mxu0 0
      %4242 = vmatmul.mubr.bf16.gmra.mrb[0].mxu0 %v4104
      %v4243 = vpop.f32.mrb[0].mxu0
      %v4244 = vadd.f32 0.0, %v4243
      %v4245 = vpop.f32.mrb[0].mxu0
      %v4246 = vpop.f32.mrb[0].mxu0
      %v4247 = vadd.f32 0.0, %v4246
      %v4248 = vpop.f32.mrb[0].mxu0
      %4249 = vmatprep.mubr.bf16.mxu0 0
      %4250 = vmatmul.mubr.bf16.gmra.mrb[0].mxu0 %v4107
      %v4251 = vpop.f32.mrb[0].mxu0
      %v4252 = vadd.f32 0.0, %v4251
      %v4253 = vpop.f32.mrb[0].mxu0
      %v4254 = vpop.f32.mrb[0].mxu0
      %v4255 = vadd.f32 0.0, %v4254
      %v4256 = vpop.f32.mrb[0].mxu0
      %4257 = vmatprep.mubr.bf16.mxu0 0
      %4258 = vmatmul.mubr.bf16.gmra.mrb[0].mxu0 %v4110
      %v4259 = vpop.f32.mrb[0].mxu0
      %v4260 = vadd.f32 0.0, %v4259
      %v4261 = vpop.f32.mrb[0].mxu0
      %v4262 = vpop.f32.mrb[0].mxu0
      %v4263 = vadd.f32 0.0, %v4262
      %v4264 = vpop.f32.mrb[0].mxu0
      %4265 = vmatprep.mubr.bf16.mxu0 0
      %4266 = vmatmul.mubr.bf16.gmra.mrb[0].mxu0 %v4113
      %v4267 = vpop.f32.mrb[0].mxu0
      %v4268 = vadd.f32 0.0, %v4267
      %v4269 = vpop.f32.mrb[0].mxu0
      %v4270 = vpop.f32.mrb[0].mxu0
      %v4271 = vadd.f32 0.0, %v4270
      %v4272 = vpop.f32.mrb[0].mxu0
      %4273 = vmatprep.mubr.bf16.mxu0 0
      %4274 = vmatmul.mubr.bf16.gmra.mrb[0].mxu0 %v4116
      %v4275 = vpop.f32.mrb[0].mxu0
      %v4276 = vadd.f32 0.0, %v4275
      %v4277 = vpop.f32.mrb[0].mxu0
      %v4278 = vpop.f32.mrb[0].mxu0
      %v4279 = vadd.f32 0.0, %v4278
      %v4280 = vpop.f32.mrb[0].mxu0
      %4281 = vdwg.mxu0
      %v4282 = vadd.f32 %v3813, %v4156
      %v4283 = vadd.f32 %v3814, %v4159
      %v4284 = vadd.f32 %v3815, %v4164
      %v4285 = vadd.f32 %v3816, %v4167
      %v4286 = vadd.f32 %v3817, %v4172
      %v4287 = vadd.f32 %v3818, %v4175
      %v4288 = vadd.f32 %v3819, %v4180
      %v4289 = vadd.f32 %v3820, %v4183
      %v4290 = vadd.f32 %v3821, %v4188
      %v4291 = vadd.f32 %v3822, %v4191
      %v4292 = vadd.f32 %v3823, %v4196
      %v4293 = vadd.f32 %v3824, %v4199
      %v4294 = vadd.f32 %v3825, %v4204
      %v4295 = vadd.f32 %v3826, %v4207
      %v4296 = vadd.f32 %v3827, %v4212
      %v4297 = vadd.f32 %v3828, %v4215
      %v4298 = vadd.f32 %v3829, %v4220
      %v4299 = vadd.f32 %v3830, %v4223
      %v4300 = vadd.f32 %v3831, %v4228
      %v4301 = vadd.f32 %v3832, %v4231
      %v4302 = vadd.f32 %v3833, %v4236
      %v4303 = vadd.f32 %v3834, %v4239
      %v4304 = vadd.f32 %v3835, %v4244
      %v4305 = vadd.f32 %v3836, %v4247
      %v4306 = vadd.f32 %v3837, %v4252
      %v4307 = vadd.f32 %v3838, %v4255
      %v4308 = vadd.f32 %v3839, %v4260
      %v4309 = vadd.f32 %v3840, %v4263
      %v4310 = vadd.f32 %v3841, %v4268
      %v4311 = vadd.f32 %v3842, %v4271
      %v4312 = vadd.f32 %v3843, %v4276
      %v4313 = vadd.f32 %v3844, %v4279
      %s4314 = scalar_lea.vmem [#allocation2], 24
      %v4315 = vld [vmem:[%s4314] sm:$0xf]
      %v4316 = vld [vmem:[%s4314 + $0x4] sm:$0xf]
      %v4317 = vld [vmem:[%s4314 + $0xc] sm:$0xf]
      %v4318 = vld [vmem:[%s4314 + $0x10] sm:$0xf]
      %v4319 = vld [vmem:[%s4314 + $0x18] sm:$0xf]
      %v4320 = vld [vmem:[%s4314 + $0x1c] sm:$0xf]
      %v4321 = vld [vmem:[%s4314 + $0x24] sm:$0xf]
      %v4322 = vld [vmem:[%s4314 + $0x28] sm:$0xf]
      %v4323 = vld [vmem:[%s4314 + $0x30] sm:$0xf]
      %v4324 = vld [vmem:[%s4314 + $0x34] sm:$0xf]
      %v4325 = vld [vmem:[%s4314 + $0x3c] sm:$0xf]
      %v4326 = vld [vmem:[%s4314 + $0x40] sm:$0xf]
      %v4327 = vld [vmem:[%s4314 + $0x48] sm:$0xf]
      %v4328 = vld [vmem:[%s4314 + $0x4c] sm:$0xf]
      %v4329 = vld [vmem:[%s4314 + $0x54] sm:$0xf]
      %v4330 = vld [vmem:[%s4314 + $0x58] sm:$0xf]
      %v4331 = vld [vmem:[%s4314 + $0x60] sm:$0xf]
      %v4332 = vld [vmem:[%s4314 + $0x64] sm:$0xf]
      %v4333 = vld [vmem:[%s4314 + $0x6c] sm:$0xf]
      %v4334 = vld [vmem:[%s4314 + $0x70] sm:$0xf]
      %v4335 = vld [vmem:[%s4314 + $0x78] sm:$0xf]
      %v4336 = vld [vmem:[%s4314 + $0x7c] sm:$0xf]
      %v4337 = vld [vmem:[%s4314 + $0x84] sm:$0xf]
      %v4338 = vld [vmem:[%s4314 + $0x88] sm:$0xf]
      %v4339 = vld [vmem:[%s4314 + $0x90] sm:$0xf]
      %v4340 = vld [vmem:[%s4314 + $0x94] sm:$0xf]
      %v4341 = vld [vmem:[%s4314 + $0x9c] sm:$0xf]
      %v4342 = vld [vmem:[%s4314 + $0xa0] sm:$0xf]
      %v4343 = vld [vmem:[%s4314 + $0xa8] sm:$0xf]
      %v4344 = vld [vmem:[%s4314 + $0xac] sm:$0xf]
      %v4345 = vld [vmem:[%s4314 + $0xb4] sm:$0xf]
      %v4346 = vld [vmem:[%s4314 + $0xb8] sm:$0xf]
      %v4347 = vld [vmem:[%s387 + $0x18] sm:$0xf]
      %v4380 = vunpack.c.l.b16 %v4315
      %v4381 = vunpack.c.l.b16 %v4316
      %v4382 = vunpack.c.l.b16 %v4317
      %v4383 = vunpack.c.l.b16 %v4318
      %v4384 = vunpack.c.l.b16 %v4319
      %v4385 = vunpack.c.l.b16 %v4320
      %v4386 = vunpack.c.l.b16 %v4321
      %v4387 = vunpack.c.l.b16 %v4322
      %v4388 = vunpack.c.l.b16 %v4323
      %v4389 = vunpack.c.l.b16 %v4324
      %v4390 = vunpack.c.l.b16 %v4325
      %v4391 = vunpack.c.l.b16 %v4326
      %v4392 = vunpack.c.l.b16 %v4327
      %v4393 = vunpack.c.l.b16 %v4328
      %v4394 = vunpack.c.l.b16 %v4329
      %v4395 = vunpack.c.l.b16 %v4330
      %v4396 = vunpack.c.l.b16 %v4331
      %v4397 = vunpack.c.l.b16 %v4332
      %v4398 = vunpack.c.l.b16 %v4333
      %v4399 = vunpack.c.l.b16 %v4334
      %v4400 = vunpack.c.l.b16 %v4335
      %v4401 = vunpack.c.l.b16 %v4336
      %v4402 = vunpack.c.l.b16 %v4337
      %v4403 = vunpack.c.l.b16 %v4338
      %v4404 = vunpack.c.l.b16 %v4339
      %v4405 = vunpack.c.l.b16 %v4340
      %v4406 = vunpack.c.l.b16 %v4341
      %v4407 = vunpack.c.l.b16 %v4342
      %v4408 = vunpack.c.l.b16 %v4343
      %v4409 = vunpack.c.l.b16 %v4344
      %v4410 = vunpack.c.l.b16 %v4345
      %v4411 = vunpack.c.l.b16 %v4346
      %v4412 = vpack.c.b16 %v4381, %v4380
      %v4413 = vpack.c.b16 %v4383, %v4382
      %v4414 = vpack.c.b16 %v4385, %v4384
      %v4415 = vpack.c.b16 %v4387, %v4386
      %v4416 = vpack.c.b16 %v4389, %v4388
      %v4417 = vpack.c.b16 %v4391, %v4390
      %v4418 = vpack.c.b16 %v4393, %v4392
      %v4419 = vpack.c.b16 %v4395, %v4394
      %v4420 = vpack.c.b16 %v4397, %v4396
      %v4421 = vpack.c.b16 %v4399, %v4398
      %v4422 = vpack.c.b16 %v4401, %v4400
      %v4423 = vpack.c.b16 %v4403, %v4402
      %v4424 = vpack.c.b16 %v4405, %v4404
      %v4425 = vpack.c.b16 %v4407, %v4406
      %v4426 = vpack.c.b16 %v4409, %v4408
      %v4427 = vpack.c.b16 %v4411, %v4410
      %v4429 = vsel %vm1801, %v4412, 0
      %v4432 = vsel %vm1801, %v4413, 0
      %v4435 = vsel %vm1801, %v4414, 0
      %v4438 = vsel %vm1801, %v4415, 0
      %v4441 = vsel %vm1801, %v4416, 0
      %v4444 = vsel %vm1801, %v4417, 0
      %v4447 = vsel %vm1801, %v4418, 0
      %v4450 = vsel %vm1801, %v4419, 0
      %v4453 = vsel %vm1801, %v4420, 0
      %v4456 = vsel %vm1801, %v4421, 0
      %v4459 = vsel %vm1801, %v4422, 0
      %v4462 = vsel %vm1801, %v4423, 0
      %v4465 = vsel %vm1801, %v4424, 0
      %v4468 = vsel %vm1801, %v4425, 0
      %v4471 = vsel %vm1801, %v4426, 0
      %v4474 = vsel %vm1801, %v4427, 0
      %v4477 = vsel %vm1850, %v4347, 0
      %4479 = vmatprep.subr.bf16.mxu0 0
      %4480 = vmatpush1.bf16.msra.mxu0 %v4477
      %4481 = vmatprep.subr.bf16.mxu0 0
      %4482 = vmatpush1.bf16.msra.mxu0 0
      %4483 = vmatprep.subr.bf16.mxu0 0
      %4484 = vmatpush1.bf16.msra.mxu0 0
      %4485 = vmatprep.subr.bf16.mxu0 0
      %4486 = vmatpush1.bf16.msra.mxu0 0
      %4487 = vmatprep.subr.bf16.mxu0 0
      %4488 = vmatpush1.bf16.msra.mxu0 0
      %4489 = vmatprep.subr.bf16.mxu0 0
      %4490 = vmatpush1.bf16.msra.mxu0 0
      %4491 = vmatprep.subr.bf16.mxu0 0
      %4492 = vmatpush1.bf16.msra.mxu0 0
      %4493 = vmatprep.subr.bf16.mxu0 0
      %4494 = vmatpush1.bf16.msra.mxu0 0
      %4495 = vmatprep.subr.bf16.mxu0 0
      %4496 = vmatpush1.bf16.msra.mxu0 0
      %4497 = vmatprep.subr.bf16.mxu0 0
      %4498 = vmatpush1.bf16.msra.mxu0 0
      %4499 = vmatprep.subr.bf16.mxu0 0
      %4500 = vmatpush1.bf16.msra.mxu0 0
      %4501 = vmatprep.subr.bf16.mxu0 0
      %4502 = vmatpush1.bf16.msra.mxu0 0
      %4503 = vmatprep.subr.bf16.mxu0 0
      %4504 = vmatpush1.bf16.msra.mxu0 0
      %4505 = vmatprep.subr.bf16.mxu0 0
      %4506 = vmatpush1.bf16.msra.mxu0 0
      %4507 = vmatprep.subr.bf16.mxu0 0
      %4508 = vmatpush1.bf16.msra.mxu0 0
      %4509 = vmatprep.subr.bf16.mxu0 0
      %4510 = vmatpush1.bf16.msra.mxu0 0
      %4511 = vmatprep.mubr.bf16.mxu0 0
      %4512 = vmatmul.mubr.bf16.gmra.mrb[0].mxu0 %v4429
      %v4513 = vpop.f32.mrb[0].mxu0
      %v4514 = vadd.f32 0.0, %v4513
      %v4515 = vpop.f32.mrb[0].mxu0
      %v4516 = vpop.f32.mrb[0].mxu0
      %v4517 = vadd.f32 0.0, %v4516
      %v4518 = vpop.f32.mrb[0].mxu0
      %4519 = vmatprep.mubr.bf16.mxu0 0
      %4520 = vmatmul.mubr.bf16.gmra.mrb[0].mxu0 %v4432
      %v4521 = vpop.f32.mrb[0].mxu0
      %v4522 = vadd.f32 0.0, %v4521
      %v4523 = vpop.f32.mrb[0].mxu0
      %v4524 = vpop.f32.mrb[0].mxu0
      %v4525 = vadd.f32 0.0, %v4524
      %v4526 = vpop.f32.mrb[0].mxu0
      %4527 = vmatprep.mubr.bf16.mxu0 0
      %4528 = vmatmul.mubr.bf16.gmra.mrb[0].mxu0 %v4435
      %v4529 = vpop.f32.mrb[0].mxu0
      %v4530 = vadd.f32 0.0, %v4529
      %v4531 = vpop.f32.mrb[0].mxu0
      %v4532 = vpop.f32.mrb[0].mxu0
      %v4533 = vadd.f32 0.0, %v4532
      %v4534 = vpop.f32.mrb[0].mxu0
      %4535 = vmatprep.mubr.bf16.mxu0 0
      %4536 = vmatmul.mubr.bf16.gmra.mrb[0].mxu0 %v4438
      %v4537 = vpop.f32.mrb[0].mxu0
      %v4538 = vadd.f32 0.0, %v4537
      %v4539 = vpop.f32.mrb[0].mxu0
      %v4540 = vpop.f32.mrb[0].mxu0
      %v4541 = vadd.f32 0.0, %v4540
      %v4542 = vpop.f32.mrb[0].mxu0
      %4543 = vmatprep.mubr.bf16.mxu0 0
      %4544 = vmatmul.mubr.bf16.gmra.mrb[0].mxu0 %v4441
      %v4545 = vpop.f32.mrb[0].mxu0
      %v4546 = vadd.f32 0.0, %v4545
      %v4547 = vpop.f32.mrb[0].mxu0
      %v4548 = vpop.f32.mrb[0].mxu0
      %v4549 = vadd.f32 0.0, %v4548
      %v4550 = vpop.f32.mrb[0].mxu0
      %4551 = vmatprep.mubr.bf16.mxu0 0
      %4552 = vmatmul.mubr.bf16.gmra.mrb[0].mxu0 %v4444
      %v4553 = vpop.f32.mrb[0].mxu0
      %v4554 = vadd.f32 0.0, %v4553
      %v4555 = vpop.f32.mrb[0].mxu0
      %v4556 = vpop.f32.mrb[0].mxu0
      %v4557 = vadd.f32 0.0, %v4556
      %v4558 = vpop.f32.mrb[0].mxu0
      %4559 = vmatprep.mubr.bf16.mxu0 0
      %4560 = vmatmul.mubr.bf16.gmra.mrb[0].mxu0 %v4447
      %v4561 = vpop.f32.mrb[0].mxu0
      %v4562 = vadd.f32 0.0, %v4561
      %v4563 = vpop.f32.mrb[0].mxu0
      %v4564 = vpop.f32.mrb[0].mxu0
      %v4565 = vadd.f32 0.0, %v4564
      %v4566 = vpop.f32.mrb[0].mxu0
      %4567 = vmatprep.mubr.bf16.mxu0 0
      %4568 = vmatmul.mubr.bf16.gmra.mrb[0].mxu0 %v4450
      %v4569 = vpop.f32.mrb[0].mxu0
      %v4570 = vadd.f32 0.0, %v4569
      %v4571 = vpop.f32.mrb[0].mxu0
      %v4572 = vpop.f32.mrb[0].mxu0
      %v4573 = vadd.f32 0.0, %v4572
      %v4574 = vpop.f32.mrb[0].mxu0
      %4575 = vmatprep.mubr.bf16.mxu0 0
      %4576 = vmatmul.mubr.bf16.gmra.mrb[0].mxu0 %v4453
      %v4577 = vpop.f32.mrb[0].mxu0
      %v4578 = vadd.f32 0.0, %v4577
      %v4579 = vpop.f32.mrb[0].mxu0
      %v4580 = vpop.f32.mrb[0].mxu0
      %v4581 = vadd.f32 0.0, %v4580
      %v4582 = vpop.f32.mrb[0].mxu0
      %4583 = vmatprep.mubr.bf16.mxu0 0
      %4584 = vmatmul.mubr.bf16.gmra.mrb[0].mxu0 %v4456
      %v4585 = vpop.f32.mrb[0].mxu0
      %v4586 = vadd.f32 0.0, %v4585
      %v4587 = vpop.f32.mrb[0].mxu0
      %v4588 = vpop.f32.mrb[0].mxu0
      %v4589 = vadd.f32 0.0, %v4588
      %v4590 = vpop.f32.mrb[0].mxu0
      %4591 = vmatprep.mubr.bf16.mxu0 0
      %4592 = vmatmul.mubr.bf16.gmra.mrb[0].mxu0 %v4459
      %v4593 = vpop.f32.mrb[0].mxu0
      %v4594 = vadd.f32 0.0, %v4593
      %v4595 = vpop.f32.mrb[0].mxu0
      %v4596 = vpop.f32.mrb[0].mxu0
      %v4597 = vadd.f32 0.0, %v4596
      %v4598 = vpop.f32.mrb[0].mxu0
      %4599 = vmatprep.mubr.bf16.mxu0 0
      %4600 = vmatmul.mubr.bf16.gmra.mrb[0].mxu0 %v4462
      %v4601 = vpop.f32.mrb[0].mxu0
      %v4602 = vadd.f32 0.0, %v4601
      %v4603 = vpop.f32.mrb[0].mxu0
      %v4604 = vpop.f32.mrb[0].mxu0
      %v4605 = vadd.f32 0.0, %v4604
      %v4606 = vpop.f32.mrb[0].mxu0
      %4607 = vmatprep.mubr.bf16.mxu0 0
      %4608 = vmatmul.mubr.bf16.gmra.mrb[0].mxu0 %v4465
      %v4609 = vpop.f32.mrb[0].mxu0
      %v4610 = vadd.f32 0.0, %v4609
      %v4611 = vpop.f32.mrb[0].mxu0
      %v4612 = vpop.f32.mrb[0].mxu0
      %v4613 = vadd.f32 0.0, %v4612
      %v4614 = vpop.f32.mrb[0].mxu0
      %4615 = vmatprep.mubr.bf16.mxu0 0
      %4616 = vmatmul.mubr.bf16.gmra.mrb[0].mxu0 %v4468
      %v4617 = vpop.f32.mrb[0].mxu0
      %v4618 = vadd.f32 0.0, %v4617
      %v4619 = vpop.f32.mrb[0].mxu0
      %v4620 = vpop.f32.mrb[0].mxu0
      %v4621 = vadd.f32 0.0, %v4620
      %v4622 = vpop.f32.mrb[0].mxu0
      %4623 = vmatprep.mubr.bf16.mxu0 0
      %4624 = vmatmul.mubr.bf16.gmra.mrb[0].mxu0 %v4471
      %v4625 = vpop.f32.mrb[0].mxu0
      %v4626 = vadd.f32 0.0, %v4625
      %v4627 = vpop.f32.mrb[0].mxu0
      %v4628 = vpop.f32.mrb[0].mxu0
      %v4629 = vadd.f32 0.0, %v4628
      %v4630 = vpop.f32.mrb[0].mxu0
      %4631 = vmatprep.mubr.bf16.mxu0 0
      %4632 = vmatmul.mubr.bf16.gmra.mrb[0].mxu0 %v4474
      %v4633 = vpop.f32.mrb[0].mxu0
      %v4634 = vadd.f32 0.0, %v4633
      %v4635 = vpop.f32.mrb[0].mxu0
      %v4636 = vpop.f32.mrb[0].mxu0
      %v4637 = vadd.f32 0.0, %v4636
      %v4638 = vpop.f32.mrb[0].mxu0
      %4639 = vdwg.mxu0
      %v4640 = vadd.f32 %v4282, %v4514
      %v4641 = vadd.f32 %v4283, %v4517
      %v4642 = vadd.f32 %v4284, %v4522
      %v4643 = vadd.f32 %v4285, %v4525
      %v4644 = vadd.f32 %v4286, %v4530
      %v4645 = vadd.f32 %v4287, %v4533
      %v4646 = vadd.f32 %v4288, %v4538
      %v4647 = vadd.f32 %v4289, %v4541
      %v4648 = vadd.f32 %v4290, %v4546
      %v4649 = vadd.f32 %v4291, %v4549
      %v4650 = vadd.f32 %v4292, %v4554
      %v4651 = vadd.f32 %v4293, %v4557
      %v4652 = vadd.f32 %v4294, %v4562
      %v4653 = vadd.f32 %v4295, %v4565
      %v4654 = vadd.f32 %v4296, %v4570
      %v4655 = vadd.f32 %v4297, %v4573
      %v4656 = vadd.f32 %v4298, %v4578
      %v4657 = vadd.f32 %v4299, %v4581
      %v4658 = vadd.f32 %v4300, %v4586
      %v4659 = vadd.f32 %v4301, %v4589
      %v4660 = vadd.f32 %v4302, %v4594
      %v4661 = vadd.f32 %v4303, %v4597
      %v4662 = vadd.f32 %v4304, %v4602
      %v4663 = vadd.f32 %v4305, %v4605
      %v4664 = vadd.f32 %v4306, %v4610
      %v4665 = vadd.f32 %v4307, %v4613
      %v4666 = vadd.f32 %v4308, %v4618
      %v4667 = vadd.f32 %v4309, %v4621
      %v4668 = vadd.f32 %v4310, %v4626
      %v4669 = vadd.f32 %v4311, %v4629
      %v4670 = vadd.f32 %v4312, %v4634
      %v4671 = vadd.f32 %v4313, %v4637
      %v4672 = vld [vmem:[%s4314] sm:$0xf]
      %v4673 = vld [vmem:[%s4314 + $0x4] sm:$0xf]
      %v4674 = vld [vmem:[%s4314 + $0x8] sm:$0x1]
      %v4675 = vld [vmem:[%s4314 + $0xc] sm:$0xf]
      %v4676 = vld [vmem:[%s4314 + $0x10] sm:$0xf]
      %v4677 = vld [vmem:[%s4314 + $0x14] sm:$0x1]
      %v4678 = vld [vmem:[%s4314 + $0x18] sm:$0xf]
      %v4679 = vld [vmem:[%s4314 + $0x1c] sm:$0xf]
      %v4680 = vld [vmem:[%s4314 + $0x20] sm:$0x1]
      %v4681 = vld [vmem:[%s4314 + $0x24] sm:$0xf]
      %v4682 = vld [vmem:[%s4314 + $0x28] sm:$0xf]
      %v4683 = vld [vmem:[%s4314 + $0x2c] sm:$0x1]
      %v4684 = vld [vmem:[%s4314 + $0x30] sm:$0xf]
      %v4685 = vld [vmem:[%s4314 + $0x34] sm:$0xf]
      %v4686 = vld [vmem:[%s4314 + $0x38] sm:$0x1]
      %v4687 = vld [vmem:[%s4314 + $0x3c] sm:$0xf]
      %v4688 = vld [vmem:[%s4314 + $0x40] sm:$0xf]
      %v4689 = vld [vmem:[%s4314 + $0x44] sm:$0x1]
      %v4690 = vld [vmem:[%s4314 + $0x48] sm:$0xf]
      %v4691 = vld [vmem:[%s4314 + $0x4c] sm:$0xf]
      %v4692 = vld [vmem:[%s4314 + $0x50] sm:$0x1]
      %v4693 = vld [vmem:[%s4314 + $0x54] sm:$0xf]
      %v4694 = vld [vmem:[%s4314 + $0x58] sm:$0xf]
      %v4695 = vld [vmem:[%s4314 + $0x5c] sm:$0x1]
      %v4696 = vld [vmem:[%s4314 + $0x60] sm:$0xf]
      %v4697 = vld [vmem:[%s4314 + $0x64] sm:$0xf]
      %v4698 = vld [vmem:[%s4314 + $0x68] sm:$0x1]
      %v4699 = vld [vmem:[%s4314 + $0x6c] sm:$0xf]
      %v4700 = vld [vmem:[%s4314 + $0x70] sm:$0xf]
      %v4701 = vld [vmem:[%s4314 + $0x74] sm:$0x1]
      %v4702 = vld [vmem:[%s4314 + $0x78] sm:$0xf]
      %v4703 = vld [vmem:[%s4314 + $0x7c] sm:$0xf]
      %v4704 = vld [vmem:[%s4314 + $0x80] sm:$0x1]
      %v4705 = vld [vmem:[%s4314 + $0x84] sm:$0xf]
      %v4706 = vld [vmem:[%s4314 + $0x88] sm:$0xf]
      %v4707 = vld [vmem:[%s4314 + $0x8c] sm:$0x1]
      %v4708 = vld [vmem:[%s4314 + $0x90] sm:$0xf]
      %v4709 = vld [vmem:[%s4314 + $0x94] sm:$0xf]
      %v4710 = vld [vmem:[%s4314 + $0x98] sm:$0x1]
      %v4711 = vld [vmem:[%s4314 + $0x9c] sm:$0xf]
      %v4712 = vld [vmem:[%s4314 + $0xa0] sm:$0xf]
      %v4713 = vld [vmem:[%s4314 + $0xa4] sm:$0x1]
      %v4714 = vld [vmem:[%s4314 + $0xa8] sm:$0xf]
      %v4715 = vld [vmem:[%s4314 + $0xac] sm:$0xf]
      %v4716 = vld [vmem:[%s4314 + $0xb0] sm:$0x1]
      %v4717 = vld [vmem:[%s4314 + $0xb4] sm:$0xf]
      %v4718 = vld [vmem:[%s4314 + $0xb8] sm:$0xf]
      %v4719 = vld [vmem:[%s4314 + $0xbc] sm:$0x1]
      %v4721 = vshrl.u32 %v4672, 16
      %v4723 = vrot.slane %v4721, 4
      %v4724 = vshll.u32 %v4672, 16
      %v4726 = vrot.slane %v4724, 5
      %v4727 = vor.u32 %v4723, %v4726
      %v4728 = vrot.slane %v4727, 4
      %v4730 = vshll.u32 %v4673, 16
      %v4732 = vrot.slane %v4730, 5
      %v4733 = vsel %vm1367, %v4728, %v4732
      %v4734 = vshrl.u32 %v4673, 16
      %v4736 = vrot.slane %v4734, 4
      %v4737 = vor.u32 %v4736, %v4732
      %v4738 = vrot.slane %v4737, 4
      %v4740 = vshll.u32 %v4674, 16
      %v4742 = vrot.slane %v4740, 5
      %v4743 = vsel %vm1367, %v4738, %v4742
      %v4745 = vshrl.u32 %v4675, 16
      %v4747 = vrot.slane %v4745, 4
      %v4748 = vshll.u32 %v4675, 16
      %v4750 = vrot.slane %v4748, 5
      %v4751 = vor.u32 %v4747, %v4750
      %v4752 = vrot.slane %v4751, 4
      %v4754 = vshll.u32 %v4676, 16
      %v4756 = vrot.slane %v4754, 5
      %v4757 = vsel %vm1367, %v4752, %v4756
      %v4758 = vshrl.u32 %v4676, 16
      %v4760 = vrot.slane %v4758, 4
      %v4761 = vor.u32 %v4760, %v4756
      %v4762 = vrot.slane %v4761, 4
      %v4764 = vshll.u32 %v4677, 16
      %v4766 = vrot.slane %v4764, 5
      %v4767 = vsel %vm1367, %v4762, %v4766
      %v4769 = vshrl.u32 %v4678, 16
      %v4771 = vrot.slane %v4769, 4
      %v4772 = vshll.u32 %v4678, 16
      %v4774 = vrot.slane %v4772, 5
      %v4775 = vor.u32 %v4771, %v4774
      %v4776 = vrot.slane %v4775, 4
      %v4778 = vshll.u32 %v4679, 16
      %v4780 = vrot.slane %v4778, 5
      %v4781 = vsel %vm1367, %v4776, %v4780
      %v4782 = vshrl.u32 %v4679, 16
      %v4784 = vrot.slane %v4782, 4
      %v4785 = vor.u32 %v4784, %v4780
      %v4786 = vrot.slane %v4785, 4
      %v4788 = vshll.u32 %v4680, 16
      %v4790 = vrot.slane %v4788, 5
      %v4791 = vsel %vm1367, %v4786, %v4790
      %v4793 = vshrl.u32 %v4681, 16
      %v4795 = vrot.slane %v4793, 4
      %v4796 = vshll.u32 %v4681, 16
      %v4798 = vrot.slane %v4796, 5
      %v4799 = vor.u32 %v4795, %v4798
      %v4800 = vrot.slane %v4799, 4
      %v4802 = vshll.u32 %v4682, 16
      %v4804 = vrot.slane %v4802, 5
      %v4805 = vsel %vm1367, %v4800, %v4804
      %v4806 = vshrl.u32 %v4682, 16
      %v4808 = vrot.slane %v4806, 4
      %v4809 = vor.u32 %v4808, %v4804
      %v4810 = vrot.slane %v4809, 4
      %v4812 = vshll.u32 %v4683, 16
      %v4814 = vrot.slane %v4812, 5
      %v4815 = vsel %vm1367, %v4810, %v4814
      %v4817 = vshrl.u32 %v4684, 16
      %v4819 = vrot.slane %v4817, 4
      %v4820 = vshll.u32 %v4684, 16
      %v4822 = vrot.slane %v4820, 5
      %v4823 = vor.u32 %v4819, %v4822
      %v4824 = vrot.slane %v4823, 4
      %v4826 = vshll.u32 %v4685, 16
      %v4828 = vrot.slane %v4826, 5
      %v4829 = vsel %vm1367, %v4824, %v4828
      %v4830 = vshrl.u32 %v4685, 16
      %v4832 = vrot.slane %v4830, 4
      %v4833 = vor.u32 %v4832, %v4828
      %v4834 = vrot.slane %v4833, 4
      %v4836 = vshll.u32 %v4686, 16
      %v4838 = vrot.slane %v4836, 5
      %v4839 = vsel %vm1367, %v4834, %v4838
      %v4841 = vshrl.u32 %v4687, 16
      %v4843 = vrot.slane %v4841, 4
      %v4844 = vshll.u32 %v4687, 16
      %v4846 = vrot.slane %v4844, 5
      %v4847 = vor.u32 %v4843, %v4846
      %v4848 = vrot.slane %v4847, 4
      %v4850 = vshll.u32 %v4688, 16
      %v4852 = vrot.slane %v4850, 5
      %v4853 = vsel %vm1367, %v4848, %v4852
      %v4854 = vshrl.u32 %v4688, 16
      %v4856 = vrot.slane %v4854, 4
      %v4857 = vor.u32 %v4856, %v4852
      %v4858 = vrot.slane %v4857, 4
      %v4860 = vshll.u32 %v4689, 16
      %v4862 = vrot.slane %v4860, 5
      %v4863 = vsel %vm1367, %v4858, %v4862
      %v4865 = vshrl.u32 %v4690, 16
      %v4867 = vrot.slane %v4865, 4
      %v4868 = vshll.u32 %v4690, 16
      %v4870 = vrot.slane %v4868, 5
      %v4871 = vor.u32 %v4867, %v4870
      %v4872 = vrot.slane %v4871, 4
      %v4874 = vshll.u32 %v4691, 16
      %v4876 = vrot.slane %v4874, 5
      %v4877 = vsel %vm1367, %v4872, %v4876
      %v4878 = vshrl.u32 %v4691, 16
      %v4880 = vrot.slane %v4878, 4
      %v4881 = vor.u32 %v4880, %v4876
      %v4882 = vrot.slane %v4881, 4
      %v4884 = vshll.u32 %v4692, 16
      %v4886 = vrot.slane %v4884, 5
      %v4887 = vsel %vm1367, %v4882, %v4886
      %v4889 = vshrl.u32 %v4693, 16
      %v4891 = vrot.slane %v4889, 4
      %v4892 = vshll.u32 %v4693, 16
      %v4894 = vrot.slane %v4892, 5
      %v4895 = vor.u32 %v4891, %v4894
      %v4896 = vrot.slane %v4895, 4
      %v4898 = vshll.u32 %v4694, 16
      %v4900 = vrot.slane %v4898, 5
      %v4901 = vsel %vm1367, %v4896, %v4900
      %v4902 = vshrl.u32 %v4694, 16
      %v4904 = vrot.slane %v4902, 4
      %v4905 = vor.u32 %v4904, %v4900
      %v4906 = vrot.slane %v4905, 4
      %v4908 = vshll.u32 %v4695, 16
      %v4910 = vrot.slane %v4908, 5
      %v4911 = vsel %vm1367, %v4906, %v4910
      %v4913 = vshrl.u32 %v4696, 16
      %v4915 = vrot.slane %v4913, 4
      %v4916 = vshll.u32 %v4696, 16
      %v4918 = vrot.slane %v4916, 5
      %v4919 = vor.u32 %v4915, %v4918
      %v4920 = vrot.slane %v4919, 4
      %v4922 = vshll.u32 %v4697, 16
      %v4924 = vrot.slane %v4922, 5
      %v4925 = vsel %vm1367, %v4920, %v4924
      %v4926 = vshrl.u32 %v4697, 16
      %v4928 = vrot.slane %v4926, 4
      %v4929 = vor.u32 %v4928, %v4924
      %v4930 = vrot.slane %v4929, 4
      %v4932 = vshll.u32 %v4698, 16
      %v4934 = vrot.slane %v4932, 5
      %v4935 = vsel %vm1367, %v4930, %v4934
      %v4937 = vshrl.u32 %v4699, 16
      %v4939 = vrot.slane %v4937, 4
      %v4940 = vshll.u32 %v4699, 16
      %v4942 = vrot.slane %v4940, 5
      %v4943 = vor.u32 %v4939, %v4942
      %v4944 = vrot.slane %v4943, 4
      %v4946 = vshll.u32 %v4700, 16
      %v4948 = vrot.slane %v4946, 5
      %v4949 = vsel %vm1367, %v4944, %v4948
      %v4950 = vshrl.u32 %v4700, 16
      %v4952 = vrot.slane %v4950, 4
      %v4953 = vor.u32 %v4952, %v4948
      %v4954 = vrot.slane %v4953, 4
      %v4956 = vshll.u32 %v4701, 16
      %v4958 = vrot.slane %v4956, 5
      %v4959 = vsel %vm1367, %v4954, %v4958
      %v4961 = vshrl.u32 %v4702, 16
      %v4963 = vrot.slane %v4961, 4
      %v4964 = vshll.u32 %v4702, 16
      %v4966 = vrot.slane %v4964, 5
      %v4967 = vor.u32 %v4963, %v4966
      %v4968 = vrot.slane %v4967, 4
      %v4970 = vshll.u32 %v4703, 16
      %v4972 = vrot.slane %v4970, 5
      %v4973 = vsel %vm1367, %v4968, %v4972
      %v4974 = vshrl.u32 %v4703, 16
      %v4976 = vrot.slane %v4974, 4
      %v4977 = vor.u32 %v4976, %v4972
      %v4978 = vrot.slane %v4977, 4
      %v4980 = vshll.u32 %v4704, 16
      %v4982 = vrot.slane %v4980, 5
      %v4983 = vsel %vm1367, %v4978, %v4982
      %v4985 = vshrl.u32 %v4705, 16
      %v4987 = vrot.slane %v4985, 4
      %v4988 = vshll.u32 %v4705, 16
      %v4990 = vrot.slane %v4988, 5
      %v4991 = vor.u32 %v4987, %v4990
      %v4992 = vrot.slane %v4991, 4
      %v4994 = vshll.u32 %v4706, 16
      %v4996 = vrot.slane %v4994, 5
      %v4997 = vsel %vm1367, %v4992, %v4996
      %v4998 = vshrl.u32 %v4706, 16
      %v5000 = vrot.slane %v4998, 4
      %v5001 = vor.u32 %v5000, %v4996
      %v5002 = vrot.slane %v5001, 4
      %v5004 = vshll.u32 %v4707, 16
      %v5006 = vrot.slane %v5004, 5
      %v5007 = vsel %vm1367, %v5002, %v5006
      %v5009 = vshrl.u32 %v4708, 16
      %v5011 = vrot.slane %v5009, 4
      %v5012 = vshll.u32 %v4708, 16
      %v5014 = vrot.slane %v5012, 5
      %v5015 = vor.u32 %v5011, %v5014
      %v5016 = vrot.slane %v5015, 4
      %v5018 = vshll.u32 %v4709, 16
      %v5020 = vrot.slane %v5018, 5
      %v5021 = vsel %vm1367, %v5016, %v5020
      %v5022 = vshrl.u32 %v4709, 16
      %v5024 = vrot.slane %v5022, 4
      %v5025 = vor.u32 %v5024, %v5020
      %v5026 = vrot.slane %v5025, 4
      %v5028 = vshll.u32 %v4710, 16
      %v5030 = vrot.slane %v5028, 5
      %v5031 = vsel %vm1367, %v5026, %v5030
      %v5033 = vshrl.u32 %v4711, 16
      %v5035 = vrot.slane %v5033, 4
      %v5036 = vshll.u32 %v4711, 16
      %v5038 = vrot.slane %v5036, 5
      %v5039 = vor.u32 %v5035, %v5038
      %v5040 = vrot.slane %v5039, 4
      %v5042 = vshll.u32 %v4712, 16
      %v5044 = vrot.slane %v5042, 5
      %v5045 = vsel %vm1367, %v5040, %v5044
      %v5046 = vshrl.u32 %v4712, 16
      %v5048 = vrot.slane %v5046, 4
      %v5049 = vor.u32 %v5048, %v5044
      %v5050 = vrot.slane %v5049, 4
      %v5052 = vshll.u32 %v4713, 16
      %v5054 = vrot.slane %v5052, 5
      %v5055 = vsel %vm1367, %v5050, %v5054
      %v5057 = vshrl.u32 %v4714, 16
      %v5059 = vrot.slane %v5057, 4
      %v5060 = vshll.u32 %v4714, 16
      %v5062 = vrot.slane %v5060, 5
      %v5063 = vor.u32 %v5059, %v5062
      %v5064 = vrot.slane %v5063, 4
      %v5066 = vshll.u32 %v4715, 16
      %v5068 = vrot.slane %v5066, 5
      %v5069 = vsel %vm1367, %v5064, %v5068
      %v5070 = vshrl.u32 %v4715, 16
      %v5072 = vrot.slane %v5070, 4
      %v5073 = vor.u32 %v5072, %v5068
      %v5074 = vrot.slane %v5073, 4
      %v5076 = vshll.u32 %v4716, 16
      %v5078 = vrot.slane %v5076, 5
      %v5079 = vsel %vm1367, %v5074, %v5078
      %v5081 = vshrl.u32 %v4717, 16
      %v5083 = vrot.slane %v5081, 4
      %v5084 = vshll.u32 %v4717, 16
      %v5086 = vrot.slane %v5084, 5
      %v5087 = vor.u32 %v5083, %v5086
      %v5088 = vrot.slane %v5087, 4
      %v5090 = vshll.u32 %v4718, 16
      %v5092 = vrot.slane %v5090, 5
      %v5093 = vsel %vm1367, %v5088, %v5092
      %v5094 = vshrl.u32 %v4718, 16
      %v5096 = vrot.slane %v5094, 4
      %v5097 = vor.u32 %v5096, %v5092
      %v5098 = vrot.slane %v5097, 4
      %v5100 = vshll.u32 %v4719, 16
      %v5102 = vrot.slane %v5100, 5
      %v5103 = vsel %vm1367, %v5098, %v5102
      %v5104 = vld [vmem:[%s387 + $0x1c] sm:$0xf]
      %v5105 = vunpack.c.l.b16 %v4733
      %v5106 = vunpack.c.l.b16 %v4743
      %v5107 = vunpack.c.l.b16 %v4757
      %v5108 = vunpack.c.l.b16 %v4767
      %v5109 = vunpack.c.l.b16 %v4781
      %v5110 = vunpack.c.l.b16 %v4791
      %v5111 = vunpack.c.l.b16 %v4805
      %v5112 = vunpack.c.l.b16 %v4815
      %v5113 = vunpack.c.l.b16 %v4829
      %v5114 = vunpack.c.l.b16 %v4839
      %v5115 = vunpack.c.l.b16 %v4853
      %v5116 = vunpack.c.l.b16 %v4863
      %v5117 = vunpack.c.l.b16 %v4877
      %v5118 = vunpack.c.l.b16 %v4887
      %v5119 = vunpack.c.l.b16 %v4901
      %v5120 = vunpack.c.l.b16 %v4911
      %v5121 = vunpack.c.l.b16 %v4925
      %v5122 = vunpack.c.l.b16 %v4935
      %v5123 = vunpack.c.l.b16 %v4949
      %v5124 = vunpack.c.l.b16 %v4959
      %v5125 = vunpack.c.l.b16 %v4973
      %v5126 = vunpack.c.l.b16 %v4983
      %v5127 = vunpack.c.l.b16 %v4997
      %v5128 = vunpack.c.l.b16 %v5007
      %v5129 = vunpack.c.l.b16 %v5021
      %v5130 = vunpack.c.l.b16 %v5031
      %v5131 = vunpack.c.l.b16 %v5045
      %v5132 = vunpack.c.l.b16 %v5055
      %v5133 = vunpack.c.l.b16 %v5069
      %v5134 = vunpack.c.l.b16 %v5079
      %v5135 = vunpack.c.l.b16 %v5093
      %v5136 = vunpack.c.l.b16 %v5103
      %v5137 = vpack.c.b16 %v5106, %v5105
      %v5138 = vpack.c.b16 %v5108, %v5107
      %v5139 = vpack.c.b16 %v5110, %v5109
      %v5140 = vpack.c.b16 %v5112, %v5111
      %v5141 = vpack.c.b16 %v5114, %v5113
      %v5142 = vpack.c.b16 %v5116, %v5115
      %v5143 = vpack.c.b16 %v5118, %v5117
      %v5144 = vpack.c.b16 %v5120, %v5119
      %v5145 = vpack.c.b16 %v5122, %v5121
      %v5146 = vpack.c.b16 %v5124, %v5123
      %v5147 = vpack.c.b16 %v5126, %v5125
      %v5148 = vpack.c.b16 %v5128, %v5127
      %v5149 = vpack.c.b16 %v5130, %v5129
      %v5150 = vpack.c.b16 %v5132, %v5131
      %v5151 = vpack.c.b16 %v5134, %v5133
      %v5152 = vpack.c.b16 %v5136, %v5135
      %v5154 = vsel %vm1801, %v5137, 0
      %v5157 = vsel %vm1801, %v5138, 0
      %v5160 = vsel %vm1801, %v5139, 0
      %v5163 = vsel %vm1801, %v5140, 0
      %v5166 = vsel %vm1801, %v5141, 0
      %v5169 = vsel %vm1801, %v5142, 0
      %v5172 = vsel %vm1801, %v5143, 0
      %v5175 = vsel %vm1801, %v5144, 0
      %v5178 = vsel %vm1801, %v5145, 0
      %v5181 = vsel %vm1801, %v5146, 0
      %v5184 = vsel %vm1801, %v5147, 0
      %v5187 = vsel %vm1801, %v5148, 0
      %v5190 = vsel %vm1801, %v5149, 0
      %v5193 = vsel %vm1801, %v5150, 0
      %v5196 = vsel %vm1801, %v5151, 0
      %v5199 = vsel %vm1801, %v5152, 0
      %v5202 = vsel %vm1850, %v5104, 0
      %5204 = vmatprep.subr.bf16.mxu0 0
      %5205 = vmatpush1.bf16.msra.mxu0 %v5202
      %5206 = vmatprep.subr.bf16.mxu0 0
      %5207 = vmatpush1.bf16.msra.mxu0 0
      %5208 = vmatprep.subr.bf16.mxu0 0
      %5209 = vmatpush1.bf16.msra.mxu0 0
      %5210 = vmatprep.subr.bf16.mxu0 0
      %5211 = vmatpush1.bf16.msra.mxu0 0
      %5212 = vmatprep.subr.bf16.mxu0 0
      %5213 = vmatpush1.bf16.msra.mxu0 0
      %5214 = vmatprep.subr.bf16.mxu0 0
      %5215 = vmatpush1.bf16.msra.mxu0 0
      %5216 = vmatprep.subr.bf16.mxu0 0
      %5217 = vmatpush1.bf16.msra.mxu0 0
      %5218 = vmatprep.subr.bf16.mxu0 0
      %5219 = vmatpush1.bf16.msra.mxu0 0
      %5220 = vmatprep.subr.bf16.mxu0 0
      %5221 = vmatpush1.bf16.msra.mxu0 0
      %5222 = vmatprep.subr.bf16.mxu0 0
      %5223 = vmatpush1.bf16.msra.mxu0 0
      %5224 = vmatprep.subr.bf16.mxu0 0
      %5225 = vmatpush1.bf16.msra.mxu0 0
      %5226 = vmatprep.subr.bf16.mxu0 0
      %5227 = vmatpush1.bf16.msra.mxu0 0
      %5228 = vmatprep.subr.bf16.mxu0 0
      %5229 = vmatpush1.bf16.msra.mxu0 0
      %5230 = vmatprep.subr.bf16.mxu0 0
      %5231 = vmatpush1.bf16.msra.mxu0 0
      %5232 = vmatprep.subr.bf16.mxu0 0
      %5233 = vmatpush1.bf16.msra.mxu0 0
      %5234 = vmatprep.subr.bf16.mxu0 0
      %5235 = vmatpush1.bf16.msra.mxu0 0
      %5236 = vmatprep.mubr.bf16.mxu0 0
      %5237 = vmatmul.mubr.bf16.gmra.mrb[0].mxu0 %v5154
      %v5238 = vpop.f32.mrb[0].mxu0
      %v5239 = vadd.f32 0.0, %v5238
      %v5240 = vpop.f32.mrb[0].mxu0
      %v5241 = vpop.f32.mrb[0].mxu0
      %v5242 = vadd.f32 0.0, %v5241
      %v5243 = vpop.f32.mrb[0].mxu0
      %5244 = vmatprep.mubr.bf16.mxu0 0
      %5245 = vmatmul.mubr.bf16.gmra.mrb[0].mxu0 %v5157
      %v5246 = vpop.f32.mrb[0].mxu0
      %v5247 = vadd.f32 0.0, %v5246
      %v5248 = vpop.f32.mrb[0].mxu0
      %v5249 = vpop.f32.mrb[0].mxu0
      %v5250 = vadd.f32 0.0, %v5249
      %v5251 = vpop.f32.mrb[0].mxu0
      %5252 = vmatprep.mubr.bf16.mxu0 0
      %5253 = vmatmul.mubr.bf16.gmra.mrb[0].mxu0 %v5160
      %v5254 = vpop.f32.mrb[0].mxu0
      %v5255 = vadd.f32 0.0, %v5254
      %v5256 = vpop.f32.mrb[0].mxu0
      %v5257 = vpop.f32.mrb[0].mxu0
      %v5258 = vadd.f32 0.0, %v5257
      %v5259 = vpop.f32.mrb[0].mxu0
      %5260 = vmatprep.mubr.bf16.mxu0 0
      %5261 = vmatmul.mubr.bf16.gmra.mrb[0].mxu0 %v5163
      %v5262 = vpop.f32.mrb[0].mxu0
      %v5263 = vadd.f32 0.0, %v5262
      %v5264 = vpop.f32.mrb[0].mxu0
      %v5265 = vpop.f32.mrb[0].mxu0
      %v5266 = vadd.f32 0.0, %v5265
      %v5267 = vpop.f32.mrb[0].mxu0
      %5268 = vmatprep.mubr.bf16.mxu0 0
      %5269 = vmatmul.mubr.bf16.gmra.mrb[0].mxu0 %v5166
      %v5270 = vpop.f32.mrb[0].mxu0
      %v5271 = vadd.f32 0.0, %v5270
      %v5272 = vpop.f32.mrb[0].mxu0
      %v5273 = vpop.f32.mrb[0].mxu0
      %v5274 = vadd.f32 0.0, %v5273
      %v5275 = vpop.f32.mrb[0].mxu0
      %5276 = vmatprep.mubr.bf16.mxu0 0
      %5277 = vmatmul.mubr.bf16.gmra.mrb[0].mxu0 %v5169
      %v5278 = vpop.f32.mrb[0].mxu0
      %v5279 = vadd.f32 0.0, %v5278
      %v5280 = vpop.f32.mrb[0].mxu0
      %v5281 = vpop.f32.mrb[0].mxu0
      %v5282 = vadd.f32 0.0, %v5281
      %v5283 = vpop.f32.mrb[0].mxu0
      %5284 = vmatprep.mubr.bf16.mxu0 0
      %5285 = vmatmul.mubr.bf16.gmra.mrb[0].mxu0 %v5172
      %v5286 = vpop.f32.mrb[0].mxu0
      %v5287 = vadd.f32 0.0, %v5286
      %v5288 = vpop.f32.mrb[0].mxu0
      %v5289 = vpop.f32.mrb[0].mxu0
      %v5290 = vadd.f32 0.0, %v5289
      %v5291 = vpop.f32.mrb[0].mxu0
      %5292 = vmatprep.mubr.bf16.mxu0 0
      %5293 = vmatmul.mubr.bf16.gmra.mrb[0].mxu0 %v5175
      %v5294 = vpop.f32.mrb[0].mxu0
      %v5295 = vadd.f32 0.0, %v5294
      %v5296 = vpop.f32.mrb[0].mxu0
      %v5297 = vpop.f32.mrb[0].mxu0
      %v5298 = vadd.f32 0.0, %v5297
      %v5299 = vpop.f32.mrb[0].mxu0
      %5300 = vmatprep.mubr.bf16.mxu0 0
      %5301 = vmatmul.mubr.bf16.gmra.mrb[0].mxu0 %v5178
      %v5302 = vpop.f32.mrb[0].mxu0
      %v5303 = vadd.f32 0.0, %v5302
      %v5304 = vpop.f32.mrb[0].mxu0
      %v5305 = vpop.f32.mrb[0].mxu0
      %v5306 = vadd.f32 0.0, %v5305
      %v5307 = vpop.f32.mrb[0].mxu0
      %5308 = vmatprep.mubr.bf16.mxu0 0
      %5309 = vmatmul.mubr.bf16.gmra.mrb[0].mxu0 %v5181
      %v5310 = vpop.f32.mrb[0].mxu0
      %v5311 = vadd.f32 0.0, %v5310
      %v5312 = vpop.f32.mrb[0].mxu0
      %v5313 = vpop.f32.mrb[0].mxu0
      %v5314 = vadd.f32 0.0, %v5313
      %v5315 = vpop.f32.mrb[0].mxu0
      %5316 = vmatprep.mubr.bf16.mxu0 0
      %5317 = vmatmul.mubr.bf16.gmra.mrb[0].mxu0 %v5184
      %v5318 = vpop.f32.mrb[0].mxu0
      %v5319 = vadd.f32 0.0, %v5318
      %v5320 = vpop.f32.mrb[0].mxu0
      %v5321 = vpop.f32.mrb[0].mxu0
      %v5322 = vadd.f32 0.0, %v5321
      %v5323 = vpop.f32.mrb[0].mxu0
      %5324 = vmatprep.mubr.bf16.mxu0 0
      %5325 = vmatmul.mubr.bf16.gmra.mrb[0].mxu0 %v5187
      %v5326 = vpop.f32.mrb[0].mxu0
      %v5327 = vadd.f32 0.0, %v5326
      %v5328 = vpop.f32.mrb[0].mxu0
      %v5329 = vpop.f32.mrb[0].mxu0
      %v5330 = vadd.f32 0.0, %v5329
      %v5331 = vpop.f32.mrb[0].mxu0
      %5332 = vmatprep.mubr.bf16.mxu0 0
      %5333 = vmatmul.mubr.bf16.gmra.mrb[0].mxu0 %v5190
      %v5334 = vpop.f32.mrb[0].mxu0
      %v5335 = vadd.f32 0.0, %v5334
      %v5336 = vpop.f32.mrb[0].mxu0
      %v5337 = vpop.f32.mrb[0].mxu0
      %v5338 = vadd.f32 0.0, %v5337
      %v5339 = vpop.f32.mrb[0].mxu0
      %5340 = vmatprep.mubr.bf16.mxu0 0
      %5341 = vmatmul.mubr.bf16.gmra.mrb[0].mxu0 %v5193
      %v5342 = vpop.f32.mrb[0].mxu0
      %v5343 = vadd.f32 0.0, %v5342
      %v5344 = vpop.f32.mrb[0].mxu0
      %v5345 = vpop.f32.mrb[0].mxu0
      %v5346 = vadd.f32 0.0, %v5345
      %v5347 = vpop.f32.mrb[0].mxu0
      %5348 = vmatprep.mubr.bf16.mxu0 0
      %5349 = vmatmul.mubr.bf16.gmra.mrb[0].mxu0 %v5196
      %v5350 = vpop.f32.mrb[0].mxu0
      %v5351 = vadd.f32 0.0, %v5350
      %v5352 = vpop.f32.mrb[0].mxu0
      %v5353 = vpop.f32.mrb[0].mxu0
      %v5354 = vadd.f32 0.0, %v5353
      %v5355 = vpop.f32.mrb[0].mxu0
      %5356 = vmatprep.mubr.bf16.mxu0 0
      %5357 = vmatmul.mubr.bf16.gmra.mrb[0].mxu0 %v5199
      %v5358 = vpop.f32.mrb[0].mxu0
      %v5359 = vadd.f32 0.0, %v5358
      %v5360 = vpop.f32.mrb[0].mxu0
      %v5361 = vpop.f32.mrb[0].mxu0
      %v5362 = vadd.f32 0.0, %v5361
      %v5363 = vpop.f32.mrb[0].mxu0
      %5364 = vdwg.mxu0
      %v5365 = vadd.f32 %v4640, %v5239
      %v5366 = vadd.f32 %v4641, %v5242
      %v5367 = vadd.f32 %v4642, %v5247
      %v5368 = vadd.f32 %v4643, %v5250
      %v5369 = vadd.f32 %v4644, %v5255
      %v5370 = vadd.f32 %v4645, %v5258
      %v5371 = vadd.f32 %v4646, %v5263
      %v5372 = vadd.f32 %v4647, %v5266
      %v5373 = vadd.f32 %v4648, %v5271
      %v5374 = vadd.f32 %v4649, %v5274
      %v5375 = vadd.f32 %v4650, %v5279
      %v5376 = vadd.f32 %v4651, %v5282
      %v5377 = vadd.f32 %v4652, %v5287
      %v5378 = vadd.f32 %v4653, %v5290
      %v5379 = vadd.f32 %v4654, %v5295
      %v5380 = vadd.f32 %v4655, %v5298
      %v5381 = vadd.f32 %v4656, %v5303
      %v5382 = vadd.f32 %v4657, %v5306
      %v5383 = vadd.f32 %v4658, %v5311
      %v5384 = vadd.f32 %v4659, %v5314
      %v5385 = vadd.f32 %v4660, %v5319
      %v5386 = vadd.f32 %v4661, %v5322
      %v5387 = vadd.f32 %v4662, %v5327
      %v5388 = vadd.f32 %v4663, %v5330
      %v5389 = vadd.f32 %v4664, %v5335
      %v5390 = vadd.f32 %v4665, %v5338
      %v5391 = vadd.f32 %v4666, %v5343
      %v5392 = vadd.f32 %v4667, %v5346
      %v5393 = vadd.f32 %v4668, %v5351
      %v5394 = vadd.f32 %v4669, %v5354
      %v5395 = vadd.f32 %v4670, %v5359
      %v5396 = vadd.f32 %v4671, %v5362
      %v5397 = vld [vmem:[%s4314] sm:$0xe]
      %v5398 = vld [vmem:[%s4314 + $0xc] sm:$0xe]
      %v5399 = vld [vmem:[%s4314 + $0x18] sm:$0xe]
      %v5400 = vld [vmem:[%s4314 + $0x24] sm:$0xe]
      %v5401 = vld [vmem:[%s4314 + $0x30] sm:$0xe]
      %v5402 = vld [vmem:[%s4314 + $0x3c] sm:$0xe]
      %v5403 = vld [vmem:[%s4314 + $0x48] sm:$0xe]
      %v5404 = vld [vmem:[%s4314 + $0x54] sm:$0xe]
      %v5405 = vld [vmem:[%s4314 + $0x60] sm:$0xe]
      %v5406 = vld [vmem:[%s4314 + $0x6c] sm:$0xe]
      %v5407 = vld [vmem:[%s4314 + $0x78] sm:$0xe]
      %v5408 = vld [vmem:[%s4314 + $0x84] sm:$0xe]
      %v5409 = vld [vmem:[%s4314 + $0x90] sm:$0xe]
      %v5410 = vld [vmem:[%s4314 + $0x9c] sm:$0xe]
      %v5411 = vld [vmem:[%s4314 + $0xa8] sm:$0xe]
      %v5412 = vld [vmem:[%s4314 + $0xb4] sm:$0xe]
      %v5461 = vrot.slane %v5397, 5
      %v5462 = vrot.slane %v5461, 4
      %v5463 = vrot.slane %v4673, 5
      %v5464 = vsel %vm2357, %v5462, %v5463
      %v5465 = vrot.slane %v5463, 4
      %v5466 = vrot.slane %v4674, 5
      %v5467 = vsel %vm2357, %v5465, %v5466
      %v5468 = vrot.slane %v5398, 5
      %v5469 = vrot.slane %v5468, 4
      %v5470 = vrot.slane %v4676, 5
      %v5471 = vsel %vm2357, %v5469, %v5470
      %v5472 = vrot.slane %v5470, 4
      %v5473 = vrot.slane %v4677, 5
      %v5474 = vsel %vm2357, %v5472, %v5473
      %v5475 = vrot.slane %v5399, 5
      %v5476 = vrot.slane %v5475, 4
      %v5477 = vrot.slane %v4679, 5
      %v5478 = vsel %vm2357, %v5476, %v5477
      %v5479 = vrot.slane %v5477, 4
      %v5480 = vrot.slane %v4680, 5
      %v5481 = vsel %vm2357, %v5479, %v5480
      %v5482 = vrot.slane %v5400, 5
      %v5483 = vrot.slane %v5482, 4
      %v5484 = vrot.slane %v4682, 5
      %v5485 = vsel %vm2357, %v5483, %v5484
      %v5486 = vrot.slane %v5484, 4
      %v5487 = vrot.slane %v4683, 5
      %v5488 = vsel %vm2357, %v5486, %v5487
      %v5489 = vrot.slane %v5401, 5
      %v5490 = vrot.slane %v5489, 4
      %v5491 = vrot.slane %v4685, 5
      %v5492 = vsel %vm2357, %v5490, %v5491
      %v5493 = vrot.slane %v5491, 4
      %v5494 = vrot.slane %v4686, 5
      %v5495 = vsel %vm2357, %v5493, %v5494
      %v5496 = vrot.slane %v5402, 5
      %v5497 = vrot.slane %v5496, 4
      %v5498 = vrot.slane %v4688, 5
      %v5499 = vsel %vm2357, %v5497, %v5498
      %v5500 = vrot.slane %v5498, 4
      %v5501 = vrot.slane %v4689, 5
      %v5502 = vsel %vm2357, %v5500, %v5501
      %v5503 = vrot.slane %v5403, 5
      %v5504 = vrot.slane %v5503, 4
      %v5505 = vrot.slane %v4691, 5
      %v5506 = vsel %vm2357, %v5504, %v5505
      %v5507 = vrot.slane %v5505, 4
      %v5508 = vrot.slane %v4692, 5
      %v5509 = vsel %vm2357, %v5507, %v5508
      %v5510 = vrot.slane %v5404, 5
      %v5511 = vrot.slane %v5510, 4
      %v5512 = vrot.slane %v4694, 5
      %v5513 = vsel %vm2357, %v5511, %v5512
      %v5514 = vrot.slane %v5512, 4
      %v5515 = vrot.slane %v4695, 5
      %v5516 = vsel %vm2357, %v5514, %v5515
      %v5517 = vrot.slane %v5405, 5
      %v5518 = vrot.slane %v5517, 4
      %v5519 = vrot.slane %v4697, 5
      %v5520 = vsel %vm2357, %v5518, %v5519
      %v5521 = vrot.slane %v5519, 4
      %v5522 = vrot.slane %v4698, 5
      %v5523 = vsel %vm2357, %v5521, %v5522
      %v5524 = vrot.slane %v5406, 5
      %v5525 = vrot.slane %v5524, 4
      %v5526 = vrot.slane %v4700, 5
      %v5527 = vsel %vm2357, %v5525, %v5526
      %v5528 = vrot.slane %v5526, 4
      %v5529 = vrot.slane %v4701, 5
      %v5530 = vsel %vm2357, %v5528, %v5529
      %v5531 = vrot.slane %v5407, 5
      %v5532 = vrot.slane %v5531, 4
      %v5533 = vrot.slane %v4703, 5
      %v5534 = vsel %vm2357, %v5532, %v5533
      %v5535 = vrot.slane %v5533, 4
      %v5536 = vrot.slane %v4704, 5
      %v5537 = vsel %vm2357, %v5535, %v5536
      %v5538 = vrot.slane %v5408, 5
      %v5539 = vrot.slane %v5538, 4
      %v5540 = vrot.slane %v4706, 5
      %v5541 = vsel %vm2357, %v5539, %v5540
      %v5542 = vrot.slane %v5540, 4
      %v5543 = vrot.slane %v4707, 5
      %v5544 = vsel %vm2357, %v5542, %v5543
      %v5545 = vrot.slane %v5409, 5
      %v5546 = vrot.slane %v5545, 4
      %v5547 = vrot.slane %v4709, 5
      %v5548 = vsel %vm2357, %v5546, %v5547
      %v5549 = vrot.slane %v5547, 4
      %v5550 = vrot.slane %v4710, 5
      %v5551 = vsel %vm2357, %v5549, %v5550
      %v5552 = vrot.slane %v5410, 5
      %v5553 = vrot.slane %v5552, 4
      %v5554 = vrot.slane %v4712, 5
      %v5555 = vsel %vm2357, %v5553, %v5554
      %v5556 = vrot.slane %v5554, 4
      %v5557 = vrot.slane %v4713, 5
      %v5558 = vsel %vm2357, %v5556, %v5557
      %v5559 = vrot.slane %v5411, 5
      %v5560 = vrot.slane %v5559, 4
      %v5561 = vrot.slane %v4715, 5
      %v5562 = vsel %vm2357, %v5560, %v5561
      %v5563 = vrot.slane %v5561, 4
      %v5564 = vrot.slane %v4716, 5
      %v5565 = vsel %vm2357, %v5563, %v5564
      %v5566 = vrot.slane %v5412, 5
      %v5567 = vrot.slane %v5566, 4
      %v5568 = vrot.slane %v4718, 5
      %v5569 = vsel %vm2357, %v5567, %v5568
      %v5570 = vrot.slane %v5568, 4
      %v5571 = vrot.slane %v4719, 5
      %v5572 = vsel %vm2357, %v5570, %v5571
      %v5573 = vld [vmem:[%s387 + $0x20] sm:$0xf]
      %v5574 = vunpack.c.l.b16 %v5464
      %v5575 = vunpack.c.l.b16 %v5467
      %v5576 = vunpack.c.l.b16 %v5471
      %v5577 = vunpack.c.l.b16 %v5474
      %v5578 = vunpack.c.l.b16 %v5478
      %v5579 = vunpack.c.l.b16 %v5481
      %v5580 = vunpack.c.l.b16 %v5485
      %v5581 = vunpack.c.l.b16 %v5488
      %v5582 = vunpack.c.l.b16 %v5492
      %v5583 = vunpack.c.l.b16 %v5495
      %v5584 = vunpack.c.l.b16 %v5499
      %v5585 = vunpack.c.l.b16 %v5502
      %v5586 = vunpack.c.l.b16 %v5506
      %v5587 = vunpack.c.l.b16 %v5509
      %v5588 = vunpack.c.l.b16 %v5513
      %v5589 = vunpack.c.l.b16 %v5516
      %v5590 = vunpack.c.l.b16 %v5520
      %v5591 = vunpack.c.l.b16 %v5523
      %v5592 = vunpack.c.l.b16 %v5527
      %v5593 = vunpack.c.l.b16 %v5530
      %v5594 = vunpack.c.l.b16 %v5534
      %v5595 = vunpack.c.l.b16 %v5537
      %v5596 = vunpack.c.l.b16 %v5541
      %v5597 = vunpack.c.l.b16 %v5544
      %v5598 = vunpack.c.l.b16 %v5548
      %v5599 = vunpack.c.l.b16 %v5551
      %v5600 = vunpack.c.l.b16 %v5555
      %v5601 = vunpack.c.l.b16 %v5558
      %v5602 = vunpack.c.l.b16 %v5562
      %v5603 = vunpack.c.l.b16 %v5565
      %v5604 = vunpack.c.l.b16 %v5569
      %v5605 = vunpack.c.l.b16 %v5572
      %v5606 = vpack.c.b16 %v5575, %v5574
      %v5607 = vpack.c.b16 %v5577, %v5576
      %v5608 = vpack.c.b16 %v5579, %v5578
      %v5609 = vpack.c.b16 %v5581, %v5580
      %v5610 = vpack.c.b16 %v5583, %v5582
      %v5611 = vpack.c.b16 %v5585, %v5584
      %v5612 = vpack.c.b16 %v5587, %v5586
      %v5613 = vpack.c.b16 %v5589, %v5588
      %v5614 = vpack.c.b16 %v5591, %v5590
      %v5615 = vpack.c.b16 %v5593, %v5592
      %v5616 = vpack.c.b16 %v5595, %v5594
      %v5617 = vpack.c.b16 %v5597, %v5596
      %v5618 = vpack.c.b16 %v5599, %v5598
      %v5619 = vpack.c.b16 %v5601, %v5600
      %v5620 = vpack.c.b16 %v5603, %v5602
      %v5621 = vpack.c.b16 %v5605, %v5604
      %v5623 = vsel %vm1801, %v5606, 0
      %v5626 = vsel %vm1801, %v5607, 0
      %v5629 = vsel %vm1801, %v5608, 0
      %v5632 = vsel %vm1801, %v5609, 0
      %v5635 = vsel %vm1801, %v5610, 0
      %v5638 = vsel %vm1801, %v5611, 0
      %v5641 = vsel %vm1801, %v5612, 0
      %v5644 = vsel %vm1801, %v5613, 0
      %v5647 = vsel %vm1801, %v5614, 0
      %v5650 = vsel %vm1801, %v5615, 0
      %v5653 = vsel %vm1801, %v5616, 0
      %v5656 = vsel %vm1801, %v5617, 0
      %v5659 = vsel %vm1801, %v5618, 0
      %v5662 = vsel %vm1801, %v5619, 0
      %v5665 = vsel %vm1801, %v5620, 0
      %v5668 = vsel %vm1801, %v5621, 0
      %v5671 = vsel %vm1850, %v5573, 0
      %5673 = vmatprep.subr.bf16.mxu0 0
      %5674 = vmatpush1.bf16.msra.mxu0 %v5671
      %5675 = vmatprep.subr.bf16.mxu0 0
      %5676 = vmatpush1.bf16.msra.mxu0 0
      %5677 = vmatprep.subr.bf16.mxu0 0
      %5678 = vmatpush1.bf16.msra.mxu0 0
      %5679 = vmatprep.subr.bf16.mxu0 0
      %5680 = vmatpush1.bf16.msra.mxu0 0
      %5681 = vmatprep.subr.bf16.mxu0 0
      %5682 = vmatpush1.bf16.msra.mxu0 0
      %5683 = vmatprep.subr.bf16.mxu0 0
      %5684 = vmatpush1.bf16.msra.mxu0 0
      %5685 = vmatprep.subr.bf16.mxu0 0
      %5686 = vmatpush1.bf16.msra.mxu0 0
      %5687 = vmatprep.subr.bf16.mxu0 0
      %5688 = vmatpush1.bf16.msra.mxu0 0
      %5689 = vmatprep.subr.bf16.mxu0 0
      %5690 = vmatpush1.bf16.msra.mxu0 0
      %5691 = vmatprep.subr.bf16.mxu0 0
      %5692 = vmatpush1.bf16.msra.mxu0 0
      %5693 = vmatprep.subr.bf16.mxu0 0
      %5694 = vmatpush1.bf16.msra.mxu0 0
      %5695 = vmatprep.subr.bf16.mxu0 0
      %5696 = vmatpush1.bf16.msra.mxu0 0
      %5697 = vmatprep.subr.bf16.mxu0 0
      %5698 = vmatpush1.bf16.msra.mxu0 0
      %5699 = vmatprep.subr.bf16.mxu0 0
      %5700 = vmatpush1.bf16.msra.mxu0 0
      %5701 = vmatprep.subr.bf16.mxu0 0
      %5702 = vmatpush1.bf16.msra.mxu0 0
      %5703 = vmatprep.subr.bf16.mxu0 0
      %5704 = vmatpush1.bf16.msra.mxu0 0
      %5705 = vmatprep.mubr.bf16.mxu0 0
      %5706 = vmatmul.mubr.bf16.gmra.mrb[0].mxu0 %v5623
      %v5707 = vpop.f32.mrb[0].mxu0
      %v5708 = vadd.f32 0.0, %v5707
      %v5709 = vpop.f32.mrb[0].mxu0
      %v5710 = vpop.f32.mrb[0].mxu0
      %v5711 = vadd.f32 0.0, %v5710
      %v5712 = vpop.f32.mrb[0].mxu0
      %5713 = vmatprep.mubr.bf16.mxu0 0
      %5714 = vmatmul.mubr.bf16.gmra.mrb[0].mxu0 %v5626
      %v5715 = vpop.f32.mrb[0].mxu0
      %v5716 = vadd.f32 0.0, %v5715
      %v5717 = vpop.f32.mrb[0].mxu0
      %v5718 = vpop.f32.mrb[0].mxu0
      %v5719 = vadd.f32 0.0, %v5718
      %v5720 = vpop.f32.mrb[0].mxu0
      %5721 = vmatprep.mubr.bf16.mxu0 0
      %5722 = vmatmul.mubr.bf16.gmra.mrb[0].mxu0 %v5629
      %v5723 = vpop.f32.mrb[0].mxu0
      %v5724 = vadd.f32 0.0, %v5723
      %v5725 = vpop.f32.mrb[0].mxu0
      %v5726 = vpop.f32.mrb[0].mxu0
      %v5727 = vadd.f32 0.0, %v5726
      %v5728 = vpop.f32.mrb[0].mxu0
      %5729 = vmatprep.mubr.bf16.mxu0 0
      %5730 = vmatmul.mubr.bf16.gmra.mrb[0].mxu0 %v5632
      %v5731 = vpop.f32.mrb[0].mxu0
      %v5732 = vadd.f32 0.0, %v5731
      %v5733 = vpop.f32.mrb[0].mxu0
      %v5734 = vpop.f32.mrb[0].mxu0
      %v5735 = vadd.f32 0.0, %v5734
      %v5736 = vpop.f32.mrb[0].mxu0
      %5737 = vmatprep.mubr.bf16.mxu0 0
      %5738 = vmatmul.mubr.bf16.gmra.mrb[0].mxu0 %v5635
      %v5739 = vpop.f32.mrb[0].mxu0
      %v5740 = vadd.f32 0.0, %v5739
      %v5741 = vpop.f32.mrb[0].mxu0
      %v5742 = vpop.f32.mrb[0].mxu0
      %v5743 = vadd.f32 0.0, %v5742
      %v5744 = vpop.f32.mrb[0].mxu0
      %5745 = vmatprep.mubr.bf16.mxu0 0
      %5746 = vmatmul.mubr.bf16.gmra.mrb[0].mxu0 %v5638
      %v5747 = vpop.f32.mrb[0].mxu0
      %v5748 = vadd.f32 0.0, %v5747
      %v5749 = vpop.f32.mrb[0].mxu0
      %v5750 = vpop.f32.mrb[0].mxu0
      %v5751 = vadd.f32 0.0, %v5750
      %v5752 = vpop.f32.mrb[0].mxu0
      %5753 = vmatprep.mubr.bf16.mxu0 0
      %5754 = vmatmul.mubr.bf16.gmra.mrb[0].mxu0 %v5641
      %v5755 = vpop.f32.mrb[0].mxu0
      %v5756 = vadd.f32 0.0, %v5755
      %v5757 = vpop.f32.mrb[0].mxu0
      %v5758 = vpop.f32.mrb[0].mxu0
      %v5759 = vadd.f32 0.0, %v5758
      %v5760 = vpop.f32.mrb[0].mxu0
      %5761 = vmatprep.mubr.bf16.mxu0 0
      %5762 = vmatmul.mubr.bf16.gmra.mrb[0].mxu0 %v5644
      %v5763 = vpop.f32.mrb[0].mxu0
      %v5764 = vadd.f32 0.0, %v5763
      %v5765 = vpop.f32.mrb[0].mxu0
      %v5766 = vpop.f32.mrb[0].mxu0
      %v5767 = vadd.f32 0.0, %v5766
      %v5768 = vpop.f32.mrb[0].mxu0
      %5769 = vmatprep.mubr.bf16.mxu0 0
      %5770 = vmatmul.mubr.bf16.gmra.mrb[0].mxu0 %v5647
      %v5771 = vpop.f32.mrb[0].mxu0
      %v5772 = vadd.f32 0.0, %v5771
      %v5773 = vpop.f32.mrb[0].mxu0
      %v5774 = vpop.f32.mrb[0].mxu0
      %v5775 = vadd.f32 0.0, %v5774
      %v5776 = vpop.f32.mrb[0].mxu0
      %5777 = vmatprep.mubr.bf16.mxu0 0
      %5778 = vmatmul.mubr.bf16.gmra.mrb[0].mxu0 %v5650
      %v5779 = vpop.f32.mrb[0].mxu0
      %v5780 = vadd.f32 0.0, %v5779
      %v5781 = vpop.f32.mrb[0].mxu0
      %v5782 = vpop.f32.mrb[0].mxu0
      %v5783 = vadd.f32 0.0, %v5782
      %v5784 = vpop.f32.mrb[0].mxu0
      %5785 = vmatprep.mubr.bf16.mxu0 0
      %5786 = vmatmul.mubr.bf16.gmra.mrb[0].mxu0 %v5653
      %v5787 = vpop.f32.mrb[0].mxu0
      %v5788 = vadd.f32 0.0, %v5787
      %v5789 = vpop.f32.mrb[0].mxu0
      %v5790 = vpop.f32.mrb[0].mxu0
      %v5791 = vadd.f32 0.0, %v5790
      %v5792 = vpop.f32.mrb[0].mxu0
      %5793 = vmatprep.mubr.bf16.mxu0 0
      %5794 = vmatmul.mubr.bf16.gmra.mrb[0].mxu0 %v5656
      %v5795 = vpop.f32.mrb[0].mxu0
      %v5796 = vadd.f32 0.0, %v5795
      %v5797 = vpop.f32.mrb[0].mxu0
      %v5798 = vpop.f32.mrb[0].mxu0
      %v5799 = vadd.f32 0.0, %v5798
      %v5800 = vpop.f32.mrb[0].mxu0
      %5801 = vmatprep.mubr.bf16.mxu0 0
      %5802 = vmatmul.mubr.bf16.gmra.mrb[0].mxu0 %v5659
      %v5803 = vpop.f32.mrb[0].mxu0
      %v5804 = vadd.f32 0.0, %v5803
      %v5805 = vpop.f32.mrb[0].mxu0
      %v5806 = vpop.f32.mrb[0].mxu0
      %v5807 = vadd.f32 0.0, %v5806
      %v5808 = vpop.f32.mrb[0].mxu0
      %5809 = vmatprep.mubr.bf16.mxu0 0
      %5810 = vmatmul.mubr.bf16.gmra.mrb[0].mxu0 %v5662
      %v5811 = vpop.f32.mrb[0].mxu0
      %v5812 = vadd.f32 0.0, %v5811
      %v5813 = vpop.f32.mrb[0].mxu0
      %v5814 = vpop.f32.mrb[0].mxu0
      %v5815 = vadd.f32 0.0, %v5814
      %v5816 = vpop.f32.mrb[0].mxu0
      %5817 = vmatprep.mubr.bf16.mxu0 0
      %5818 = vmatmul.mubr.bf16.gmra.mrb[0].mxu0 %v5665
      %v5819 = vpop.f32.mrb[0].mxu0
      %v5820 = vadd.f32 0.0, %v5819
      %v5821 = vpop.f32.mrb[0].mxu0
      %v5822 = vpop.f32.mrb[0].mxu0
      %v5823 = vadd.f32 0.0, %v5822
      %v5824 = vpop.f32.mrb[0].mxu0
      %5825 = vmatprep.mubr.bf16.mxu0 0
      %5826 = vmatmul.mubr.bf16.gmra.mrb[0].mxu0 %v5668
      %v5827 = vpop.f32.mrb[0].mxu0
      %v5828 = vadd.f32 0.0, %v5827
      %v5829 = vpop.f32.mrb[0].mxu0
      %v5830 = vpop.f32.mrb[0].mxu0
      %v5831 = vadd.f32 0.0, %v5830
      %v5832 = vpop.f32.mrb[0].mxu0
      %5833 = vdwg.mxu0
      %v5834 = vadd.f32 %v5365, %v5708
      %v5835 = vadd.f32 %v5366, %v5711
      %v5836 = vadd.f32 %v5367, %v5716
      %v5837 = vadd.f32 %v5368, %v5719
      %v5838 = vadd.f32 %v5369, %v5724
      %v5839 = vadd.f32 %v5370, %v5727
      %v5840 = vadd.f32 %v5371, %v5732
      %v5841 = vadd.f32 %v5372, %v5735
      %v5842 = vadd.f32 %v5373, %v5740
      %v5843 = vadd.f32 %v5374, %v5743
      %v5844 = vadd.f32 %v5375, %v5748
      %v5845 = vadd.f32 %v5376, %v5751
      %v5846 = vadd.f32 %v5377, %v5756
      %v5847 = vadd.f32 %v5378, %v5759
      %v5848 = vadd.f32 %v5379, %v5764
      %v5849 = vadd.f32 %v5380, %v5767
      %v5850 = vadd.f32 %v5381, %v5772
      %v5851 = vadd.f32 %v5382, %v5775
      %v5852 = vadd.f32 %v5383, %v5780
      %v5853 = vadd.f32 %v5384, %v5783
      %v5854 = vadd.f32 %v5385, %v5788
      %v5855 = vadd.f32 %v5386, %v5791
      %v5856 = vadd.f32 %v5387, %v5796
      %v5857 = vadd.f32 %v5388, %v5799
      %v5858 = vadd.f32 %v5389, %v5804
      %v5859 = vadd.f32 %v5390, %v5807
      %v5860 = vadd.f32 %v5391, %v5812
      %v5861 = vadd.f32 %v5392, %v5815
      %v5862 = vadd.f32 %v5393, %v5820
      %v5863 = vadd.f32 %v5394, %v5823
      %v5864 = vadd.f32 %v5395, %v5828
      %v5865 = vadd.f32 %v5396, %v5831
      %v5866 = vpack.c.bf16 %v5835, %v5834
      %v5867 = vpack.c.bf16 %v5837, %v5836
      %v5868 = vpack.c.bf16 %v5839, %v5838
      %v5869 = vpack.c.bf16 %v5841, %v5840
      %v5870 = vpack.c.bf16 %v5843, %v5842
      %v5871 = vpack.c.bf16 %v5845, %v5844
      %v5872 = vpack.c.bf16 %v5847, %v5846
      %v5873 = vpack.c.bf16 %v5849, %v5848
      %v5874 = vpack.c.bf16 %v5851, %v5850
      %v5875 = vpack.c.bf16 %v5853, %v5852
      %v5876 = vpack.c.bf16 %v5855, %v5854
      %v5877 = vpack.c.bf16 %v5857, %v5856
      %v5878 = vpack.c.bf16 %v5859, %v5858
      %v5879 = vpack.c.bf16 %v5861, %v5860
      %v5880 = vpack.c.bf16 %v5863, %v5862
      %v5881 = vpack.c.bf16 %v5865, %v5864
      %v5898 = vunpack.c.l.b16 %v5866
      %v5899 = vunpack.c.h.b16 %v5866
      %v5900 = vunpack.c.l.b16 %v5867
      %v5901 = vunpack.c.h.b16 %v5867
      %v5902 = vunpack.c.l.b16 %v5868
      %v5903 = vunpack.c.h.b16 %v5868
      %v5904 = vunpack.c.l.b16 %v5869
      %v5905 = vunpack.c.h.b16 %v5869
      %v5906 = vunpack.c.l.b16 %v5870
      %v5907 = vunpack.c.h.b16 %v5870
      %v5908 = vunpack.c.l.b16 %v5871
      %v5909 = vunpack.c.h.b16 %v5871
      %v5910 = vunpack.c.l.b16 %v5872
      %v5911 = vunpack.c.h.b16 %v5872
      %v5912 = vunpack.c.l.b16 %v5873
      %v5913 = vunpack.c.h.b16 %v5873
      %v5914 = vunpack.c.l.b16 %v5874
      %v5915 = vunpack.c.h.b16 %v5874
      %v5916 = vunpack.c.l.b16 %v5875
      %v5917 = vunpack.c.h.b16 %v5875
      %v5918 = vunpack.c.l.b16 %v5876
      %v5919 = vunpack.c.h.b16 %v5876
      %v5920 = vunpack.c.l.b16 %v5877
      %v5921 = vunpack.c.h.b16 %v5877
      %v5922 = vunpack.c.l.b16 %v5878
      %v5923 = vunpack.c.h.b16 %v5878
      %v5924 = vunpack.c.l.b16 %v5879
      %v5925 = vunpack.c.h.b16 %v5879
      %v5926 = vunpack.c.l.b16 %v5880
      %v5927 = vunpack.c.h.b16 %v5880
      %v5928 = vunpack.c.l.b16 %v5881
      %v5929 = vunpack.c.h.b16 %v5881
      %v5930 = vpack.c.b16 %v5898, %v5898
      %v5931 = vpack.c.b16 %v5899, %v5899
      %v5932 = vpack.c.b16 %v5900, %v5900
      %v5933 = vpack.c.b16 %v5901, %v5901
      %v5934 = vpack.c.b16 %v5902, %v5902
      %v5935 = vpack.c.b16 %v5903, %v5903
      %v5936 = vpack.c.b16 %v5904, %v5904
      %v5937 = vpack.c.b16 %v5905, %v5905
      %v5938 = vpack.c.b16 %v5906, %v5906
      %v5939 = vpack.c.b16 %v5907, %v5907
      %v5940 = vpack.c.b16 %v5908, %v5908
      %v5941 = vpack.c.b16 %v5909, %v5909
      %v5942 = vpack.c.b16 %v5910, %v5910
      %v5943 = vpack.c.b16 %v5911, %v5911
      %v5944 = vpack.c.b16 %v5912, %v5912
      %v5945 = vpack.c.b16 %v5913, %v5913
      %v5946 = vpack.c.b16 %v5914, %v5914
      %v5947 = vpack.c.b16 %v5915, %v5915
      %v5948 = vpack.c.b16 %v5916, %v5916
      %v5949 = vpack.c.b16 %v5917, %v5917
      %v5950 = vpack.c.b16 %v5918, %v5918
      %v5951 = vpack.c.b16 %v5919, %v5919
      %v5952 = vpack.c.b16 %v5920, %v5920
      %v5953 = vpack.c.b16 %v5921, %v5921
      %v5954 = vpack.c.b16 %v5922, %v5922
      %v5955 = vpack.c.b16 %v5923, %v5923
      %v5956 = vpack.c.b16 %v5924, %v5924
      %v5957 = vpack.c.b16 %v5925, %v5925
      %v5958 = vpack.c.b16 %v5926, %v5926
      %v5959 = vpack.c.b16 %v5927, %v5927
      %v5960 = vpack.c.b16 %v5928, %v5928
      %v5961 = vpack.c.b16 %v5929, %v5929
      %5994 = vst.msk [vmem:[%s400] sm:$0xf] %vm1156, %v5930
      %5995 = vst.msk [vmem:[%s400 + $0x4] sm:$0xf] %vm1156, %v5931
      %5996 = vst.msk [vmem:[%s400 + $0x8] sm:$0xf] %vm1156, %v5932
      %5997 = vst.msk [vmem:[%s400 + $0xc] sm:$0xf] %vm1156, %v5933
      %5998 = vst.msk [vmem:[%s400 + $0x10] sm:$0xf] %vm1156, %v5934
      %5999 = vst.msk [vmem:[%s400 + $0x14] sm:$0xf] %vm1156, %v5935
      %6000 = vst.msk [vmem:[%s400 + $0x18] sm:$0xf] %vm1156, %v5936
      %6001 = vst.msk [vmem:[%s400 + $0x1c] sm:$0xf] %vm1156, %v5937
      %6002 = vst.msk [vmem:[%s400 + $0x20] sm:$0xf] %vm1156, %v5938
      %6003 = vst.msk [vmem:[%s400 + $0x24] sm:$0xf] %vm1156, %v5939
      %6004 = vst.msk [vmem:[%s400 + $0x28] sm:$0xf] %vm1156, %v5940
      %6005 = vst.msk [vmem:[%s400 + $0x2c] sm:$0xf] %vm1156, %v5941
      %6006 = vst.msk [vmem:[%s400 + $0x30] sm:$0xf] %vm1156, %v5942
      %6007 = vst.msk [vmem:[%s400 + $0x34] sm:$0xf] %vm1156, %v5943
      %6008 = vst.msk [vmem:[%s400 + $0x38] sm:$0xf] %vm1156, %v5944
      %6009 = vst.msk [vmem:[%s400 + $0x3c] sm:$0xf] %vm1156, %v5945
      %6010 = vst.msk [vmem:[%s400 + $0x40] sm:$0xf] %vm1156, %v5946
      %6011 = vst.msk [vmem:[%s400 + $0x44] sm:$0xf] %vm1156, %v5947
      %6012 = vst.msk [vmem:[%s400 + $0x48] sm:$0xf] %vm1156, %v5948
      %6013 = vst.msk [vmem:[%s400 + $0x4c] sm:$0xf] %vm1156, %v5949
      %6014 = vst.msk [vmem:[%s400 + $0x50] sm:$0xf] %vm1156, %v5950
      %6015 = vst.msk [vmem:[%s400 + $0x54] sm:$0xf] %vm1156, %v5951
      %6016 = vst.msk [vmem:[%s400 + $0x58] sm:$0xf] %vm1156, %v5952
      %6017 = vst.msk [vmem:[%s400 + $0x5c] sm:$0xf] %vm1156, %v5953
      %6018 = vst.msk [vmem:[%s400 + $0x60] sm:$0xf] %vm1156, %v5954
      %6019 = vst.msk [vmem:[%s400 + $0x64] sm:$0xf] %vm1156, %v5955
      %6020 = vst.msk [vmem:[%s400 + $0x68] sm:$0xf] %vm1156, %v5956
      %6021 = vst.msk [vmem:[%s400 + $0x6c] sm:$0xf] %vm1156, %v5957
      %6022 = vst.msk [vmem:[%s400 + $0x70] sm:$0xf] %vm1156, %v5958
      %6023 = vst.msk [vmem:[%s400 + $0x74] sm:$0xf] %vm1156, %v5959
      %6024 = vst.msk [vmem:[%s400 + $0x78] sm:$0xf] %vm1156, %v5960
      %6025 = vst.msk [vmem:[%s400 + $0x7c] sm:$0xf] %vm1156, %v5961
      %v6026 = vsel %vm1801, %v5834, 0.0
      %v6027 = vsel %vm1801, %v5835, 0.0
      %v6028 = vadd.f32 %v6026, %v6027
      %v6029 = vsel %vm1801, %v5836, 0.0
      %v6030 = vadd.f32 %v6028, %v6029
      %v6031 = vsel %vm1801, %v5837, 0.0
      %v6032 = vadd.f32 %v6030, %v6031
      %v6033 = vsel %vm1801, %v5838, 0.0
      %v6034 = vadd.f32 %v6032, %v6033
      %v6035 = vsel %vm1801, %v5839, 0.0
      %v6036 = vadd.f32 %v6034, %v6035
      %v6037 = vsel %vm1801, %v5840, 0.0
      %v6038 = vadd.f32 %v6036, %v6037
      %v6039 = vsel %vm1801, %v5841, 0.0
      %v6040 = vadd.f32 %v6038, %v6039
      %v6041 = vsel %vm1801, %v5842, 0.0
      %v6042 = vadd.f32 %v6040, %v6041
      %v6043 = vsel %vm1801, %v5843, 0.0
      %v6044 = vadd.f32 %v6042, %v6043
      %v6045 = vsel %vm1801, %v5844, 0.0
      %v6046 = vadd.f32 %v6044, %v6045
      %v6047 = vsel %vm1801, %v5845, 0.0
      %v6048 = vadd.f32 %v6046, %v6047
      %v6049 = vsel %vm1801, %v5846, 0.0
      %v6050 = vadd.f32 %v6048, %v6049
      %v6051 = vsel %vm1801, %v5847, 0.0
      %v6052 = vadd.f32 %v6050, %v6051
      %v6053 = vsel %vm1801, %v5848, 0.0
      %v6054 = vadd.f32 %v6052, %v6053
      %v6055 = vsel %vm1801, %v5849, 0.0
      %v6056 = vadd.f32 %v6054, %v6055
      %v6057 = vsel %vm1801, %v5850, 0.0
      %v6058 = vadd.f32 %v6056, %v6057
      %v6059 = vsel %vm1801, %v5851, 0.0
      %v6060 = vadd.f32 %v6058, %v6059
      %v6061 = vsel %vm1801, %v5852, 0.0
      %v6062 = vadd.f32 %v6060, %v6061
      %v6063 = vsel %vm1801, %v5853, 0.0
      %v6064 = vadd.f32 %v6062, %v6063
      %v6065 = vsel %vm1801, %v5854, 0.0
      %v6066 = vadd.f32 %v6064, %v6065
      %v6067 = vsel %vm1801, %v5855, 0.0
      %v6068 = vadd.f32 %v6066, %v6067
      %v6069 = vsel %vm1801, %v5856, 0.0
      %v6070 = vadd.f32 %v6068, %v6069
      %v6071 = vsel %vm1801, %v5857, 0.0
      %v6072 = vadd.f32 %v6070, %v6071
      %v6073 = vsel %vm1801, %v5858, 0.0
      %v6074 = vadd.f32 %v6072, %v6073
      %v6075 = vsel %vm1801, %v5859, 0.0
      %v6076 = vadd.f32 %v6074, %v6075
      %v6077 = vsel %vm1801, %v5860, 0.0
      %v6078 = vadd.f32 %v6076, %v6077
      %v6079 = vsel %vm1801, %v5861, 0.0
      %v6080 = vadd.f32 %v6078, %v6079
      %v6081 = vsel %vm1801, %v5862, 0.0
      %v6082 = vadd.f32 %v6080, %v6081
      %v6083 = vsel %vm1801, %v5863, 0.0
      %v6084 = vadd.f32 %v6082, %v6083
      %v6085 = vsel %vm1801, %v5864, 0.0
      %v6086 = vadd.f32 %v6084, %v6085
      %v6087 = vsel %vm1801, %v5865, 0.0
      %v6088 = vadd.f32 %v6086, %v6087
      %v6089 = vrot.slane %v6088, 4
      %v6090 = vadd.f32 %v6088, %v6089
      %v6091 = vrot.slane %v6090, 2
      %v6092 = vadd.f32 %v6090, %v6091
      %v6093 = vrot.slane %v6092, 1
      %v6094 = vadd.f32 %v6092, %v6093
      %v6095 = vmul.f32 %v5834, %v5834
      %v6096 = vmul.f32 %v5835, %v5835
      %v6097 = vmul.f32 %v5836, %v5836
      %v6098 = vmul.f32 %v5837, %v5837
      %v6099 = vmul.f32 %v5838, %v5838
      %v6100 = vmul.f32 %v5839, %v5839
      %v6101 = vmul.f32 %v5840, %v5840
      %v6102 = vmul.f32 %v5841, %v5841
      %v6103 = vmul.f32 %v5842, %v5842
      %v6104 = vmul.f32 %v5843, %v5843
      %v6105 = vmul.f32 %v5844, %v5844
      %v6106 = vmul.f32 %v5845, %v5845
      %v6107 = vmul.f32 %v5846, %v5846
      %v6108 = vmul.f32 %v5847, %v5847
      %v6109 = vmul.f32 %v5848, %v5848
      %v6110 = vmul.f32 %v5849, %v5849
      %v6111 = vmul.f32 %v5850, %v5850
      %v6112 = vmul.f32 %v5851, %v5851
      %v6113 = vmul.f32 %v5852, %v5852
      %v6114 = vmul.f32 %v5853, %v5853
      %v6115 = vmul.f32 %v5854, %v5854
      %v6116 = vmul.f32 %v5855, %v5855
      %v6117 = vmul.f32 %v5856, %v5856
      %v6118 = vmul.f32 %v5857, %v5857
      %v6119 = vmul.f32 %v5858, %v5858
      %v6120 = vmul.f32 %v5859, %v5859
      %v6121 = vmul.f32 %v5860, %v5860
      %v6122 = vmul.f32 %v5861, %v5861
      %v6123 = vmul.f32 %v5862, %v5862
      %v6124 = vmul.f32 %v5863, %v5863
      %v6125 = vmul.f32 %v5864, %v5864
      %v6126 = vmul.f32 %v5865, %v5865
      %v6127 = vsel %vm1801, %v6095, 0.0
      %v6128 = vsel %vm1801, %v6096, 0.0
      %v6129 = vadd.f32 %v6127, %v6128
      %v6130 = vsel %vm1801, %v6097, 0.0
      %v6131 = vadd.f32 %v6129, %v6130
      %v6132 = vsel %vm1801, %v6098, 0.0
      %v6133 = vadd.f32 %v6131, %v6132
      %v6134 = vsel %vm1801, %v6099, 0.0
      %v6135 = vadd.f32 %v6133, %v6134
      %v6136 = vsel %vm1801, %v6100, 0.0
      %v6137 = vadd.f32 %v6135, %v6136
      %v6138 = vsel %vm1801, %v6101, 0.0
      %v6139 = vadd.f32 %v6137, %v6138
      %v6140 = vsel %vm1801, %v6102, 0.0
      %v6141 = vadd.f32 %v6139, %v6140
      %v6142 = vsel %vm1801, %v6103, 0.0
      %v6143 = vadd.f32 %v6141, %v6142
      %v6144 = vsel %vm1801, %v6104, 0.0
      %v6145 = vadd.f32 %v6143, %v6144
      %v6146 = vsel %vm1801, %v6105, 0.0
      %v6147 = vadd.f32 %v6145, %v6146
      %v6148 = vsel %vm1801, %v6106, 0.0
      %v6149 = vadd.f32 %v6147, %v6148
      %v6150 = vsel %vm1801, %v6107, 0.0
      %v6151 = vadd.f32 %v6149, %v6150
      %v6152 = vsel %vm1801, %v6108, 0.0
      %v6153 = vadd.f32 %v6151, %v6152
      %v6154 = vsel %vm1801, %v6109, 0.0
      %v6155 = vadd.f32 %v6153, %v6154
      %v6156 = vsel %vm1801, %v6110, 0.0
      %v6157 = vadd.f32 %v6155, %v6156
      %v6158 = vsel %vm1801, %v6111, 0.0
      %v6159 = vadd.f32 %v6157, %v6158
      %v6160 = vsel %vm1801, %v6112, 0.0
      %v6161 = vadd.f32 %v6159, %v6160
      %v6162 = vsel %vm1801, %v6113, 0.0
      %v6163 = vadd.f32 %v6161, %v6162
      %v6164 = vsel %vm1801, %v6114, 0.0
      %v6165 = vadd.f32 %v6163, %v6164
      %v6166 = vsel %vm1801, %v6115, 0.0
      %v6167 = vadd.f32 %v6165, %v6166
      %v6168 = vsel %vm1801, %v6116, 0.0
      %v6169 = vadd.f32 %v6167, %v6168
      %v6170 = vsel %vm1801, %v6117, 0.0
      %v6171 = vadd.f32 %v6169, %v6170
      %v6172 = vsel %vm1801, %v6118, 0.0
      %v6173 = vadd.f32 %v6171, %v6172
      %v6174 = vsel %vm1801, %v6119, 0.0
      %v6175 = vadd.f32 %v6173, %v6174
      %v6176 = vsel %vm1801, %v6120, 0.0
      %v6177 = vadd.f32 %v6175, %v6176
      %v6178 = vsel %vm1801, %v6121, 0.0
      %v6179 = vadd.f32 %v6177, %v6178
      %v6180 = vsel %vm1801, %v6122, 0.0
      %v6181 = vadd.f32 %v6179, %v6180
      %v6182 = vsel %vm1801, %v6123, 0.0
      %v6183 = vadd.f32 %v6181, %v6182
      %v6184 = vsel %vm1801, %v6124, 0.0
      %v6185 = vadd.f32 %v6183, %v6184
      %v6186 = vsel %vm1801, %v6125, 0.0
      %v6187 = vadd.f32 %v6185, %v6186
      %v6188 = vsel %vm1801, %v6126, 0.0
      %v6189 = vadd.f32 %v6187, %v6188
      %v6190 = vrot.slane %v6189, 4
      %v6191 = vadd.f32 %v6189, %v6190
      %v6192 = vrot.slane %v6191, 2
      %v6193 = vadd.f32 %v6191, %v6192
      %v6194 = vrot.slane %v6193, 1
      %v6195 = vadd.f32 %v6193, %v6194
      %vm6196 = vcmask 1040384
      %v6197 = vsel %vm6196, %v6094, %v6195
      // Predicated region
      $region57: #{double_conv.4} parent=39 // pred_check
        %p6198 = pneg %p611
      $region58: #{double_conv.4} parent=39 // pred_check_branch
        %6200 = sbr.rel (%p6198) target = $region60
      $region59: #{double_conv.4} parent=39 // pred_region
        %vm6201 = vcmask 58368
        %6202 = vst.msk [vmem:[%s408] sm:$0x3] %vm6201, %v6197
      $region60: #{double_conv.4} parent=39 // pred_fallthru
        _
      // Predicated region
      $region61: #{double_conv.4} parent=39 // pred_check
        %p6203 = pneg %p733
      $region62: #{double_conv.4} parent=39 // pred_check_branch
        %6205 = sbr.rel (%p6203) target = $region64
      $region63: #{double_conv.4} parent=39 // pred_region
        %v6206 = vld [vmem:[%s408] sm:$0x3]
        %v6207 = vadd.f32 %v6206, %v6197
        %vm6208 = vcmask 58368
        %6209 = vst.msk [vmem:[%s408] sm:$0x3] %vm6208, %v6207
      $region64: #{double_conv.4} parent=39 // pred_fallthru
        _
      %s6210 = smul.u32 16, %s25
      %p6211 = scmp.lt.s32.totalorder %s23, 1
      %s6212 = scalar_select %p6211, %s23, 1
      %p6213 = scmp.lt.s32.totalorder %s6210, 15
      %s6214 = scalar_select %p6213, %s6210, 15
      %p6215 = scmp.lt.s32.totalorder %s24, 0
      %s6216 = scalar_select %p6215, %s24, 0
      %s6217 = smul.addr %s6214, 2
      %s6218 = sadd.s32 %s6216, %s6217
      %s6219 = smul.addr %s6212, 32
      %s6220 = sadd.s32 %s6218, %s6219
      %s6221 = smul.addr %s6220, 4
      %s6222 = scalar_lea.vmem %s5, %s6221
      %p6223 = scmp.lt.s32.totalorder %s23, 1
      %s6224 = scalar_select %p6223, %s23, 1
      %p6225 = scmp.lt.s32.totalorder %s24, 0
      %s6226 = scalar_select %p6225, %s24, 0
      %s6227 = sadd.s32 %s6226, %s6224
      %s6228 = smul.addr %s6227, 2
      %s6229 = scalar_lea.vmem %s6, %s6228
      // Predicated region
      $region65: #{double_conv.4} parent=39 // pred_check
        %p6230 = pneg %p191
      $region66: #{double_conv.4} parent=39 // pred_check_branch
        %6232 = sbr.rel (%p6230) target = $region68
      $region67: #{double_conv.4} parent=39 // pred_region
        %s6233 = smul.u32 16, %s25
      $region68: #{double_conv.4} parent=39 // pred_fallthru
        _
      // Predicated region
      $region69: #{double_conv.4} parent=39 // pred_check
        %p6234 = pneg %p219
      $region70: #{double_conv.4} parent=39 // pred_check_branch
        %6236 = sbr.rel (%p6234) target = $region72
      $region71: #{double_conv.4} parent=39 // pred_region
        _
      $region72: #{double_conv.4} parent=39 // pred_fallthru
        _
    $region40: #{double_conv.4} parent=5 // pred_fallthru
      _
    %p6237 = scmp.le.s32.totalorder 2, %s13
    // Predicated region
    $region73: #{double_conv.4} parent=5 // pred_check
      %p6238 = pneg %p6237
    $region74: #{double_conv.4} parent=5 // pred_check_branch
      %6240 = sbr.rel (%p6238) target = $region76
    $region75: #{double_conv.4} parent=5 // pred_region
      %s6241 = ssub.s32 %s13, 2
      // Predicated region
      $region77: #{double_conv.4} parent=75 // pred_check
        %p6242 = pneg %p197
      $region78: #{double_conv.4} parent=75 // pred_check_branch
        %6244 = sbr.rel (%p6242) target = $region80
      $region79: #{double_conv.4} parent=75 // pred_region
        %s6245 = smul.u32 16, %s28
        %p6246 = scmp.lt.s32.totalorder %s26, 1
        %s6247 = scalar_select %p6246, %s26, 1
        %p6248 = scmp.lt.s32.totalorder %s6245, 15
        %s6249 = scalar_select %p6248, %s6245, 15
        %p6250 = scmp.lt.s32.totalorder %s27, 0
        %s6251 = scalar_select %p6250, %s27, 0
        %s6252 = smul.addr %s6249, 2
        %s6253 = sadd.s32 %s6251, %s6252
        %s6254 = smul.addr %s6247, 32
        %s6255 = sadd.s32 %s6253, %s6254
        %s6256 = smul.addr %s6255, 4
        %s6257 = scalar_lea.vmem %s5, %s6256
      $region80: #{double_conv.4} parent=75 // pred_fallthru
        _
      // Predicated region
      $region81: #{double_conv.4} parent=75 // pred_check
        %p6258 = pneg %p225
      $region82: #{double_conv.4} parent=75 // pred_check_branch
        %6260 = sbr.rel (%p6258) target = $region84
      $region83: #{double_conv.4} parent=75 // pred_region
        %p6261 = scmp.lt.s32.totalorder %s26, 1
        %s6262 = scalar_select %p6261, %s26, 1
        %p6263 = scmp.lt.s32.totalorder %s27, 0
        %s6264 = scalar_select %p6263, %s27, 0
        %s6265 = sadd.s32 %s6264, %s6262
        %s6266 = smul.addr %s6265, 2
        %s6267 = scalar_lea.vmem %s6, %s6266
      $region84: #{double_conv.4} parent=75 // pred_fallthru
        _
    $region76: #{double_conv.4} parent=5 // pred_fallthru
      _
  $region6: #{double_conv.4} parent=0 // loop_footer
    %s17 = sadd.s32 1, %s13
  $region7: #{double_conv.4} parent=0 // loop_footer_branch
    %12 = sbr.rel target = $region3
  $region8: #{double_conv.4} parent=0 // loop_exit
    _

</llo_original>
